<compile_context>
chip_gen: v7x
topology: tpu7x:2x2x1
jax: 0.10.0
libtpu: 0.0.40
codegen_flags: <defaults>
</compile_context>

<pallas_src>
import functools

import jax
import jax.numpy as jnp
import numpy as np
from jax.experimental import pallas as pl
from jax.experimental.pallas import tpu as pltpu


# ----------------------------------------------------------------------- layouts
def _pad128(n):
    return ((n + 127) // 128) * 128


def _pad8(n):
    return ((n + 7) // 8) * 8


def _h0f_layout(H, D):
    """Fused h0-driven weight columns:
    [W_hh_i | W_hh_f | W_hh_g | W_hh_o | h0_fc | h1_fc | h2_fc_lstm(h-part)],
    each block padded to a 128-lane boundary."""
    g = _pad128(H)
    offs = {'i': 0, 'f': g, 'g': 2 * g, 'o': 3 * g,
            'h0fc': 4 * g,
            'h1fc': 4 * g + _pad128(D),
            'cval': 4 * g + _pad128(D) + _pad128(H)}
    width = offs['cval'] + _pad128(H)
    return offs, width


def _inf_layout(H, D):
    """Fused input-side weight columns (rows = [proj_pre(D); w_img(D); w_ctx(H)]):
    [W_ih_i | W_ih_f | W_ih_g | W_ih_o | h2_fc_lstm(img-part) | logit_fc(ctx-part)]."""
    g = _pad128(H)
    offs = {'i': 0, 'f': g, 'g': 2 * g, 'o': 3 * g,
            'cval': 4 * g,
            'htc': 4 * g + _pad128(H)}
    width = offs['htc'] + _pad128(D)
    return offs, width


def _const_layout(H, D, L):
    """Constant slab: row 0 = packed biases / critic weight, rows 0:L = pe table.
    Every block starts at a 128-lane boundary."""
    _, h0f_w = _h0f_layout(H, D)
    offs = {}
    offs['bh0f'] = 0
    offs['bmlp'] = h0f_w
    offs['blogit'] = offs['bmlp'] + _pad128(D)
    offs['bcrit'] = offs['blogit'] + _pad128(D)
    offs['wc_ctx'] = offs['bcrit'] + 128
    offs['wc_h'] = offs['wc_ctx'] + _pad128(L)
    offs['pe'] = offs['wc_h'] + _pad128(H)
    width = offs['pe'] + _pad128(H)
    rows = _pad8(max(L, 1))
    return offs, width, rows


# ------------------------------------------------------------------------ kernel
def self_monitoring_kernel(step_ref, ctx_ref, cmask_ref, hc0_ref,
                           w_mlp_ref, w_h0f_ref, w_inf_ref, w_lh_ref, const_ref,
                           out_ref, h_scr, c_scr, *, n_nav, mrow):
    f32 = jnp.float32
    NEG = jnp.float32(-1e30)
    B, L, H = ctx_ref.shape
    D = w_mlp_ref.shape[1]
    N = n_nav
    t = pl.program_id(0)

    h_offs, h0f_w = _h0f_layout(H, D)
    i_offs, _ = _inf_layout(H, D)
    c_offs, _, _ = _const_layout(H, D, L)

    # ---- recurrent carry: initialize from (h_0, c_0) on the first timestep only
    @pl.when(t == 0)
    def _():
        h_scr[...] = hc0_ref[:, 0:H]
        c_scr[...] = hc0_ref[:, H:2 * H]

    h0 = h_scr[...]
    c0 = c_scr[...]

    # ---- constants (biases / critic weights / positional table), 128-aligned slices
    b_h0f = const_ref[0:1, c_offs['bh0f']:c_offs['bh0f'] + h0f_w]
    b_mlp = const_ref[0:1, c_offs['bmlp']:c_offs['bmlp'] + D]
    b_logit = const_ref[0:1, c_offs['blogit']:c_offs['blogit'] + D]
    b_crit = const_ref[0:1, c_offs['bcrit']:c_offs['bcrit'] + 1]
    w_crit_ctx = const_ref[0:1, c_offs['wc_ctx']:c_offs['wc_ctx'] + L]
    w_crit_h = const_ref[0:1, c_offs['wc_h']:c_offs['wc_h'] + H]
    pe = const_ref[0:L, c_offs['pe']:c_offs['pe'] + H]                  # (L, H)

    # ---- projection MLP (Linear + ReLU) over [navigable_feat ; pre_feat] (one matmul)
    feats = step_ref[0:mrow, :]                                         # zero-padded rows
    proj_all = jnp.dot(feats, w_mlp_ref[...], preferred_element_type=f32) + b_mlp
    proj_all = jnp.maximum(proj_all, 0.0)
    nav_mask = step_ref[mrow:mrow + B, 0:N]                             # (B, N)
    proj_nav = proj_all[0:B * N, :].reshape(B, N, D) * nav_mask[:, :, None]
    proj_pre = proj_all[B * N:B * N + B, :]                             # (B, D)

    # ---- positional encoding on ctx (dropout = identity)
    pctx = ctx_ref[...] + pe[None, :, :]                                # (B, L, H)

    # ---- ONE fused matmul for everything driven by h_0 (gate/bias blocks 128-aligned)
    h0_out = jnp.dot(h0, w_h0f_ref[...], preferred_element_type=f32) + b_h0f
    h0fc = h0_out[:, h_offs['h0fc']:h_offs['h0fc'] + D]
    h1fc = h0_out[:, h_offs['h1fc']:h_offs['h1fc'] + H]

    # ---- soft attention over the instruction (ctx)
    ctx_scores = jnp.sum(pctx * h1fc[:, None, :], axis=2)               # (B, L)
    ctx_scores = jnp.where(cmask_ref[...] > 0, ctx_scores, NEG)
    ctx_scores = ctx_scores - jnp.max(ctx_scores, axis=1, keepdims=True)
    ctx_e = jnp.exp(ctx_scores)
    ctx_attn = ctx_e / jnp.sum(ctx_e, axis=1, keepdims=True)
    weighted_ctx = jnp.sum(ctx_attn[:, :, None] * pctx, axis=1)         # (B, H)

    # ---- soft attention over navigable directions
    img_scores = jnp.sum(proj_nav * h0fc[:, None, :], axis=2)           # (B, N)
    img_scores = jnp.where(nav_mask > 0, img_scores, NEG)
    img_scores = img_scores - jnp.max(img_scores, axis=1, keepdims=True)
    img_e = jnp.exp(img_scores)
    img_attn = img_e / jnp.sum(img_e, axis=1, keepdims=True)
    weighted_img = jnp.sum(img_attn[:, :, None] * proj_nav, axis=1)     # (B, D)

    # ---- ONE fused input-side matmul on concat([proj_pre, weighted_img, weighted_ctx])
    cat_in = jnp.concatenate([proj_pre, weighted_img, weighted_ctx], axis=1)
    in_out = jnp.dot(cat_in, w_inf_ref[...], preferred_element_type=f32)

    # ---- LSTMCell (PyTorch gate order i, f, g, o); gate biases already in h0_out
    def gate(name):
        return (h0_out[:, h_offs[name]:h_offs[name] + H]
                + in_out[:, i_offs[name]:i_offs[name] + H])

    i_g = jax.nn.sigmoid(gate('i'))
    f_g = jax.nn.sigmoid(gate('f'))
    g_g = jnp.tanh(gate('g'))
    o_g = jax.nn.sigmoid(gate('o'))
    c1 = f_g * c0 + i_g * g_g
    h1 = o_g * jnp.tanh(c1)
    h_scr[...] = h1
    c_scr[...] = c1

    # ---- action logits: logit_fc(cat(weighted_ctx, h1)) . proj_nav
    h_tilde = (in_out[:, i_offs['htc']:i_offs['htc'] + D]
               + jnp.dot(h1, w_lh_ref[...], preferred_element_type=f32) + b_logit)
    logit = jnp.sum(proj_nav * h_tilde[:, None, :], axis=2)             # (B, N)

    # ---- progress-monitor value head (critic = Linear + Tanh)
    cval = (h0_out[:, h_offs['cval']:h_offs['cval'] + H]
            + in_out[:, i_offs['cval']:i_offs['cval'] + H])             # h2_fc_lstm(cat(h0, w_img))
    h1_value = jax.nn.sigmoid(cval) * jnp.tanh(c1)
    value = jnp.tanh(jnp.sum(ctx_attn * w_crit_ctx, axis=1, keepdims=True)
                     + jnp.sum(h1_value * w_crit_h, axis=1, keepdims=True)
                     + b_crit)                                          # (B, 1)

    # ---- single lane-dense output store:
    #      [h1 | c1 | weighted_ctx | img_attn | ctx_attn | logit | value | pad]
    K = 3 * H + 2 * N + L + 1
    parts = [h1, c1, weighted_ctx, img_attn, ctx_attn, logit, value]
    pad = out_ref.shape[1] - K
    if pad > 0:
        parts.append(jnp.zeros((B, pad), f32))
    out_ref[...] = jnp.concatenate(parts, axis=1)


# ------------------------------------------------------------------------ params
def positional_encoding_table(max_len, d_model):
    position = np.arange(max_len, dtype=np.float32)[:, None]
    div_term = np.exp(np.arange(0, d_model, 2, dtype=np.float32)
                      * (-np.log(10000.0) / d_model))
    pe = np.zeros((max_len, d_model), np.float32)
    pe[:, 0::2] = np.sin(position * div_term)
    pe[:, 1::2] = np.cos(position * div_term)
    return jnp.asarray(pe)


def init_params(key, F, D, H, L):
    """Deterministic PyTorch-style synthetic weights, stored in x @ W layout."""
    ks = jax.random.split(key, 16)

    def u(k, shape, fan_in):
        bound = 1.0 / np.sqrt(fan_in)
        return jax.random.uniform(k, shape, jnp.float32, -bound, bound)

    p = {}
    p['w_mlp'] = u(ks[0], (F, D), F);            p['b_mlp'] = u(ks[1], (1, D), F)
    p['w_h0'] = u(ks[2], (H, D), H);             p['b_h0'] = u(ks[3], (1, D), H)
    p['w_h1'] = u(ks[4], (H, H), H);             p['b_h1'] = u(ks[5], (1, H), H)
    p['w_ih'] = u(ks[6], (2 * D + H, 4 * H), H); p['b_ih'] = u(ks[7], (1, 4 * H), H)
    p['w_hh'] = u(ks[8], (H, 4 * H), H);         p['b_hh'] = u(ks[9], (1, 4 * H), H)
    p['w_logit'] = u(ks[10], (2 * H, D), 2 * H); p['b_logit'] = u(ks[11], (1, D), 2 * H)
    p['w_h2'] = u(ks[12], (H + D, H), H + D);    p['b_h2'] = u(ks[13], (1, H), H + D)
    p['w_crit'] = u(ks[14], (1, L + H), L + H);  p['b_crit'] = u(ks[15], (1, 1), L + H)
    return p


def pack_params(p, F, D, H, L):
    """One-time host-side fusion: 128-lane-aligned fused weights + one constant slab."""
    gates = ('i', 'f', 'g', 'o')
    w_h2_h, w_h2_img = p['w_h2'][:H], p['w_h2'][H:]
    w_logit_ctx, w_logit_h = p['w_logit'][:H], p['w_logit'][H:]

    h_offs, h0f_w = _h0f_layout(H, D)
    w_h0f = jnp.zeros((H, h0f_w), jnp.float32)
    for gi, g in enumerate(gates):
        w_h0f = w_h0f.at[:, h_offs[g]:h_offs[g] + H].set(p['w_hh'][:, gi * H:(gi + 1) * H])
    w_h0f = w_h0f.at[:, h_offs['h0fc']:h_offs['h0fc'] + D].set(p['w_h0'])
    w_h0f = w_h0f.at[:, h_offs['h1fc']:h_offs['h1fc'] + H].set(p['w_h1'])
    w_h0f = w_h0f.at[:, h_offs['cval']:h_offs['cval'] + H].set(w_h2_h)

    i_offs, inf_w = _inf_layout(H, D)
    w_inf = jnp.zeros((2 * D + H, inf_w), jnp.float32)
    for gi, g in enumerate(gates):
        w_inf = w_inf.at[:, i_offs[g]:i_offs[g] + H].set(p['w_ih'][:, gi * H:(gi + 1) * H])
    w_inf = w_inf.at[D:2 * D, i_offs['cval']:i_offs['cval'] + H].set(w_h2_img)
    w_inf = w_inf.at[2 * D:, i_offs['htc']:i_offs['htc'] + D].set(w_logit_ctx)

    c_offs, c_w, c_r = _const_layout(H, D, L)
    const = jnp.zeros((c_r, c_w), jnp.float32)
    b_gate = p['b_ih'] + p['b_hh']
    for gi, g in enumerate(gates):
        const = const.at[0:1, c_offs['bh0f'] + h_offs[g]:
                              c_offs['bh0f'] + h_offs[g] + H].set(b_gate[:, gi * H:(gi + 1) * H])
    const = const.at[0:1, c_offs['bh0f'] + h_offs['h0fc']:
                          c_offs['bh0f'] + h_offs['h0fc'] + D].set(p['b_h0'])
    const = const.at[0:1, c_offs['bh0f'] + h_offs['h1fc']:
                          c_offs['bh0f'] + h_offs['h1fc'] + H].set(p['b_h1'])
    const = const.at[0:1, c_offs['bh0f'] + h_offs['cval']:
                          c_offs['bh0f'] + h_offs['cval'] + H].set(p['b_h2'])
    const = const.at[0:1, c_offs['bmlp']:c_offs['bmlp'] + D].set(p['b_mlp'])
    const = const.at[0:1, c_offs['blogit']:c_offs['blogit'] + D].set(p['b_logit'])
    const = const.at[0:1, c_offs['bcrit']:c_offs['bcrit'] + 1].set(p['b_crit'])
    const = const.at[0:1, c_offs['wc_ctx']:c_offs['wc_ctx'] + L].set(p['w_crit'][:, :L])
    const = const.at[0:1, c_offs['wc_h']:c_offs['wc_h'] + H].set(p['w_crit'][:, L:])
    const = const.at[0:L, c_offs['pe']:c_offs['pe'] + H].set(positional_encoding_table(L, H))

    return {'w_mlp': p['w_mlp'], 'w_h0f': w_h0f, 'w_inf': w_inf,
            'w_logit_h': w_logit_h, 'const': const}


# -------------------------------------------------------------------------- glue
@jax.jit
def self_monitoring_rollout(packed, navigable_feat_seq, pre_feat_seq, navigable_mask_seq,
                            h_0, c_0, ctx, ctx_mask):
    """Runs T decoder steps in ONE pallas_call; each step == the PyTorch forward."""
    T, B, N, F = navigable_feat_seq.shape
    L = ctx.shape[1]
    H = h_0.shape[1]
    D = packed['w_mlp'].shape[1]

    # per-step lane-dense slab: rows [nav feats (B*N) | pre_feat (B) | pad | mask (B)]
    mrow = _pad8(B * N + B)
    rp = mrow + _pad8(B)
    step = jnp.zeros((T, rp, F), jnp.float32)
    step = step.at[:, 0:B * N, :].set(navigable_feat_seq.reshape(T, B * N, F))
    step = step.at[:, B * N:B * N + B, :].set(pre_feat_seq)
    step = step.at[:, mrow:mrow + B, 0:N].set(navigable_mask_seq)

    hc0 = jnp.concatenate([h_0, c_0], axis=1)                           # (B, 2H)

    out_w = _pad128(3 * H + 2 * N + L + 1)
    _, h0f_w = _h0f_layout(H, D)
    _, inf_w = _inf_layout(H, D)
    _, c_w, c_r = _const_layout(H, D, L)

    flops_step = 2 * (mrow * F * D + B * H * h0f_w + B * (2 * D + H) * inf_w + B * H * D) \
        + 10 * B * (L * H + N * D)
    transc_step = B * (L + N + 8 * H + 1)
    bytes_once = 4 * (F * D + H * h0f_w + (2 * D + H) * inf_w + H * D
                      + c_r * c_w + B * L * H + B * L + 2 * B * H)
    bytes_step = 4 * (rp * F + B * out_w)

    out = pl.pallas_call(
        functools.partial(self_monitoring_kernel, n_nav=N, mrow=mrow),
        out_shape=jax.ShapeDtypeStruct((T, B, out_w), jnp.float32),
        grid=(T,),
        in_specs=[
            pl.BlockSpec((None, rp, F), lambda t: (t, 0, 0)),           # per-step slab
            pl.BlockSpec((B, L, H), lambda t: (0, 0, 0)),               # ctx (resident)
            pl.BlockSpec((B, L), lambda t: (0, 0)),                     # ctx_mask (resident)
            pl.BlockSpec((B, 2 * H), lambda t: (0, 0)),                 # h_0 | c_0 (resident)
            pl.BlockSpec((F, D), lambda t: (0, 0)),                     # proj MLP weight
            pl.BlockSpec((H, h0f_w), lambda t: (0, 0)),                 # fused h0-driven weight
            pl.BlockSpec((2 * D + H, inf_w), lambda t: (0, 0)),         # fused input-side weight
            pl.BlockSpec((H, D), lambda t: (0, 0)),                     # logit_fc h-part
            pl.BlockSpec((c_r, c_w), lambda t: (0, 0)),                 # biases/critic/pe slab
        ],
        out_specs=pl.BlockSpec((None, B, out_w), lambda t: (t, 0, 0)),
        scratch_shapes=[pltpu.VMEM((B, H), jnp.float32),                # h carry
                        pltpu.VMEM((B, H), jnp.float32)],               # c carry
        compiler_params=pltpu.CompilerParams(dimension_semantics=("arbitrary",)),
        cost_estimate=pl.CostEstimate(flops=T * flops_step,
                                      transcendentals=T * transc_step,
                                      bytes_accessed=bytes_once + T * bytes_step),
    )(step, ctx, ctx_mask, hc0, packed['w_mlp'], packed['w_h0f'],
      packed['w_inf'], packed['w_logit_h'], packed['const'])

    h_1 = out[:, :, 0:H]
    c_1 = out[:, :, H:2 * H]
    weighted_ctx = out[:, :, 2 * H:3 * H]
    img_attn = out[:, :, 3 * H:3 * H + N]
    ctx_attn = out[:, :, 3 * H + N:3 * H + N + L]
    logit = out[:, :, 3 * H + N + L:3 * H + 2 * N + L]
    value = out[:, :, 3 * H + 2 * N + L:3 * H + 2 * N + L + 1]
    return h_1, c_1, weighted_ctx, img_attn, ctx_attn, logit, value


def self_monitoring_forward(packed, img_feat, navigable_feat, pre_feat, question,
                            h_0, c_0, ctx, pre_ctx_attend,
                            navigable_index=None, ctx_mask=None, max_navigable=8):
    """Single decoder step with the original PyTorch forward() signature (T = 1)."""
    del question, pre_ctx_attend                     # unused by the PyTorch forward too
    B = img_feat.shape[0]
    N = max_navigable
    L = ctx.shape[1]
    # create_mask(batch, max_navigable, index_length)  (host-side, data-dependent lists)
    index_length = np.array([len(idx) + 1 for idx in navigable_index], dtype=np.int32)
    navigable_mask = jnp.asarray(
        (np.arange(N)[None, :] < index_length[:, None]).astype(np.float32))
    if ctx_mask is None:
        ctx_mask = jnp.ones((B, L), jnp.float32)
    outs = self_monitoring_rollout(packed, navigable_feat[None], pre_feat[None],
                                   navigable_mask[None], h_0, c_0, ctx,
                                   jnp.asarray(ctx_mask, jnp.float32))
    h_1, c_1, weighted_ctx, img_attn, ctx_attn, logit, value = (o[0] for o in outs)
    return (h_1, c_1, weighted_ctx, img_attn, ctx_attn, logit, value, navigable_mask)


# -------------------------------------------------------------- pure-JAX reference
def reference_rollout(p, nav_feat_seq, pre_feat_seq, nav_mask_seq, h_0, c_0, ctx, ctx_mask):
    T, B, N, F = nav_feat_seq.shape
    H = h_0.shape[1]
    L = ctx.shape[1]
    pctx = ctx + positional_encoding_table(L, H)[None]

    def mlp(x):
        return jnp.maximum(x @ p['w_mlp'] + p['b_mlp'], 0.0)

    def soft_attn(hq, context, mask):
        scores = jnp.einsum('bld,bd->bl', context, hq)
        scores = jnp.where(mask > 0, scores, -1e30)
        attn = jax.nn.softmax(scores, axis=1)
        return jnp.einsum('bl,bld->bd', attn, context), attn

    h, c = h_0, c_0
    outs = []
    for t in range(T):
        nav_mask = nav_mask_seq[t]
        proj_nav = mlp(nav_feat_seq[t].reshape(B * N, F)).reshape(B, N, -1) * nav_mask[:, :, None]
        proj_pre = mlp(pre_feat_seq[t])
        weighted_ctx, ctx_attn = soft_attn(h @ p['w_h1'] + p['b_h1'], pctx, ctx_mask)
        weighted_img, img_attn = soft_attn(h @ p['w_h0'] + p['b_h0'], proj_nav, nav_mask)
        cat_in = jnp.concatenate([proj_pre, weighted_img, weighted_ctx], axis=1)
        gates = cat_in @ p['w_ih'] + p['b_ih'] + h @ p['w_hh'] + p['b_hh']
        i = jax.nn.sigmoid(gates[:, 0:H]); f = jax.nn.sigmoid(gates[:, H:2 * H])
        g = jnp.tanh(gates[:, 2 * H:3 * H]); o = jax.nn.sigmoid(gates[:, 3 * H:4 * H])
        c1 = f * c + i * g
        h1 = o * jnp.tanh(c1)
        h_tilde = jnp.concatenate([weighted_ctx, h1], axis=1) @ p['w_logit'] + p['b_logit']
        logit = jnp.einsum('bnd,bd->bn', proj_nav, h_tilde)
        cval = jnp.concatenate([h, weighted_img], axis=1) @ p['w_h2'] + p['b_h2']
        h1_value = jax.nn.sigmoid(cval) * jnp.tanh(c1)
        value = jnp.tanh(jnp.concatenate([ctx_attn, h1_value], axis=1) @ p['w_crit'].T
                         + p['b_crit'])
        outs.append((h1, c1, weighted_ctx, img_attn, ctx_attn, logit, value))
        h, c = h1, c1
    return tuple(jnp.stack([o[k] for o in outs], axis=0) for k in range(7))


# --------------------------------------------------------------------------- main
if __name__ == "__main__":
    jax.config.update("jax_default_matmul_precision", "highest")

    B, NUM_IMGS, F = 2, 36, 64      # batch, panorama views, img_feat_input_dim
    N, D, H, L = 8, 32, 32, 8       # max_navigable, img_fc_dim[-1], rnn_hidden, max_len
    T = 4                           # decoder timesteps fused into one pallas_call

    key = jax.random.PRNGKey(0)
    ks = jax.random.split(key, 8)
    navigable_feat_seq = jax.random.normal(ks[0], (T, B, N, F), jnp.float32)
    pre_feat_seq = jax.random.normal(ks[1], (T, B, F), jnp.float32)
    h_0 = jax.random.normal(ks[2], (B, H), jnp.float32)
    c_0 = jax.random.normal(ks[3], (B, H), jnp.float32)
    ctx = jax.random.normal(ks[4], (B, L, H), jnp.float32)
    img_feat = jax.random.normal(ks[5], (B, NUM_IMGS, F), jnp.float32)
    question = jax.random.normal(ks[6], (B, H), jnp.float32)
    pre_ctx_attend = jnp.zeros((B, H), jnp.float32)
    ctx_mask = jnp.asarray(np.array([[1, 1, 1, 1, 1, 1, 0, 0],
                                     [1, 1, 1, 1, 1, 1, 1, 1]], np.float32))

    # per-step navigable_index (list-of-lists per batch element, host-side data)
    navigable_index_seq = [
        [[0, 1, 2], [0, 1, 2, 3, 4]],
        [[0], [0, 1]],
        [[0, 1, 2, 3, 4, 5, 6], [0]],
        [[0, 1], [0, 1, 2]],
    ]
    lengths = np.array([[len(idx) + 1 for idx in step] for step in navigable_index_seq],
                       np.int32)
    navigable_mask_seq = jnp.asarray(
        (np.arange(N)[None, None, :] < lengths[:, :, None]).astype(np.float32))

    raw_params = init_params(jax.random.PRNGKey(42), F, D, H, L)
    packed = pack_params(raw_params, F, D, H, L)     # one-time host-side fusion

    # fused T-step rollout: one launch, weights resident, h/c carried in VMEM scratch
    outs = jax.block_until_ready(
        self_monitoring_rollout(packed, navigable_feat_seq, pre_feat_seq,
                                navigable_mask_seq, h_0, c_0, ctx, ctx_mask))

    refs = reference_rollout(raw_params, navigable_feat_seq, pre_feat_seq,
                             navigable_mask_seq, h_0, c_0, ctx, ctx_mask)
    for got, want in zip(outs, refs):
        np.testing.assert_allclose(np.asarray(got), np.asarray(want), rtol=2e-3, atol=2e-3)

    # original single-step module interface (T = 1) remains available and identical
    single = self_monitoring_forward(packed, img_feat, navigable_feat_seq[0],
                                     pre_feat_seq[0], question, h_0, c_0, ctx,
                                     pre_ctx_attend,
                                     navigable_index=navigable_index_seq[0],
                                     ctx_mask=ctx_mask, max_navigable=N)
    single = jax.block_until_ready(single)
    for got, want in zip(single[:7], [r[0] for r in refs]):
        np.testing.assert_allclose(np.asarray(got), np.asarray(want), rtol=2e-3, atol=2e-3)

    print("KERNEL_OK")
</pallas_src>

<mosaic_0001>
module attributes {stable_mosaic.version = 11 : i64} {
  func.func @self_monitoring_kernel(%arg0: i32, %arg1: memref<1x32x64xf32, #tpu.memory_space<vmem>>, %arg2: memref<2x8x32xf32, #tpu.memory_space<vmem>>, %arg3: memref<2x8xf32, #tpu.memory_space<vmem>>, %arg4: memref<2x64xf32, #tpu.memory_space<vmem>>, %arg5: memref<64x32xf32, #tpu.memory_space<vmem>>, %arg6: memref<32x896xf32, #tpu.memory_space<vmem>>, %arg7: memref<96x768xf32, #tpu.memory_space<vmem>>, %arg8: memref<32x32xf32, #tpu.memory_space<vmem>>, %arg9: memref<8x1664xf32, #tpu.memory_space<vmem>>, %arg10: memref<1x2x128xf32, #tpu.memory_space<vmem>>, %arg11: memref<2x32xf32, #tpu.memory_space<vmem>>, %arg12: memref<2x32xf32, #tpu.memory_space<vmem>>) attributes {dimension_semantics = [#tpu.dimension_semantics<arbitrary>], iteration_bounds = array<i64: 4>, scalar_prefetch = 0 : i64, scratch_operands = 2 : i64, tpu.core_type = #tpu.core_type<tc>, window_params = [{transform_indices = @transform_0, window_bounds = array<i64: 1, 32, 64>}, {pipeline_mode = #tpu.pipeline_mode<synchronous>, transform_indices = @transform_1, window_bounds = array<i64: 2, 8, 32>}, {pipeline_mode = #tpu.pipeline_mode<synchronous>, transform_indices = @transform_2, window_bounds = array<i64: 2, 8>}, {pipeline_mode = #tpu.pipeline_mode<synchronous>, transform_indices = @transform_3, window_bounds = array<i64: 2, 64>}, {pipeline_mode = #tpu.pipeline_mode<synchronous>, transform_indices = @transform_4, window_bounds = array<i64: 64, 32>}, {pipeline_mode = #tpu.pipeline_mode<synchronous>, transform_indices = @transform_5, window_bounds = array<i64: 32, 896>}, {pipeline_mode = #tpu.pipeline_mode<synchronous>, transform_indices = @transform_6, window_bounds = array<i64: 96, 768>}, {pipeline_mode = #tpu.pipeline_mode<synchronous>, transform_indices = @transform_7, window_bounds = array<i64: 32, 32>}, {pipeline_mode = #tpu.pipeline_mode<synchronous>, transform_indices = @transform_8, window_bounds = array<i64: 8, 1664>}, {transform_indices = @transform_9, window_bounds = array<i64: 1, 2, 128>}]} {
    %c0_i32 = arith.constant 0 : i32
    %0 = arith.cmpi eq, %arg0, %c0_i32 : i32
    %1 = arith.extui %0 : i1 to i32
    %c0_i32_0 = arith.constant 0 : i32
    %2 = arith.cmpi ne, %1, %c0_i32_0 : i32
    scf.if %2 {
      %c0_61 = arith.constant 0 : index
      %c0_62 = arith.constant 0 : index
      %156 = vector.load %arg4[%c0_61, %c0_62] : memref<2x64xf32, #tpu.memory_space<vmem>>, vector<2x32xf32>
      %c0_63 = arith.constant 0 : index
      %c0_64 = arith.constant 0 : index
      %157 = vector.load %arg11[%c0_63, %c0_64] : memref<2x32xf32, #tpu.memory_space<vmem>>, vector<2x32xf32>
      tpu.vector_store %arg11[%c0_63, %c0_64], %156 {strides = array<i32>} : memref<2x32xf32, #tpu.memory_space<vmem>>, vector<2x32xf32>,
      %c0_65 = arith.constant 0 : index
      %c32 = arith.constant 32 : index
      %158 = vector.load %arg4[%c0_65, %c32] : memref<2x64xf32, #tpu.memory_space<vmem>>, vector<2x32xf32>
      %c0_66 = arith.constant 0 : index
      %c0_67 = arith.constant 0 : index
      %159 = vector.load %arg12[%c0_66, %c0_67] : memref<2x32xf32, #tpu.memory_space<vmem>>, vector<2x32xf32>
      tpu.vector_store %arg12[%c0_66, %c0_67], %158 {strides = array<i32>} : memref<2x32xf32, #tpu.memory_space<vmem>>, vector<2x32xf32>,
    } else {
    }
    %c0 = arith.constant 0 : index
    %c0_1 = arith.constant 0 : index
    %3 = vector.load %arg11[%c0, %c0_1] : memref<2x32xf32, #tpu.memory_space<vmem>>, vector<2x32xf32>
    %c0_2 = arith.constant 0 : index
    %c0_3 = arith.constant 0 : index
    %4 = vector.load %arg12[%c0_2, %c0_3] : memref<2x32xf32, #tpu.memory_space<vmem>>, vector<2x32xf32>
    %c0_4 = arith.constant 0 : index
    %c0_5 = arith.constant 0 : index
    %5 = vector.load %arg9[%c0_4, %c0_5] : memref<8x1664xf32, #tpu.memory_space<vmem>>, vector<1x896xf32>
    %c0_6 = arith.constant 0 : index
    %c896 = arith.constant 896 : index
    %6 = vector.load %arg9[%c0_6, %c896] : memref<8x1664xf32, #tpu.memory_space<vmem>>, vector<1x32xf32>
    %c0_7 = arith.constant 0 : index
    %c1024 = arith.constant 1024 : index
    %7 = vector.load %arg9[%c0_7, %c1024] : memref<8x1664xf32, #tpu.memory_space<vmem>>, vector<1x32xf32>
    %c0_8 = arith.constant 0 : index
    %c1152 = arith.constant 1152 : index
    %8 = vector.load %arg9[%c0_8, %c1152] : memref<8x1664xf32, #tpu.memory_space<vmem>>, vector<1x1xf32>
    %c0_9 = arith.constant 0 : index
    %c1280 = arith.constant 1280 : index
    %9 = vector.load %arg9[%c0_9, %c1280] : memref<8x1664xf32, #tpu.memory_space<vmem>>, vector<1x8xf32>
    %c0_10 = arith.constant 0 : index
    %c1408 = arith.constant 1408 : index
    %10 = vector.load %arg9[%c0_10, %c1408] : memref<8x1664xf32, #tpu.memory_space<vmem>>, vector<1x32xf32>
    %c0_11 = arith.constant 0 : index
    %c1536 = arith.constant 1536 : index
    %11 = vector.load %arg9[%c0_11, %c1536] : memref<8x1664xf32, #tpu.memory_space<vmem>>, vector<8x32xf32>
    %c0_12 = arith.constant 0 : index
    %c0_13 = arith.constant 0 : index
    %c0_14 = arith.constant 0 : index
    %12 = vector.load %arg1[%c0_12, %c0_13, %c0_14] : memref<1x32x64xf32, #tpu.memory_space<vmem>>, vector<1x24x64xf32>
    %13 = vector.shape_cast %12 : vector<1x24x64xf32> to vector<24x64xf32>
    %c0_15 = arith.constant 0 : index
    %c0_16 = arith.constant 0 : index
    %14 = vector.load %arg5[%c0_15, %c0_16] : memref<64x32xf32, #tpu.memory_space<vmem>>, vector<64x32xf32>
    %cst = arith.constant dense<0.000000e+00> : vector<24x32xf32>
    %15 = tpu.matmul %13, %14, %cst {dimension_numbers = #tpu.dot_dimension_numbers<[1], [0], [0], [1], [0, 0, 1, 1], [], []>, precision = #tpu.contract_precision<fp32>} : vector<24x64xf32>, vector<64x32xf32>, vector<24x32xf32> -> vector<24x32xf32>
    %16 = vector.broadcast %6 : vector<1x32xf32> to vector<24x32xf32>
    %17 = arith.addf %15, %16 : vector<24x32xf32>
    %cst_17 = arith.constant 0.000000e+00 : f32
    %18 = vector.broadcast %cst_17 : f32 to vector<24x32xf32>
    %19 = arith.maximumf %17, %18 : vector<24x32xf32>
    %c0_18 = arith.constant 0 : index
    %c24 = arith.constant 24 : index
    %c0_19 = arith.constant 0 : index
    %20 = vector.load %arg1[%c0_18, %c24, %c0_19] : memref<1x32x64xf32, #tpu.memory_space<vmem>>, vector<1x2x8xf32>
    %21 = vector.shape_cast %20 : vector<1x2x8xf32> to vector<2x8xf32>
    %22 = vector.extract_strided_slice %19 {offsets = [0, 0], sizes = [16, 32], strides = [1, 1]} : vector<24x32xf32> to vector<16x32xf32>
    %23 = vector.shape_cast %22 : vector<16x32xf32> to vector<2x8x32xf32>
    %24 = vector.shape_cast %21 : vector<2x8xf32> to vector<2x8x1xf32>
    %25 = vector.broadcast %24 : vector<2x8x1xf32> to vector<2x8x32xf32>
    %26 = arith.mulf %23, %25 : vector<2x8x32xf32>
    %27 = vector.extract_strided_slice %19 {offsets = [16, 0], sizes = [2, 32], strides = [1, 1]} : vector<24x32xf32> to vector<2x32xf32>
    %c0_20 = arith.constant 0 : index
    %c0_21 = arith.constant 0 : index
    %c0_22 = arith.constant 0 : index
    %28 = vector.load %arg2[%c0_20, %c0_21, %c0_22] : memref<2x8x32xf32, #tpu.memory_space<vmem>>, vector<2x8x32xf32>
    %29 = vector.shape_cast %11 : vector<8x32xf32> to vector<1x8x32xf32>
    %30 = vector.broadcast %29 : vector<1x8x32xf32> to vector<2x8x32xf32>
    %31 = arith.addf %28, %30 : vector<2x8x32xf32>
    %c0_23 = arith.constant 0 : index
    %c0_24 = arith.constant 0 : index
    %32 = vector.load %arg6[%c0_23, %c0_24] : memref<32x896xf32, #tpu.memory_space<vmem>>, vector<32x896xf32>
    %cst_25 = arith.constant dense<0.000000e+00> : vector<2x896xf32>
    %33 = tpu.matmul %3, %32, %cst_25 {dimension_numbers = #tpu.dot_dimension_numbers<[1], [0], [0], [1], [0, 0, 1, 1], [], []>, precision = #tpu.contract_precision<fp32>} : vector<2x32xf32>, vector<32x896xf32>, vector<2x896xf32> -> vector<2x896xf32>
    %34 = vector.broadcast %5 : vector<1x896xf32> to vector<2x896xf32>
    %35 = arith.addf %33, %34 : vector<2x896xf32>
    %36 = vector.extract_strided_slice %35 {offsets = [0, 512], sizes = [2, 32], strides = [1, 1]} : vector<2x896xf32> to vector<2x32xf32>
    %37 = vector.extract_strided_slice %35 {offsets = [0, 640], sizes = [2, 32], strides = [1, 1]} : vector<2x896xf32> to vector<2x32xf32>
    %38 = vector.shape_cast %37 : vector<2x32xf32> to vector<2x1x32xf32>
    %39 = vector.broadcast %38 : vector<2x1x32xf32> to vector<2x8x32xf32>
    %40 = arith.mulf %31, %39 : vector<2x8x32xf32>
    %cst_26 = arith.constant dense<0.000000e+00> : vector<2x8xf32>
    %41 = vector.multi_reduction <add>, %40, %cst_26 [2] : vector<2x8x32xf32> to vector<2x8xf32>
    %c0_27 = arith.constant 0 : index
    %c0_28 = arith.constant 0 : index
    %42 = vector.load %arg3[%c0_27, %c0_28] : memref<2x8xf32, #tpu.memory_space<vmem>>, vector<2x8xf32>
    %cst_29 = arith.constant 0.000000e+00 : f32
    %43 = vector.broadcast %cst_29 : f32 to vector<2x8xf32>
    %44 = arith.cmpf ogt, %42, %43 : vector<2x8xf32>
    %cst_30 = arith.constant -1.000000e+30 : f32
    %45 = vector.broadcast %cst_30 : f32 to vector<2x8xf32>
    %46 = arith.select %44, %41, %45 : vector<2x8xi1>, vector<2x8xf32>
    %cst_31 = arith.constant dense<0xFF800000> : vector<2xf32>
    %47 = vector.multi_reduction <maximumf>, %46, %cst_31 [1] : vector<2x8xf32> to vector<2xf32>
    %48 = vector.shape_cast %47 : vector<2xf32> to vector<2x1xf32>
    %49 = vector.broadcast %48 : vector<2x1xf32> to vector<2x8xf32>
    %50 = arith.subf %46, %49 : vector<2x8xf32>
    %51 = math.exp %50 : vector<2x8xf32>
    %cst_32 = arith.constant dense<0.000000e+00> : vector<2xf32>
    %52 = vector.multi_reduction <add>, %51, %cst_32 [1] : vector<2x8xf32> to vector<2xf32>
    %53 = vector.shape_cast %52 : vector<2xf32> to vector<2x1xf32>
    %54 = vector.broadcast %53 : vector<2x1xf32> to vector<2x8xf32>
    %55 = arith.divf %51, %54 : vector<2x8xf32>
    %56 = vector.shape_cast %55 : vector<2x8xf32> to vector<2x8x1xf32>
    %57 = vector.broadcast %56 : vector<2x8x1xf32> to vector<2x8x32xf32>
    %58 = arith.mulf %57, %31 : vector<2x8x32xf32>
    %cst_33 = arith.constant dense<0.000000e+00> : vector<2x32xf32>
    %59 = vector.multi_reduction <add>, %58, %cst_33 [1] : vector<2x8x32xf32> to vector<2x32xf32>
    %60 = vector.shape_cast %36 : vector<2x32xf32> to vector<2x1x32xf32>
    %61 = vector.broadcast %60 : vector<2x1x32xf32> to vector<2x8x32xf32>
    %62 = arith.mulf %26, %61 : vector<2x8x32xf32>
    %cst_34 = arith.constant dense<0.000000e+00> : vector<2x8xf32>
    %63 = vector.multi_reduction <add>, %62, %cst_34 [2] : vector<2x8x32xf32> to vector<2x8xf32>
    %cst_35 = arith.constant 0.000000e+00 : f32
    %64 = vector.broadcast %cst_35 : f32 to vector<2x8xf32>
    %65 = arith.cmpf ogt, %21, %64 : vector<2x8xf32>
    %cst_36 = arith.constant -1.000000e+30 : f32
    %66 = vector.broadcast %cst_36 : f32 to vector<2x8xf32>
    %67 = arith.select %65, %63, %66 : vector<2x8xi1>, vector<2x8xf32>
    %cst_37 = arith.constant dense<0xFF800000> : vector<2xf32>
    %68 = vector.multi_reduction <maximumf>, %67, %cst_37 [1] : vector<2x8xf32> to vector<2xf32>
    %69 = vector.shape_cast %68 : vector<2xf32> to vector<2x1xf32>
    %70 = vector.broadcast %69 : vector<2x1xf32> to vector<2x8xf32>
    %71 = arith.subf %67, %70 : vector<2x8xf32>
    %72 = math.exp %71 : vector<2x8xf32>
    %cst_38 = arith.constant dense<0.000000e+00> : vector<2xf32>
    %73 = vector.multi_reduction <add>, %72, %cst_38 [1] : vector<2x8xf32> to vector<2xf32>
    %74 = vector.shape_cast %73 : vector<2xf32> to vector<2x1xf32>
    %75 = vector.broadcast %74 : vector<2x1xf32> to vector<2x8xf32>
    %76 = arith.divf %72, %75 : vector<2x8xf32>
    %77 = vector.shape_cast %76 : vector<2x8xf32> to vector<2x8x1xf32>
    %78 = vector.broadcast %77 : vector<2x8x1xf32> to vector<2x8x32xf32>
    %79 = arith.mulf %78, %26 : vector<2x8x32xf32>
    %cst_39 = arith.constant dense<0.000000e+00> : vector<2x32xf32>
    %80 = vector.multi_reduction <add>, %79, %cst_39 [1] : vector<2x8x32xf32> to vector<2x32xf32>
    %81 = tpu.concatenate %27, %80, %59 in 1 : vector<2x32xf32>, vector<2x32xf32>, vector<2x32xf32> -> vector<2x96xf32>
    %c0_40 = arith.constant 0 : index
    %c0_41 = arith.constant 0 : index
    %82 = vector.load %arg7[%c0_40, %c0_41] : memref<96x768xf32, #tpu.memory_space<vmem>>, vector<96x768xf32>
    %cst_42 = arith.constant dense<0.000000e+00> : vector<2x768xf32>
    %83 = tpu.matmul %81, %82, %cst_42 {dimension_numbers = #tpu.dot_dimension_numbers<[1], [0], [0], [1], [0, 0, 1, 1], [], []>, precision = #tpu.contract_precision<fp32>} : vector<2x96xf32>, vector<96x768xf32>, vector<2x768xf32> -> vector<2x768xf32>
    %84 = vector.extract_strided_slice %35 {offsets = [0, 0], sizes = [2, 32], strides = [1, 1]} : vector<2x896xf32> to vector<2x32xf32>
    %85 = vector.extract_strided_slice %83 {offsets = [0, 0], sizes = [2, 32], strides = [1, 1]} : vector<2x768xf32> to vector<2x32xf32>
    %86 = arith.addf %84, %85 : vector<2x32xf32>
    %87 = arith.negf %86 : vector<2x32xf32>
    %88 = math.exp %87 : vector<2x32xf32>
    %cst_43 = arith.constant 1.000000e+00 : f32
    %89 = vector.broadcast %cst_43 : f32 to vector<2x32xf32>
    %90 = arith.addf %89, %88 : vector<2x32xf32>
    %91 = arith.divf %89, %90 : vector<2x32xf32>
    %92 = vector.extract_strided_slice %35 {offsets = [0, 128], sizes = [2, 32], strides = [1, 1]} : vector<2x896xf32> to vector<2x32xf32>
    %93 = vector.extract_strided_slice %83 {offsets = [0, 128], sizes = [2, 32], strides = [1, 1]} : vector<2x768xf32> to vector<2x32xf32>
    %94 = arith.addf %92, %93 : vector<2x32xf32>
    %95 = arith.negf %94 : vector<2x32xf32>
    %96 = math.exp %95 : vector<2x32xf32>
    %cst_44 = arith.constant 1.000000e+00 : f32
    %97 = vector.broadcast %cst_44 : f32 to vector<2x32xf32>
    %98 = arith.addf %97, %96 : vector<2x32xf32>
    %99 = arith.divf %97, %98 : vector<2x32xf32>
    %100 = vector.extract_strided_slice %35 {offsets = [0, 256], sizes = [2, 32], strides = [1, 1]} : vector<2x896xf32> to vector<2x32xf32>
    %101 = vector.extract_strided_slice %83 {offsets = [0, 256], sizes = [2, 32], strides = [1, 1]} : vector<2x768xf32> to vector<2x32xf32>
    %102 = arith.addf %100, %101 : vector<2x32xf32>
    %103 = math.tanh %102 : vector<2x32xf32>
    %104 = vector.extract_strided_slice %35 {offsets = [0, 384], sizes = [2, 32], strides = [1, 1]} : vector<2x896xf32> to vector<2x32xf32>
    %105 = vector.extract_strided_slice %83 {offsets = [0, 384], sizes = [2, 32], strides = [1, 1]} : vector<2x768xf32> to vector<2x32xf32>
    %106 = arith.addf %104, %105 : vector<2x32xf32>
    %107 = arith.negf %106 : vector<2x32xf32>
    %108 = math.exp %107 : vector<2x32xf32>
    %cst_45 = arith.constant 1.000000e+00 : f32
    %109 = vector.broadcast %cst_45 : f32 to vector<2x32xf32>
    %110 = arith.addf %109, %108 : vector<2x32xf32>
    %111 = arith.divf %109, %110 : vector<2x32xf32>
    %112 = arith.mulf %99, %4 : vector<2x32xf32>
    %113 = arith.mulf %91, %103 : vector<2x32xf32>
    %114 = arith.addf %112, %113 : vector<2x32xf32>
    %115 = math.tanh %114 : vector<2x32xf32>
    %116 = arith.mulf %111, %115 : vector<2x32xf32>
    %c0_46 = arith.constant 0 : index
    %c0_47 = arith.constant 0 : index
    %117 = vector.load %arg11[%c0_46, %c0_47] : memref<2x32xf32, #tpu.memory_space<vmem>>, vector<2x32xf32>
    tpu.vector_store %arg11[%c0_46, %c0_47], %116 {strides = array<i32>} : memref<2x32xf32, #tpu.memory_space<vmem>>, vector<2x32xf32>,
    %c0_48 = arith.constant 0 : index
    %c0_49 = arith.constant 0 : index
    %118 = vector.load %arg12[%c0_48, %c0_49] : memref<2x32xf32, #tpu.memory_space<vmem>>, vector<2x32xf32>
    tpu.vector_store %arg12[%c0_48, %c0_49], %114 {strides = array<i32>} : memref<2x32xf32, #tpu.memory_space<vmem>>, vector<2x32xf32>,
    %119 = vector.extract_strided_slice %83 {offsets = [0, 640], sizes = [2, 32], strides = [1, 1]} : vector<2x768xf32> to vector<2x32xf32>
    %c0_50 = arith.constant 0 : index
    %c0_51 = arith.constant 0 : index
    %120 = vector.load %arg8[%c0_50, %c0_51] : memref<32x32xf32, #tpu.memory_space<vmem>>, vector<32x32xf32>
    %cst_52 = arith.constant dense<0.000000e+00> : vector<2x32xf32>
    %121 = tpu.matmul %116, %120, %cst_52 {dimension_numbers = #tpu.dot_dimension_numbers<[1], [0], [0], [1], [0, 0, 1, 1], [], []>, precision = #tpu.contract_precision<fp32>} : vector<2x32xf32>, vector<32x32xf32>, vector<2x32xf32> -> vector<2x32xf32>
    %122 = arith.addf %119, %121 : vector<2x32xf32>
    %123 = vector.broadcast %7 : vector<1x32xf32> to vector<2x32xf32>
    %124 = arith.addf %122, %123 : vector<2x32xf32>
    %125 = vector.shape_cast %124 : vector<2x32xf32> to vector<2x1x32xf32>
    %126 = vector.broadcast %125 : vector<2x1x32xf32> to vector<2x8x32xf32>
    %127 = arith.mulf %26, %126 : vector<2x8x32xf32>
    %cst_53 = arith.constant dense<0.000000e+00> : vector<2x8xf32>
    %128 = vector.multi_reduction <add>, %127, %cst_53 [2] : vector<2x8x32xf32> to vector<2x8xf32>
    %129 = vector.extract_strided_slice %35 {offsets = [0, 768], sizes = [2, 32], strides = [1, 1]} : vector<2x896xf32> to vector<2x32xf32>
    %130 = vector.extract_strided_slice %83 {offsets = [0, 512], sizes = [2, 32], strides = [1, 1]} : vector<2x768xf32> to vector<2x32xf32>
    %131 = arith.addf %129, %130 : vector<2x32xf32>
    %132 = arith.negf %131 : vector<2x32xf32>
    %133 = math.exp %132 : vector<2x32xf32>
    %cst_54 = arith.constant 1.000000e+00 : f32
    %134 = vector.broadcast %cst_54 : f32 to vector<2x32xf32>
    %135 = arith.addf %134, %133 : vector<2x32xf32>
    %136 = arith.divf %134, %135 : vector<2x32xf32>
    %137 = math.tanh %114 : vector<2x32xf32>
    %138 = arith.mulf %136, %137 : vector<2x32xf32>
    %139 = vector.broadcast %9 : vector<1x8xf32> to vector<2x8xf32>
    %140 = arith.mulf %55, %139 : vector<2x8xf32>
    %cst_55 = arith.constant dense<0.000000e+00> : vector<2xf32>
    %141 = vector.multi_reduction <add>, %140, %cst_55 [1] : vector<2x8xf32> to vector<2xf32>
    %142 = vector.shape_cast %141 : vector<2xf32> to vector<2x1xf32>
    %143 = vector.broadcast %10 : vector<1x32xf32> to vector<2x32xf32>
    %144 = arith.mulf %138, %143 : vector<2x32xf32>
    %cst_56 = arith.constant dense<0.000000e+00> : vector<2xf32>
    %145 = vector.multi_reduction <add>, %144, %cst_56 [1] : vector<2x32xf32> to vector<2xf32>
    %146 = vector.shape_cast %145 : vector<2xf32> to vector<2x1xf32>
    %147 = arith.addf %142, %146 : vector<2x1xf32>
    %148 = vector.broadcast %8 : vector<1x1xf32> to vector<2x1xf32>
    %149 = arith.addf %147, %148 : vector<2x1xf32>
    %150 = math.tanh %149 : vector<2x1xf32>
    %cst_57 = arith.constant 0.000000e+00 : f32
    %151 = vector.broadcast %cst_57 : f32 to vector<2x7xf32>
    %152 = tpu.concatenate %116, %114, %59, %76, %55, %128, %150, %151 in 1 : vector<2x32xf32>, vector<2x32xf32>, vector<2x32xf32>, vector<2x8xf32>, vector<2x8xf32>, vector<2x8xf32>, vector<2x1xf32>, vector<2x7xf32> -> vector<2x128xf32>
    %c0_58 = arith.constant 0 : index
    %c0_59 = arith.constant 0 : index
    %c0_60 = arith.constant 0 : index
    %153 = vector.load %arg10[%c0_58, %c0_59, %c0_60] : memref<1x2x128xf32, #tpu.memory_space<vmem>>, vector<1x2x128xf32>
    %154 = vector.shape_cast %153 : vector<1x2x128xf32> to vector<2x128xf32>
    %155 = vector.shape_cast %152 : vector<2x128xf32> to vector<1x2x128xf32>
    tpu.vector_store %arg10[%c0_58, %c0_59, %c0_60], %155 {strides = array<i32>} : memref<1x2x128xf32, #tpu.memory_space<vmem>>, vector<1x2x128xf32>,
    return
  }
  func.func @transform_0(%arg0: i32) -> (i32, i32, i32) {
    %c0_i32 = arith.constant 0 : i32
    %c0_i32_0 = arith.constant 0 : i32
    %c0_i32_1 = arith.constant 0 : i32
    return %arg0, %c0_i32, %c0_i32_0 : i32, i32, i32
  }
  func.func @transform_1(%arg0: i32) -> (i32, i32, i32) {
    %c0_i32 = arith.constant 0 : i32
    %c0_i32_0 = arith.constant 0 : i32
    %c0_i32_1 = arith.constant 0 : i32
    %c0_i32_2 = arith.constant 0 : i32
    return %c0_i32, %c0_i32_0, %c0_i32_1 : i32, i32, i32
  }
  func.func @transform_2(%arg0: i32) -> (i32, i32) {
    %c0_i32 = arith.constant 0 : i32
    %c0_i32_0 = arith.constant 0 : i32
    %c0_i32_1 = arith.constant 0 : i32
    return %c0_i32, %c0_i32_0 : i32, i32
  }
  func.func @transform_3(%arg0: i32) -> (i32, i32) {
    %c0_i32 = arith.constant 0 : i32
    %c0_i32_0 = arith.constant 0 : i32
    %c0_i32_1 = arith.constant 0 : i32
    return %c0_i32, %c0_i32_0 : i32, i32
  }
  func.func @transform_4(%arg0: i32) -> (i32, i32) {
    %c0_i32 = arith.constant 0 : i32
    %c0_i32_0 = arith.constant 0 : i32
    %c0_i32_1 = arith.constant 0 : i32
    return %c0_i32, %c0_i32_0 : i32, i32
  }
  func.func @transform_5(%arg0: i32) -> (i32, i32) {
    %c0_i32 = arith.constant 0 : i32
    %c0_i32_0 = arith.constant 0 : i32
    %c0_i32_1 = arith.constant 0 : i32
    return %c0_i32, %c0_i32_0 : i32, i32
  }
  func.func @transform_6(%arg0: i32) -> (i32, i32) {
    %c0_i32 = arith.constant 0 : i32
    %c0_i32_0 = arith.constant 0 : i32
    %c0_i32_1 = arith.constant 0 : i32
    return %c0_i32, %c0_i32_0 : i32, i32
  }
  func.func @transform_7(%arg0: i32) -> (i32, i32) {
    %c0_i32 = arith.constant 0 : i32
    %c0_i32_0 = arith.constant 0 : i32
    %c0_i32_1 = arith.constant 0 : i32
    return %c0_i32, %c0_i32_0 : i32, i32
  }
  func.func @transform_8(%arg0: i32) -> (i32, i32) {
    %c0_i32 = arith.constant 0 : i32
    %c0_i32_0 = arith.constant 0 : i32
    %c0_i32_1 = arith.constant 0 : i32
    return %c0_i32, %c0_i32_0 : i32, i32
  }
  func.func @transform_9(%arg0: i32) -> (i32, i32, i32) {
    %c0_i32 = arith.constant 0 : i32
    %c0_i32_0 = arith.constant 0 : i32
    %c0_i32_1 = arith.constant 0 : i32
    return %arg0, %c0_i32, %c0_i32_0 : i32, i32, i32
  }
}

</mosaic_0001>

<llo_original>
// kernel: self_monitoring_rollout.1
$region0: #{self_monitoring_rollout.1}
  #allocation0 [shape = 'u32[]', space=smem, size = 0x4, offset = 0x4, fixed_abs, tag = 'smem constant byte address 0x4 - core index']
  #allocation1 [shape = 'u32[144,128]{1,0:T(1,128)}', space=vmem, size = 0x12000, scoped, tag = 'internal scratch']
  #allocation2 [shape = 'f32[2,32]{1,0:T(2,128)}', space=vmem, size = 0x400, scoped, tag = 'scratch operand']
  #allocation3 [shape = 'f32[2,32]{1,0:T(2,128)}', space=vmem, size = 0x400, scoped, tag = 'scratch operand']
  %s0 = inlined_call_operand.vmem [shape: f32[4,32,64], index: 0, kind: input, shape index: {}]
  %s1 = inlined_call_operand.hbm [shape: f32[2,8,32], index: 1, kind: input, shape index: {}]
  %s2 = inlined_call_operand.vmem [shape: f32[2,8], index: 2, kind: input, shape index: {}]
  %s3 = inlined_call_operand.vmem [shape: f32[2,64], index: 3, kind: input, shape index: {}]
  %s4 = inlined_call_operand.vmem [shape: f32[64,32], index: 4, kind: input, shape index: {}]
  %s5 = inlined_call_operand.vmem [shape: f32[32,896], index: 5, kind: input, shape index: {}]
  %s6 = inlined_call_operand.hbm [shape: f32[96,768], index: 6, kind: input, shape index: {}]
  %s7 = inlined_call_operand.hbm [shape: f32[32,32], index: 7, kind: input, shape index: {}]
  %s8 = inlined_call_operand.vmem [shape: f32[8,1664], index: 8, kind: input, shape index: {}]
  %s9 = inlined_call_operand.vmem [shape: f32[4,2,128], index: 9, kind: output, shape index: {}]
  %s10 = sld [smem:[#allocation0]]
  $region85: #{self_monitoring_rollout.1} parent=0
    _
  %s12 = ssub.s32 1, %s10
  %s13 = scalar_select 0, %s12, %s10
  $region1: #{self_monitoring_rollout.1} parent=0
    #allocation4 [shape = 'u8[8192]{0}', space=vmem, size = 0x2000, scoped, tag = 'input window, operand 1, single buffered']
    #allocation5 [shape = 's32[2]{0}', space=sflag, size = 0x8, scoped, tag = 'scoped memory for self_monitoring_rollout.1']
    #allocation6 [shape = 'u8[294912]{0}', space=vmem, size = 0x48000, scoped, tag = 'input window, operand 6, single buffered']
    #allocation7 [shape = 's32[1]{0}', space=sflag, size = 0x4, scoped, tag = 'scoped memory for self_monitoring_rollout.1']
    #allocation8 [shape = 'u8[16384]{0}', space=vmem, size = 0x4000, scoped, tag = 'input window, operand 7, single buffered']
    %14 = vsyncpa [#allocation5], 0
    %15 = vsyncpa [#allocation7], 0
    loop: start=0, step=1, limit=6
    $region2: #{self_monitoring_rollout.1} parent=1 // loop_pre_header
      _
    $region3: #{self_monitoring_rollout.1} parent=1 // loop_header
      %s17 = sphi 0, %s21
      %p18 = scmp.ge.s32.totalorder %s17, 6
      %s27 = sphi 0, %s29
      %s30 = sphi 0, %s27
      %s31 = sphi 0, %s30
      %s47 = sphi 0, %s31
      %s51 = sphi 0, %s51
      %s53 = sphi 0, %s51
      %s54 = sphi 0, %s53
      %s68 = sphi 0, %s54
      %s72 = sphi 0, %s72
      %s74 = sphi 0, %s72
      %s75 = sphi 0, %s74
      %s89 = sphi 0, %s75
      %s93 = sphi 0, %s93
      %s95 = sphi 0, %s93
      %s96 = sphi 0, %s95
      %s110 = sphi 0, %s96
      %s114 = sphi 0, %s114
      %s116 = sphi 0, %s114
      %s117 = sphi 0, %s116
      %s131 = sphi 0, %s117
      %s135 = sphi 0, %s135
      %s137 = sphi 0, %s135
      %s138 = sphi 0, %s137
      %s152 = sphi 0, %s138
      %s156 = sphi 0, %s156
      %s158 = sphi 0, %s156
      %s159 = sphi 0, %s158
      %s173 = sphi 0, %s159
      %s177 = sphi 0, %s177
      %s179 = sphi 0, %s177
      %s180 = sphi 0, %s179
      %s194 = sphi 0, %s180
      %s198 = sphi 0, %s198
      %s200 = sphi 0, %s198
      %s201 = sphi 0, %s200
      %s215 = sphi 0, %s201
      %s221 = sphi 0, %s223
      %s224 = sphi 0, %s221
      %s225 = sphi 0, %s224
      %s241 = sphi 0, %s225
    $region4: #{self_monitoring_rollout.1} parent=1 // loop_header_branch
      %20 = sbr.rel (%p18) target = $region8
    $region5: #{self_monitoring_rollout.1} parent=1 // loop_body
      %s22 = ssub.s32 %s17, 1
      %s23 = ssub.s32 %s17, 2
      %s24 = sadd.s32 %s17, 1
      %s25 = ssub.s32 %s17, %s24
      %p26 = scmp.eq.s32.totalorder %s25, 0
      %s28 = sadd.s32 %s27, 1
      %s29 = scalar_select %p26, %s27, %s28
      %p32 = pneg %p26
      %p33 = scmp.eq.s32.totalorder %s17, 3
      %p34 = por %p32, %p33
      %p35 = scmp.ne.s32.totalorder %s27, %s30
      %p36 = scmp.eq.s32.totalorder %s17, 0
      %p37 = por %p35, %p36
      %p38 = scmp.ne.s32.totalorder %s27, %s30
      %p39 = scmp.eq.s32.totalorder %s22, 3
      %p40 = por %p38, %p39
      %p41 = scmp.ne.s32.totalorder %s30, %s31
      %p42 = scmp.eq.s32.totalorder %s22, 0
      %p43 = por %p41, %p42
      %p44 = scmp.ne.s32.totalorder %s30, %s31
      %p45 = scmp.eq.s32.totalorder %s23, 3
      %p46 = por %p44, %p45
      %p48 = scmp.ne.s32.totalorder %s31, %s47
      %p49 = scmp.eq.s32.totalorder %s23, 0
      %p50 = por %p48, %p49
      %s52 = sadd.s32 %s51, 1
      %p55 = scmp.eq.s32.totalorder %s17, 3
      %p56 = scmp.ne.s32.totalorder %s51, %s53
      %p57 = scmp.eq.s32.totalorder %s17, 0
      %p58 = por %p56, %p57
      %p59 = scmp.ne.s32.totalorder %s51, %s53
      %p60 = scmp.eq.s32.totalorder %s22, 3
      %p61 = por %p59, %p60
      %p62 = scmp.ne.s32.totalorder %s53, %s54
      %p63 = scmp.eq.s32.totalorder %s22, 0
      %p64 = por %p62, %p63
      %p65 = scmp.ne.s32.totalorder %s53, %s54
      %p66 = scmp.eq.s32.totalorder %s23, 3
      %p67 = por %p65, %p66
      %p69 = scmp.ne.s32.totalorder %s54, %s68
      %p70 = scmp.eq.s32.totalorder %s23, 0
      %p71 = por %p69, %p70
      %s73 = sadd.s32 %s72, 1
      %p76 = scmp.eq.s32.totalorder %s17, 3
      %p77 = scmp.ne.s32.totalorder %s72, %s74
      %p78 = scmp.eq.s32.totalorder %s17, 0
      %p79 = por %p77, %p78
      %p80 = scmp.ne.s32.totalorder %s72, %s74
      %p81 = scmp.eq.s32.totalorder %s22, 3
      %p82 = por %p80, %p81
      %p83 = scmp.ne.s32.totalorder %s74, %s75
      %p84 = scmp.eq.s32.totalorder %s22, 0
      %p85 = por %p83, %p84
      %p86 = scmp.ne.s32.totalorder %s74, %s75
      %p87 = scmp.eq.s32.totalorder %s23, 3
      %p88 = por %p86, %p87
      %p90 = scmp.ne.s32.totalorder %s75, %s89
      %p91 = scmp.eq.s32.totalorder %s23, 0
      %p92 = por %p90, %p91
      %s94 = sadd.s32 %s93, 1
      %p97 = scmp.eq.s32.totalorder %s17, 3
      %p98 = scmp.ne.s32.totalorder %s93, %s95
      %p99 = scmp.eq.s32.totalorder %s17, 0
      %p100 = por %p98, %p99
      %p101 = scmp.ne.s32.totalorder %s93, %s95
      %p102 = scmp.eq.s32.totalorder %s22, 3
      %p103 = por %p101, %p102
      %p104 = scmp.ne.s32.totalorder %s95, %s96
      %p105 = scmp.eq.s32.totalorder %s22, 0
      %p106 = por %p104, %p105
      %p107 = scmp.ne.s32.totalorder %s95, %s96
      %p108 = scmp.eq.s32.totalorder %s23, 3
      %p109 = por %p107, %p108
      %p111 = scmp.ne.s32.totalorder %s96, %s110
      %p112 = scmp.eq.s32.totalorder %s23, 0
      %p113 = por %p111, %p112
      %s115 = sadd.s32 %s114, 1
      %p118 = scmp.eq.s32.totalorder %s17, 3
      %p119 = scmp.ne.s32.totalorder %s114, %s116
      %p120 = scmp.eq.s32.totalorder %s17, 0
      %p121 = por %p119, %p120
      %p122 = scmp.ne.s32.totalorder %s114, %s116
      %p123 = scmp.eq.s32.totalorder %s22, 3
      %p124 = por %p122, %p123
      %p125 = scmp.ne.s32.totalorder %s116, %s117
      %p126 = scmp.eq.s32.totalorder %s22, 0
      %p127 = por %p125, %p126
      %p128 = scmp.ne.s32.totalorder %s116, %s117
      %p129 = scmp.eq.s32.totalorder %s23, 3
      %p130 = por %p128, %p129
      %p132 = scmp.ne.s32.totalorder %s117, %s131
      %p133 = scmp.eq.s32.totalorder %s23, 0
      %p134 = por %p132, %p133
      %s136 = sadd.s32 %s135, 1
      %p139 = scmp.eq.s32.totalorder %s17, 3
      %p140 = scmp.ne.s32.totalorder %s135, %s137
      %p141 = scmp.eq.s32.totalorder %s17, 0
      %p142 = por %p140, %p141
      %p143 = scmp.ne.s32.totalorder %s135, %s137
      %p144 = scmp.eq.s32.totalorder %s22, 3
      %p145 = por %p143, %p144
      %p146 = scmp.ne.s32.totalorder %s137, %s138
      %p147 = scmp.eq.s32.totalorder %s22, 0
      %p148 = por %p146, %p147
      %p149 = scmp.ne.s32.totalorder %s137, %s138
      %p150 = scmp.eq.s32.totalorder %s23, 3
      %p151 = por %p149, %p150
      %p153 = scmp.ne.s32.totalorder %s138, %s152
      %p154 = scmp.eq.s32.totalorder %s23, 0
      %p155 = por %p153, %p154
      %s157 = sadd.s32 %s156, 1
      %p160 = scmp.eq.s32.totalorder %s17, 3
      %p161 = scmp.ne.s32.totalorder %s156, %s158
      %p162 = scmp.eq.s32.totalorder %s17, 0
      %p163 = por %p161, %p162
      %p164 = scmp.ne.s32.totalorder %s156, %s158
      %p165 = scmp.eq.s32.totalorder %s22, 3
      %p166 = por %p164, %p165
      %p167 = scmp.ne.s32.totalorder %s158, %s159
      %p168 = scmp.eq.s32.totalorder %s22, 0
      %p169 = por %p167, %p168
      %p170 = scmp.ne.s32.totalorder %s158, %s159
      %p171 = scmp.eq.s32.totalorder %s23, 3
      %p172 = por %p170, %p171
      %p174 = scmp.ne.s32.totalorder %s159, %s173
      %p175 = scmp.eq.s32.totalorder %s23, 0
      %p176 = por %p174, %p175
      %s178 = sadd.s32 %s177, 1
      %p181 = scmp.eq.s32.totalorder %s17, 3
      %p182 = scmp.ne.s32.totalorder %s177, %s179
      %p183 = scmp.eq.s32.totalorder %s17, 0
      %p184 = por %p182, %p183
      %p185 = scmp.ne.s32.totalorder %s177, %s179
      %p186 = scmp.eq.s32.totalorder %s22, 3
      %p187 = por %p185, %p186
      %p188 = scmp.ne.s32.totalorder %s179, %s180
      %p189 = scmp.eq.s32.totalorder %s22, 0
      %p190 = por %p188, %p189
      %p191 = scmp.ne.s32.totalorder %s179, %s180
      %p192 = scmp.eq.s32.totalorder %s23, 3
      %p193 = por %p191, %p192
      %p195 = scmp.ne.s32.totalorder %s180, %s194
      %p196 = scmp.eq.s32.totalorder %s23, 0
      %p197 = por %p195, %p196
      %s199 = sadd.s32 %s198, 1
      %p202 = scmp.eq.s32.totalorder %s17, 3
      %p203 = scmp.ne.s32.totalorder %s198, %s200
      %p204 = scmp.eq.s32.totalorder %s17, 0
      %p205 = por %p203, %p204
      %p206 = scmp.ne.s32.totalorder %s198, %s200
      %p207 = scmp.eq.s32.totalorder %s22, 3
      %p208 = por %p206, %p207
      %p209 = scmp.ne.s32.totalorder %s200, %s201
      %p210 = scmp.eq.s32.totalorder %s22, 0
      %p211 = por %p209, %p210
      %p212 = scmp.ne.s32.totalorder %s200, %s201
      %p213 = scmp.eq.s32.totalorder %s23, 3
      %p214 = por %p212, %p213
      %p216 = scmp.ne.s32.totalorder %s201, %s215
      %p217 = scmp.eq.s32.totalorder %s23, 0
      %p218 = por %p216, %p217
      %s219 = ssub.s32 %s17, %s24
      %p220 = scmp.eq.s32.totalorder %s219, 0
      %s222 = sadd.s32 %s221, 1
      %s223 = scalar_select %p220, %s221, %s222
      %p226 = pneg %p220
      %p227 = scmp.eq.s32.totalorder %s17, 3
      %p228 = por %p226, %p227
      %p229 = scmp.ne.s32.totalorder %s221, %s224
      %p230 = scmp.eq.s32.totalorder %s17, 0
      %p231 = por %p229, %p230
      %p232 = scmp.ne.s32.totalorder %s221, %s224
      %p233 = scmp.eq.s32.totalorder %s22, 3
      %p234 = por %p232, %p233
      %p235 = scmp.ne.s32.totalorder %s224, %s225
      %p236 = scmp.eq.s32.totalorder %s22, 0
      %p237 = por %p235, %p236
      %p238 = scmp.ne.s32.totalorder %s224, %s225
      %p239 = scmp.eq.s32.totalorder %s23, 3
      %p240 = por %p238, %p239
      %p242 = scmp.ne.s32.totalorder %s225, %s241
      %p243 = scmp.eq.s32.totalorder %s23, 0
      %p244 = por %p242, %p243
      %p245 = scmp.le.s32.totalorder 1, %s17
      %p246 = scmp.lt.s32.totalorder %s17, 5
      %p247 = pnand %p245, %p246
      %p248 = pneg %p247
      // Predicated region
      $region9: #{self_monitoring_rollout.1} parent=5 // pred_check
        _
      $region10: #{self_monitoring_rollout.1} parent=5 // pred_check_branch
        %250 = sbr.rel (%p247) target = $region12
      $region11: #{self_monitoring_rollout.1} parent=5 // pred_region
        %s251 = ssub.s32 %s17, 1
        // Predicated region
        $region13: #{self_monitoring_rollout.1} parent=11 // pred_check
          %p252 = pneg %p64
        $region14: #{self_monitoring_rollout.1} parent=11 // pred_check_branch
          %254 = sbr.rel (%p252) target = $region16
        $region15: #{self_monitoring_rollout.1} parent=11 // pred_region
          %s256 = ssub.s32 256, 256
          %257 = vsyncadd [#allocation5], %s256
          %s258 = sshll.u32 [#allocation4], 4
          %s259 = int_to_ptr.vmem [resolvable:$true] %s258
          %264 = dma.hbm_to_vmem [thread:$0]  %s1, 256, %s259, [#allocation5], 128, 128, 8
        $region16: #{self_monitoring_rollout.1} parent=11 // pred_fallthru
          _
        // Predicated region
        $region17: #{self_monitoring_rollout.1} parent=11 // pred_check
          %p265 = pneg %p85
        $region18: #{self_monitoring_rollout.1} parent=11 // pred_check_branch
          %267 = sbr.rel (%p265) target = $region20
        $region19: #{self_monitoring_rollout.1} parent=11 // pred_region
          _
        $region20: #{self_monitoring_rollout.1} parent=11 // pred_fallthru
          _
        // Predicated region
        $region21: #{self_monitoring_rollout.1} parent=11 // pred_check
          %p268 = pneg %p106
        $region22: #{self_monitoring_rollout.1} parent=11 // pred_check_branch
          %270 = sbr.rel (%p268) target = $region24
        $region23: #{self_monitoring_rollout.1} parent=11 // pred_region
          _
        $region24: #{self_monitoring_rollout.1} parent=11 // pred_fallthru
          _
        // Predicated region
        $region25: #{self_monitoring_rollout.1} parent=11 // pred_check
          %p271 = pneg %p127
        $region26: #{self_monitoring_rollout.1} parent=11 // pred_check_branch
          %273 = sbr.rel (%p271) target = $region28
        $region27: #{self_monitoring_rollout.1} parent=11 // pred_region
          _
        $region28: #{self_monitoring_rollout.1} parent=11 // pred_fallthru
          _
        // Predicated region
        $region29: #{self_monitoring_rollout.1} parent=11 // pred_check
          %p274 = pneg %p148
        $region30: #{self_monitoring_rollout.1} parent=11 // pred_check_branch
          %276 = sbr.rel (%p274) target = $region32
        $region31: #{self_monitoring_rollout.1} parent=11 // pred_region
          _
        $region32: #{self_monitoring_rollout.1} parent=11 // pred_fallthru
          _
        // Predicated region
        $region33: #{self_monitoring_rollout.1} parent=11 // pred_check
          %p277 = pneg %p169
        $region34: #{self_monitoring_rollout.1} parent=11 // pred_check_branch
          %279 = sbr.rel (%p277) target = $region36
        $region35: #{self_monitoring_rollout.1} parent=11 // pred_region
          %s281 = ssub.s32 9216, 9216
          %282 = vsyncadd [#allocation7], %s281
          %s283 = sshll.u32 [#allocation6], 4
          %s284 = int_to_ptr.vmem [resolvable:$true] %s283
          %289 = dma.hbm_to_vmem [thread:$0]  %s6, 9216, %s284, [#allocation7], 768, 768, 48
        $region36: #{self_monitoring_rollout.1} parent=11 // pred_fallthru
          _
        // Predicated region
        $region37: #{self_monitoring_rollout.1} parent=11 // pred_check
          %p290 = pneg %p190
        $region38: #{self_monitoring_rollout.1} parent=11 // pred_check_branch
          %292 = sbr.rel (%p290) target = $region40
        $region39: #{self_monitoring_rollout.1} parent=11 // pred_region
          %s294 = ssub.s32 512, 512
          %295 = vsyncadd [#allocation7], %s294
          %s296 = sshll.u32 [#allocation8], 4
          %s297 = int_to_ptr.vmem [resolvable:$true] %s296
          %302 = dma.hbm_to_vmem [thread:$0]  %s7, 512, %s297, [#allocation7], 128, 128, 8
        $region40: #{self_monitoring_rollout.1} parent=11 // pred_fallthru
          _
        // Predicated region
        $region41: #{self_monitoring_rollout.1} parent=11 // pred_check
          %p303 = pneg %p211
        $region42: #{self_monitoring_rollout.1} parent=11 // pred_check_branch
          %305 = sbr.rel (%p303) target = $region44
        $region43: #{self_monitoring_rollout.1} parent=11 // pred_region
          _
        $region44: #{self_monitoring_rollout.1} parent=11 // pred_fallthru
          _
      $region12: #{self_monitoring_rollout.1} parent=5 // pred_fallthru
        _
      %p306 = scmp.lt.s32.totalorder %s17, 4
      // Predicated region
      $region45: #{self_monitoring_rollout.1} parent=5 // pred_check
        %p307 = pneg %p306
      $region46: #{self_monitoring_rollout.1} parent=5 // pred_check_branch
        %309 = sbr.rel (%p307) target = $region48
      $region47: #{self_monitoring_rollout.1} parent=5 // pred_region
        // Predicated region
        $region49: #{self_monitoring_rollout.1} parent=47 // pred_check
          %p310 = pneg %p37
        $region50: #{self_monitoring_rollout.1} parent=47 // pred_check_branch
          %312 = sbr.rel (%p310) target = $region52
        $region51: #{self_monitoring_rollout.1} parent=47 // pred_region
          %p313 = scmp.lt.s32.totalorder %s17, 3
          %s314 = scalar_select %p313, %s17, 3
          %s315 = smul.addr %s314, 4
          %s316 = smul.addr %s315, 8
          %s317 = scalar_lea.vmem %s0, %s316
        $region52: #{self_monitoring_rollout.1} parent=47 // pred_fallthru
          _
      $region48: #{self_monitoring_rollout.1} parent=5 // pred_fallthru
        _
      %p318 = scmp.le.s32.totalorder 1, %s17
      %p319 = scmp.lt.s32.totalorder %s17, 5
      %p320 = pnand %p318, %p319
      %p321 = pneg %p320
      // Predicated region
      $region53: #{self_monitoring_rollout.1} parent=5 // pred_check
        _
      $region54: #{self_monitoring_rollout.1} parent=5 // pred_check_branch
        %323 = sbr.rel (%p320) target = $region56
      $region55: #{self_monitoring_rollout.1} parent=5 // pred_region
        %s324 = ssub.s32 %s17, 1
        // Predicated region
        $region57: #{self_monitoring_rollout.1} parent=55 // pred_check
          %p325 = pneg %p64
        $region58: #{self_monitoring_rollout.1} parent=55 // pred_check_branch
          %327 = sbr.rel (%p325) target = $region60
        $region59: #{self_monitoring_rollout.1} parent=55 // pred_region
          %328 = dma.done [#allocation5], 256
        $region60: #{self_monitoring_rollout.1} parent=55 // pred_fallthru
          _
        // Predicated region
        $region61: #{self_monitoring_rollout.1} parent=55 // pred_check
          %p329 = pneg %p169
        $region62: #{self_monitoring_rollout.1} parent=55 // pred_check_branch
          %331 = sbr.rel (%p329) target = $region64
        $region63: #{self_monitoring_rollout.1} parent=55 // pred_region
          %332 = dma.done [#allocation7], 9216
        $region64: #{self_monitoring_rollout.1} parent=55 // pred_fallthru
          _
        // Predicated region
        $region65: #{self_monitoring_rollout.1} parent=55 // pred_check
          %p333 = pneg %p190
        $region66: #{self_monitoring_rollout.1} parent=55 // pred_check_branch
          %335 = sbr.rel (%p333) target = $region68
        $region67: #{self_monitoring_rollout.1} parent=55 // pred_region
          %336 = dma.done [#allocation7], 512
        $region68: #{self_monitoring_rollout.1} parent=55 // pred_fallthru
          _
        %p337 = scmp.lt.s32.totalorder %s22, 3
        %s338 = scalar_select %p337, %s22, 3
        %s339 = smul.addr %s338, 4
        %s340 = smul.addr %s339, 8
        %s341 = scalar_lea.vmem %s0, %s340
        %p342 = pneg %p43
        %p343 = pneg %p40
        %p344 = pneg %p64
        %p345 = pneg %p61
        %p346 = pneg %p85
        %p347 = pneg %p82
        %p348 = pneg %p106
        %p349 = pneg %p103
        %p350 = pneg %p127
        %p351 = pneg %p124
        %p352 = pneg %p148
        %p353 = pneg %p145
        %p354 = pneg %p169
        %p355 = pneg %p166
        %p356 = pneg %p190
        %p357 = pneg %p187
        %p358 = pneg %p211
        %p359 = pneg %p208
        %p360 = pneg %p237
        %p361 = pneg %p234
        %p362 = scmp.lt.s32.totalorder %s22, 3
        %s363 = scalar_select %p362, %s22, 3
        %s364 = smul.addr %s363, 2
        %s365 = scalar_lea.vmem %s9, %s364
        %p366 = scmp.lt.s32.totalorder %s22, 3
        %s367 = scalar_select %p366, %s22, 3
        %s368 = smul.addr %s367, 4
        %s369 = smul.addr %s368, 8
        %s370 = scalar_lea.vmem %s0, %s369
        %p371 = scmp.lt.s32.totalorder %s22, 3
        %s372 = scalar_select %p371, %s22, 3
        %s373 = smul.addr %s372, 2
        %s374 = scalar_lea.vmem %s9, %s373
        %p375 = scmp.eq.s32.totalorder %s22, 0
        // Predicated region
        $region69: #{self_monitoring_rollout.1} parent=55 // pred_check
          %p376 = pneg %p375
        $region70: #{self_monitoring_rollout.1} parent=55 // pred_check_branch
          %378 = sbr.rel (%p376) target = $region72
        $region71: #{self_monitoring_rollout.1} parent=55 // pred_region
          %v379 = vld [vmem:[%s3] sm:$0x3]
          %vm380 = vcmask 254976
          %381 = vst.msk [vmem:[#allocation2] sm:$0x3] %vm380, %v379
          %v382 = vld [vmem:[%s3] sm:$0x3]
          %384 = vrot.lane.b32.xlu0 %v382, 96
          %v385 = vpop.permute.xlu0 %384
          %387 = vst.msk [vmem:[#allocation3] sm:$0x3] %vm380, %v385
        $region72: #{self_monitoring_rollout.1} parent=55 // pred_fallthru
          _
        %v388 = vld [vmem:[#allocation2] sm:$0x3]
        %v389 = vld [vmem:[#allocation3] sm:$0x3]
        %v390 = vld [vmem:[%s8] ss:$8 sm:$0xf]
        %v391 = vld [vmem:[%s8] ss:$8 sm:$0xf0]
        %v392 = vor.u32 %v390, %v391
        %v393 = vld [vmem:[%s8 + $0x38] ss:$0 sm:$0xff]
        %v394 = vld [vmem:[%s8 + $0x40] ss:$0 sm:$0xff]
        %v395 = vld [vmem:[%s8 + $0x48] ss:$0 sm:$0xff]
        %v396 = vld [vmem:[%s8 + $0x50] ss:$0 sm:$0xff]
        %v397 = vld [vmem:[%s8 + $0x58] ss:$0 sm:$0xff]
        %v398 = vld [vmem:[%s8 + $0x60] sm:$0xff]
        %v399 = vld [vmem:[%s370] sm:$0xff]
        %v400 = vld [vmem:[%s370 + $0x8] sm:$0xff]
        %v401 = vld [vmem:[%s370 + $0x10] sm:$0xff]
        %v402 = vld [vmem:[%s4] sm:$0xff]
        %v403 = vld [vmem:[%s4 + $0x8] sm:$0xff]
        %v404 = vld [vmem:[%s4 + $0x10] sm:$0xff]
        %v405 = vld [vmem:[%s4 + $0x18] sm:$0xff]
        %v406 = vld [vmem:[%s4 + $0x20] sm:$0xff]
        %v407 = vld [vmem:[%s4 + $0x28] sm:$0xff]
        %v408 = vld [vmem:[%s4 + $0x30] sm:$0xff]
        %v409 = vld [vmem:[%s4 + $0x38] sm:$0xff]
        %vm410 = vcmask 523264
        %v412 = vsel %vm410, %v399, 0
        %v415 = vsel %vm410, %v400, 0
        %v418 = vsel %vm410, %v401, 0
        %420 = vmatprep.subr.mxu0 0.0
        %v421 = vand.u32 %v402, 4294901760
        %422 = vmatpush1.msra.mxu0 %v421
        %423 = vmatprep.subr.mxu0 0.0
        %v424 = vand.u32 %v403, 4294901760
        %425 = vmatpush1.msra.mxu0 %v424
        %426 = vmatprep.subr.mxu0 0.0
        %v427 = vand.u32 %v404, 4294901760
        %428 = vmatpush1.msra.mxu0 %v427
        %429 = vmatprep.subr.mxu0 0.0
        %v430 = vand.u32 %v405, 4294901760
        %431 = vmatpush1.msra.mxu0 %v430
        %432 = vmatprep.subr.mxu0 0.0
        %v433 = vand.u32 %v406, 4294901760
        %434 = vmatpush1.msra.mxu0 %v433
        %435 = vmatprep.subr.mxu0 0.0
        %v436 = vand.u32 %v407, 4294901760
        %437 = vmatpush1.msra.mxu0 %v436
        %438 = vmatprep.subr.mxu0 0.0
        %v439 = vand.u32 %v408, 4294901760
        %440 = vmatpush1.msra.mxu0 %v439
        %441 = vmatprep.subr.mxu0 0.0
        %v442 = vand.u32 %v409, 4294901760
        %443 = vmatpush1.msra.mxu0 %v442
        %444 = vmatprep.subr.mxu0 0.0
        %445 = vmatpush1.msra.mxu0 0.0
        %446 = vmatprep.subr.mxu0 0.0
        %447 = vmatpush1.msra.mxu0 0.0
        %448 = vmatprep.subr.mxu0 0.0
        %449 = vmatpush1.msra.mxu0 0.0
        %450 = vmatprep.subr.mxu0 0.0
        %451 = vmatpush1.msra.mxu0 0.0
        %452 = vmatprep.subr.mxu0 0.0
        %453 = vmatpush1.msra.mxu0 0.0
        %454 = vmatprep.subr.mxu0 0.0
        %455 = vmatpush1.msra.mxu0 0.0
        %456 = vmatprep.subr.mxu0 0.0
        %457 = vmatpush1.msra.mxu0 0.0
        %458 = vmatprep.subr.mxu0 0.0
        %459 = vmatpush1.msra.mxu0 0.0
        %460 = vmatprep.subr.mxu0 0.0
        %461 = vmatpush1.msra.mxu0 0.0
        %462 = vmatprep.subr.mxu0 0.0
        %463 = vmatpush1.msra.mxu0 0.0
        %464 = vmatprep.subr.mxu0 0.0
        %465 = vmatpush1.msra.mxu0 0.0
        %466 = vmatprep.subr.mxu0 0.0
        %467 = vmatpush1.msra.mxu0 0.0
        %468 = vmatprep.subr.mxu0 0.0
        %469 = vmatpush1.msra.mxu0 0.0
        %470 = vmatprep.subr.mxu0 0.0
        %471 = vmatpush1.msra.mxu0 0.0
        %472 = vmatprep.subr.mxu0 0.0
        %473 = vmatpush1.msra.mxu0 0.0
        %474 = vmatprep.subr.mxu0 0.0
        %475 = vmatpush1.msra.mxu0 0.0
        %476 = vmatprep.subr.mxu0 0.0
        %477 = vmatpush1.msra.mxu0 0.0
        %478 = vmatprep.subr.mxu0 0.0
        %479 = vmatpush1.msra.mxu0 0.0
        %480 = vmatprep.subr.mxu0 0.0
        %481 = vmatpush1.msra.mxu0 0.0
        %482 = vmatprep.subr.mxu0 0.0
        %483 = vmatpush1.msra.mxu0 0.0
        %484 = vmatprep.subr.mxu0 0.0
        %485 = vmatpush1.msra.mxu0 0.0
        %486 = vmatprep.subr.mxu0 0.0
        %487 = vmatpush1.msra.mxu0 0.0
        %488 = vmatprep.subr.mxu0 0.0
        %489 = vmatpush1.msra.mxu0 0.0
        %490 = vmatprep.subr.mxu0 0.0
        %491 = vmatpush1.msra.mxu0 0.0
        %492 = vmatprep.mubr.f32.mxu0 0.0
        %v493 = vand.u32 %v412, 4294901760
        %v494 = vsub.f32 %v412, %v493
        %v495 = vand.u32 %v494, 4294901760
        %v496 = vsub.f32 %v494, %v495
        %v497 = vand.u32 %v496, 4294901760
        %498 = vmatmul.mubr.f32.gmra.mrb[0].mxu0 %v497
        %v499 = vpop.f32.mrb[0].mxu0
        %v500 = vadd.f32 %v393, %v499
        %v501 = vpop.f32.mrb[0].mxu0
        %502 = vmatprep.mubr.f32.mxu0 0.0
        %v503 = vand.u32 %v415, 4294901760
        %v504 = vsub.f32 %v415, %v503
        %v505 = vand.u32 %v504, 4294901760
        %v506 = vsub.f32 %v504, %v505
        %v507 = vand.u32 %v506, 4294901760
        %508 = vmatmul.mubr.f32.gmra.mrb[0].mxu0 %v507
        %v509 = vpop.f32.mrb[0].mxu0
        %v510 = vadd.f32 %v393, %v509
        %v511 = vpop.f32.mrb[0].mxu0
        %512 = vmatprep.mubr.f32.mxu0 0.0
        %v513 = vand.u32 %v418, 4294901760
        %v514 = vsub.f32 %v418, %v513
        %v515 = vand.u32 %v514, 4294901760
        %v516 = vsub.f32 %v514, %v515
        %v517 = vand.u32 %v516, 4294901760
        %518 = vmatmul.mubr.f32.gmra.mrb[0].mxu0 %v517
        %v519 = vpop.f32.mrb[0].mxu0
        %v520 = vadd.f32 %v393, %v519
        %v521 = vpop.f32.mrb[0].mxu0
        %522 = vdwg.mxu0
        %523 = vmatprep.subr.mxu0 0.0
        %v524 = vand.u32 %v402, 4294901760
        %v525 = vsub.f32 %v402, %v524
        %v526 = vand.u32 %v525, 4294901760
        %v527 = vsub.f32 %v525, %v526
        %v528 = vand.u32 %v527, 4294901760
        %529 = vmatpush1.msra.mxu0 %v528
        %530 = vmatprep.subr.mxu0 0.0
        %v531 = vand.u32 %v403, 4294901760
        %v532 = vsub.f32 %v403, %v531
        %v533 = vand.u32 %v532, 4294901760
        %v534 = vsub.f32 %v532, %v533
        %v535 = vand.u32 %v534, 4294901760
        %536 = vmatpush1.msra.mxu0 %v535
        %537 = vmatprep.subr.mxu0 0.0
        %v538 = vand.u32 %v404, 4294901760
        %v539 = vsub.f32 %v404, %v538
        %v540 = vand.u32 %v539, 4294901760
        %v541 = vsub.f32 %v539, %v540
        %v542 = vand.u32 %v541, 4294901760
        %543 = vmatpush1.msra.mxu0 %v542
        %544 = vmatprep.subr.mxu0 0.0
        %v545 = vand.u32 %v405, 4294901760
        %v546 = vsub.f32 %v405, %v545
        %v547 = vand.u32 %v546, 4294901760
        %v548 = vsub.f32 %v546, %v547
        %v549 = vand.u32 %v548, 4294901760
        %550 = vmatpush1.msra.mxu0 %v549
        %551 = vmatprep.subr.mxu0 0.0
        %v552 = vand.u32 %v406, 4294901760
        %v553 = vsub.f32 %v406, %v552
        %v554 = vand.u32 %v553, 4294901760
        %v555 = vsub.f32 %v553, %v554
        %v556 = vand.u32 %v555, 4294901760
        %557 = vmatpush1.msra.mxu0 %v556
        %558 = vmatprep.subr.mxu0 0.0
        %v559 = vand.u32 %v407, 4294901760
        %v560 = vsub.f32 %v407, %v559
        %v561 = vand.u32 %v560, 4294901760
        %v562 = vsub.f32 %v560, %v561
        %v563 = vand.u32 %v562, 4294901760
        %564 = vmatpush1.msra.mxu0 %v563
        %565 = vmatprep.subr.mxu0 0.0
        %v566 = vand.u32 %v408, 4294901760
        %v567 = vsub.f32 %v408, %v566
        %v568 = vand.u32 %v567, 4294901760
        %v569 = vsub.f32 %v567, %v568
        %v570 = vand.u32 %v569, 4294901760
        %571 = vmatpush1.msra.mxu0 %v570
        %572 = vmatprep.subr.mxu0 0.0
        %v573 = vand.u32 %v409, 4294901760
        %v574 = vsub.f32 %v409, %v573
        %v575 = vand.u32 %v574, 4294901760
        %v576 = vsub.f32 %v574, %v575
        %v577 = vand.u32 %v576, 4294901760
        %578 = vmatpush1.msra.mxu0 %v577
        %579 = vmatprep.subr.mxu0 0.0
        %580 = vmatpush1.msra.mxu0 0.0
        %581 = vmatprep.subr.mxu0 0.0
        %582 = vmatpush1.msra.mxu0 0.0
        %583 = vmatprep.subr.mxu0 0.0
        %584 = vmatpush1.msra.mxu0 0.0
        %585 = vmatprep.subr.mxu0 0.0
        %586 = vmatpush1.msra.mxu0 0.0
        %587 = vmatprep.subr.mxu0 0.0
        %588 = vmatpush1.msra.mxu0 0.0
        %589 = vmatprep.subr.mxu0 0.0
        %590 = vmatpush1.msra.mxu0 0.0
        %591 = vmatprep.subr.mxu0 0.0
        %592 = vmatpush1.msra.mxu0 0.0
        %593 = vmatprep.subr.mxu0 0.0
        %594 = vmatpush1.msra.mxu0 0.0
        %595 = vmatprep.subr.mxu0 0.0
        %596 = vmatpush1.msra.mxu0 0.0
        %597 = vmatprep.subr.mxu0 0.0
        %598 = vmatpush1.msra.mxu0 0.0
        %599 = vmatprep.subr.mxu0 0.0
        %600 = vmatpush1.msra.mxu0 0.0
        %601 = vmatprep.subr.mxu0 0.0
        %602 = vmatpush1.msra.mxu0 0.0
        %603 = vmatprep.subr.mxu0 0.0
        %604 = vmatpush1.msra.mxu0 0.0
        %605 = vmatprep.subr.mxu0 0.0
        %606 = vmatpush1.msra.mxu0 0.0
        %607 = vmatprep.subr.mxu0 0.0
        %608 = vmatpush1.msra.mxu0 0.0
        %609 = vmatprep.subr.mxu0 0.0
        %610 = vmatpush1.msra.mxu0 0.0
        %611 = vmatprep.subr.mxu0 0.0
        %612 = vmatpush1.msra.mxu0 0.0
        %613 = vmatprep.subr.mxu0 0.0
        %614 = vmatpush1.msra.mxu0 0.0
        %615 = vmatprep.subr.mxu0 0.0
        %616 = vmatpush1.msra.mxu0 0.0
        %617 = vmatprep.subr.mxu0 0.0
        %618 = vmatpush1.msra.mxu0 0.0
        %619 = vmatprep.subr.mxu0 0.0
        %620 = vmatpush1.msra.mxu0 0.0
        %621 = vmatprep.subr.mxu0 0.0
        %622 = vmatpush1.msra.mxu0 0.0
        %623 = vmatprep.subr.mxu0 0.0
        %624 = vmatpush1.msra.mxu0 0.0
        %625 = vmatprep.subr.mxu0 0.0
        %626 = vmatpush1.msra.mxu0 0.0
        %627 = vmatprep.mubr.f32.mxu0 0.0
        %v628 = vand.u32 %v412, 4294901760
        %629 = vmatmul.mubr.f32.gmra.mrb[0].mxu0 %v628
        %v630 = vpop.f32.mrb[0].mxu0
        %v631 = vadd.f32 %v500, %v630
        %v632 = vpop.f32.mrb[0].mxu0
        %633 = vmatprep.mubr.f32.mxu0 0.0
        %v634 = vand.u32 %v415, 4294901760
        %635 = vmatmul.mubr.f32.gmra.mrb[0].mxu0 %v634
        %v636 = vpop.f32.mrb[0].mxu0
        %v637 = vadd.f32 %v510, %v636
        %v638 = vpop.f32.mrb[0].mxu0
        %639 = vmatprep.mubr.f32.mxu0 0.0
        %v640 = vand.u32 %v418, 4294901760
        %641 = vmatmul.mubr.f32.gmra.mrb[0].mxu0 %v640
        %v642 = vpop.f32.mrb[0].mxu0
        %v643 = vadd.f32 %v520, %v642
        %v644 = vpop.f32.mrb[0].mxu0
        %645 = vdwg.mxu0
        %646 = vmatprep.subr.mxu0 0.0
        %v647 = vand.u32 %v402, 4294901760
        %v648 = vsub.f32 %v402, %v647
        %649 = vmatpush1.msra.mxu0 %v648
        %650 = vmatprep.subr.mxu0 0.0
        %v651 = vand.u32 %v403, 4294901760
        %v652 = vsub.f32 %v403, %v651
        %653 = vmatpush1.msra.mxu0 %v652
        %654 = vmatprep.subr.mxu0 0.0
        %v655 = vand.u32 %v404, 4294901760
        %v656 = vsub.f32 %v404, %v655
        %657 = vmatpush1.msra.mxu0 %v656
        %658 = vmatprep.subr.mxu0 0.0
        %v659 = vand.u32 %v405, 4294901760
        %v660 = vsub.f32 %v405, %v659
        %661 = vmatpush1.msra.mxu0 %v660
        %662 = vmatprep.subr.mxu0 0.0
        %v663 = vand.u32 %v406, 4294901760
        %v664 = vsub.f32 %v406, %v663
        %665 = vmatpush1.msra.mxu0 %v664
        %666 = vmatprep.subr.mxu0 0.0
        %v667 = vand.u32 %v407, 4294901760
        %v668 = vsub.f32 %v407, %v667
        %669 = vmatpush1.msra.mxu0 %v668
        %670 = vmatprep.subr.mxu0 0.0
        %v671 = vand.u32 %v408, 4294901760
        %v672 = vsub.f32 %v408, %v671
        %673 = vmatpush1.msra.mxu0 %v672
        %674 = vmatprep.subr.mxu0 0.0
        %v675 = vand.u32 %v409, 4294901760
        %v676 = vsub.f32 %v409, %v675
        %677 = vmatpush1.msra.mxu0 %v676
        %678 = vmatprep.subr.mxu0 0.0
        %679 = vmatpush1.msra.mxu0 0.0
        %680 = vmatprep.subr.mxu0 0.0
        %681 = vmatpush1.msra.mxu0 0.0
        %682 = vmatprep.subr.mxu0 0.0
        %683 = vmatpush1.msra.mxu0 0.0
        %684 = vmatprep.subr.mxu0 0.0
        %685 = vmatpush1.msra.mxu0 0.0
        %686 = vmatprep.subr.mxu0 0.0
        %687 = vmatpush1.msra.mxu0 0.0
        %688 = vmatprep.subr.mxu0 0.0
        %689 = vmatpush1.msra.mxu0 0.0
        %690 = vmatprep.subr.mxu0 0.0
        %691 = vmatpush1.msra.mxu0 0.0
        %692 = vmatprep.subr.mxu0 0.0
        %693 = vmatpush1.msra.mxu0 0.0
        %694 = vmatprep.subr.mxu0 0.0
        %695 = vmatpush1.msra.mxu0 0.0
        %696 = vmatprep.subr.mxu0 0.0
        %697 = vmatpush1.msra.mxu0 0.0
        %698 = vmatprep.subr.mxu0 0.0
        %699 = vmatpush1.msra.mxu0 0.0
        %700 = vmatprep.subr.mxu0 0.0
        %701 = vmatpush1.msra.mxu0 0.0
        %702 = vmatprep.subr.mxu0 0.0
        %703 = vmatpush1.msra.mxu0 0.0
        %704 = vmatprep.subr.mxu0 0.0
        %705 = vmatpush1.msra.mxu0 0.0
        %706 = vmatprep.subr.mxu0 0.0
        %707 = vmatpush1.msra.mxu0 0.0
        %708 = vmatprep.subr.mxu0 0.0
        %709 = vmatpush1.msra.mxu0 0.0
        %710 = vmatprep.subr.mxu0 0.0
        %711 = vmatpush1.msra.mxu0 0.0
        %712 = vmatprep.subr.mxu0 0.0
        %713 = vmatpush1.msra.mxu0 0.0
        %714 = vmatprep.subr.mxu0 0.0
        %715 = vmatpush1.msra.mxu0 0.0
        %716 = vmatprep.subr.mxu0 0.0
        %717 = vmatpush1.msra.mxu0 0.0
        %718 = vmatprep.subr.mxu0 0.0
        %719 = vmatpush1.msra.mxu0 0.0
        %720 = vmatprep.subr.mxu0 0.0
        %721 = vmatpush1.msra.mxu0 0.0
        %722 = vmatprep.subr.mxu0 0.0
        %723 = vmatpush1.msra.mxu0 0.0
        %724 = vmatprep.subr.mxu0 0.0
        %725 = vmatpush1.msra.mxu0 0.0
        %726 = vmatprep.mubr.f32.mxu0 0.0
        %v727 = vand.u32 %v412, 4294901760
        %v728 = vsub.f32 %v412, %v727
        %729 = vmatmul.mubr.f32.gmra.mrb[0].mxu0 %v728
        %v730 = vpop.f32.mrb[0].mxu0
        %v731 = vadd.f32 %v631, %v730
        %v732 = vpop.f32.mrb[0].mxu0
        %733 = vmatprep.mubr.f32.mxu0 0.0
        %v734 = vand.u32 %v415, 4294901760
        %v735 = vsub.f32 %v415, %v734
        %736 = vmatmul.mubr.f32.gmra.mrb[0].mxu0 %v735
        %v737 = vpop.f32.mrb[0].mxu0
        %v738 = vadd.f32 %v637, %v737
        %v739 = vpop.f32.mrb[0].mxu0
        %740 = vmatprep.mubr.f32.mxu0 0.0
        %v741 = vand.u32 %v418, 4294901760
        %v742 = vsub.f32 %v418, %v741
        %743 = vmatmul.mubr.f32.gmra.mrb[0].mxu0 %v742
        %v744 = vpop.f32.mrb[0].mxu0
        %v745 = vadd.f32 %v643, %v744
        %v746 = vpop.f32.mrb[0].mxu0
        %747 = vdwg.mxu0
        %748 = vmatprep.subr.mxu0 0.0
        %v749 = vand.u32 %v402, 4294901760
        %750 = vmatpush1.msra.mxu0 %v749
        %751 = vmatprep.subr.mxu0 0.0
        %v752 = vand.u32 %v403, 4294901760
        %753 = vmatpush1.msra.mxu0 %v752
        %754 = vmatprep.subr.mxu0 0.0
        %v755 = vand.u32 %v404, 4294901760
        %756 = vmatpush1.msra.mxu0 %v755
        %757 = vmatprep.subr.mxu0 0.0
        %v758 = vand.u32 %v405, 4294901760
        %759 = vmatpush1.msra.mxu0 %v758
        %760 = vmatprep.subr.mxu0 0.0
        %v761 = vand.u32 %v406, 4294901760
        %762 = vmatpush1.msra.mxu0 %v761
        %763 = vmatprep.subr.mxu0 0.0
        %v764 = vand.u32 %v407, 4294901760
        %765 = vmatpush1.msra.mxu0 %v764
        %766 = vmatprep.subr.mxu0 0.0
        %v767 = vand.u32 %v408, 4294901760
        %768 = vmatpush1.msra.mxu0 %v767
        %769 = vmatprep.subr.mxu0 0.0
        %v770 = vand.u32 %v409, 4294901760
        %771 = vmatpush1.msra.mxu0 %v770
        %772 = vmatprep.subr.mxu0 0.0
        %773 = vmatpush1.msra.mxu0 0.0
        %774 = vmatprep.subr.mxu0 0.0
        %775 = vmatpush1.msra.mxu0 0.0
        %776 = vmatprep.subr.mxu0 0.0
        %777 = vmatpush1.msra.mxu0 0.0
        %778 = vmatprep.subr.mxu0 0.0
        %779 = vmatpush1.msra.mxu0 0.0
        %780 = vmatprep.subr.mxu0 0.0
        %781 = vmatpush1.msra.mxu0 0.0
        %782 = vmatprep.subr.mxu0 0.0
        %783 = vmatpush1.msra.mxu0 0.0
        %784 = vmatprep.subr.mxu0 0.0
        %785 = vmatpush1.msra.mxu0 0.0
        %786 = vmatprep.subr.mxu0 0.0
        %787 = vmatpush1.msra.mxu0 0.0
        %788 = vmatprep.subr.mxu0 0.0
        %789 = vmatpush1.msra.mxu0 0.0
        %790 = vmatprep.subr.mxu0 0.0
        %791 = vmatpush1.msra.mxu0 0.0
        %792 = vmatprep.subr.mxu0 0.0
        %793 = vmatpush1.msra.mxu0 0.0
        %794 = vmatprep.subr.mxu0 0.0
        %795 = vmatpush1.msra.mxu0 0.0
        %796 = vmatprep.subr.mxu0 0.0
        %797 = vmatpush1.msra.mxu0 0.0
        %798 = vmatprep.subr.mxu0 0.0
        %799 = vmatpush1.msra.mxu0 0.0
        %800 = vmatprep.subr.mxu0 0.0
        %801 = vmatpush1.msra.mxu0 0.0
        %802 = vmatprep.subr.mxu0 0.0
        %803 = vmatpush1.msra.mxu0 0.0
        %804 = vmatprep.subr.mxu0 0.0
        %805 = vmatpush1.msra.mxu0 0.0
        %806 = vmatprep.subr.mxu0 0.0
        %807 = vmatpush1.msra.mxu0 0.0
        %808 = vmatprep.subr.mxu0 0.0
        %809 = vmatpush1.msra.mxu0 0.0
        %810 = vmatprep.subr.mxu0 0.0
        %811 = vmatpush1.msra.mxu0 0.0
        %812 = vmatprep.subr.mxu0 0.0
        %813 = vmatpush1.msra.mxu0 0.0
        %814 = vmatprep.subr.mxu0 0.0
        %815 = vmatpush1.msra.mxu0 0.0
        %816 = vmatprep.subr.mxu0 0.0
        %817 = vmatpush1.msra.mxu0 0.0
        %818 = vmatprep.subr.mxu0 0.0
        %819 = vmatpush1.msra.mxu0 0.0
        %820 = vmatprep.mubr.f32.mxu0 0.0
        %v821 = vand.u32 %v412, 4294901760
        %v822 = vsub.f32 %v412, %v821
        %v823 = vand.u32 %v822, 4294901760
        %824 = vmatmul.mubr.f32.gmra.mrb[0].mxu0 %v823
        %v825 = vpop.f32.mrb[0].mxu0
        %v826 = vadd.f32 %v731, %v825
        %v827 = vpop.f32.mrb[0].mxu0
        %828 = vmatprep.mubr.f32.mxu0 0.0
        %v829 = vand.u32 %v415, 4294901760
        %v830 = vsub.f32 %v415, %v829
        %v831 = vand.u32 %v830, 4294901760
        %832 = vmatmul.mubr.f32.gmra.mrb[0].mxu0 %v831
        %v833 = vpop.f32.mrb[0].mxu0
        %v834 = vadd.f32 %v738, %v833
        %v835 = vpop.f32.mrb[0].mxu0
        %836 = vmatprep.mubr.f32.mxu0 0.0
        %v837 = vand.u32 %v418, 4294901760
        %v838 = vsub.f32 %v418, %v837
        %v839 = vand.u32 %v838, 4294901760
        %840 = vmatmul.mubr.f32.gmra.mrb[0].mxu0 %v839
        %v841 = vpop.f32.mrb[0].mxu0
        %v842 = vadd.f32 %v745, %v841
        %v843 = vpop.f32.mrb[0].mxu0
        %844 = vdwg.mxu0
        %845 = vmatprep.subr.mxu0 0.0
        %v846 = vand.u32 %v402, 4294901760
        %v847 = vsub.f32 %v402, %v846
        %v848 = vand.u32 %v847, 4294901760
        %849 = vmatpush1.msra.mxu0 %v848
        %850 = vmatprep.subr.mxu0 0.0
        %v851 = vand.u32 %v403, 4294901760
        %v852 = vsub.f32 %v403, %v851
        %v853 = vand.u32 %v852, 4294901760
        %854 = vmatpush1.msra.mxu0 %v853
        %855 = vmatprep.subr.mxu0 0.0
        %v856 = vand.u32 %v404, 4294901760
        %v857 = vsub.f32 %v404, %v856
        %v858 = vand.u32 %v857, 4294901760
        %859 = vmatpush1.msra.mxu0 %v858
        %860 = vmatprep.subr.mxu0 0.0
        %v861 = vand.u32 %v405, 4294901760
        %v862 = vsub.f32 %v405, %v861
        %v863 = vand.u32 %v862, 4294901760
        %864 = vmatpush1.msra.mxu0 %v863
        %865 = vmatprep.subr.mxu0 0.0
        %v866 = vand.u32 %v406, 4294901760
        %v867 = vsub.f32 %v406, %v866
        %v868 = vand.u32 %v867, 4294901760
        %869 = vmatpush1.msra.mxu0 %v868
        %870 = vmatprep.subr.mxu0 0.0
        %v871 = vand.u32 %v407, 4294901760
        %v872 = vsub.f32 %v407, %v871
        %v873 = vand.u32 %v872, 4294901760
        %874 = vmatpush1.msra.mxu0 %v873
        %875 = vmatprep.subr.mxu0 0.0
        %v876 = vand.u32 %v408, 4294901760
        %v877 = vsub.f32 %v408, %v876
        %v878 = vand.u32 %v877, 4294901760
        %879 = vmatpush1.msra.mxu0 %v878
        %880 = vmatprep.subr.mxu0 0.0
        %v881 = vand.u32 %v409, 4294901760
        %v882 = vsub.f32 %v409, %v881
        %v883 = vand.u32 %v882, 4294901760
        %884 = vmatpush1.msra.mxu0 %v883
        %885 = vmatprep.subr.mxu0 0.0
        %886 = vmatpush1.msra.mxu0 0.0
        %887 = vmatprep.subr.mxu0 0.0
        %888 = vmatpush1.msra.mxu0 0.0
        %889 = vmatprep.subr.mxu0 0.0
        %890 = vmatpush1.msra.mxu0 0.0
        %891 = vmatprep.subr.mxu0 0.0
        %892 = vmatpush1.msra.mxu0 0.0
        %893 = vmatprep.subr.mxu0 0.0
        %894 = vmatpush1.msra.mxu0 0.0
        %895 = vmatprep.subr.mxu0 0.0
        %896 = vmatpush1.msra.mxu0 0.0
        %897 = vmatprep.subr.mxu0 0.0
        %898 = vmatpush1.msra.mxu0 0.0
        %899 = vmatprep.subr.mxu0 0.0
        %900 = vmatpush1.msra.mxu0 0.0
        %901 = vmatprep.subr.mxu0 0.0
        %902 = vmatpush1.msra.mxu0 0.0
        %903 = vmatprep.subr.mxu0 0.0
        %904 = vmatpush1.msra.mxu0 0.0
        %905 = vmatprep.subr.mxu0 0.0
        %906 = vmatpush1.msra.mxu0 0.0
        %907 = vmatprep.subr.mxu0 0.0
        %908 = vmatpush1.msra.mxu0 0.0
        %909 = vmatprep.subr.mxu0 0.0
        %910 = vmatpush1.msra.mxu0 0.0
        %911 = vmatprep.subr.mxu0 0.0
        %912 = vmatpush1.msra.mxu0 0.0
        %913 = vmatprep.subr.mxu0 0.0
        %914 = vmatpush1.msra.mxu0 0.0
        %915 = vmatprep.subr.mxu0 0.0
        %916 = vmatpush1.msra.mxu0 0.0
        %917 = vmatprep.subr.mxu0 0.0
        %918 = vmatpush1.msra.mxu0 0.0
        %919 = vmatprep.subr.mxu0 0.0
        %920 = vmatpush1.msra.mxu0 0.0
        %921 = vmatprep.subr.mxu0 0.0
        %922 = vmatpush1.msra.mxu0 0.0
        %923 = vmatprep.subr.mxu0 0.0
        %924 = vmatpush1.msra.mxu0 0.0
        %925 = vmatprep.subr.mxu0 0.0
        %926 = vmatpush1.msra.mxu0 0.0
        %927 = vmatprep.subr.mxu0 0.0
        %928 = vmatpush1.msra.mxu0 0.0
        %929 = vmatprep.subr.mxu0 0.0
        %930 = vmatpush1.msra.mxu0 0.0
        %931 = vmatprep.subr.mxu0 0.0
        %932 = vmatpush1.msra.mxu0 0.0
        %933 = vmatprep.mubr.f32.mxu0 0.0
        %v934 = vand.u32 %v412, 4294901760
        %935 = vmatmul.mubr.f32.gmra.mrb[0].mxu0 %v934
        %v936 = vpop.f32.mrb[0].mxu0
        %v937 = vadd.f32 %v826, %v936
        %v938 = vpop.f32.mrb[0].mxu0
        %939 = vmatprep.mubr.f32.mxu0 0.0
        %v940 = vand.u32 %v415, 4294901760
        %941 = vmatmul.mubr.f32.gmra.mrb[0].mxu0 %v940
        %v942 = vpop.f32.mrb[0].mxu0
        %v943 = vadd.f32 %v834, %v942
        %v944 = vpop.f32.mrb[0].mxu0
        %945 = vmatprep.mubr.f32.mxu0 0.0
        %v946 = vand.u32 %v418, 4294901760
        %947 = vmatmul.mubr.f32.gmra.mrb[0].mxu0 %v946
        %v948 = vpop.f32.mrb[0].mxu0
        %v949 = vadd.f32 %v842, %v948
        %v950 = vpop.f32.mrb[0].mxu0
        %951 = vdwg.mxu0
        %952 = vmatprep.subr.mxu0 0.0
        %v953 = vand.u32 %v402, 4294901760
        %954 = vmatpush1.msra.mxu0 %v953
        %955 = vmatprep.subr.mxu0 0.0
        %v956 = vand.u32 %v403, 4294901760
        %957 = vmatpush1.msra.mxu0 %v956
        %958 = vmatprep.subr.mxu0 0.0
        %v959 = vand.u32 %v404, 4294901760
        %960 = vmatpush1.msra.mxu0 %v959
        %961 = vmatprep.subr.mxu0 0.0
        %v962 = vand.u32 %v405, 4294901760
        %963 = vmatpush1.msra.mxu0 %v962
        %964 = vmatprep.subr.mxu0 0.0
        %v965 = vand.u32 %v406, 4294901760
        %966 = vmatpush1.msra.mxu0 %v965
        %967 = vmatprep.subr.mxu0 0.0
        %v968 = vand.u32 %v407, 4294901760
        %969 = vmatpush1.msra.mxu0 %v968
        %970 = vmatprep.subr.mxu0 0.0
        %v971 = vand.u32 %v408, 4294901760
        %972 = vmatpush1.msra.mxu0 %v971
        %973 = vmatprep.subr.mxu0 0.0
        %v974 = vand.u32 %v409, 4294901760
        %975 = vmatpush1.msra.mxu0 %v974
        %976 = vmatprep.subr.mxu0 0.0
        %977 = vmatpush1.msra.mxu0 0.0
        %978 = vmatprep.subr.mxu0 0.0
        %979 = vmatpush1.msra.mxu0 0.0
        %980 = vmatprep.subr.mxu0 0.0
        %981 = vmatpush1.msra.mxu0 0.0
        %982 = vmatprep.subr.mxu0 0.0
        %983 = vmatpush1.msra.mxu0 0.0
        %984 = vmatprep.subr.mxu0 0.0
        %985 = vmatpush1.msra.mxu0 0.0
        %986 = vmatprep.subr.mxu0 0.0
        %987 = vmatpush1.msra.mxu0 0.0
        %988 = vmatprep.subr.mxu0 0.0
        %989 = vmatpush1.msra.mxu0 0.0
        %990 = vmatprep.subr.mxu0 0.0
        %991 = vmatpush1.msra.mxu0 0.0
        %992 = vmatprep.subr.mxu0 0.0
        %993 = vmatpush1.msra.mxu0 0.0
        %994 = vmatprep.subr.mxu0 0.0
        %995 = vmatpush1.msra.mxu0 0.0
        %996 = vmatprep.subr.mxu0 0.0
        %997 = vmatpush1.msra.mxu0 0.0
        %998 = vmatprep.subr.mxu0 0.0
        %999 = vmatpush1.msra.mxu0 0.0
        %1000 = vmatprep.subr.mxu0 0.0
        %1001 = vmatpush1.msra.mxu0 0.0
        %1002 = vmatprep.subr.mxu0 0.0
        %1003 = vmatpush1.msra.mxu0 0.0
        %1004 = vmatprep.subr.mxu0 0.0
        %1005 = vmatpush1.msra.mxu0 0.0
        %1006 = vmatprep.subr.mxu0 0.0
        %1007 = vmatpush1.msra.mxu0 0.0
        %1008 = vmatprep.subr.mxu0 0.0
        %1009 = vmatpush1.msra.mxu0 0.0
        %1010 = vmatprep.subr.mxu0 0.0
        %1011 = vmatpush1.msra.mxu0 0.0
        %1012 = vmatprep.subr.mxu0 0.0
        %1013 = vmatpush1.msra.mxu0 0.0
        %1014 = vmatprep.subr.mxu0 0.0
        %1015 = vmatpush1.msra.mxu0 0.0
        %1016 = vmatprep.subr.mxu0 0.0
        %1017 = vmatpush1.msra.mxu0 0.0
        %1018 = vmatprep.subr.mxu0 0.0
        %1019 = vmatpush1.msra.mxu0 0.0
        %1020 = vmatprep.subr.mxu0 0.0
        %1021 = vmatpush1.msra.mxu0 0.0
        %1022 = vmatprep.subr.mxu0 0.0
        %1023 = vmatpush1.msra.mxu0 0.0
        %1024 = vmatprep.mubr.f32.mxu0 0.0
        %v1025 = vand.u32 %v412, 4294901760
        %1026 = vmatmul.mubr.f32.gmra.mrb[0].mxu0 %v1025
        %v1027 = vpop.f32.mrb[0].mxu0
        %v1028 = vadd.f32 %v937, %v1027
        %v1029 = vpop.f32.mrb[0].mxu0
        %1030 = vmatprep.mubr.f32.mxu0 0.0
        %v1031 = vand.u32 %v415, 4294901760
        %1032 = vmatmul.mubr.f32.gmra.mrb[0].mxu0 %v1031
        %v1033 = vpop.f32.mrb[0].mxu0
        %v1034 = vadd.f32 %v943, %v1033
        %v1035 = vpop.f32.mrb[0].mxu0
        %1036 = vmatprep.mubr.f32.mxu0 0.0
        %v1037 = vand.u32 %v418, 4294901760
        %1038 = vmatmul.mubr.f32.gmra.mrb[0].mxu0 %v1037
        %v1039 = vpop.f32.mrb[0].mxu0
        %v1040 = vadd.f32 %v949, %v1039
        %v1041 = vpop.f32.mrb[0].mxu0
        %1042 = vdwg.mxu0
        %v1043 = vmax.f32 %v1028, 0.0
        %v1044 = vmax.f32 %v1034, 0.0
        %v1045 = vmax.f32 %v1040, 0.0
        %v1046 = vld [vmem:[%s370 + $0x18] sm:$0x3]
        %v1047 = vlaneseq
        %v1048 = vshrl.u32 %v1047, 7
        %v1049 = vsub.s32 0, %v1048
        %v1050 = vrot.slane %v1046, %v1049
        %1052 = vbcast.lane.b32.xlu0 %v1050, 256
        %v1053 = vpop.permute.xlu0 %1052
        %v1054 = vlaneseq
        %v1055 = vshrl.u32 %v1054, 7
        %v1056 = vsub.s32 1, %v1055
        %v1057 = vrot.slane %v1046, %v1056
        %1059 = vbcast.lane.b32.xlu0 %v1057, 256
        %v1060 = vpop.permute.xlu0 %1059
        %v1061 = vmul.f32 %v1043, %v1053
        %v1062 = vmul.f32 %v1044, %v1060
        %v1063 = vld [vmem:[#allocation4] sm:$0xff]
        %v1064 = vld [vmem:[#allocation4 + $0x8] sm:$0xff]
        %v1065 = vadd.f32 %v1063, %v398
        %v1066 = vadd.f32 %v1064, %v398
        %v1067 = vld [vmem:[%s5] sm:$0xff]
        %v1068 = vld [vmem:[%s5 + $0x8] sm:$0xff]
        %v1069 = vld [vmem:[%s5 + $0x10] sm:$0xff]
        %v1070 = vld [vmem:[%s5 + $0x18] sm:$0xff]
        %v1071 = vld [vmem:[%s5 + $0x20] sm:$0xff]
        %v1072 = vld [vmem:[%s5 + $0x28] sm:$0xff]
        %v1073 = vld [vmem:[%s5 + $0x30] sm:$0xff]
        %v1074 = vld [vmem:[%s5 + $0x38] sm:$0xff]
        %v1075 = vld [vmem:[%s5 + $0x40] sm:$0xff]
        %v1076 = vld [vmem:[%s5 + $0x48] sm:$0xff]
        %v1077 = vld [vmem:[%s5 + $0x50] sm:$0xff]
        %v1078 = vld [vmem:[%s5 + $0x58] sm:$0xff]
        %v1079 = vld [vmem:[%s5 + $0x60] sm:$0xff]
        %v1080 = vld [vmem:[%s5 + $0x68] sm:$0xff]
        %v1081 = vld [vmem:[%s5 + $0x70] sm:$0xff]
        %v1082 = vld [vmem:[%s5 + $0x78] sm:$0xff]
        %v1083 = vld [vmem:[%s5 + $0x80] sm:$0xff]
        %v1084 = vld [vmem:[%s5 + $0x88] sm:$0xff]
        %v1085 = vld [vmem:[%s5 + $0x90] sm:$0xff]
        %v1086 = vld [vmem:[%s5 + $0x98] sm:$0xff]
        %v1087 = vld [vmem:[%s5 + $0xa0] sm:$0xff]
        %v1088 = vld [vmem:[%s5 + $0xa8] sm:$0xff]
        %v1089 = vld [vmem:[%s5 + $0xb0] sm:$0xff]
        %v1090 = vld [vmem:[%s5 + $0xb8] sm:$0xff]
        %v1091 = vld [vmem:[%s5 + $0xc0] sm:$0xff]
        %v1092 = vld [vmem:[%s5 + $0xc8] sm:$0xff]
        %v1093 = vld [vmem:[%s5 + $0xd0] sm:$0xff]
        %v1094 = vld [vmem:[%s5 + $0xd8] sm:$0xff]
        %v1096 = vlaneseq
        %v1097 = vshrl.u32 %v1096, 7
        %v1098 = vsub.s32 0, %v1097
        %v1099 = vrot.slane %v392, %v1098
        %v1100 = vlaneseq
        %v1101 = vshrl.u32 %v1100, 7
        %v1102 = vsub.s32 1, %v1101
        %v1103 = vrot.slane %v392, %v1102
        %v1104 = vlaneseq
        %v1105 = vshrl.u32 %v1104, 7
        %v1106 = vsub.s32 2, %v1105
        %v1107 = vrot.slane %v392, %v1106
        %v1108 = vlaneseq
        %v1109 = vshrl.u32 %v1108, 7
        %v1110 = vsub.s32 3, %v1109
        %v1111 = vrot.slane %v392, %v1110
        %v1112 = vlaneseq
        %v1113 = vshrl.u32 %v1112, 7
        %v1114 = vsub.s32 4, %v1113
        %v1115 = vrot.slane %v392, %v1114
        %v1116 = vlaneseq
        %v1117 = vshrl.u32 %v1116, 7
        %v1118 = vsub.s32 5, %v1117
        %v1119 = vrot.slane %v392, %v1118
        %v1120 = vlaneseq
        %v1121 = vshrl.u32 %v1120, 7
        %v1122 = vsub.s32 6, %v1121
        %v1123 = vrot.slane %v392, %v1122
        %vm1131 = vcmask 261120
        %v1133 = vsel %vm1131, %v388, 0
        %v1135 = vand.u32 %v1068, 4294901760
        %1136 = vmatprep.subr.mxu0 %v1135
        %v1137 = vand.u32 %v1067, 4294901760
        %1138 = vmatpush1.msra.mxu0 %v1137
        %v1139 = vand.u32 %v1075, 4294901760
        %1140 = vmatprep.subr.mxu0 %v1139
        %v1141 = vand.u32 %v1074, 4294901760
        %1142 = vmatpush1.msra.mxu0 %v1141
        %v1143 = vand.u32 %v1082, 4294901760
        %1144 = vmatprep.subr.mxu0 %v1143
        %v1145 = vand.u32 %v1081, 4294901760
        %1146 = vmatpush1.msra.mxu0 %v1145
        %v1147 = vand.u32 %v1089, 4294901760
        %1148 = vmatprep.subr.mxu0 %v1147
        %v1149 = vand.u32 %v1088, 4294901760
        %1150 = vmatpush1.msra.mxu0 %v1149
        %1151 = vmatprep.subr.mxu0 0.0
        %1152 = vmatpush1.msra.mxu0 0.0
        %1153 = vmatprep.subr.mxu0 0.0
        %1154 = vmatpush1.msra.mxu0 0.0
        %1155 = vmatprep.subr.mxu0 0.0
        %1156 = vmatpush1.msra.mxu0 0.0
        %1157 = vmatprep.subr.mxu0 0.0
        %1158 = vmatpush1.msra.mxu0 0.0
        %1159 = vmatprep.subr.mxu0 0.0
        %1160 = vmatpush1.msra.mxu0 0.0
        %1161 = vmatprep.subr.mxu0 0.0
        %1162 = vmatpush1.msra.mxu0 0.0
        %1163 = vmatprep.subr.mxu0 0.0
        %1164 = vmatpush1.msra.mxu0 0.0
        %1165 = vmatprep.subr.mxu0 0.0
        %1166 = vmatpush1.msra.mxu0 0.0
        %1167 = vmatprep.subr.mxu0 0.0
        %1168 = vmatpush1.msra.mxu0 0.0
        %1169 = vmatprep.subr.mxu0 0.0
        %1170 = vmatpush1.msra.mxu0 0.0
        %1171 = vmatprep.subr.mxu0 0.0
        %1172 = vmatpush1.msra.mxu0 0.0
        %1173 = vmatprep.subr.mxu0 0.0
        %1174 = vmatpush1.msra.mxu0 0.0
        %1175 = vmatprep.subr.mxu0 0.0
        %1176 = vmatpush1.msra.mxu0 0.0
        %1177 = vmatprep.subr.mxu0 0.0
        %1178 = vmatpush1.msra.mxu0 0.0
        %1179 = vmatprep.subr.mxu0 0.0
        %1180 = vmatpush1.msra.mxu0 0.0
        %1181 = vmatprep.subr.mxu0 0.0
        %1182 = vmatpush1.msra.mxu0 0.0
        %1183 = vmatprep.subr.mxu0 0.0
        %1184 = vmatpush1.msra.mxu0 0.0
        %1185 = vmatprep.subr.mxu0 0.0
        %1186 = vmatpush1.msra.mxu0 0.0
        %1187 = vmatprep.subr.mxu0 0.0
        %1188 = vmatpush1.msra.mxu0 0.0
        %1189 = vmatprep.subr.mxu0 0.0
        %1190 = vmatpush1.msra.mxu0 0.0
        %1191 = vmatprep.subr.mxu0 0.0
        %1192 = vmatpush1.msra.mxu0 0.0
        %1193 = vmatprep.subr.mxu0 0.0
        %1194 = vmatpush1.msra.mxu0 0.0
        %1195 = vmatprep.subr.mxu0 0.0
        %1196 = vmatpush1.msra.mxu0 0.0
        %1197 = vmatprep.subr.mxu0 0.0
        %1198 = vmatpush1.msra.mxu0 0.0
        %1199 = vmatprep.subr.mxu0 0.0
        %1200 = vmatpush1.msra.mxu0 0.0
        %1201 = vmatprep.subr.mxu0 0.0
        %1202 = vmatpush1.msra.mxu0 0.0
        %1203 = vmatprep.subr.mxu0 0.0
        %1204 = vmatpush1.msra.mxu0 0.0
        %1205 = vmatprep.subr.mxu0 0.0
        %1206 = vmatpush1.msra.mxu0 0.0
        %1207 = vmatprep.mubr.f32.mxu0 0.0
        %v1208 = vand.u32 %v1133, 4294901760
        %v1209 = vsub.f32 %v1133, %v1208
        %v1210 = vand.u32 %v1209, 4294901760
        %v1211 = vsub.f32 %v1209, %v1210
        %v1212 = vand.u32 %v1211, 4294901760
        %1213 = vmatmul.mubr.f32.gmra.mrb[0].mxu0 %v1212
        %v1214 = vpop.f32.mrb[0].mxu0
        %v1215 = vadd.f32 %v1099, %v1214
        %v1216 = vpop.f32.mrb[0].mxu0
        %v1217 = vadd.f32 %v1103, %v1216
        %1218 = vdwg.mxu0
        %v1219 = vand.u32 %v1068, 4294901760
        %v1220 = vsub.f32 %v1068, %v1219
        %v1221 = vand.u32 %v1220, 4294901760
        %v1222 = vsub.f32 %v1220, %v1221
        %v1223 = vand.u32 %v1222, 4294901760
        %1224 = vmatprep.subr.mxu0 %v1223
        %v1225 = vand.u32 %v1067, 4294901760
        %v1226 = vsub.f32 %v1067, %v1225
        %v1227 = vand.u32 %v1226, 4294901760
        %v1228 = vsub.f32 %v1226, %v1227
        %v1229 = vand.u32 %v1228, 4294901760
        %1230 = vmatpush1.msra.mxu0 %v1229
        %v1231 = vand.u32 %v1075, 4294901760
        %v1232 = vsub.f32 %v1075, %v1231
        %v1233 = vand.u32 %v1232, 4294901760
        %v1234 = vsub.f32 %v1232, %v1233
        %v1235 = vand.u32 %v1234, 4294901760
        %1236 = vmatprep.subr.mxu0 %v1235
        %v1237 = vand.u32 %v1074, 4294901760
        %v1238 = vsub.f32 %v1074, %v1237
        %v1239 = vand.u32 %v1238, 4294901760
        %v1240 = vsub.f32 %v1238, %v1239
        %v1241 = vand.u32 %v1240, 4294901760
        %1242 = vmatpush1.msra.mxu0 %v1241
        %v1243 = vand.u32 %v1082, 4294901760
        %v1244 = vsub.f32 %v1082, %v1243
        %v1245 = vand.u32 %v1244, 4294901760
        %v1246 = vsub.f32 %v1244, %v1245
        %v1247 = vand.u32 %v1246, 4294901760
        %1248 = vmatprep.subr.mxu0 %v1247
        %v1249 = vand.u32 %v1081, 4294901760
        %v1250 = vsub.f32 %v1081, %v1249
        %v1251 = vand.u32 %v1250, 4294901760
        %v1252 = vsub.f32 %v1250, %v1251
        %v1253 = vand.u32 %v1252, 4294901760
        %1254 = vmatpush1.msra.mxu0 %v1253
        %v1255 = vand.u32 %v1089, 4294901760
        %v1256 = vsub.f32 %v1089, %v1255
        %v1257 = vand.u32 %v1256, 4294901760
        %v1258 = vsub.f32 %v1256, %v1257
        %v1259 = vand.u32 %v1258, 4294901760
        %1260 = vmatprep.subr.mxu0 %v1259
        %v1261 = vand.u32 %v1088, 4294901760
        %v1262 = vsub.f32 %v1088, %v1261
        %v1263 = vand.u32 %v1262, 4294901760
        %v1264 = vsub.f32 %v1262, %v1263
        %v1265 = vand.u32 %v1264, 4294901760
        %1266 = vmatpush1.msra.mxu0 %v1265
        %1267 = vmatprep.subr.mxu0 0.0
        %1268 = vmatpush1.msra.mxu0 0.0
        %1269 = vmatprep.subr.mxu0 0.0
        %1270 = vmatpush1.msra.mxu0 0.0
        %1271 = vmatprep.subr.mxu0 0.0
        %1272 = vmatpush1.msra.mxu0 0.0
        %1273 = vmatprep.subr.mxu0 0.0
        %1274 = vmatpush1.msra.mxu0 0.0
        %1275 = vmatprep.subr.mxu0 0.0
        %1276 = vmatpush1.msra.mxu0 0.0
        %1277 = vmatprep.subr.mxu0 0.0
        %1278 = vmatpush1.msra.mxu0 0.0
        %1279 = vmatprep.subr.mxu0 0.0
        %1280 = vmatpush1.msra.mxu0 0.0
        %1281 = vmatprep.subr.mxu0 0.0
        %1282 = vmatpush1.msra.mxu0 0.0
        %1283 = vmatprep.subr.mxu0 0.0
        %1284 = vmatpush1.msra.mxu0 0.0
        %1285 = vmatprep.subr.mxu0 0.0
        %1286 = vmatpush1.msra.mxu0 0.0
        %1287 = vmatprep.subr.mxu0 0.0
        %1288 = vmatpush1.msra.mxu0 0.0
        %1289 = vmatprep.subr.mxu0 0.0
        %1290 = vmatpush1.msra.mxu0 0.0
        %1291 = vmatprep.subr.mxu0 0.0
        %1292 = vmatpush1.msra.mxu0 0.0
        %1293 = vmatprep.subr.mxu0 0.0
        %1294 = vmatpush1.msra.mxu0 0.0
        %1295 = vmatprep.subr.mxu0 0.0
        %1296 = vmatpush1.msra.mxu0 0.0
        %1297 = vmatprep.subr.mxu0 0.0
        %1298 = vmatpush1.msra.mxu0 0.0
        %1299 = vmatprep.subr.mxu0 0.0
        %1300 = vmatpush1.msra.mxu0 0.0
        %1301 = vmatprep.subr.mxu0 0.0
        %1302 = vmatpush1.msra.mxu0 0.0
        %1303 = vmatprep.subr.mxu0 0.0
        %1304 = vmatpush1.msra.mxu0 0.0
        %1305 = vmatprep.subr.mxu0 0.0
        %1306 = vmatpush1.msra.mxu0 0.0
        %1307 = vmatprep.subr.mxu0 0.0
        %1308 = vmatpush1.msra.mxu0 0.0
        %1309 = vmatprep.subr.mxu0 0.0
        %1310 = vmatpush1.msra.mxu0 0.0
        %1311 = vmatprep.subr.mxu0 0.0
        %1312 = vmatpush1.msra.mxu0 0.0
        %1313 = vmatprep.subr.mxu0 0.0
        %1314 = vmatpush1.msra.mxu0 0.0
        %1315 = vmatprep.subr.mxu0 0.0
        %1316 = vmatpush1.msra.mxu0 0.0
        %1317 = vmatprep.subr.mxu0 0.0
        %1318 = vmatpush1.msra.mxu0 0.0
        %1319 = vmatprep.subr.mxu0 0.0
        %1320 = vmatpush1.msra.mxu0 0.0
        %1321 = vmatprep.subr.mxu0 0.0
        %1322 = vmatpush1.msra.mxu0 0.0
        %1323 = vmatprep.mubr.f32.mxu0 0.0
        %v1324 = vand.u32 %v1133, 4294901760
        %1325 = vmatmul.mubr.f32.gmra.mrb[0].mxu0 %v1324
        %v1326 = vpop.f32.mrb[0].mxu0
        %v1327 = vadd.f32 %v1215, %v1326
        %v1328 = vpop.f32.mrb[0].mxu0
        %v1329 = vadd.f32 %v1217, %v1328
        %1330 = vdwg.mxu0
        %v1331 = vand.u32 %v1068, 4294901760
        %v1332 = vsub.f32 %v1068, %v1331
        %1333 = vmatprep.subr.mxu0 %v1332
        %v1334 = vand.u32 %v1067, 4294901760
        %v1335 = vsub.f32 %v1067, %v1334
        %1336 = vmatpush1.msra.mxu0 %v1335
        %v1337 = vand.u32 %v1075, 4294901760
        %v1338 = vsub.f32 %v1075, %v1337
        %1339 = vmatprep.subr.mxu0 %v1338
        %v1340 = vand.u32 %v1074, 4294901760
        %v1341 = vsub.f32 %v1074, %v1340
        %1342 = vmatpush1.msra.mxu0 %v1341
        %v1343 = vand.u32 %v1082, 4294901760
        %v1344 = vsub.f32 %v1082, %v1343
        %1345 = vmatprep.subr.mxu0 %v1344
        %v1346 = vand.u32 %v1081, 4294901760
        %v1347 = vsub.f32 %v1081, %v1346
        %1348 = vmatpush1.msra.mxu0 %v1347
        %v1349 = vand.u32 %v1089, 4294901760
        %v1350 = vsub.f32 %v1089, %v1349
        %1351 = vmatprep.subr.mxu0 %v1350
        %v1352 = vand.u32 %v1088, 4294901760
        %v1353 = vsub.f32 %v1088, %v1352
        %1354 = vmatpush1.msra.mxu0 %v1353
        %1355 = vmatprep.subr.mxu0 0.0
        %1356 = vmatpush1.msra.mxu0 0.0
        %1357 = vmatprep.subr.mxu0 0.0
        %1358 = vmatpush1.msra.mxu0 0.0
        %1359 = vmatprep.subr.mxu0 0.0
        %1360 = vmatpush1.msra.mxu0 0.0
        %1361 = vmatprep.subr.mxu0 0.0
        %1362 = vmatpush1.msra.mxu0 0.0
        %1363 = vmatprep.subr.mxu0 0.0
        %1364 = vmatpush1.msra.mxu0 0.0
        %1365 = vmatprep.subr.mxu0 0.0
        %1366 = vmatpush1.msra.mxu0 0.0
        %1367 = vmatprep.subr.mxu0 0.0
        %1368 = vmatpush1.msra.mxu0 0.0
        %1369 = vmatprep.subr.mxu0 0.0
        %1370 = vmatpush1.msra.mxu0 0.0
        %1371 = vmatprep.subr.mxu0 0.0
        %1372 = vmatpush1.msra.mxu0 0.0
        %1373 = vmatprep.subr.mxu0 0.0
        %1374 = vmatpush1.msra.mxu0 0.0
        %1375 = vmatprep.subr.mxu0 0.0
        %1376 = vmatpush1.msra.mxu0 0.0
        %1377 = vmatprep.subr.mxu0 0.0
        %1378 = vmatpush1.msra.mxu0 0.0
        %1379 = vmatprep.subr.mxu0 0.0
        %1380 = vmatpush1.msra.mxu0 0.0
        %1381 = vmatprep.subr.mxu0 0.0
        %1382 = vmatpush1.msra.mxu0 0.0
        %1383 = vmatprep.subr.mxu0 0.0
        %1384 = vmatpush1.msra.mxu0 0.0
        %1385 = vmatprep.subr.mxu0 0.0
        %1386 = vmatpush1.msra.mxu0 0.0
        %1387 = vmatprep.subr.mxu0 0.0
        %1388 = vmatpush1.msra.mxu0 0.0
        %1389 = vmatprep.subr.mxu0 0.0
        %1390 = vmatpush1.msra.mxu0 0.0
        %1391 = vmatprep.subr.mxu0 0.0
        %1392 = vmatpush1.msra.mxu0 0.0
        %1393 = vmatprep.subr.mxu0 0.0
        %1394 = vmatpush1.msra.mxu0 0.0
        %1395 = vmatprep.subr.mxu0 0.0
        %1396 = vmatpush1.msra.mxu0 0.0
        %1397 = vmatprep.subr.mxu0 0.0
        %1398 = vmatpush1.msra.mxu0 0.0
        %1399 = vmatprep.subr.mxu0 0.0
        %1400 = vmatpush1.msra.mxu0 0.0
        %1401 = vmatprep.subr.mxu0 0.0
        %1402 = vmatpush1.msra.mxu0 0.0
        %1403 = vmatprep.subr.mxu0 0.0
        %1404 = vmatpush1.msra.mxu0 0.0
        %1405 = vmatprep.subr.mxu0 0.0
        %1406 = vmatpush1.msra.mxu0 0.0
        %1407 = vmatprep.subr.mxu0 0.0
        %1408 = vmatpush1.msra.mxu0 0.0
        %1409 = vmatprep.subr.mxu0 0.0
        %1410 = vmatpush1.msra.mxu0 0.0
        %1411 = vmatprep.mubr.f32.mxu0 0.0
        %v1412 = vand.u32 %v1133, 4294901760
        %v1413 = vsub.f32 %v1133, %v1412
        %1414 = vmatmul.mubr.f32.gmra.mrb[0].mxu0 %v1413
        %v1415 = vpop.f32.mrb[0].mxu0
        %v1416 = vadd.f32 %v1327, %v1415
        %v1417 = vpop.f32.mrb[0].mxu0
        %v1418 = vadd.f32 %v1329, %v1417
        %1419 = vdwg.mxu0
        %v1420 = vand.u32 %v1068, 4294901760
        %1421 = vmatprep.subr.mxu0 %v1420
        %v1422 = vand.u32 %v1067, 4294901760
        %1423 = vmatpush1.msra.mxu0 %v1422
        %v1424 = vand.u32 %v1075, 4294901760
        %1425 = vmatprep.subr.mxu0 %v1424
        %v1426 = vand.u32 %v1074, 4294901760
        %1427 = vmatpush1.msra.mxu0 %v1426
        %v1428 = vand.u32 %v1082, 4294901760
        %1429 = vmatprep.subr.mxu0 %v1428
        %v1430 = vand.u32 %v1081, 4294901760
        %1431 = vmatpush1.msra.mxu0 %v1430
        %v1432 = vand.u32 %v1089, 4294901760
        %1433 = vmatprep.subr.mxu0 %v1432
        %v1434 = vand.u32 %v1088, 4294901760
        %1435 = vmatpush1.msra.mxu0 %v1434
        %1436 = vmatprep.subr.mxu0 0.0
        %1437 = vmatpush1.msra.mxu0 0.0
        %1438 = vmatprep.subr.mxu0 0.0
        %1439 = vmatpush1.msra.mxu0 0.0
        %1440 = vmatprep.subr.mxu0 0.0
        %1441 = vmatpush1.msra.mxu0 0.0
        %1442 = vmatprep.subr.mxu0 0.0
        %1443 = vmatpush1.msra.mxu0 0.0
        %1444 = vmatprep.subr.mxu0 0.0
        %1445 = vmatpush1.msra.mxu0 0.0
        %1446 = vmatprep.subr.mxu0 0.0
        %1447 = vmatpush1.msra.mxu0 0.0
        %1448 = vmatprep.subr.mxu0 0.0
        %1449 = vmatpush1.msra.mxu0 0.0
        %1450 = vmatprep.subr.mxu0 0.0
        %1451 = vmatpush1.msra.mxu0 0.0
        %1452 = vmatprep.subr.mxu0 0.0
        %1453 = vmatpush1.msra.mxu0 0.0
        %1454 = vmatprep.subr.mxu0 0.0
        %1455 = vmatpush1.msra.mxu0 0.0
        %1456 = vmatprep.subr.mxu0 0.0
        %1457 = vmatpush1.msra.mxu0 0.0
        %1458 = vmatprep.subr.mxu0 0.0
        %1459 = vmatpush1.msra.mxu0 0.0
        %1460 = vmatprep.subr.mxu0 0.0
        %1461 = vmatpush1.msra.mxu0 0.0
        %1462 = vmatprep.subr.mxu0 0.0
        %1463 = vmatpush1.msra.mxu0 0.0
        %1464 = vmatprep.subr.mxu0 0.0
        %1465 = vmatpush1.msra.mxu0 0.0
        %1466 = vmatprep.subr.mxu0 0.0
        %1467 = vmatpush1.msra.mxu0 0.0
        %1468 = vmatprep.subr.mxu0 0.0
        %1469 = vmatpush1.msra.mxu0 0.0
        %1470 = vmatprep.subr.mxu0 0.0
        %1471 = vmatpush1.msra.mxu0 0.0
        %1472 = vmatprep.subr.mxu0 0.0
        %1473 = vmatpush1.msra.mxu0 0.0
        %1474 = vmatprep.subr.mxu0 0.0
        %1475 = vmatpush1.msra.mxu0 0.0
        %1476 = vmatprep.subr.mxu0 0.0
        %1477 = vmatpush1.msra.mxu0 0.0
        %1478 = vmatprep.subr.mxu0 0.0
        %1479 = vmatpush1.msra.mxu0 0.0
        %1480 = vmatprep.subr.mxu0 0.0
        %1481 = vmatpush1.msra.mxu0 0.0
        %1482 = vmatprep.subr.mxu0 0.0
        %1483 = vmatpush1.msra.mxu0 0.0
        %1484 = vmatprep.subr.mxu0 0.0
        %1485 = vmatpush1.msra.mxu0 0.0
        %1486 = vmatprep.subr.mxu0 0.0
        %1487 = vmatpush1.msra.mxu0 0.0
        %1488 = vmatprep.subr.mxu0 0.0
        %1489 = vmatpush1.msra.mxu0 0.0
        %1490 = vmatprep.subr.mxu0 0.0
        %1491 = vmatpush1.msra.mxu0 0.0
        %1492 = vmatprep.mubr.f32.mxu0 0.0
        %v1493 = vand.u32 %v1133, 4294901760
        %v1494 = vsub.f32 %v1133, %v1493
        %v1495 = vand.u32 %v1494, 4294901760
        %1496 = vmatmul.mubr.f32.gmra.mrb[0].mxu0 %v1495
        %v1497 = vpop.f32.mrb[0].mxu0
        %v1498 = vadd.f32 %v1416, %v1497
        %v1499 = vpop.f32.mrb[0].mxu0
        %v1500 = vadd.f32 %v1418, %v1499
        %1501 = vdwg.mxu0
        %v1502 = vand.u32 %v1068, 4294901760
        %v1503 = vsub.f32 %v1068, %v1502
        %v1504 = vand.u32 %v1503, 4294901760
        %1505 = vmatprep.subr.mxu0 %v1504
        %v1506 = vand.u32 %v1067, 4294901760
        %v1507 = vsub.f32 %v1067, %v1506
        %v1508 = vand.u32 %v1507, 4294901760
        %1509 = vmatpush1.msra.mxu0 %v1508
        %v1510 = vand.u32 %v1075, 4294901760
        %v1511 = vsub.f32 %v1075, %v1510
        %v1512 = vand.u32 %v1511, 4294901760
        %1513 = vmatprep.subr.mxu0 %v1512
        %v1514 = vand.u32 %v1074, 4294901760
        %v1515 = vsub.f32 %v1074, %v1514
        %v1516 = vand.u32 %v1515, 4294901760
        %1517 = vmatpush1.msra.mxu0 %v1516
        %v1518 = vand.u32 %v1082, 4294901760
        %v1519 = vsub.f32 %v1082, %v1518
        %v1520 = vand.u32 %v1519, 4294901760
        %1521 = vmatprep.subr.mxu0 %v1520
        %v1522 = vand.u32 %v1081, 4294901760
        %v1523 = vsub.f32 %v1081, %v1522
        %v1524 = vand.u32 %v1523, 4294901760
        %1525 = vmatpush1.msra.mxu0 %v1524
        %v1526 = vand.u32 %v1089, 4294901760
        %v1527 = vsub.f32 %v1089, %v1526
        %v1528 = vand.u32 %v1527, 4294901760
        %1529 = vmatprep.subr.mxu0 %v1528
        %v1530 = vand.u32 %v1088, 4294901760
        %v1531 = vsub.f32 %v1088, %v1530
        %v1532 = vand.u32 %v1531, 4294901760
        %1533 = vmatpush1.msra.mxu0 %v1532
        %1534 = vmatprep.subr.mxu0 0.0
        %1535 = vmatpush1.msra.mxu0 0.0
        %1536 = vmatprep.subr.mxu0 0.0
        %1537 = vmatpush1.msra.mxu0 0.0
        %1538 = vmatprep.subr.mxu0 0.0
        %1539 = vmatpush1.msra.mxu0 0.0
        %1540 = vmatprep.subr.mxu0 0.0
        %1541 = vmatpush1.msra.mxu0 0.0
        %1542 = vmatprep.subr.mxu0 0.0
        %1543 = vmatpush1.msra.mxu0 0.0
        %1544 = vmatprep.subr.mxu0 0.0
        %1545 = vmatpush1.msra.mxu0 0.0
        %1546 = vmatprep.subr.mxu0 0.0
        %1547 = vmatpush1.msra.mxu0 0.0
        %1548 = vmatprep.subr.mxu0 0.0
        %1549 = vmatpush1.msra.mxu0 0.0
        %1550 = vmatprep.subr.mxu0 0.0
        %1551 = vmatpush1.msra.mxu0 0.0
        %1552 = vmatprep.subr.mxu0 0.0
        %1553 = vmatpush1.msra.mxu0 0.0
        %1554 = vmatprep.subr.mxu0 0.0
        %1555 = vmatpush1.msra.mxu0 0.0
        %1556 = vmatprep.subr.mxu0 0.0
        %1557 = vmatpush1.msra.mxu0 0.0
        %1558 = vmatprep.subr.mxu0 0.0
        %1559 = vmatpush1.msra.mxu0 0.0
        %1560 = vmatprep.subr.mxu0 0.0
        %1561 = vmatpush1.msra.mxu0 0.0
        %1562 = vmatprep.subr.mxu0 0.0
        %1563 = vmatpush1.msra.mxu0 0.0
        %1564 = vmatprep.subr.mxu0 0.0
        %1565 = vmatpush1.msra.mxu0 0.0
        %1566 = vmatprep.subr.mxu0 0.0
        %1567 = vmatpush1.msra.mxu0 0.0
        %1568 = vmatprep.subr.mxu0 0.0
        %1569 = vmatpush1.msra.mxu0 0.0
        %1570 = vmatprep.subr.mxu0 0.0
        %1571 = vmatpush1.msra.mxu0 0.0
        %1572 = vmatprep.subr.mxu0 0.0
        %1573 = vmatpush1.msra.mxu0 0.0
        %1574 = vmatprep.subr.mxu0 0.0
        %1575 = vmatpush1.msra.mxu0 0.0
        %1576 = vmatprep.subr.mxu0 0.0
        %1577 = vmatpush1.msra.mxu0 0.0
        %1578 = vmatprep.subr.mxu0 0.0
        %1579 = vmatpush1.msra.mxu0 0.0
        %1580 = vmatprep.subr.mxu0 0.0
        %1581 = vmatpush1.msra.mxu0 0.0
        %1582 = vmatprep.subr.mxu0 0.0
        %1583 = vmatpush1.msra.mxu0 0.0
        %1584 = vmatprep.subr.mxu0 0.0
        %1585 = vmatpush1.msra.mxu0 0.0
        %1586 = vmatprep.subr.mxu0 0.0
        %1587 = vmatpush1.msra.mxu0 0.0
        %1588 = vmatprep.subr.mxu0 0.0
        %1589 = vmatpush1.msra.mxu0 0.0
        %1590 = vmatprep.mubr.f32.mxu0 0.0
        %v1591 = vand.u32 %v1133, 4294901760
        %1592 = vmatmul.mubr.f32.gmra.mrb[0].mxu0 %v1591
        %v1593 = vpop.f32.mrb[0].mxu0
        %v1594 = vadd.f32 %v1498, %v1593
        %v1595 = vpop.f32.mrb[0].mxu0
        %v1596 = vadd.f32 %v1500, %v1595
        %1597 = vdwg.mxu0
        %v1598 = vand.u32 %v1068, 4294901760
        %1599 = vmatprep.subr.mxu0 %v1598
        %v1600 = vand.u32 %v1067, 4294901760
        %1601 = vmatpush1.msra.mxu0 %v1600
        %v1602 = vand.u32 %v1075, 4294901760
        %1603 = vmatprep.subr.mxu0 %v1602
        %v1604 = vand.u32 %v1074, 4294901760
        %1605 = vmatpush1.msra.mxu0 %v1604
        %v1606 = vand.u32 %v1082, 4294901760
        %1607 = vmatprep.subr.mxu0 %v1606
        %v1608 = vand.u32 %v1081, 4294901760
        %1609 = vmatpush1.msra.mxu0 %v1608
        %v1610 = vand.u32 %v1089, 4294901760
        %1611 = vmatprep.subr.mxu0 %v1610
        %v1612 = vand.u32 %v1088, 4294901760
        %1613 = vmatpush1.msra.mxu0 %v1612
        %1614 = vmatprep.subr.mxu0 0.0
        %1615 = vmatpush1.msra.mxu0 0.0
        %1616 = vmatprep.subr.mxu0 0.0
        %1617 = vmatpush1.msra.mxu0 0.0
        %1618 = vmatprep.subr.mxu0 0.0
        %1619 = vmatpush1.msra.mxu0 0.0
        %1620 = vmatprep.subr.mxu0 0.0
        %1621 = vmatpush1.msra.mxu0 0.0
        %1622 = vmatprep.subr.mxu0 0.0
        %1623 = vmatpush1.msra.mxu0 0.0
        %1624 = vmatprep.subr.mxu0 0.0
        %1625 = vmatpush1.msra.mxu0 0.0
        %1626 = vmatprep.subr.mxu0 0.0
        %1627 = vmatpush1.msra.mxu0 0.0
        %1628 = vmatprep.subr.mxu0 0.0
        %1629 = vmatpush1.msra.mxu0 0.0
        %1630 = vmatprep.subr.mxu0 0.0
        %1631 = vmatpush1.msra.mxu0 0.0
        %1632 = vmatprep.subr.mxu0 0.0
        %1633 = vmatpush1.msra.mxu0 0.0
        %1634 = vmatprep.subr.mxu0 0.0
        %1635 = vmatpush1.msra.mxu0 0.0
        %1636 = vmatprep.subr.mxu0 0.0
        %1637 = vmatpush1.msra.mxu0 0.0
        %1638 = vmatprep.subr.mxu0 0.0
        %1639 = vmatpush1.msra.mxu0 0.0
        %1640 = vmatprep.subr.mxu0 0.0
        %1641 = vmatpush1.msra.mxu0 0.0
        %1642 = vmatprep.subr.mxu0 0.0
        %1643 = vmatpush1.msra.mxu0 0.0
        %1644 = vmatprep.subr.mxu0 0.0
        %1645 = vmatpush1.msra.mxu0 0.0
        %1646 = vmatprep.subr.mxu0 0.0
        %1647 = vmatpush1.msra.mxu0 0.0
        %1648 = vmatprep.subr.mxu0 0.0
        %1649 = vmatpush1.msra.mxu0 0.0
        %1650 = vmatprep.subr.mxu0 0.0
        %1651 = vmatpush1.msra.mxu0 0.0
        %1652 = vmatprep.subr.mxu0 0.0
        %1653 = vmatpush1.msra.mxu0 0.0
        %1654 = vmatprep.subr.mxu0 0.0
        %1655 = vmatpush1.msra.mxu0 0.0
        %1656 = vmatprep.subr.mxu0 0.0
        %1657 = vmatpush1.msra.mxu0 0.0
        %1658 = vmatprep.subr.mxu0 0.0
        %1659 = vmatpush1.msra.mxu0 0.0
        %1660 = vmatprep.subr.mxu0 0.0
        %1661 = vmatpush1.msra.mxu0 0.0
        %1662 = vmatprep.subr.mxu0 0.0
        %1663 = vmatpush1.msra.mxu0 0.0
        %1664 = vmatprep.subr.mxu0 0.0
        %1665 = vmatpush1.msra.mxu0 0.0
        %1666 = vmatprep.subr.mxu0 0.0
        %1667 = vmatpush1.msra.mxu0 0.0
        %1668 = vmatprep.subr.mxu0 0.0
        %1669 = vmatpush1.msra.mxu0 0.0
        %1670 = vmatprep.mubr.f32.mxu0 0.0
        %v1671 = vand.u32 %v1133, 4294901760
        %1672 = vmatmul.mubr.f32.gmra.mrb[0].mxu0 %v1671
        %v1673 = vpop.f32.mrb[0].mxu0
        %v1674 = vadd.f32 %v1594, %v1673
        %v1675 = vpop.f32.mrb[0].mxu0
        %v1676 = vadd.f32 %v1596, %v1675
        %1677 = vdwg.mxu0
        %v1678 = vand.u32 %v1070, 4294901760
        %1679 = vmatprep.subr.mxu0 %v1678
        %v1680 = vand.u32 %v1069, 4294901760
        %1681 = vmatpush1.msra.mxu0 %v1680
        %v1682 = vand.u32 %v1077, 4294901760
        %1683 = vmatprep.subr.mxu0 %v1682
        %v1684 = vand.u32 %v1076, 4294901760
        %1685 = vmatpush1.msra.mxu0 %v1684
        %v1686 = vand.u32 %v1084, 4294901760
        %1687 = vmatprep.subr.mxu0 %v1686
        %v1688 = vand.u32 %v1083, 4294901760
        %1689 = vmatpush1.msra.mxu0 %v1688
        %v1690 = vand.u32 %v1091, 4294901760
        %1691 = vmatprep.subr.mxu0 %v1690
        %v1692 = vand.u32 %v1090, 4294901760
        %1693 = vmatpush1.msra.mxu0 %v1692
        %1694 = vmatprep.subr.mxu0 0.0
        %1695 = vmatpush1.msra.mxu0 0.0
        %1696 = vmatprep.subr.mxu0 0.0
        %1697 = vmatpush1.msra.mxu0 0.0
        %1698 = vmatprep.subr.mxu0 0.0
        %1699 = vmatpush1.msra.mxu0 0.0
        %1700 = vmatprep.subr.mxu0 0.0
        %1701 = vmatpush1.msra.mxu0 0.0
        %1702 = vmatprep.subr.mxu0 0.0
        %1703 = vmatpush1.msra.mxu0 0.0
        %1704 = vmatprep.subr.mxu0 0.0
        %1705 = vmatpush1.msra.mxu0 0.0
        %1706 = vmatprep.subr.mxu0 0.0
        %1707 = vmatpush1.msra.mxu0 0.0
        %1708 = vmatprep.subr.mxu0 0.0
        %1709 = vmatpush1.msra.mxu0 0.0
        %1710 = vmatprep.subr.mxu0 0.0
        %1711 = vmatpush1.msra.mxu0 0.0
        %1712 = vmatprep.subr.mxu0 0.0
        %1713 = vmatpush1.msra.mxu0 0.0
        %1714 = vmatprep.subr.mxu0 0.0
        %1715 = vmatpush1.msra.mxu0 0.0
        %1716 = vmatprep.subr.mxu0 0.0
        %1717 = vmatpush1.msra.mxu0 0.0
        %1718 = vmatprep.subr.mxu0 0.0
        %1719 = vmatpush1.msra.mxu0 0.0
        %1720 = vmatprep.subr.mxu0 0.0
        %1721 = vmatpush1.msra.mxu0 0.0
        %1722 = vmatprep.subr.mxu0 0.0
        %1723 = vmatpush1.msra.mxu0 0.0
        %1724 = vmatprep.subr.mxu0 0.0
        %1725 = vmatpush1.msra.mxu0 0.0
        %1726 = vmatprep.subr.mxu0 0.0
        %1727 = vmatpush1.msra.mxu0 0.0
        %1728 = vmatprep.subr.mxu0 0.0
        %1729 = vmatpush1.msra.mxu0 0.0
        %1730 = vmatprep.subr.mxu0 0.0
        %1731 = vmatpush1.msra.mxu0 0.0
        %1732 = vmatprep.subr.mxu0 0.0
        %1733 = vmatpush1.msra.mxu0 0.0
        %1734 = vmatprep.subr.mxu0 0.0
        %1735 = vmatpush1.msra.mxu0 0.0
        %1736 = vmatprep.subr.mxu0 0.0
        %1737 = vmatpush1.msra.mxu0 0.0
        %1738 = vmatprep.subr.mxu0 0.0
        %1739 = vmatpush1.msra.mxu0 0.0
        %1740 = vmatprep.subr.mxu0 0.0
        %1741 = vmatpush1.msra.mxu0 0.0
        %1742 = vmatprep.subr.mxu0 0.0
        %1743 = vmatpush1.msra.mxu0 0.0
        %1744 = vmatprep.subr.mxu0 0.0
        %1745 = vmatpush1.msra.mxu0 0.0
        %1746 = vmatprep.subr.mxu0 0.0
        %1747 = vmatpush1.msra.mxu0 0.0
        %1748 = vmatprep.subr.mxu0 0.0
        %1749 = vmatpush1.msra.mxu0 0.0
        %1750 = vmatprep.mubr.f32.mxu0 0.0
        %v1751 = vand.u32 %v1133, 4294901760
        %v1752 = vsub.f32 %v1133, %v1751
        %v1753 = vand.u32 %v1752, 4294901760
        %v1754 = vsub.f32 %v1752, %v1753
        %v1755 = vand.u32 %v1754, 4294901760
        %1756 = vmatmul.mubr.f32.gmra.mrb[0].mxu0 %v1755
        %v1757 = vpop.f32.mrb[0].mxu0
        %v1758 = vadd.f32 %v1107, %v1757
        %v1759 = vpop.f32.mrb[0].mxu0
        %v1760 = vadd.f32 %v1111, %v1759
        %1761 = vdwg.mxu0
        %v1762 = vand.u32 %v1070, 4294901760
        %v1763 = vsub.f32 %v1070, %v1762
        %v1764 = vand.u32 %v1763, 4294901760
        %v1765 = vsub.f32 %v1763, %v1764
        %v1766 = vand.u32 %v1765, 4294901760
        %1767 = vmatprep.subr.mxu0 %v1766
        %v1768 = vand.u32 %v1069, 4294901760
        %v1769 = vsub.f32 %v1069, %v1768
        %v1770 = vand.u32 %v1769, 4294901760
        %v1771 = vsub.f32 %v1769, %v1770
        %v1772 = vand.u32 %v1771, 4294901760
        %1773 = vmatpush1.msra.mxu0 %v1772
        %v1774 = vand.u32 %v1077, 4294901760
        %v1775 = vsub.f32 %v1077, %v1774
        %v1776 = vand.u32 %v1775, 4294901760
        %v1777 = vsub.f32 %v1775, %v1776
        %v1778 = vand.u32 %v1777, 4294901760
        %1779 = vmatprep.subr.mxu0 %v1778
        %v1780 = vand.u32 %v1076, 4294901760
        %v1781 = vsub.f32 %v1076, %v1780
        %v1782 = vand.u32 %v1781, 4294901760
        %v1783 = vsub.f32 %v1781, %v1782
        %v1784 = vand.u32 %v1783, 4294901760
        %1785 = vmatpush1.msra.mxu0 %v1784
        %v1786 = vand.u32 %v1084, 4294901760
        %v1787 = vsub.f32 %v1084, %v1786
        %v1788 = vand.u32 %v1787, 4294901760
        %v1789 = vsub.f32 %v1787, %v1788
        %v1790 = vand.u32 %v1789, 4294901760
        %1791 = vmatprep.subr.mxu0 %v1790
        %v1792 = vand.u32 %v1083, 4294901760
        %v1793 = vsub.f32 %v1083, %v1792
        %v1794 = vand.u32 %v1793, 4294901760
        %v1795 = vsub.f32 %v1793, %v1794
        %v1796 = vand.u32 %v1795, 4294901760
        %1797 = vmatpush1.msra.mxu0 %v1796
        %v1798 = vand.u32 %v1091, 4294901760
        %v1799 = vsub.f32 %v1091, %v1798
        %v1800 = vand.u32 %v1799, 4294901760
        %v1801 = vsub.f32 %v1799, %v1800
        %v1802 = vand.u32 %v1801, 4294901760
        %1803 = vmatprep.subr.mxu0 %v1802
        %v1804 = vand.u32 %v1090, 4294901760
        %v1805 = vsub.f32 %v1090, %v1804
        %v1806 = vand.u32 %v1805, 4294901760
        %v1807 = vsub.f32 %v1805, %v1806
        %v1808 = vand.u32 %v1807, 4294901760
        %1809 = vmatpush1.msra.mxu0 %v1808
        %1810 = vmatprep.subr.mxu0 0.0
        %1811 = vmatpush1.msra.mxu0 0.0
        %1812 = vmatprep.subr.mxu0 0.0
        %1813 = vmatpush1.msra.mxu0 0.0
        %1814 = vmatprep.subr.mxu0 0.0
        %1815 = vmatpush1.msra.mxu0 0.0
        %1816 = vmatprep.subr.mxu0 0.0
        %1817 = vmatpush1.msra.mxu0 0.0
        %1818 = vmatprep.subr.mxu0 0.0
        %1819 = vmatpush1.msra.mxu0 0.0
        %1820 = vmatprep.subr.mxu0 0.0
        %1821 = vmatpush1.msra.mxu0 0.0
        %1822 = vmatprep.subr.mxu0 0.0
        %1823 = vmatpush1.msra.mxu0 0.0
        %1824 = vmatprep.subr.mxu0 0.0
        %1825 = vmatpush1.msra.mxu0 0.0
        %1826 = vmatprep.subr.mxu0 0.0
        %1827 = vmatpush1.msra.mxu0 0.0
        %1828 = vmatprep.subr.mxu0 0.0
        %1829 = vmatpush1.msra.mxu0 0.0
        %1830 = vmatprep.subr.mxu0 0.0
        %1831 = vmatpush1.msra.mxu0 0.0
        %1832 = vmatprep.subr.mxu0 0.0
        %1833 = vmatpush1.msra.mxu0 0.0
        %1834 = vmatprep.subr.mxu0 0.0
        %1835 = vmatpush1.msra.mxu0 0.0
        %1836 = vmatprep.subr.mxu0 0.0
        %1837 = vmatpush1.msra.mxu0 0.0
        %1838 = vmatprep.subr.mxu0 0.0
        %1839 = vmatpush1.msra.mxu0 0.0
        %1840 = vmatprep.subr.mxu0 0.0
        %1841 = vmatpush1.msra.mxu0 0.0
        %1842 = vmatprep.subr.mxu0 0.0
        %1843 = vmatpush1.msra.mxu0 0.0
        %1844 = vmatprep.subr.mxu0 0.0
        %1845 = vmatpush1.msra.mxu0 0.0
        %1846 = vmatprep.subr.mxu0 0.0
        %1847 = vmatpush1.msra.mxu0 0.0
        %1848 = vmatprep.subr.mxu0 0.0
        %1849 = vmatpush1.msra.mxu0 0.0
        %1850 = vmatprep.subr.mxu0 0.0
        %1851 = vmatpush1.msra.mxu0 0.0
        %1852 = vmatprep.subr.mxu0 0.0
        %1853 = vmatpush1.msra.mxu0 0.0
        %1854 = vmatprep.subr.mxu0 0.0
        %1855 = vmatpush1.msra.mxu0 0.0
        %1856 = vmatprep.subr.mxu0 0.0
        %1857 = vmatpush1.msra.mxu0 0.0
        %1858 = vmatprep.subr.mxu0 0.0
        %1859 = vmatpush1.msra.mxu0 0.0
        %1860 = vmatprep.subr.mxu0 0.0
        %1861 = vmatpush1.msra.mxu0 0.0
        %1862 = vmatprep.subr.mxu0 0.0
        %1863 = vmatpush1.msra.mxu0 0.0
        %1864 = vmatprep.subr.mxu0 0.0
        %1865 = vmatpush1.msra.mxu0 0.0
        %1866 = vmatprep.mubr.f32.mxu0 0.0
        %v1867 = vand.u32 %v1133, 4294901760
        %1868 = vmatmul.mubr.f32.gmra.mrb[0].mxu0 %v1867
        %v1869 = vpop.f32.mrb[0].mxu0
        %v1870 = vadd.f32 %v1758, %v1869
        %v1871 = vpop.f32.mrb[0].mxu0
        %v1872 = vadd.f32 %v1760, %v1871
        %1873 = vdwg.mxu0
        %v1874 = vand.u32 %v1070, 4294901760
        %v1875 = vsub.f32 %v1070, %v1874
        %1876 = vmatprep.subr.mxu0 %v1875
        %v1877 = vand.u32 %v1069, 4294901760
        %v1878 = vsub.f32 %v1069, %v1877
        %1879 = vmatpush1.msra.mxu0 %v1878
        %v1880 = vand.u32 %v1077, 4294901760
        %v1881 = vsub.f32 %v1077, %v1880
        %1882 = vmatprep.subr.mxu0 %v1881
        %v1883 = vand.u32 %v1076, 4294901760
        %v1884 = vsub.f32 %v1076, %v1883
        %1885 = vmatpush1.msra.mxu0 %v1884
        %v1886 = vand.u32 %v1084, 4294901760
        %v1887 = vsub.f32 %v1084, %v1886
        %1888 = vmatprep.subr.mxu0 %v1887
        %v1889 = vand.u32 %v1083, 4294901760
        %v1890 = vsub.f32 %v1083, %v1889
        %1891 = vmatpush1.msra.mxu0 %v1890
        %v1892 = vand.u32 %v1091, 4294901760
        %v1893 = vsub.f32 %v1091, %v1892
        %1894 = vmatprep.subr.mxu0 %v1893
        %v1895 = vand.u32 %v1090, 4294901760
        %v1896 = vsub.f32 %v1090, %v1895
        %1897 = vmatpush1.msra.mxu0 %v1896
        %1898 = vmatprep.subr.mxu0 0.0
        %1899 = vmatpush1.msra.mxu0 0.0
        %1900 = vmatprep.subr.mxu0 0.0
        %1901 = vmatpush1.msra.mxu0 0.0
        %1902 = vmatprep.subr.mxu0 0.0
        %1903 = vmatpush1.msra.mxu0 0.0
        %1904 = vmatprep.subr.mxu0 0.0
        %1905 = vmatpush1.msra.mxu0 0.0
        %1906 = vmatprep.subr.mxu0 0.0
        %1907 = vmatpush1.msra.mxu0 0.0
        %1908 = vmatprep.subr.mxu0 0.0
        %1909 = vmatpush1.msra.mxu0 0.0
        %1910 = vmatprep.subr.mxu0 0.0
        %1911 = vmatpush1.msra.mxu0 0.0
        %1912 = vmatprep.subr.mxu0 0.0
        %1913 = vmatpush1.msra.mxu0 0.0
        %1914 = vmatprep.subr.mxu0 0.0
        %1915 = vmatpush1.msra.mxu0 0.0
        %1916 = vmatprep.subr.mxu0 0.0
        %1917 = vmatpush1.msra.mxu0 0.0
        %1918 = vmatprep.subr.mxu0 0.0
        %1919 = vmatpush1.msra.mxu0 0.0
        %1920 = vmatprep.subr.mxu0 0.0
        %1921 = vmatpush1.msra.mxu0 0.0
        %1922 = vmatprep.subr.mxu0 0.0
        %1923 = vmatpush1.msra.mxu0 0.0
        %1924 = vmatprep.subr.mxu0 0.0
        %1925 = vmatpush1.msra.mxu0 0.0
        %1926 = vmatprep.subr.mxu0 0.0
        %1927 = vmatpush1.msra.mxu0 0.0
        %1928 = vmatprep.subr.mxu0 0.0
        %1929 = vmatpush1.msra.mxu0 0.0
        %1930 = vmatprep.subr.mxu0 0.0
        %1931 = vmatpush1.msra.mxu0 0.0
        %1932 = vmatprep.subr.mxu0 0.0
        %1933 = vmatpush1.msra.mxu0 0.0
        %1934 = vmatprep.subr.mxu0 0.0
        %1935 = vmatpush1.msra.mxu0 0.0
        %1936 = vmatprep.subr.mxu0 0.0
        %1937 = vmatpush1.msra.mxu0 0.0
        %1938 = vmatprep.subr.mxu0 0.0
        %1939 = vmatpush1.msra.mxu0 0.0
        %1940 = vmatprep.subr.mxu0 0.0
        %1941 = vmatpush1.msra.mxu0 0.0
        %1942 = vmatprep.subr.mxu0 0.0
        %1943 = vmatpush1.msra.mxu0 0.0
        %1944 = vmatprep.subr.mxu0 0.0
        %1945 = vmatpush1.msra.mxu0 0.0
        %1946 = vmatprep.subr.mxu0 0.0
        %1947 = vmatpush1.msra.mxu0 0.0
        %1948 = vmatprep.subr.mxu0 0.0
        %1949 = vmatpush1.msra.mxu0 0.0
        %1950 = vmatprep.subr.mxu0 0.0
        %1951 = vmatpush1.msra.mxu0 0.0
        %1952 = vmatprep.subr.mxu0 0.0
        %1953 = vmatpush1.msra.mxu0 0.0
        %1954 = vmatprep.mubr.f32.mxu0 0.0
        %v1955 = vand.u32 %v1133, 4294901760
        %v1956 = vsub.f32 %v1133, %v1955
        %1957 = vmatmul.mubr.f32.gmra.mrb[0].mxu0 %v1956
        %v1958 = vpop.f32.mrb[0].mxu0
        %v1959 = vadd.f32 %v1870, %v1958
        %v1960 = vpop.f32.mrb[0].mxu0
        %v1961 = vadd.f32 %v1872, %v1960
        %1962 = vdwg.mxu0
        %v1963 = vand.u32 %v1070, 4294901760
        %1964 = vmatprep.subr.mxu0 %v1963
        %v1965 = vand.u32 %v1069, 4294901760
        %1966 = vmatpush1.msra.mxu0 %v1965
        %v1967 = vand.u32 %v1077, 4294901760
        %1968 = vmatprep.subr.mxu0 %v1967
        %v1969 = vand.u32 %v1076, 4294901760
        %1970 = vmatpush1.msra.mxu0 %v1969
        %v1971 = vand.u32 %v1084, 4294901760
        %1972 = vmatprep.subr.mxu0 %v1971
        %v1973 = vand.u32 %v1083, 4294901760
        %1974 = vmatpush1.msra.mxu0 %v1973
        %v1975 = vand.u32 %v1091, 4294901760
        %1976 = vmatprep.subr.mxu0 %v1975
        %v1977 = vand.u32 %v1090, 4294901760
        %1978 = vmatpush1.msra.mxu0 %v1977
        %1979 = vmatprep.subr.mxu0 0.0
        %1980 = vmatpush1.msra.mxu0 0.0
        %1981 = vmatprep.subr.mxu0 0.0
        %1982 = vmatpush1.msra.mxu0 0.0
        %1983 = vmatprep.subr.mxu0 0.0
        %1984 = vmatpush1.msra.mxu0 0.0
        %1985 = vmatprep.subr.mxu0 0.0
        %1986 = vmatpush1.msra.mxu0 0.0
        %1987 = vmatprep.subr.mxu0 0.0
        %1988 = vmatpush1.msra.mxu0 0.0
        %1989 = vmatprep.subr.mxu0 0.0
        %1990 = vmatpush1.msra.mxu0 0.0
        %1991 = vmatprep.subr.mxu0 0.0
        %1992 = vmatpush1.msra.mxu0 0.0
        %1993 = vmatprep.subr.mxu0 0.0
        %1994 = vmatpush1.msra.mxu0 0.0
        %1995 = vmatprep.subr.mxu0 0.0
        %1996 = vmatpush1.msra.mxu0 0.0
        %1997 = vmatprep.subr.mxu0 0.0
        %1998 = vmatpush1.msra.mxu0 0.0
        %1999 = vmatprep.subr.mxu0 0.0
        %2000 = vmatpush1.msra.mxu0 0.0
        %2001 = vmatprep.subr.mxu0 0.0
        %2002 = vmatpush1.msra.mxu0 0.0
        %2003 = vmatprep.subr.mxu0 0.0
        %2004 = vmatpush1.msra.mxu0 0.0
        %2005 = vmatprep.subr.mxu0 0.0
        %2006 = vmatpush1.msra.mxu0 0.0
        %2007 = vmatprep.subr.mxu0 0.0
        %2008 = vmatpush1.msra.mxu0 0.0
        %2009 = vmatprep.subr.mxu0 0.0
        %2010 = vmatpush1.msra.mxu0 0.0
        %2011 = vmatprep.subr.mxu0 0.0
        %2012 = vmatpush1.msra.mxu0 0.0
        %2013 = vmatprep.subr.mxu0 0.0
        %2014 = vmatpush1.msra.mxu0 0.0
        %2015 = vmatprep.subr.mxu0 0.0
        %2016 = vmatpush1.msra.mxu0 0.0
        %2017 = vmatprep.subr.mxu0 0.0
        %2018 = vmatpush1.msra.mxu0 0.0
        %2019 = vmatprep.subr.mxu0 0.0
        %2020 = vmatpush1.msra.mxu0 0.0
        %2021 = vmatprep.subr.mxu0 0.0
        %2022 = vmatpush1.msra.mxu0 0.0
        %2023 = vmatprep.subr.mxu0 0.0
        %2024 = vmatpush1.msra.mxu0 0.0
        %2025 = vmatprep.subr.mxu0 0.0
        %2026 = vmatpush1.msra.mxu0 0.0
        %2027 = vmatprep.subr.mxu0 0.0
        %2028 = vmatpush1.msra.mxu0 0.0
        %2029 = vmatprep.subr.mxu0 0.0
        %2030 = vmatpush1.msra.mxu0 0.0
        %2031 = vmatprep.subr.mxu0 0.0
        %2032 = vmatpush1.msra.mxu0 0.0
        %2033 = vmatprep.subr.mxu0 0.0
        %2034 = vmatpush1.msra.mxu0 0.0
        %2035 = vmatprep.mubr.f32.mxu0 0.0
        %v2036 = vand.u32 %v1133, 4294901760
        %v2037 = vsub.f32 %v1133, %v2036
        %v2038 = vand.u32 %v2037, 4294901760
        %2039 = vmatmul.mubr.f32.gmra.mrb[0].mxu0 %v2038
        %v2040 = vpop.f32.mrb[0].mxu0
        %v2041 = vadd.f32 %v1959, %v2040
        %v2042 = vpop.f32.mrb[0].mxu0
        %v2043 = vadd.f32 %v1961, %v2042
        %2044 = vdwg.mxu0
        %v2045 = vand.u32 %v1070, 4294901760
        %v2046 = vsub.f32 %v1070, %v2045
        %v2047 = vand.u32 %v2046, 4294901760
        %2048 = vmatprep.subr.mxu0 %v2047
        %v2049 = vand.u32 %v1069, 4294901760
        %v2050 = vsub.f32 %v1069, %v2049
        %v2051 = vand.u32 %v2050, 4294901760
        %2052 = vmatpush1.msra.mxu0 %v2051
        %v2053 = vand.u32 %v1077, 4294901760
        %v2054 = vsub.f32 %v1077, %v2053
        %v2055 = vand.u32 %v2054, 4294901760
        %2056 = vmatprep.subr.mxu0 %v2055
        %v2057 = vand.u32 %v1076, 4294901760
        %v2058 = vsub.f32 %v1076, %v2057
        %v2059 = vand.u32 %v2058, 4294901760
        %2060 = vmatpush1.msra.mxu0 %v2059
        %v2061 = vand.u32 %v1084, 4294901760
        %v2062 = vsub.f32 %v1084, %v2061
        %v2063 = vand.u32 %v2062, 4294901760
        %2064 = vmatprep.subr.mxu0 %v2063
        %v2065 = vand.u32 %v1083, 4294901760
        %v2066 = vsub.f32 %v1083, %v2065
        %v2067 = vand.u32 %v2066, 4294901760
        %2068 = vmatpush1.msra.mxu0 %v2067
        %v2069 = vand.u32 %v1091, 4294901760
        %v2070 = vsub.f32 %v1091, %v2069
        %v2071 = vand.u32 %v2070, 4294901760
        %2072 = vmatprep.subr.mxu0 %v2071
        %v2073 = vand.u32 %v1090, 4294901760
        %v2074 = vsub.f32 %v1090, %v2073
        %v2075 = vand.u32 %v2074, 4294901760
        %2076 = vmatpush1.msra.mxu0 %v2075
        %2077 = vmatprep.subr.mxu0 0.0
        %2078 = vmatpush1.msra.mxu0 0.0
        %2079 = vmatprep.subr.mxu0 0.0
        %2080 = vmatpush1.msra.mxu0 0.0
        %2081 = vmatprep.subr.mxu0 0.0
        %2082 = vmatpush1.msra.mxu0 0.0
        %2083 = vmatprep.subr.mxu0 0.0
        %2084 = vmatpush1.msra.mxu0 0.0
        %2085 = vmatprep.subr.mxu0 0.0
        %2086 = vmatpush1.msra.mxu0 0.0
        %2087 = vmatprep.subr.mxu0 0.0
        %2088 = vmatpush1.msra.mxu0 0.0
        %2089 = vmatprep.subr.mxu0 0.0
        %2090 = vmatpush1.msra.mxu0 0.0
        %2091 = vmatprep.subr.mxu0 0.0
        %2092 = vmatpush1.msra.mxu0 0.0
        %2093 = vmatprep.subr.mxu0 0.0
        %2094 = vmatpush1.msra.mxu0 0.0
        %2095 = vmatprep.subr.mxu0 0.0
        %2096 = vmatpush1.msra.mxu0 0.0
        %2097 = vmatprep.subr.mxu0 0.0
        %2098 = vmatpush1.msra.mxu0 0.0
        %2099 = vmatprep.subr.mxu0 0.0
        %2100 = vmatpush1.msra.mxu0 0.0
        %2101 = vmatprep.subr.mxu0 0.0
        %2102 = vmatpush1.msra.mxu0 0.0
        %2103 = vmatprep.subr.mxu0 0.0
        %2104 = vmatpush1.msra.mxu0 0.0
        %2105 = vmatprep.subr.mxu0 0.0
        %2106 = vmatpush1.msra.mxu0 0.0
        %2107 = vmatprep.subr.mxu0 0.0
        %2108 = vmatpush1.msra.mxu0 0.0
        %2109 = vmatprep.subr.mxu0 0.0
        %2110 = vmatpush1.msra.mxu0 0.0
        %2111 = vmatprep.subr.mxu0 0.0
        %2112 = vmatpush1.msra.mxu0 0.0
        %2113 = vmatprep.subr.mxu0 0.0
        %2114 = vmatpush1.msra.mxu0 0.0
        %2115 = vmatprep.subr.mxu0 0.0
        %2116 = vmatpush1.msra.mxu0 0.0
        %2117 = vmatprep.subr.mxu0 0.0
        %2118 = vmatpush1.msra.mxu0 0.0
        %2119 = vmatprep.subr.mxu0 0.0
        %2120 = vmatpush1.msra.mxu0 0.0
        %2121 = vmatprep.subr.mxu0 0.0
        %2122 = vmatpush1.msra.mxu0 0.0
        %2123 = vmatprep.subr.mxu0 0.0
        %2124 = vmatpush1.msra.mxu0 0.0
        %2125 = vmatprep.subr.mxu0 0.0
        %2126 = vmatpush1.msra.mxu0 0.0
        %2127 = vmatprep.subr.mxu0 0.0
        %2128 = vmatpush1.msra.mxu0 0.0
        %2129 = vmatprep.subr.mxu0 0.0
        %2130 = vmatpush1.msra.mxu0 0.0
        %2131 = vmatprep.subr.mxu0 0.0
        %2132 = vmatpush1.msra.mxu0 0.0
        %2133 = vmatprep.mubr.f32.mxu0 0.0
        %v2134 = vand.u32 %v1133, 4294901760
        %2135 = vmatmul.mubr.f32.gmra.mrb[0].mxu0 %v2134
        %v2136 = vpop.f32.mrb[0].mxu0
        %v2137 = vadd.f32 %v2041, %v2136
        %v2138 = vpop.f32.mrb[0].mxu0
        %v2139 = vadd.f32 %v2043, %v2138
        %2140 = vdwg.mxu0
        %v2141 = vand.u32 %v1070, 4294901760
        %2142 = vmatprep.subr.mxu0 %v2141
        %v2143 = vand.u32 %v1069, 4294901760
        %2144 = vmatpush1.msra.mxu0 %v2143
        %v2145 = vand.u32 %v1077, 4294901760
        %2146 = vmatprep.subr.mxu0 %v2145
        %v2147 = vand.u32 %v1076, 4294901760
        %2148 = vmatpush1.msra.mxu0 %v2147
        %v2149 = vand.u32 %v1084, 4294901760
        %2150 = vmatprep.subr.mxu0 %v2149
        %v2151 = vand.u32 %v1083, 4294901760
        %2152 = vmatpush1.msra.mxu0 %v2151
        %v2153 = vand.u32 %v1091, 4294901760
        %2154 = vmatprep.subr.mxu0 %v2153
        %v2155 = vand.u32 %v1090, 4294901760
        %2156 = vmatpush1.msra.mxu0 %v2155
        %2157 = vmatprep.subr.mxu0 0.0
        %2158 = vmatpush1.msra.mxu0 0.0
        %2159 = vmatprep.subr.mxu0 0.0
        %2160 = vmatpush1.msra.mxu0 0.0
        %2161 = vmatprep.subr.mxu0 0.0
        %2162 = vmatpush1.msra.mxu0 0.0
        %2163 = vmatprep.subr.mxu0 0.0
        %2164 = vmatpush1.msra.mxu0 0.0
        %2165 = vmatprep.subr.mxu0 0.0
        %2166 = vmatpush1.msra.mxu0 0.0
        %2167 = vmatprep.subr.mxu0 0.0
        %2168 = vmatpush1.msra.mxu0 0.0
        %2169 = vmatprep.subr.mxu0 0.0
        %2170 = vmatpush1.msra.mxu0 0.0
        %2171 = vmatprep.subr.mxu0 0.0
        %2172 = vmatpush1.msra.mxu0 0.0
        %2173 = vmatprep.subr.mxu0 0.0
        %2174 = vmatpush1.msra.mxu0 0.0
        %2175 = vmatprep.subr.mxu0 0.0
        %2176 = vmatpush1.msra.mxu0 0.0
        %2177 = vmatprep.subr.mxu0 0.0
        %2178 = vmatpush1.msra.mxu0 0.0
        %2179 = vmatprep.subr.mxu0 0.0
        %2180 = vmatpush1.msra.mxu0 0.0
        %2181 = vmatprep.subr.mxu0 0.0
        %2182 = vmatpush1.msra.mxu0 0.0
        %2183 = vmatprep.subr.mxu0 0.0
        %2184 = vmatpush1.msra.mxu0 0.0
        %2185 = vmatprep.subr.mxu0 0.0
        %2186 = vmatpush1.msra.mxu0 0.0
        %2187 = vmatprep.subr.mxu0 0.0
        %2188 = vmatpush1.msra.mxu0 0.0
        %2189 = vmatprep.subr.mxu0 0.0
        %2190 = vmatpush1.msra.mxu0 0.0
        %2191 = vmatprep.subr.mxu0 0.0
        %2192 = vmatpush1.msra.mxu0 0.0
        %2193 = vmatprep.subr.mxu0 0.0
        %2194 = vmatpush1.msra.mxu0 0.0
        %2195 = vmatprep.subr.mxu0 0.0
        %2196 = vmatpush1.msra.mxu0 0.0
        %2197 = vmatprep.subr.mxu0 0.0
        %2198 = vmatpush1.msra.mxu0 0.0
        %2199 = vmatprep.subr.mxu0 0.0
        %2200 = vmatpush1.msra.mxu0 0.0
        %2201 = vmatprep.subr.mxu0 0.0
        %2202 = vmatpush1.msra.mxu0 0.0
        %2203 = vmatprep.subr.mxu0 0.0
        %2204 = vmatpush1.msra.mxu0 0.0
        %2205 = vmatprep.subr.mxu0 0.0
        %2206 = vmatpush1.msra.mxu0 0.0
        %2207 = vmatprep.subr.mxu0 0.0
        %2208 = vmatpush1.msra.mxu0 0.0
        %2209 = vmatprep.subr.mxu0 0.0
        %2210 = vmatpush1.msra.mxu0 0.0
        %2211 = vmatprep.subr.mxu0 0.0
        %2212 = vmatpush1.msra.mxu0 0.0
        %2213 = vmatprep.mubr.f32.mxu0 0.0
        %v2214 = vand.u32 %v1133, 4294901760
        %2215 = vmatmul.mubr.f32.gmra.mrb[0].mxu0 %v2214
        %v2216 = vpop.f32.mrb[0].mxu0
        %v2217 = vadd.f32 %v2137, %v2216
        %v2218 = vpop.f32.mrb[0].mxu0
        %v2219 = vadd.f32 %v2139, %v2218
        %2220 = vdwg.mxu0
        %v2221 = vand.u32 %v1072, 4294901760
        %2222 = vmatprep.subr.mxu0 %v2221
        %v2223 = vand.u32 %v1071, 4294901760
        %2224 = vmatpush1.msra.mxu0 %v2223
        %v2225 = vand.u32 %v1079, 4294901760
        %2226 = vmatprep.subr.mxu0 %v2225
        %v2227 = vand.u32 %v1078, 4294901760
        %2228 = vmatpush1.msra.mxu0 %v2227
        %v2229 = vand.u32 %v1086, 4294901760
        %2230 = vmatprep.subr.mxu0 %v2229
        %v2231 = vand.u32 %v1085, 4294901760
        %2232 = vmatpush1.msra.mxu0 %v2231
        %v2233 = vand.u32 %v1093, 4294901760
        %2234 = vmatprep.subr.mxu0 %v2233
        %v2235 = vand.u32 %v1092, 4294901760
        %2236 = vmatpush1.msra.mxu0 %v2235
        %2237 = vmatprep.subr.mxu0 0.0
        %2238 = vmatpush1.msra.mxu0 0.0
        %2239 = vmatprep.subr.mxu0 0.0
        %2240 = vmatpush1.msra.mxu0 0.0
        %2241 = vmatprep.subr.mxu0 0.0
        %2242 = vmatpush1.msra.mxu0 0.0
        %2243 = vmatprep.subr.mxu0 0.0
        %2244 = vmatpush1.msra.mxu0 0.0
        %2245 = vmatprep.subr.mxu0 0.0
        %2246 = vmatpush1.msra.mxu0 0.0
        %2247 = vmatprep.subr.mxu0 0.0
        %2248 = vmatpush1.msra.mxu0 0.0
        %2249 = vmatprep.subr.mxu0 0.0
        %2250 = vmatpush1.msra.mxu0 0.0
        %2251 = vmatprep.subr.mxu0 0.0
        %2252 = vmatpush1.msra.mxu0 0.0
        %2253 = vmatprep.subr.mxu0 0.0
        %2254 = vmatpush1.msra.mxu0 0.0
        %2255 = vmatprep.subr.mxu0 0.0
        %2256 = vmatpush1.msra.mxu0 0.0
        %2257 = vmatprep.subr.mxu0 0.0
        %2258 = vmatpush1.msra.mxu0 0.0
        %2259 = vmatprep.subr.mxu0 0.0
        %2260 = vmatpush1.msra.mxu0 0.0
        %2261 = vmatprep.subr.mxu0 0.0
        %2262 = vmatpush1.msra.mxu0 0.0
        %2263 = vmatprep.subr.mxu0 0.0
        %2264 = vmatpush1.msra.mxu0 0.0
        %2265 = vmatprep.subr.mxu0 0.0
        %2266 = vmatpush1.msra.mxu0 0.0
        %2267 = vmatprep.subr.mxu0 0.0
        %2268 = vmatpush1.msra.mxu0 0.0
        %2269 = vmatprep.subr.mxu0 0.0
        %2270 = vmatpush1.msra.mxu0 0.0
        %2271 = vmatprep.subr.mxu0 0.0
        %2272 = vmatpush1.msra.mxu0 0.0
        %2273 = vmatprep.subr.mxu0 0.0
        %2274 = vmatpush1.msra.mxu0 0.0
        %2275 = vmatprep.subr.mxu0 0.0
        %2276 = vmatpush1.msra.mxu0 0.0
        %2277 = vmatprep.subr.mxu0 0.0
        %2278 = vmatpush1.msra.mxu0 0.0
        %2279 = vmatprep.subr.mxu0 0.0
        %2280 = vmatpush1.msra.mxu0 0.0
        %2281 = vmatprep.subr.mxu0 0.0
        %2282 = vmatpush1.msra.mxu0 0.0
        %2283 = vmatprep.subr.mxu0 0.0
        %2284 = vmatpush1.msra.mxu0 0.0
        %2285 = vmatprep.subr.mxu0 0.0
        %2286 = vmatpush1.msra.mxu0 0.0
        %2287 = vmatprep.subr.mxu0 0.0
        %2288 = vmatpush1.msra.mxu0 0.0
        %2289 = vmatprep.subr.mxu0 0.0
        %2290 = vmatpush1.msra.mxu0 0.0
        %2291 = vmatprep.subr.mxu0 0.0
        %2292 = vmatpush1.msra.mxu0 0.0
        %2293 = vmatprep.mubr.f32.mxu0 0.0
        %v2294 = vand.u32 %v1133, 4294901760
        %v2295 = vsub.f32 %v1133, %v2294
        %v2296 = vand.u32 %v2295, 4294901760
        %v2297 = vsub.f32 %v2295, %v2296
        %v2298 = vand.u32 %v2297, 4294901760
        %2299 = vmatmul.mubr.f32.gmra.mrb[0].mxu0 %v2298
        %v2300 = vpop.f32.mrb[0].mxu0
        %v2301 = vadd.f32 %v1115, %v2300
        %v2302 = vpop.f32.mrb[0].mxu0
        %v2303 = vadd.f32 %v1119, %v2302
        %2304 = vdwg.mxu0
        %v2305 = vand.u32 %v1072, 4294901760
        %v2306 = vsub.f32 %v1072, %v2305
        %v2307 = vand.u32 %v2306, 4294901760
        %v2308 = vsub.f32 %v2306, %v2307
        %v2309 = vand.u32 %v2308, 4294901760
        %2310 = vmatprep.subr.mxu0 %v2309
        %v2311 = vand.u32 %v1071, 4294901760
        %v2312 = vsub.f32 %v1071, %v2311
        %v2313 = vand.u32 %v2312, 4294901760
        %v2314 = vsub.f32 %v2312, %v2313
        %v2315 = vand.u32 %v2314, 4294901760
        %2316 = vmatpush1.msra.mxu0 %v2315
        %v2317 = vand.u32 %v1079, 4294901760
        %v2318 = vsub.f32 %v1079, %v2317
        %v2319 = vand.u32 %v2318, 4294901760
        %v2320 = vsub.f32 %v2318, %v2319
        %v2321 = vand.u32 %v2320, 4294901760
        %2322 = vmatprep.subr.mxu0 %v2321
        %v2323 = vand.u32 %v1078, 4294901760
        %v2324 = vsub.f32 %v1078, %v2323
        %v2325 = vand.u32 %v2324, 4294901760
        %v2326 = vsub.f32 %v2324, %v2325
        %v2327 = vand.u32 %v2326, 4294901760
        %2328 = vmatpush1.msra.mxu0 %v2327
        %v2329 = vand.u32 %v1086, 4294901760
        %v2330 = vsub.f32 %v1086, %v2329
        %v2331 = vand.u32 %v2330, 4294901760
        %v2332 = vsub.f32 %v2330, %v2331
        %v2333 = vand.u32 %v2332, 4294901760
        %2334 = vmatprep.subr.mxu0 %v2333
        %v2335 = vand.u32 %v1085, 4294901760
        %v2336 = vsub.f32 %v1085, %v2335
        %v2337 = vand.u32 %v2336, 4294901760
        %v2338 = vsub.f32 %v2336, %v2337
        %v2339 = vand.u32 %v2338, 4294901760
        %2340 = vmatpush1.msra.mxu0 %v2339
        %v2341 = vand.u32 %v1093, 4294901760
        %v2342 = vsub.f32 %v1093, %v2341
        %v2343 = vand.u32 %v2342, 4294901760
        %v2344 = vsub.f32 %v2342, %v2343
        %v2345 = vand.u32 %v2344, 4294901760
        %2346 = vmatprep.subr.mxu0 %v2345
        %v2347 = vand.u32 %v1092, 4294901760
        %v2348 = vsub.f32 %v1092, %v2347
        %v2349 = vand.u32 %v2348, 4294901760
        %v2350 = vsub.f32 %v2348, %v2349
        %v2351 = vand.u32 %v2350, 4294901760
        %2352 = vmatpush1.msra.mxu0 %v2351
        %2353 = vmatprep.subr.mxu0 0.0
        %2354 = vmatpush1.msra.mxu0 0.0
        %2355 = vmatprep.subr.mxu0 0.0
        %2356 = vmatpush1.msra.mxu0 0.0
        %2357 = vmatprep.subr.mxu0 0.0
        %2358 = vmatpush1.msra.mxu0 0.0
        %2359 = vmatprep.subr.mxu0 0.0
        %2360 = vmatpush1.msra.mxu0 0.0
        %2361 = vmatprep.subr.mxu0 0.0
        %2362 = vmatpush1.msra.mxu0 0.0
        %2363 = vmatprep.subr.mxu0 0.0
        %2364 = vmatpush1.msra.mxu0 0.0
        %2365 = vmatprep.subr.mxu0 0.0
        %2366 = vmatpush1.msra.mxu0 0.0
        %2367 = vmatprep.subr.mxu0 0.0
        %2368 = vmatpush1.msra.mxu0 0.0
        %2369 = vmatprep.subr.mxu0 0.0
        %2370 = vmatpush1.msra.mxu0 0.0
        %2371 = vmatprep.subr.mxu0 0.0
        %2372 = vmatpush1.msra.mxu0 0.0
        %2373 = vmatprep.subr.mxu0 0.0
        %2374 = vmatpush1.msra.mxu0 0.0
        %2375 = vmatprep.subr.mxu0 0.0
        %2376 = vmatpush1.msra.mxu0 0.0
        %2377 = vmatprep.subr.mxu0 0.0
        %2378 = vmatpush1.msra.mxu0 0.0
        %2379 = vmatprep.subr.mxu0 0.0
        %2380 = vmatpush1.msra.mxu0 0.0
        %2381 = vmatprep.subr.mxu0 0.0
        %2382 = vmatpush1.msra.mxu0 0.0
        %2383 = vmatprep.subr.mxu0 0.0
        %2384 = vmatpush1.msra.mxu0 0.0
        %2385 = vmatprep.subr.mxu0 0.0
        %2386 = vmatpush1.msra.mxu0 0.0
        %2387 = vmatprep.subr.mxu0 0.0
        %2388 = vmatpush1.msra.mxu0 0.0
        %2389 = vmatprep.subr.mxu0 0.0
        %2390 = vmatpush1.msra.mxu0 0.0
        %2391 = vmatprep.subr.mxu0 0.0
        %2392 = vmatpush1.msra.mxu0 0.0
        %2393 = vmatprep.subr.mxu0 0.0
        %2394 = vmatpush1.msra.mxu0 0.0
        %2395 = vmatprep.subr.mxu0 0.0
        %2396 = vmatpush1.msra.mxu0 0.0
        %2397 = vmatprep.subr.mxu0 0.0
        %2398 = vmatpush1.msra.mxu0 0.0
        %2399 = vmatprep.subr.mxu0 0.0
        %2400 = vmatpush1.msra.mxu0 0.0
        %2401 = vmatprep.subr.mxu0 0.0
        %2402 = vmatpush1.msra.mxu0 0.0
        %2403 = vmatprep.subr.mxu0 0.0
        %2404 = vmatpush1.msra.mxu0 0.0
        %2405 = vmatprep.subr.mxu0 0.0
        %2406 = vmatpush1.msra.mxu0 0.0
        %2407 = vmatprep.subr.mxu0 0.0
        %2408 = vmatpush1.msra.mxu0 0.0
        %2409 = vmatprep.mubr.f32.mxu0 0.0
        %v2410 = vand.u32 %v1133, 4294901760
        %2411 = vmatmul.mubr.f32.gmra.mrb[0].mxu0 %v2410
        %v2412 = vpop.f32.mrb[0].mxu0
        %v2413 = vadd.f32 %v2301, %v2412
        %v2414 = vpop.f32.mrb[0].mxu0
        %v2415 = vadd.f32 %v2303, %v2414
        %2416 = vdwg.mxu0
        %v2417 = vand.u32 %v1072, 4294901760
        %v2418 = vsub.f32 %v1072, %v2417
        %2419 = vmatprep.subr.mxu0 %v2418
        %v2420 = vand.u32 %v1071, 4294901760
        %v2421 = vsub.f32 %v1071, %v2420
        %2422 = vmatpush1.msra.mxu0 %v2421
        %v2423 = vand.u32 %v1079, 4294901760
        %v2424 = vsub.f32 %v1079, %v2423
        %2425 = vmatprep.subr.mxu0 %v2424
        %v2426 = vand.u32 %v1078, 4294901760
        %v2427 = vsub.f32 %v1078, %v2426
        %2428 = vmatpush1.msra.mxu0 %v2427
        %v2429 = vand.u32 %v1086, 4294901760
        %v2430 = vsub.f32 %v1086, %v2429
        %2431 = vmatprep.subr.mxu0 %v2430
        %v2432 = vand.u32 %v1085, 4294901760
        %v2433 = vsub.f32 %v1085, %v2432
        %2434 = vmatpush1.msra.mxu0 %v2433
        %v2435 = vand.u32 %v1093, 4294901760
        %v2436 = vsub.f32 %v1093, %v2435
        %2437 = vmatprep.subr.mxu0 %v2436
        %v2438 = vand.u32 %v1092, 4294901760
        %v2439 = vsub.f32 %v1092, %v2438
        %2440 = vmatpush1.msra.mxu0 %v2439
        %2441 = vmatprep.subr.mxu0 0.0
        %2442 = vmatpush1.msra.mxu0 0.0
        %2443 = vmatprep.subr.mxu0 0.0
        %2444 = vmatpush1.msra.mxu0 0.0
        %2445 = vmatprep.subr.mxu0 0.0
        %2446 = vmatpush1.msra.mxu0 0.0
        %2447 = vmatprep.subr.mxu0 0.0
        %2448 = vmatpush1.msra.mxu0 0.0
        %2449 = vmatprep.subr.mxu0 0.0
        %2450 = vmatpush1.msra.mxu0 0.0
        %2451 = vmatprep.subr.mxu0 0.0
        %2452 = vmatpush1.msra.mxu0 0.0
        %2453 = vmatprep.subr.mxu0 0.0
        %2454 = vmatpush1.msra.mxu0 0.0
        %2455 = vmatprep.subr.mxu0 0.0
        %2456 = vmatpush1.msra.mxu0 0.0
        %2457 = vmatprep.subr.mxu0 0.0
        %2458 = vmatpush1.msra.mxu0 0.0
        %2459 = vmatprep.subr.mxu0 0.0
        %2460 = vmatpush1.msra.mxu0 0.0
        %2461 = vmatprep.subr.mxu0 0.0
        %2462 = vmatpush1.msra.mxu0 0.0
        %2463 = vmatprep.subr.mxu0 0.0
        %2464 = vmatpush1.msra.mxu0 0.0
        %2465 = vmatprep.subr.mxu0 0.0
        %2466 = vmatpush1.msra.mxu0 0.0
        %2467 = vmatprep.subr.mxu0 0.0
        %2468 = vmatpush1.msra.mxu0 0.0
        %2469 = vmatprep.subr.mxu0 0.0
        %2470 = vmatpush1.msra.mxu0 0.0
        %2471 = vmatprep.subr.mxu0 0.0
        %2472 = vmatpush1.msra.mxu0 0.0
        %2473 = vmatprep.subr.mxu0 0.0
        %2474 = vmatpush1.msra.mxu0 0.0
        %2475 = vmatprep.subr.mxu0 0.0
        %2476 = vmatpush1.msra.mxu0 0.0
        %2477 = vmatprep.subr.mxu0 0.0
        %2478 = vmatpush1.msra.mxu0 0.0
        %2479 = vmatprep.subr.mxu0 0.0
        %2480 = vmatpush1.msra.mxu0 0.0
        %2481 = vmatprep.subr.mxu0 0.0
        %2482 = vmatpush1.msra.mxu0 0.0
        %2483 = vmatprep.subr.mxu0 0.0
        %2484 = vmatpush1.msra.mxu0 0.0
        %2485 = vmatprep.subr.mxu0 0.0
        %2486 = vmatpush1.msra.mxu0 0.0
        %2487 = vmatprep.subr.mxu0 0.0
        %2488 = vmatpush1.msra.mxu0 0.0
        %2489 = vmatprep.subr.mxu0 0.0
        %2490 = vmatpush1.msra.mxu0 0.0
        %2491 = vmatprep.subr.mxu0 0.0
        %2492 = vmatpush1.msra.mxu0 0.0
        %2493 = vmatprep.subr.mxu0 0.0
        %2494 = vmatpush1.msra.mxu0 0.0
        %2495 = vmatprep.subr.mxu0 0.0
        %2496 = vmatpush1.msra.mxu0 0.0
        %2497 = vmatprep.mubr.f32.mxu0 0.0
        %v2498 = vand.u32 %v1133, 4294901760
        %v2499 = vsub.f32 %v1133, %v2498
        %2500 = vmatmul.mubr.f32.gmra.mrb[0].mxu0 %v2499
        %v2501 = vpop.f32.mrb[0].mxu0
        %v2502 = vadd.f32 %v2413, %v2501
        %v2503 = vpop.f32.mrb[0].mxu0
        %v2504 = vadd.f32 %v2415, %v2503
        %2505 = vdwg.mxu0
        %v2506 = vand.u32 %v1072, 4294901760
        %2507 = vmatprep.subr.mxu0 %v2506
        %v2508 = vand.u32 %v1071, 4294901760
        %2509 = vmatpush1.msra.mxu0 %v2508
        %v2510 = vand.u32 %v1079, 4294901760
        %2511 = vmatprep.subr.mxu0 %v2510
        %v2512 = vand.u32 %v1078, 4294901760
        %2513 = vmatpush1.msra.mxu0 %v2512
        %v2514 = vand.u32 %v1086, 4294901760
        %2515 = vmatprep.subr.mxu0 %v2514
        %v2516 = vand.u32 %v1085, 4294901760
        %2517 = vmatpush1.msra.mxu0 %v2516
        %v2518 = vand.u32 %v1093, 4294901760
        %2519 = vmatprep.subr.mxu0 %v2518
        %v2520 = vand.u32 %v1092, 4294901760
        %2521 = vmatpush1.msra.mxu0 %v2520
        %2522 = vmatprep.subr.mxu0 0.0
        %2523 = vmatpush1.msra.mxu0 0.0
        %2524 = vmatprep.subr.mxu0 0.0
        %2525 = vmatpush1.msra.mxu0 0.0
        %2526 = vmatprep.subr.mxu0 0.0
        %2527 = vmatpush1.msra.mxu0 0.0
        %2528 = vmatprep.subr.mxu0 0.0
        %2529 = vmatpush1.msra.mxu0 0.0
        %2530 = vmatprep.subr.mxu0 0.0
        %2531 = vmatpush1.msra.mxu0 0.0
        %2532 = vmatprep.subr.mxu0 0.0
        %2533 = vmatpush1.msra.mxu0 0.0
        %2534 = vmatprep.subr.mxu0 0.0
        %2535 = vmatpush1.msra.mxu0 0.0
        %2536 = vmatprep.subr.mxu0 0.0
        %2537 = vmatpush1.msra.mxu0 0.0
        %2538 = vmatprep.subr.mxu0 0.0
        %2539 = vmatpush1.msra.mxu0 0.0
        %2540 = vmatprep.subr.mxu0 0.0
        %2541 = vmatpush1.msra.mxu0 0.0
        %2542 = vmatprep.subr.mxu0 0.0
        %2543 = vmatpush1.msra.mxu0 0.0
        %2544 = vmatprep.subr.mxu0 0.0
        %2545 = vmatpush1.msra.mxu0 0.0
        %2546 = vmatprep.subr.mxu0 0.0
        %2547 = vmatpush1.msra.mxu0 0.0
        %2548 = vmatprep.subr.mxu0 0.0
        %2549 = vmatpush1.msra.mxu0 0.0
        %2550 = vmatprep.subr.mxu0 0.0
        %2551 = vmatpush1.msra.mxu0 0.0
        %2552 = vmatprep.subr.mxu0 0.0
        %2553 = vmatpush1.msra.mxu0 0.0
        %2554 = vmatprep.subr.mxu0 0.0
        %2555 = vmatpush1.msra.mxu0 0.0
        %2556 = vmatprep.subr.mxu0 0.0
        %2557 = vmatpush1.msra.mxu0 0.0
        %2558 = vmatprep.subr.mxu0 0.0
        %2559 = vmatpush1.msra.mxu0 0.0
        %2560 = vmatprep.subr.mxu0 0.0
        %2561 = vmatpush1.msra.mxu0 0.0
        %2562 = vmatprep.subr.mxu0 0.0
        %2563 = vmatpush1.msra.mxu0 0.0
        %2564 = vmatprep.subr.mxu0 0.0
        %2565 = vmatpush1.msra.mxu0 0.0
        %2566 = vmatprep.subr.mxu0 0.0
        %2567 = vmatpush1.msra.mxu0 0.0
        %2568 = vmatprep.subr.mxu0 0.0
        %2569 = vmatpush1.msra.mxu0 0.0
        %2570 = vmatprep.subr.mxu0 0.0
        %2571 = vmatpush1.msra.mxu0 0.0
        %2572 = vmatprep.subr.mxu0 0.0
        %2573 = vmatpush1.msra.mxu0 0.0
        %2574 = vmatprep.subr.mxu0 0.0
        %2575 = vmatpush1.msra.mxu0 0.0
        %2576 = vmatprep.subr.mxu0 0.0
        %2577 = vmatpush1.msra.mxu0 0.0
        %2578 = vmatprep.mubr.f32.mxu0 0.0
        %v2579 = vand.u32 %v1133, 4294901760
        %v2580 = vsub.f32 %v1133, %v2579
        %v2581 = vand.u32 %v2580, 4294901760
        %2582 = vmatmul.mubr.f32.gmra.mrb[0].mxu0 %v2581
        %v2583 = vpop.f32.mrb[0].mxu0
        %v2584 = vadd.f32 %v2502, %v2583
        %v2585 = vpop.f32.mrb[0].mxu0
        %v2586 = vadd.f32 %v2504, %v2585
        %2587 = vdwg.mxu0
        %v2588 = vand.u32 %v1072, 4294901760
        %v2589 = vsub.f32 %v1072, %v2588
        %v2590 = vand.u32 %v2589, 4294901760
        %2591 = vmatprep.subr.mxu0 %v2590
        %v2592 = vand.u32 %v1071, 4294901760
        %v2593 = vsub.f32 %v1071, %v2592
        %v2594 = vand.u32 %v2593, 4294901760
        %2595 = vmatpush1.msra.mxu0 %v2594
        %v2596 = vand.u32 %v1079, 4294901760
        %v2597 = vsub.f32 %v1079, %v2596
        %v2598 = vand.u32 %v2597, 4294901760
        %2599 = vmatprep.subr.mxu0 %v2598
        %v2600 = vand.u32 %v1078, 4294901760
        %v2601 = vsub.f32 %v1078, %v2600
        %v2602 = vand.u32 %v2601, 4294901760
        %2603 = vmatpush1.msra.mxu0 %v2602
        %v2604 = vand.u32 %v1086, 4294901760
        %v2605 = vsub.f32 %v1086, %v2604
        %v2606 = vand.u32 %v2605, 4294901760
        %2607 = vmatprep.subr.mxu0 %v2606
        %v2608 = vand.u32 %v1085, 4294901760
        %v2609 = vsub.f32 %v1085, %v2608
        %v2610 = vand.u32 %v2609, 4294901760
        %2611 = vmatpush1.msra.mxu0 %v2610
        %v2612 = vand.u32 %v1093, 4294901760
        %v2613 = vsub.f32 %v1093, %v2612
        %v2614 = vand.u32 %v2613, 4294901760
        %2615 = vmatprep.subr.mxu0 %v2614
        %v2616 = vand.u32 %v1092, 4294901760
        %v2617 = vsub.f32 %v1092, %v2616
        %v2618 = vand.u32 %v2617, 4294901760
        %2619 = vmatpush1.msra.mxu0 %v2618
        %2620 = vmatprep.subr.mxu0 0.0
        %2621 = vmatpush1.msra.mxu0 0.0
        %2622 = vmatprep.subr.mxu0 0.0
        %2623 = vmatpush1.msra.mxu0 0.0
        %2624 = vmatprep.subr.mxu0 0.0
        %2625 = vmatpush1.msra.mxu0 0.0
        %2626 = vmatprep.subr.mxu0 0.0
        %2627 = vmatpush1.msra.mxu0 0.0
        %2628 = vmatprep.subr.mxu0 0.0
        %2629 = vmatpush1.msra.mxu0 0.0
        %2630 = vmatprep.subr.mxu0 0.0
        %2631 = vmatpush1.msra.mxu0 0.0
        %2632 = vmatprep.subr.mxu0 0.0
        %2633 = vmatpush1.msra.mxu0 0.0
        %2634 = vmatprep.subr.mxu0 0.0
        %2635 = vmatpush1.msra.mxu0 0.0
        %2636 = vmatprep.subr.mxu0 0.0
        %2637 = vmatpush1.msra.mxu0 0.0
        %2638 = vmatprep.subr.mxu0 0.0
        %2639 = vmatpush1.msra.mxu0 0.0
        %2640 = vmatprep.subr.mxu0 0.0
        %2641 = vmatpush1.msra.mxu0 0.0
        %2642 = vmatprep.subr.mxu0 0.0
        %2643 = vmatpush1.msra.mxu0 0.0
        %2644 = vmatprep.subr.mxu0 0.0
        %2645 = vmatpush1.msra.mxu0 0.0
        %2646 = vmatprep.subr.mxu0 0.0
        %2647 = vmatpush1.msra.mxu0 0.0
        %2648 = vmatprep.subr.mxu0 0.0
        %2649 = vmatpush1.msra.mxu0 0.0
        %2650 = vmatprep.subr.mxu0 0.0
        %2651 = vmatpush1.msra.mxu0 0.0
        %2652 = vmatprep.subr.mxu0 0.0
        %2653 = vmatpush1.msra.mxu0 0.0
        %2654 = vmatprep.subr.mxu0 0.0
        %2655 = vmatpush1.msra.mxu0 0.0
        %2656 = vmatprep.subr.mxu0 0.0
        %2657 = vmatpush1.msra.mxu0 0.0
        %2658 = vmatprep.subr.mxu0 0.0
        %2659 = vmatpush1.msra.mxu0 0.0
        %2660 = vmatprep.subr.mxu0 0.0
        %2661 = vmatpush1.msra.mxu0 0.0
        %2662 = vmatprep.subr.mxu0 0.0
        %2663 = vmatpush1.msra.mxu0 0.0
        %2664 = vmatprep.subr.mxu0 0.0
        %2665 = vmatpush1.msra.mxu0 0.0
        %2666 = vmatprep.subr.mxu0 0.0
        %2667 = vmatpush1.msra.mxu0 0.0
        %2668 = vmatprep.subr.mxu0 0.0
        %2669 = vmatpush1.msra.mxu0 0.0
        %2670 = vmatprep.subr.mxu0 0.0
        %2671 = vmatpush1.msra.mxu0 0.0
        %2672 = vmatprep.subr.mxu0 0.0
        %2673 = vmatpush1.msra.mxu0 0.0
        %2674 = vmatprep.subr.mxu0 0.0
        %2675 = vmatpush1.msra.mxu0 0.0
        %2676 = vmatprep.mubr.f32.mxu0 0.0
        %v2677 = vand.u32 %v1133, 4294901760
        %2678 = vmatmul.mubr.f32.gmra.mrb[0].mxu0 %v2677
        %v2679 = vpop.f32.mrb[0].mxu0
        %v2680 = vadd.f32 %v2584, %v2679
        %v2681 = vpop.f32.mrb[0].mxu0
        %v2682 = vadd.f32 %v2586, %v2681
        %2683 = vdwg.mxu0
        %v2684 = vand.u32 %v1072, 4294901760
        %2685 = vmatprep.subr.mxu0 %v2684
        %v2686 = vand.u32 %v1071, 4294901760
        %2687 = vmatpush1.msra.mxu0 %v2686
        %v2688 = vand.u32 %v1079, 4294901760
        %2689 = vmatprep.subr.mxu0 %v2688
        %v2690 = vand.u32 %v1078, 4294901760
        %2691 = vmatpush1.msra.mxu0 %v2690
        %v2692 = vand.u32 %v1086, 4294901760
        %2693 = vmatprep.subr.mxu0 %v2692
        %v2694 = vand.u32 %v1085, 4294901760
        %2695 = vmatpush1.msra.mxu0 %v2694
        %v2696 = vand.u32 %v1093, 4294901760
        %2697 = vmatprep.subr.mxu0 %v2696
        %v2698 = vand.u32 %v1092, 4294901760
        %2699 = vmatpush1.msra.mxu0 %v2698
        %2700 = vmatprep.subr.mxu0 0.0
        %2701 = vmatpush1.msra.mxu0 0.0
        %2702 = vmatprep.subr.mxu0 0.0
        %2703 = vmatpush1.msra.mxu0 0.0
        %2704 = vmatprep.subr.mxu0 0.0
        %2705 = vmatpush1.msra.mxu0 0.0
        %2706 = vmatprep.subr.mxu0 0.0
        %2707 = vmatpush1.msra.mxu0 0.0
        %2708 = vmatprep.subr.mxu0 0.0
        %2709 = vmatpush1.msra.mxu0 0.0
        %2710 = vmatprep.subr.mxu0 0.0
        %2711 = vmatpush1.msra.mxu0 0.0
        %2712 = vmatprep.subr.mxu0 0.0
        %2713 = vmatpush1.msra.mxu0 0.0
        %2714 = vmatprep.subr.mxu0 0.0
        %2715 = vmatpush1.msra.mxu0 0.0
        %2716 = vmatprep.subr.mxu0 0.0
        %2717 = vmatpush1.msra.mxu0 0.0
        %2718 = vmatprep.subr.mxu0 0.0
        %2719 = vmatpush1.msra.mxu0 0.0
        %2720 = vmatprep.subr.mxu0 0.0
        %2721 = vmatpush1.msra.mxu0 0.0
        %2722 = vmatprep.subr.mxu0 0.0
        %2723 = vmatpush1.msra.mxu0 0.0
        %2724 = vmatprep.subr.mxu0 0.0
        %2725 = vmatpush1.msra.mxu0 0.0
        %2726 = vmatprep.subr.mxu0 0.0
        %2727 = vmatpush1.msra.mxu0 0.0
        %2728 = vmatprep.subr.mxu0 0.0
        %2729 = vmatpush1.msra.mxu0 0.0
        %2730 = vmatprep.subr.mxu0 0.0
        %2731 = vmatpush1.msra.mxu0 0.0
        %2732 = vmatprep.subr.mxu0 0.0
        %2733 = vmatpush1.msra.mxu0 0.0
        %2734 = vmatprep.subr.mxu0 0.0
        %2735 = vmatpush1.msra.mxu0 0.0
        %2736 = vmatprep.subr.mxu0 0.0
        %2737 = vmatpush1.msra.mxu0 0.0
        %2738 = vmatprep.subr.mxu0 0.0
        %2739 = vmatpush1.msra.mxu0 0.0
        %2740 = vmatprep.subr.mxu0 0.0
        %2741 = vmatpush1.msra.mxu0 0.0
        %2742 = vmatprep.subr.mxu0 0.0
        %2743 = vmatpush1.msra.mxu0 0.0
        %2744 = vmatprep.subr.mxu0 0.0
        %2745 = vmatpush1.msra.mxu0 0.0
        %2746 = vmatprep.subr.mxu0 0.0
        %2747 = vmatpush1.msra.mxu0 0.0
        %2748 = vmatprep.subr.mxu0 0.0
        %2749 = vmatpush1.msra.mxu0 0.0
        %2750 = vmatprep.subr.mxu0 0.0
        %2751 = vmatpush1.msra.mxu0 0.0
        %2752 = vmatprep.subr.mxu0 0.0
        %2753 = vmatpush1.msra.mxu0 0.0
        %2754 = vmatprep.subr.mxu0 0.0
        %2755 = vmatpush1.msra.mxu0 0.0
        %2756 = vmatprep.mubr.f32.mxu0 0.0
        %v2757 = vand.u32 %v1133, 4294901760
        %2758 = vmatmul.mubr.f32.gmra.mrb[0].mxu0 %v2757
        %v2759 = vpop.f32.mrb[0].mxu0
        %v2760 = vadd.f32 %v2680, %v2759
        %v2761 = vpop.f32.mrb[0].mxu0
        %v2762 = vadd.f32 %v2682, %v2761
        %2763 = vdwg.mxu0
        %2764 = vmatprep.subr.mxu0 0.0
        %v2765 = vand.u32 %v1073, 4294901760
        %2766 = vmatpush1.msra.mxu0 %v2765
        %2767 = vmatprep.subr.mxu0 0.0
        %v2768 = vand.u32 %v1080, 4294901760
        %2769 = vmatpush1.msra.mxu0 %v2768
        %2770 = vmatprep.subr.mxu0 0.0
        %v2771 = vand.u32 %v1087, 4294901760
        %2772 = vmatpush1.msra.mxu0 %v2771
        %2773 = vmatprep.subr.mxu0 0.0
        %v2774 = vand.u32 %v1094, 4294901760
        %2775 = vmatpush1.msra.mxu0 %v2774
        %2776 = vmatprep.subr.mxu0 0.0
        %2777 = vmatpush1.msra.mxu0 0.0
        %2778 = vmatprep.subr.mxu0 0.0
        %2779 = vmatpush1.msra.mxu0 0.0
        %2780 = vmatprep.subr.mxu0 0.0
        %2781 = vmatpush1.msra.mxu0 0.0
        %2782 = vmatprep.subr.mxu0 0.0
        %2783 = vmatpush1.msra.mxu0 0.0
        %2784 = vmatprep.subr.mxu0 0.0
        %2785 = vmatpush1.msra.mxu0 0.0
        %2786 = vmatprep.subr.mxu0 0.0
        %2787 = vmatpush1.msra.mxu0 0.0
        %2788 = vmatprep.subr.mxu0 0.0
        %2789 = vmatpush1.msra.mxu0 0.0
        %2790 = vmatprep.subr.mxu0 0.0
        %2791 = vmatpush1.msra.mxu0 0.0
        %2792 = vmatprep.subr.mxu0 0.0
        %2793 = vmatpush1.msra.mxu0 0.0
        %2794 = vmatprep.subr.mxu0 0.0
        %2795 = vmatpush1.msra.mxu0 0.0
        %2796 = vmatprep.subr.mxu0 0.0
        %2797 = vmatpush1.msra.mxu0 0.0
        %2798 = vmatprep.subr.mxu0 0.0
        %2799 = vmatpush1.msra.mxu0 0.0
        %2800 = vmatprep.subr.mxu0 0.0
        %2801 = vmatpush1.msra.mxu0 0.0
        %2802 = vmatprep.subr.mxu0 0.0
        %2803 = vmatpush1.msra.mxu0 0.0
        %2804 = vmatprep.subr.mxu0 0.0
        %2805 = vmatpush1.msra.mxu0 0.0
        %2806 = vmatprep.subr.mxu0 0.0
        %2807 = vmatpush1.msra.mxu0 0.0
        %2808 = vmatprep.subr.mxu0 0.0
        %2809 = vmatpush1.msra.mxu0 0.0
        %2810 = vmatprep.subr.mxu0 0.0
        %2811 = vmatpush1.msra.mxu0 0.0
        %2812 = vmatprep.subr.mxu0 0.0
        %2813 = vmatpush1.msra.mxu0 0.0
        %2814 = vmatprep.subr.mxu0 0.0
        %2815 = vmatpush1.msra.mxu0 0.0
        %2816 = vmatprep.subr.mxu0 0.0
        %2817 = vmatpush1.msra.mxu0 0.0
        %2818 = vmatprep.subr.mxu0 0.0
        %2819 = vmatpush1.msra.mxu0 0.0
        %2820 = vmatprep.subr.mxu0 0.0
        %2821 = vmatpush1.msra.mxu0 0.0
        %2822 = vmatprep.subr.mxu0 0.0
        %2823 = vmatpush1.msra.mxu0 0.0
        %2824 = vmatprep.subr.mxu0 0.0
        %2825 = vmatpush1.msra.mxu0 0.0
        %2826 = vmatprep.subr.mxu0 0.0
        %2827 = vmatpush1.msra.mxu0 0.0
        %2828 = vmatprep.subr.mxu0 0.0
        %2829 = vmatpush1.msra.mxu0 0.0
        %2830 = vmatprep.subr.mxu0 0.0
        %2831 = vmatpush1.msra.mxu0 0.0
        %2832 = vmatprep.mubr.f32.mxu0 0.0
        %v2833 = vand.u32 %v1133, 4294901760
        %v2834 = vsub.f32 %v1133, %v2833
        %v2835 = vand.u32 %v2834, 4294901760
        %v2836 = vsub.f32 %v2834, %v2835
        %v2837 = vand.u32 %v2836, 4294901760
        %2838 = vmatmul.mubr.f32.gmra.mrb[0].mxu0 %v2837
        %v2839 = vpop.f32.mrb[0].mxu0
        %v2840 = vadd.f32 %v1123, %v2839
        %v2841 = vpop.f32.mrb[0].mxu0
        %2842 = vdwg.mxu0
        %2843 = vmatprep.subr.mxu0 0.0
        %v2844 = vand.u32 %v1073, 4294901760
        %v2845 = vsub.f32 %v1073, %v2844
        %v2846 = vand.u32 %v2845, 4294901760
        %v2847 = vsub.f32 %v2845, %v2846
        %v2848 = vand.u32 %v2847, 4294901760
        %2849 = vmatpush1.msra.mxu0 %v2848
        %2850 = vmatprep.subr.mxu0 0.0
        %v2851 = vand.u32 %v1080, 4294901760
        %v2852 = vsub.f32 %v1080, %v2851
        %v2853 = vand.u32 %v2852, 4294901760
        %v2854 = vsub.f32 %v2852, %v2853
        %v2855 = vand.u32 %v2854, 4294901760
        %2856 = vmatpush1.msra.mxu0 %v2855
        %2857 = vmatprep.subr.mxu0 0.0
        %v2858 = vand.u32 %v1087, 4294901760
        %v2859 = vsub.f32 %v1087, %v2858
        %v2860 = vand.u32 %v2859, 4294901760
        %v2861 = vsub.f32 %v2859, %v2860
        %v2862 = vand.u32 %v2861, 4294901760
        %2863 = vmatpush1.msra.mxu0 %v2862
        %2864 = vmatprep.subr.mxu0 0.0
        %v2865 = vand.u32 %v1094, 4294901760
        %v2866 = vsub.f32 %v1094, %v2865
        %v2867 = vand.u32 %v2866, 4294901760
        %v2868 = vsub.f32 %v2866, %v2867
        %v2869 = vand.u32 %v2868, 4294901760
        %2870 = vmatpush1.msra.mxu0 %v2869
        %2871 = vmatprep.subr.mxu0 0.0
        %2872 = vmatpush1.msra.mxu0 0.0
        %2873 = vmatprep.subr.mxu0 0.0
        %2874 = vmatpush1.msra.mxu0 0.0
        %2875 = vmatprep.subr.mxu0 0.0
        %2876 = vmatpush1.msra.mxu0 0.0
        %2877 = vmatprep.subr.mxu0 0.0
        %2878 = vmatpush1.msra.mxu0 0.0
        %2879 = vmatprep.subr.mxu0 0.0
        %2880 = vmatpush1.msra.mxu0 0.0
        %2881 = vmatprep.subr.mxu0 0.0
        %2882 = vmatpush1.msra.mxu0 0.0
        %2883 = vmatprep.subr.mxu0 0.0
        %2884 = vmatpush1.msra.mxu0 0.0
        %2885 = vmatprep.subr.mxu0 0.0
        %2886 = vmatpush1.msra.mxu0 0.0
        %2887 = vmatprep.subr.mxu0 0.0
        %2888 = vmatpush1.msra.mxu0 0.0
        %2889 = vmatprep.subr.mxu0 0.0
        %2890 = vmatpush1.msra.mxu0 0.0
        %2891 = vmatprep.subr.mxu0 0.0
        %2892 = vmatpush1.msra.mxu0 0.0
        %2893 = vmatprep.subr.mxu0 0.0
        %2894 = vmatpush1.msra.mxu0 0.0
        %2895 = vmatprep.subr.mxu0 0.0
        %2896 = vmatpush1.msra.mxu0 0.0
        %2897 = vmatprep.subr.mxu0 0.0
        %2898 = vmatpush1.msra.mxu0 0.0
        %2899 = vmatprep.subr.mxu0 0.0
        %2900 = vmatpush1.msra.mxu0 0.0
        %2901 = vmatprep.subr.mxu0 0.0
        %2902 = vmatpush1.msra.mxu0 0.0
        %2903 = vmatprep.subr.mxu0 0.0
        %2904 = vmatpush1.msra.mxu0 0.0
        %2905 = vmatprep.subr.mxu0 0.0
        %2906 = vmatpush1.msra.mxu0 0.0
        %2907 = vmatprep.subr.mxu0 0.0
        %2908 = vmatpush1.msra.mxu0 0.0
        %2909 = vmatprep.subr.mxu0 0.0
        %2910 = vmatpush1.msra.mxu0 0.0
        %2911 = vmatprep.subr.mxu0 0.0
        %2912 = vmatpush1.msra.mxu0 0.0
        %2913 = vmatprep.subr.mxu0 0.0
        %2914 = vmatpush1.msra.mxu0 0.0
        %2915 = vmatprep.subr.mxu0 0.0
        %2916 = vmatpush1.msra.mxu0 0.0
        %2917 = vmatprep.subr.mxu0 0.0
        %2918 = vmatpush1.msra.mxu0 0.0
        %2919 = vmatprep.subr.mxu0 0.0
        %2920 = vmatpush1.msra.mxu0 0.0
        %2921 = vmatprep.subr.mxu0 0.0
        %2922 = vmatpush1.msra.mxu0 0.0
        %2923 = vmatprep.subr.mxu0 0.0
        %2924 = vmatpush1.msra.mxu0 0.0
        %2925 = vmatprep.subr.mxu0 0.0
        %2926 = vmatpush1.msra.mxu0 0.0
        %2927 = vmatprep.mubr.f32.mxu0 0.0
        %v2928 = vand.u32 %v1133, 4294901760
        %2929 = vmatmul.mubr.f32.gmra.mrb[0].mxu0 %v2928
        %v2930 = vpop.f32.mrb[0].mxu0
        %v2931 = vadd.f32 %v2840, %v2930
        %v2932 = vpop.f32.mrb[0].mxu0
        %2933 = vdwg.mxu0
        %2934 = vmatprep.subr.mxu0 0.0
        %v2935 = vand.u32 %v1073, 4294901760
        %v2936 = vsub.f32 %v1073, %v2935
        %2937 = vmatpush1.msra.mxu0 %v2936
        %2938 = vmatprep.subr.mxu0 0.0
        %v2939 = vand.u32 %v1080, 4294901760
        %v2940 = vsub.f32 %v1080, %v2939
        %2941 = vmatpush1.msra.mxu0 %v2940
        %2942 = vmatprep.subr.mxu0 0.0
        %v2943 = vand.u32 %v1087, 4294901760
        %v2944 = vsub.f32 %v1087, %v2943
        %2945 = vmatpush1.msra.mxu0 %v2944
        %2946 = vmatprep.subr.mxu0 0.0
        %v2947 = vand.u32 %v1094, 4294901760
        %v2948 = vsub.f32 %v1094, %v2947
        %2949 = vmatpush1.msra.mxu0 %v2948
        %2950 = vmatprep.subr.mxu0 0.0
        %2951 = vmatpush1.msra.mxu0 0.0
        %2952 = vmatprep.subr.mxu0 0.0
        %2953 = vmatpush1.msra.mxu0 0.0
        %2954 = vmatprep.subr.mxu0 0.0
        %2955 = vmatpush1.msra.mxu0 0.0
        %2956 = vmatprep.subr.mxu0 0.0
        %2957 = vmatpush1.msra.mxu0 0.0
        %2958 = vmatprep.subr.mxu0 0.0
        %2959 = vmatpush1.msra.mxu0 0.0
        %2960 = vmatprep.subr.mxu0 0.0
        %2961 = vmatpush1.msra.mxu0 0.0
        %2962 = vmatprep.subr.mxu0 0.0
        %2963 = vmatpush1.msra.mxu0 0.0
        %2964 = vmatprep.subr.mxu0 0.0
        %2965 = vmatpush1.msra.mxu0 0.0
        %2966 = vmatprep.subr.mxu0 0.0
        %2967 = vmatpush1.msra.mxu0 0.0
        %2968 = vmatprep.subr.mxu0 0.0
        %2969 = vmatpush1.msra.mxu0 0.0
        %2970 = vmatprep.subr.mxu0 0.0
        %2971 = vmatpush1.msra.mxu0 0.0
        %2972 = vmatprep.subr.mxu0 0.0
        %2973 = vmatpush1.msra.mxu0 0.0
        %2974 = vmatprep.subr.mxu0 0.0
        %2975 = vmatpush1.msra.mxu0 0.0
        %2976 = vmatprep.subr.mxu0 0.0
        %2977 = vmatpush1.msra.mxu0 0.0
        %2978 = vmatprep.subr.mxu0 0.0
        %2979 = vmatpush1.msra.mxu0 0.0
        %2980 = vmatprep.subr.mxu0 0.0
        %2981 = vmatpush1.msra.mxu0 0.0
        %2982 = vmatprep.subr.mxu0 0.0
        %2983 = vmatpush1.msra.mxu0 0.0
        %2984 = vmatprep.subr.mxu0 0.0
        %2985 = vmatpush1.msra.mxu0 0.0
        %2986 = vmatprep.subr.mxu0 0.0
        %2987 = vmatpush1.msra.mxu0 0.0
        %2988 = vmatprep.subr.mxu0 0.0
        %2989 = vmatpush1.msra.mxu0 0.0
        %2990 = vmatprep.subr.mxu0 0.0
        %2991 = vmatpush1.msra.mxu0 0.0
        %2992 = vmatprep.subr.mxu0 0.0
        %2993 = vmatpush1.msra.mxu0 0.0
        %2994 = vmatprep.subr.mxu0 0.0
        %2995 = vmatpush1.msra.mxu0 0.0
        %2996 = vmatprep.subr.mxu0 0.0
        %2997 = vmatpush1.msra.mxu0 0.0
        %2998 = vmatprep.subr.mxu0 0.0
        %2999 = vmatpush1.msra.mxu0 0.0
        %3000 = vmatprep.subr.mxu0 0.0
        %3001 = vmatpush1.msra.mxu0 0.0
        %3002 = vmatprep.subr.mxu0 0.0
        %3003 = vmatpush1.msra.mxu0 0.0
        %3004 = vmatprep.subr.mxu0 0.0
        %3005 = vmatpush1.msra.mxu0 0.0
        %3006 = vmatprep.mubr.f32.mxu0 0.0
        %v3007 = vand.u32 %v1133, 4294901760
        %v3008 = vsub.f32 %v1133, %v3007
        %3009 = vmatmul.mubr.f32.gmra.mrb[0].mxu0 %v3008
        %v3010 = vpop.f32.mrb[0].mxu0
        %v3011 = vadd.f32 %v2931, %v3010
        %v3012 = vpop.f32.mrb[0].mxu0
        %3013 = vdwg.mxu0
        %3014 = vmatprep.subr.mxu0 0.0
        %v3015 = vand.u32 %v1073, 4294901760
        %3016 = vmatpush1.msra.mxu0 %v3015
        %3017 = vmatprep.subr.mxu0 0.0
        %v3018 = vand.u32 %v1080, 4294901760
        %3019 = vmatpush1.msra.mxu0 %v3018
        %3020 = vmatprep.subr.mxu0 0.0
        %v3021 = vand.u32 %v1087, 4294901760
        %3022 = vmatpush1.msra.mxu0 %v3021
        %3023 = vmatprep.subr.mxu0 0.0
        %v3024 = vand.u32 %v1094, 4294901760
        %3025 = vmatpush1.msra.mxu0 %v3024
        %3026 = vmatprep.subr.mxu0 0.0
        %3027 = vmatpush1.msra.mxu0 0.0
        %3028 = vmatprep.subr.mxu0 0.0
        %3029 = vmatpush1.msra.mxu0 0.0
        %3030 = vmatprep.subr.mxu0 0.0
        %3031 = vmatpush1.msra.mxu0 0.0
        %3032 = vmatprep.subr.mxu0 0.0
        %3033 = vmatpush1.msra.mxu0 0.0
        %3034 = vmatprep.subr.mxu0 0.0
        %3035 = vmatpush1.msra.mxu0 0.0
        %3036 = vmatprep.subr.mxu0 0.0
        %3037 = vmatpush1.msra.mxu0 0.0
        %3038 = vmatprep.subr.mxu0 0.0
        %3039 = vmatpush1.msra.mxu0 0.0
        %3040 = vmatprep.subr.mxu0 0.0
        %3041 = vmatpush1.msra.mxu0 0.0
        %3042 = vmatprep.subr.mxu0 0.0
        %3043 = vmatpush1.msra.mxu0 0.0
        %3044 = vmatprep.subr.mxu0 0.0
        %3045 = vmatpush1.msra.mxu0 0.0
        %3046 = vmatprep.subr.mxu0 0.0
        %3047 = vmatpush1.msra.mxu0 0.0
        %3048 = vmatprep.subr.mxu0 0.0
        %3049 = vmatpush1.msra.mxu0 0.0
        %3050 = vmatprep.subr.mxu0 0.0
        %3051 = vmatpush1.msra.mxu0 0.0
        %3052 = vmatprep.subr.mxu0 0.0
        %3053 = vmatpush1.msra.mxu0 0.0
        %3054 = vmatprep.subr.mxu0 0.0
        %3055 = vmatpush1.msra.mxu0 0.0
        %3056 = vmatprep.subr.mxu0 0.0
        %3057 = vmatpush1.msra.mxu0 0.0
        %3058 = vmatprep.subr.mxu0 0.0
        %3059 = vmatpush1.msra.mxu0 0.0
        %3060 = vmatprep.subr.mxu0 0.0
        %3061 = vmatpush1.msra.mxu0 0.0
        %3062 = vmatprep.subr.mxu0 0.0
        %3063 = vmatpush1.msra.mxu0 0.0
        %3064 = vmatprep.subr.mxu0 0.0
        %3065 = vmatpush1.msra.mxu0 0.0
        %3066 = vmatprep.subr.mxu0 0.0
        %3067 = vmatpush1.msra.mxu0 0.0
        %3068 = vmatprep.subr.mxu0 0.0
        %3069 = vmatpush1.msra.mxu0 0.0
        %3070 = vmatprep.subr.mxu0 0.0
        %3071 = vmatpush1.msra.mxu0 0.0
        %3072 = vmatprep.subr.mxu0 0.0
        %3073 = vmatpush1.msra.mxu0 0.0
        %3074 = vmatprep.subr.mxu0 0.0
        %3075 = vmatpush1.msra.mxu0 0.0
        %3076 = vmatprep.subr.mxu0 0.0
        %3077 = vmatpush1.msra.mxu0 0.0
        %3078 = vmatprep.subr.mxu0 0.0
        %3079 = vmatpush1.msra.mxu0 0.0
        %3080 = vmatprep.subr.mxu0 0.0
        %3081 = vmatpush1.msra.mxu0 0.0
        %3082 = vmatprep.mubr.f32.mxu0 0.0
        %v3083 = vand.u32 %v1133, 4294901760
        %v3084 = vsub.f32 %v1133, %v3083
        %v3085 = vand.u32 %v3084, 4294901760
        %3086 = vmatmul.mubr.f32.gmra.mrb[0].mxu0 %v3085
        %v3087 = vpop.f32.mrb[0].mxu0
        %v3088 = vadd.f32 %v3011, %v3087
        %v3089 = vpop.f32.mrb[0].mxu0
        %3090 = vdwg.mxu0
        %3091 = vmatprep.subr.mxu0 0.0
        %v3092 = vand.u32 %v1073, 4294901760
        %v3093 = vsub.f32 %v1073, %v3092
        %v3094 = vand.u32 %v3093, 4294901760
        %3095 = vmatpush1.msra.mxu0 %v3094
        %3096 = vmatprep.subr.mxu0 0.0
        %v3097 = vand.u32 %v1080, 4294901760
        %v3098 = vsub.f32 %v1080, %v3097
        %v3099 = vand.u32 %v3098, 4294901760
        %3100 = vmatpush1.msra.mxu0 %v3099
        %3101 = vmatprep.subr.mxu0 0.0
        %v3102 = vand.u32 %v1087, 4294901760
        %v3103 = vsub.f32 %v1087, %v3102
        %v3104 = vand.u32 %v3103, 4294901760
        %3105 = vmatpush1.msra.mxu0 %v3104
        %3106 = vmatprep.subr.mxu0 0.0
        %v3107 = vand.u32 %v1094, 4294901760
        %v3108 = vsub.f32 %v1094, %v3107
        %v3109 = vand.u32 %v3108, 4294901760
        %3110 = vmatpush1.msra.mxu0 %v3109
        %3111 = vmatprep.subr.mxu0 0.0
        %3112 = vmatpush1.msra.mxu0 0.0
        %3113 = vmatprep.subr.mxu0 0.0
        %3114 = vmatpush1.msra.mxu0 0.0
        %3115 = vmatprep.subr.mxu0 0.0
        %3116 = vmatpush1.msra.mxu0 0.0
        %3117 = vmatprep.subr.mxu0 0.0
        %3118 = vmatpush1.msra.mxu0 0.0
        %3119 = vmatprep.subr.mxu0 0.0
        %3120 = vmatpush1.msra.mxu0 0.0
        %3121 = vmatprep.subr.mxu0 0.0
        %3122 = vmatpush1.msra.mxu0 0.0
        %3123 = vmatprep.subr.mxu0 0.0
        %3124 = vmatpush1.msra.mxu0 0.0
        %3125 = vmatprep.subr.mxu0 0.0
        %3126 = vmatpush1.msra.mxu0 0.0
        %3127 = vmatprep.subr.mxu0 0.0
        %3128 = vmatpush1.msra.mxu0 0.0
        %3129 = vmatprep.subr.mxu0 0.0
        %3130 = vmatpush1.msra.mxu0 0.0
        %3131 = vmatprep.subr.mxu0 0.0
        %3132 = vmatpush1.msra.mxu0 0.0
        %3133 = vmatprep.subr.mxu0 0.0
        %3134 = vmatpush1.msra.mxu0 0.0
        %3135 = vmatprep.subr.mxu0 0.0
        %3136 = vmatpush1.msra.mxu0 0.0
        %3137 = vmatprep.subr.mxu0 0.0
        %3138 = vmatpush1.msra.mxu0 0.0
        %3139 = vmatprep.subr.mxu0 0.0
        %3140 = vmatpush1.msra.mxu0 0.0
        %3141 = vmatprep.subr.mxu0 0.0
        %3142 = vmatpush1.msra.mxu0 0.0
        %3143 = vmatprep.subr.mxu0 0.0
        %3144 = vmatpush1.msra.mxu0 0.0
        %3145 = vmatprep.subr.mxu0 0.0
        %3146 = vmatpush1.msra.mxu0 0.0
        %3147 = vmatprep.subr.mxu0 0.0
        %3148 = vmatpush1.msra.mxu0 0.0
        %3149 = vmatprep.subr.mxu0 0.0
        %3150 = vmatpush1.msra.mxu0 0.0
        %3151 = vmatprep.subr.mxu0 0.0
        %3152 = vmatpush1.msra.mxu0 0.0
        %3153 = vmatprep.subr.mxu0 0.0
        %3154 = vmatpush1.msra.mxu0 0.0
        %3155 = vmatprep.subr.mxu0 0.0
        %3156 = vmatpush1.msra.mxu0 0.0
        %3157 = vmatprep.subr.mxu0 0.0
        %3158 = vmatpush1.msra.mxu0 0.0
        %3159 = vmatprep.subr.mxu0 0.0
        %3160 = vmatpush1.msra.mxu0 0.0
        %3161 = vmatprep.subr.mxu0 0.0
        %3162 = vmatpush1.msra.mxu0 0.0
        %3163 = vmatprep.subr.mxu0 0.0
        %3164 = vmatpush1.msra.mxu0 0.0
        %3165 = vmatprep.subr.mxu0 0.0
        %3166 = vmatpush1.msra.mxu0 0.0
        %3167 = vmatprep.mubr.f32.mxu0 0.0
        %v3168 = vand.u32 %v1133, 4294901760
        %3169 = vmatmul.mubr.f32.gmra.mrb[0].mxu0 %v3168
        %v3170 = vpop.f32.mrb[0].mxu0
        %v3171 = vadd.f32 %v3088, %v3170
        %v3172 = vpop.f32.mrb[0].mxu0
        %3173 = vdwg.mxu0
        %3174 = vmatprep.subr.mxu0 0.0
        %v3175 = vand.u32 %v1073, 4294901760
        %3176 = vmatpush1.msra.mxu0 %v3175
        %3177 = vmatprep.subr.mxu0 0.0
        %v3178 = vand.u32 %v1080, 4294901760
        %3179 = vmatpush1.msra.mxu0 %v3178
        %3180 = vmatprep.subr.mxu0 0.0
        %v3181 = vand.u32 %v1087, 4294901760
        %3182 = vmatpush1.msra.mxu0 %v3181
        %3183 = vmatprep.subr.mxu0 0.0
        %v3184 = vand.u32 %v1094, 4294901760
        %3185 = vmatpush1.msra.mxu0 %v3184
        %3186 = vmatprep.subr.mxu0 0.0
        %3187 = vmatpush1.msra.mxu0 0.0
        %3188 = vmatprep.subr.mxu0 0.0
        %3189 = vmatpush1.msra.mxu0 0.0
        %3190 = vmatprep.subr.mxu0 0.0
        %3191 = vmatpush1.msra.mxu0 0.0
        %3192 = vmatprep.subr.mxu0 0.0
        %3193 = vmatpush1.msra.mxu0 0.0
        %3194 = vmatprep.subr.mxu0 0.0
        %3195 = vmatpush1.msra.mxu0 0.0
        %3196 = vmatprep.subr.mxu0 0.0
        %3197 = vmatpush1.msra.mxu0 0.0
        %3198 = vmatprep.subr.mxu0 0.0
        %3199 = vmatpush1.msra.mxu0 0.0
        %3200 = vmatprep.subr.mxu0 0.0
        %3201 = vmatpush1.msra.mxu0 0.0
        %3202 = vmatprep.subr.mxu0 0.0
        %3203 = vmatpush1.msra.mxu0 0.0
        %3204 = vmatprep.subr.mxu0 0.0
        %3205 = vmatpush1.msra.mxu0 0.0
        %3206 = vmatprep.subr.mxu0 0.0
        %3207 = vmatpush1.msra.mxu0 0.0
        %3208 = vmatprep.subr.mxu0 0.0
        %3209 = vmatpush1.msra.mxu0 0.0
        %3210 = vmatprep.subr.mxu0 0.0
        %3211 = vmatpush1.msra.mxu0 0.0
        %3212 = vmatprep.subr.mxu0 0.0
        %3213 = vmatpush1.msra.mxu0 0.0
        %3214 = vmatprep.subr.mxu0 0.0
        %3215 = vmatpush1.msra.mxu0 0.0
        %3216 = vmatprep.subr.mxu0 0.0
        %3217 = vmatpush1.msra.mxu0 0.0
        %3218 = vmatprep.subr.mxu0 0.0
        %3219 = vmatpush1.msra.mxu0 0.0
        %3220 = vmatprep.subr.mxu0 0.0
        %3221 = vmatpush1.msra.mxu0 0.0
        %3222 = vmatprep.subr.mxu0 0.0
        %3223 = vmatpush1.msra.mxu0 0.0
        %3224 = vmatprep.subr.mxu0 0.0
        %3225 = vmatpush1.msra.mxu0 0.0
        %3226 = vmatprep.subr.mxu0 0.0
        %3227 = vmatpush1.msra.mxu0 0.0
        %3228 = vmatprep.subr.mxu0 0.0
        %3229 = vmatpush1.msra.mxu0 0.0
        %3230 = vmatprep.subr.mxu0 0.0
        %3231 = vmatpush1.msra.mxu0 0.0
        %3232 = vmatprep.subr.mxu0 0.0
        %3233 = vmatpush1.msra.mxu0 0.0
        %3234 = vmatprep.subr.mxu0 0.0
        %3235 = vmatpush1.msra.mxu0 0.0
        %3236 = vmatprep.subr.mxu0 0.0
        %3237 = vmatpush1.msra.mxu0 0.0
        %3238 = vmatprep.subr.mxu0 0.0
        %3239 = vmatpush1.msra.mxu0 0.0
        %3240 = vmatprep.subr.mxu0 0.0
        %3241 = vmatpush1.msra.mxu0 0.0
        %3242 = vmatprep.mubr.f32.mxu0 0.0
        %v3243 = vand.u32 %v1133, 4294901760
        %3244 = vmatmul.mubr.f32.gmra.mrb[0].mxu0 %v3243
        %v3245 = vpop.f32.mrb[0].mxu0
        %v3246 = vadd.f32 %v3171, %v3245
        %v3247 = vpop.f32.mrb[0].mxu0
        %3248 = vdwg.mxu0
        %v3251 = vunpack.c.l.s4 1966171168
        %v3252 = vunpack.c.0.s8 %v3251
        %v3253 = vlaneseq
        %v3254 = vshrl.u32 %v3253, 7
        %v3255 = vsub.s32 %v3252, %v3254
        %v3256 = vrot.slane %v2762, %v3255
        %v3257 = vcombine.high %v3256, %v3256
        %v3259 = vunpack.c.l.s4 1966171168
        %v3260 = vunpack.c.0.s8 %v3259
        %v3261 = vlaneseq
        %v3262 = vshrl.u32 %v3261, 7
        %v3263 = vsub.s32 %v3260, %v3262
        %v3264 = vrot.slane %v3256, %v3263
        %v3266 = vunpack.c.l.s4 1966171168
        %v3267 = vunpack.c.0.s8 %v3266
        %v3268 = vlaneseq
        %v3269 = vshrl.u32 %v3268, 7
        %v3270 = vsub.s32 %v3267, %v3269
        %v3271 = vrot.slane %v3257, %v3270
        %v3272 = vlaneseq
        %v3273 = vshrl.u32 %v3272, 7
        %v3274 = vsub.s32 0, %v3273
        %v3275 = vrot.slane %v3264, %v3274
        %v3276 = vlaneseq
        %v3277 = vshrl.u32 %v3276, 7
        %v3278 = vsub.s32 0, %v3277
        %v3279 = vrot.slane %v3271, %v3278
        %v3282 = vmul.f32 %v1065, %v3275
        %v3283 = vmul.f32 %v1066, %v3279
        %v3284 = vsel %vm1131, %v3282, 0.0
        %3285 = vadd.xlane.f32.xlu0 %v3284
        %v3286 = vpop.xlane.xlu0 %3285
        %v3287 = vsel %vm1131, %v3283, 0.0
        %3288 = vadd.xlane.f32.xlu0 %v3287
        %v3289 = vpop.xlane.xlu0 %3288
        %v3290 = vld [vmem:[%s2] sm:$0x3]
        %vm3291 = vcmp.gt.f32.partialorder %v3290, 0.0
        %v3294 = vlaneseq
        %v3295 = vand.u32 %v3294, 127
        %v3296 = vlaneseq
        %v3297 = vshrl.u32 %v3296, 7
        %v3298 = vsub.s32 %v3295, %v3297
        %v3299 = vrot.slane %v3286, %v3298
        %v3300 = vlaneseq
        %v3301 = vshrl.u32 %v3300, 7
        %v3302 = vsub.s32 %v3295, %v3301
        %v3303 = vrot.slane %v3289, %v3302
        %vm3304 = vcmask 1041409
        %v3305 = vsel %vm3304, %v3303, %v3299
        %v3307 = vsel %vm3291, %v3305, -1e+30
        %vm3308 = vcmask 58368
        %v3309 = vsel %vm3308, %v3307, -inf
        %3310 = vmax.xlane.f32.xlu0 %v3309
        %v3311 = vpop.xlane.xlu0 %3310
        %v3312 = vsub.f32 %v3307, %v3311
        %v3313 = vmul.f32 %v3312, 1.442695
        %v3314 = vpow.pop %v3313
        %v3315 = vsel %vm3308, %v3314, 0.0
        %3316 = vadd.xlane.f32.xlu0 %v3315
        %v3317 = vpop.xlane.xlu0 %3316
        %v3318 = vrcp.pop %v3317
        %v3319 = vmul.f32 %v3314, %v3318
        %v3320 = vlaneseq
        %v3321 = vshrl.u32 %v3320, 7
        %v3322 = vsub.s32 0, %v3321
        %v3323 = vrot.slane %v3319, %v3322
        %3325 = vbcast.lane.b32.xlu0 %v3323, 256
        %v3326 = vpop.permute.xlu0 %3325
        %v3327 = vlaneseq
        %v3328 = vshrl.u32 %v3327, 7
        %v3329 = vsub.s32 1, %v3328
        %v3330 = vrot.slane %v3319, %v3329
        %3332 = vbcast.lane.b32.xlu0 %v3330, 256
        %v3333 = vpop.permute.xlu0 %3332
        %v3334 = vmul.f32 %v3326, %v1065
        %v3335 = vmul.f32 %v3333, %v1066
        %v3336 = vsel %vm1131, %v3334, 0.0
        %v3337 = vrot.slane %v3336, 4
        %v3338 = vadd.f32 %v3336, %v3337
        %v3339 = vrot.slane %v3338, 2
        %v3340 = vadd.f32 %v3338, %v3339
        %v3341 = vrot.slane %v3340, 1
        %v3342 = vadd.f32 %v3340, %v3341
        %v3343 = vsel %vm1131, %v3335, 0.0
        %v3344 = vrot.slane %v3343, 4
        %v3345 = vadd.f32 %v3343, %v3344
        %v3346 = vrot.slane %v3345, 2
        %v3347 = vadd.f32 %v3345, %v3346
        %v3348 = vrot.slane %v3347, 1
        %v3349 = vadd.f32 %v3347, %v3348
        %v3352 = vunpack.c.l.s4 1966171168
        %v3353 = vunpack.c.0.s8 %v3352
        %v3354 = vlaneseq
        %v3355 = vshrl.u32 %v3354, 7
        %v3356 = vsub.s32 %v3353, %v3355
        %v3357 = vrot.slane %v2760, %v3356
        %v3358 = vcombine.high %v3357, %v3357
        %v3360 = vunpack.c.l.s4 1966171168
        %v3361 = vunpack.c.0.s8 %v3360
        %v3362 = vlaneseq
        %v3363 = vshrl.u32 %v3362, 7
        %v3364 = vsub.s32 %v3361, %v3363
        %v3365 = vrot.slane %v3357, %v3364
        %v3367 = vunpack.c.l.s4 1966171168
        %v3368 = vunpack.c.0.s8 %v3367
        %v3369 = vlaneseq
        %v3370 = vshrl.u32 %v3369, 7
        %v3371 = vsub.s32 %v3368, %v3370
        %v3372 = vrot.slane %v3358, %v3371
        %v3373 = vlaneseq
        %v3374 = vshrl.u32 %v3373, 7
        %v3375 = vsub.s32 0, %v3374
        %v3376 = vrot.slane %v3365, %v3375
        %v3377 = vlaneseq
        %v3378 = vshrl.u32 %v3377, 7
        %v3379 = vsub.s32 0, %v3378
        %v3380 = vrot.slane %v3372, %v3379
        %v3383 = vmul.f32 %v1061, %v3376
        %v3384 = vmul.f32 %v1062, %v3380
        %v3385 = vsel %vm1131, %v3383, 0.0
        %3386 = vadd.xlane.f32.xlu0 %v3385
        %v3387 = vpop.xlane.xlu0 %3386
        %v3388 = vsel %vm1131, %v3384, 0.0
        %3389 = vadd.xlane.f32.xlu0 %v3388
        %v3390 = vpop.xlane.xlu0 %3389
        %vm3391 = vcmp.gt.f32.partialorder %v1046, 0.0
        %v3394 = vlaneseq
        %v3395 = vshrl.u32 %v3394, 7
        %v3396 = vsub.s32 %v3295, %v3395
        %v3397 = vrot.slane %v3387, %v3396
        %v3398 = vlaneseq
        %v3399 = vshrl.u32 %v3398, 7
        %v3400 = vsub.s32 %v3295, %v3399
        %v3401 = vrot.slane %v3390, %v3400
        %v3402 = vsel %vm3304, %v3401, %v3397
        %v3404 = vsel %vm3391, %v3402, -1e+30
        %v3405 = vsel %vm3308, %v3404, -inf
        %3406 = vmax.xlane.f32.xlu0 %v3405
        %v3407 = vpop.xlane.xlu0 %3406
        %v3408 = vsub.f32 %v3404, %v3407
        %v3409 = vmul.f32 %v3408, 1.442695
        %v3410 = vpow.pop %v3409
        %v3411 = vsel %vm3308, %v3410, 0.0
        %3412 = vadd.xlane.f32.xlu0 %v3411
        %v3413 = vpop.xlane.xlu0 %3412
        %v3414 = vrcp.pop %v3413
        %v3415 = vmul.f32 %v3410, %v3414
        %v3416 = vlaneseq
        %v3417 = vshrl.u32 %v3416, 7
        %v3418 = vsub.s32 0, %v3417
        %v3419 = vrot.slane %v3415, %v3418
        %3421 = vbcast.lane.b32.xlu0 %v3419, 256
        %v3422 = vpop.permute.xlu0 %3421
        %v3423 = vlaneseq
        %v3424 = vshrl.u32 %v3423, 7
        %v3425 = vsub.s32 1, %v3424
        %v3426 = vrot.slane %v3415, %v3425
        %3428 = vbcast.lane.b32.xlu0 %v3426, 256
        %v3429 = vpop.permute.xlu0 %3428
        %v3430 = vmul.f32 %v3422, %v1061
        %v3431 = vmul.f32 %v3429, %v1062
        %v3432 = vsel %vm1131, %v3430, 0.0
        %v3433 = vrot.slane %v3432, 4
        %v3434 = vadd.f32 %v3432, %v3433
        %v3435 = vrot.slane %v3434, 2
        %v3436 = vadd.f32 %v3434, %v3435
        %v3437 = vrot.slane %v3436, 1
        %v3438 = vadd.f32 %v3436, %v3437
        %v3439 = vsel %vm1131, %v3431, 0.0
        %v3440 = vrot.slane %v3439, 4
        %v3441 = vadd.f32 %v3439, %v3440
        %v3442 = vrot.slane %v3441, 2
        %v3443 = vadd.f32 %v3441, %v3442
        %v3444 = vrot.slane %v3443, 1
        %v3445 = vadd.f32 %v3443, %v3444
        %v3448 = vsel %vm3304, %v3445, %v3438
        %3449 = vrot.lane.b32.xlu0 %v3448, 32
        %v3450 = vpop.permute.xlu0 %3449
        %v3454 = vsel %vm3304, %v3349, %v3342
        %3455 = vrot.lane.b32.xlu0 %v3454, 64
        %v3456 = vpop.permute.xlu0 %3455
        %v3458 = vsel %vm1131, %v1045, %v3450
        %v3459 = vsel %vm410, %v3458, %v3456
        %v3460 = vld [vmem:[#allocation6] sm:$0xff]
        %v3461 = vld [vmem:[#allocation6 + $0x8] sm:$0xff]
        %v3462 = vld [vmem:[#allocation6 + $0x10] sm:$0xff]
        %v3463 = vld [vmem:[#allocation6 + $0x18] sm:$0xff]
        %v3464 = vld [vmem:[#allocation6 + $0x20] sm:$0xff]
        %v3465 = vld [vmem:[#allocation6 + $0x28] sm:$0xff]
        %v3466 = vld [vmem:[#allocation6 + $0x30] sm:$0xff]
        %v3467 = vld [vmem:[#allocation6 + $0x38] sm:$0xff]
        %v3468 = vld [vmem:[#allocation6 + $0x40] sm:$0xff]
        %v3469 = vld [vmem:[#allocation6 + $0x48] sm:$0xff]
        %v3470 = vld [vmem:[#allocation6 + $0x50] sm:$0xff]
        %v3471 = vld [vmem:[#allocation6 + $0x58] sm:$0xff]
        %v3472 = vld [vmem:[#allocation6 + $0x60] sm:$0xff]
        %v3473 = vld [vmem:[#allocation6 + $0x68] sm:$0xff]
        %v3474 = vld [vmem:[#allocation6 + $0x70] sm:$0xff]
        %v3475 = vld [vmem:[#allocation6 + $0x78] sm:$0xff]
        %v3476 = vld [vmem:[#allocation6 + $0x80] sm:$0xff]
        %v3477 = vld [vmem:[#allocation6 + $0x88] sm:$0xff]
        %v3478 = vld [vmem:[#allocation6 + $0x90] sm:$0xff]
        %v3479 = vld [vmem:[#allocation6 + $0x98] sm:$0xff]
        %v3480 = vld [vmem:[#allocation6 + $0xa0] sm:$0xff]
        %v3481 = vld [vmem:[#allocation6 + $0xa8] sm:$0xff]
        %v3482 = vld [vmem:[#allocation6 + $0xb0] sm:$0xff]
        %v3483 = vld [vmem:[#allocation6 + $0xb8] sm:$0xff]
        %v3484 = vld [vmem:[#allocation6 + $0xc0] sm:$0xff]
        %v3485 = vld [vmem:[#allocation6 + $0xc8] sm:$0xff]
        %v3486 = vld [vmem:[#allocation6 + $0xd0] sm:$0xff]
        %v3487 = vld [vmem:[#allocation6 + $0xd8] sm:$0xff]
        %v3488 = vld [vmem:[#allocation6 + $0xe0] sm:$0xff]
        %v3489 = vld [vmem:[#allocation6 + $0xe8] sm:$0xff]
        %v3490 = vld [vmem:[#allocation6 + $0xf0] sm:$0xff]
        %v3491 = vld [vmem:[#allocation6 + $0xf8] sm:$0xff]
        %v3492 = vld [vmem:[#allocation6 + $0x100] sm:$0xff]
        %v3493 = vld [vmem:[#allocation6 + $0x108] sm:$0xff]
        %v3494 = vld [vmem:[#allocation6 + $0x110] sm:$0xff]
        %v3495 = vld [vmem:[#allocation6 + $0x118] sm:$0xff]
        %v3496 = vld [vmem:[#allocation6 + $0x120] sm:$0xff]
        %v3497 = vld [vmem:[#allocation6 + $0x128] sm:$0xff]
        %v3498 = vld [vmem:[#allocation6 + $0x130] sm:$0xff]
        %v3499 = vld [vmem:[#allocation6 + $0x138] sm:$0xff]
        %v3500 = vld [vmem:[#allocation6 + $0x140] sm:$0xff]
        %v3501 = vld [vmem:[#allocation6 + $0x148] sm:$0xff]
        %v3502 = vld [vmem:[#allocation6 + $0x150] sm:$0xff]
        %v3503 = vld [vmem:[#allocation6 + $0x158] sm:$0xff]
        %v3504 = vld [vmem:[#allocation6 + $0x160] sm:$0xff]
        %v3505 = vld [vmem:[#allocation6 + $0x168] sm:$0xff]
        %v3506 = vld [vmem:[#allocation6 + $0x170] sm:$0xff]
        %v3507 = vld [vmem:[#allocation6 + $0x178] sm:$0xff]
        %v3508 = vld [vmem:[#allocation6 + $0x180] sm:$0xff]
        %v3509 = vld [vmem:[#allocation6 + $0x188] sm:$0xff]
        %v3510 = vld [vmem:[#allocation6 + $0x190] sm:$0xff]
        %v3511 = vld [vmem:[#allocation6 + $0x198] sm:$0xff]
        %v3512 = vld [vmem:[#allocation6 + $0x1a0] sm:$0xff]
        %v3513 = vld [vmem:[#allocation6 + $0x1a8] sm:$0xff]
        %v3514 = vld [vmem:[#allocation6 + $0x1b0] sm:$0xff]
        %v3515 = vld [vmem:[#allocation6 + $0x1b8] sm:$0xff]
        %v3516 = vld [vmem:[#allocation6 + $0x1c0] sm:$0xff]
        %v3517 = vld [vmem:[#allocation6 + $0x1c8] sm:$0xff]
        %v3518 = vld [vmem:[#allocation6 + $0x1d0] sm:$0xff]
        %v3519 = vld [vmem:[#allocation6 + $0x1d8] sm:$0xff]
        %v3520 = vld [vmem:[#allocation6 + $0x1e0] sm:$0xff]
        %v3521 = vld [vmem:[#allocation6 + $0x1e8] sm:$0xff]
        %v3522 = vld [vmem:[#allocation6 + $0x1f0] sm:$0xff]
        %v3523 = vld [vmem:[#allocation6 + $0x1f8] sm:$0xff]
        %v3524 = vld [vmem:[#allocation6 + $0x200] sm:$0xff]
        %v3525 = vld [vmem:[#allocation6 + $0x208] sm:$0xff]
        %v3526 = vld [vmem:[#allocation6 + $0x210] sm:$0xff]
        %v3527 = vld [vmem:[#allocation6 + $0x218] sm:$0xff]
        %v3528 = vld [vmem:[#allocation6 + $0x220] sm:$0xff]
        %v3529 = vld [vmem:[#allocation6 + $0x228] sm:$0xff]
        %v3530 = vld [vmem:[#allocation6 + $0x230] sm:$0xff]
        %v3531 = vld [vmem:[#allocation6 + $0x238] sm:$0xff]
        %vm3532 = vcmask 785408
        %v3534 = vsel %vm3532, %v3459, 0
        %v3536 = vand.u32 %v3461, 4294901760
        %3537 = vmatprep.subr.mxu0 %v3536
        %v3538 = vand.u32 %v3460, 4294901760
        %3539 = vmatpush1.msra.mxu0 %v3538
        %v3540 = vand.u32 %v3467, 4294901760
        %3541 = vmatprep.subr.mxu0 %v3540
        %v3542 = vand.u32 %v3466, 4294901760
        %3543 = vmatpush1.msra.mxu0 %v3542
        %v3544 = vand.u32 %v3473, 4294901760
        %3545 = vmatprep.subr.mxu0 %v3544
        %v3546 = vand.u32 %v3472, 4294901760
        %3547 = vmatpush1.msra.mxu0 %v3546
        %v3548 = vand.u32 %v3479, 4294901760
        %3549 = vmatprep.subr.mxu0 %v3548
        %v3550 = vand.u32 %v3478, 4294901760
        %3551 = vmatpush1.msra.mxu0 %v3550
        %v3552 = vand.u32 %v3485, 4294901760
        %3553 = vmatprep.subr.mxu0 %v3552
        %v3554 = vand.u32 %v3484, 4294901760
        %3555 = vmatpush1.msra.mxu0 %v3554
        %v3556 = vand.u32 %v3491, 4294901760
        %3557 = vmatprep.subr.mxu0 %v3556
        %v3558 = vand.u32 %v3490, 4294901760
        %3559 = vmatpush1.msra.mxu0 %v3558
        %v3560 = vand.u32 %v3497, 4294901760
        %3561 = vmatprep.subr.mxu0 %v3560
        %v3562 = vand.u32 %v3496, 4294901760
        %3563 = vmatpush1.msra.mxu0 %v3562
        %v3564 = vand.u32 %v3503, 4294901760
        %3565 = vmatprep.subr.mxu0 %v3564
        %v3566 = vand.u32 %v3502, 4294901760
        %3567 = vmatpush1.msra.mxu0 %v3566
        %v3568 = vand.u32 %v3509, 4294901760
        %3569 = vmatprep.subr.mxu0 %v3568
        %v3570 = vand.u32 %v3508, 4294901760
        %3571 = vmatpush1.msra.mxu0 %v3570
        %v3572 = vand.u32 %v3515, 4294901760
        %3573 = vmatprep.subr.mxu0 %v3572
        %v3574 = vand.u32 %v3514, 4294901760
        %3575 = vmatpush1.msra.mxu0 %v3574
        %v3576 = vand.u32 %v3521, 4294901760
        %3577 = vmatprep.subr.mxu0 %v3576
        %v3578 = vand.u32 %v3520, 4294901760
        %3579 = vmatpush1.msra.mxu0 %v3578
        %v3580 = vand.u32 %v3527, 4294901760
        %3581 = vmatprep.subr.mxu0 %v3580
        %v3582 = vand.u32 %v3526, 4294901760
        %3583 = vmatpush1.msra.mxu0 %v3582
        %3584 = vmatprep.subr.mxu0 0.0
        %3585 = vmatpush1.msra.mxu0 0.0
        %3586 = vmatprep.subr.mxu0 0.0
        %3587 = vmatpush1.msra.mxu0 0.0
        %3588 = vmatprep.subr.mxu0 0.0
        %3589 = vmatpush1.msra.mxu0 0.0
        %3590 = vmatprep.subr.mxu0 0.0
        %3591 = vmatpush1.msra.mxu0 0.0
        %3592 = vmatprep.subr.mxu0 0.0
        %3593 = vmatpush1.msra.mxu0 0.0
        %3594 = vmatprep.subr.mxu0 0.0
        %3595 = vmatpush1.msra.mxu0 0.0
        %3596 = vmatprep.subr.mxu0 0.0
        %3597 = vmatpush1.msra.mxu0 0.0
        %3598 = vmatprep.subr.mxu0 0.0
        %3599 = vmatpush1.msra.mxu0 0.0
        %3600 = vmatprep.subr.mxu0 0.0
        %3601 = vmatpush1.msra.mxu0 0.0
        %3602 = vmatprep.subr.mxu0 0.0
        %3603 = vmatpush1.msra.mxu0 0.0
        %3604 = vmatprep.subr.mxu0 0.0
        %3605 = vmatpush1.msra.mxu0 0.0
        %3606 = vmatprep.subr.mxu0 0.0
        %3607 = vmatpush1.msra.mxu0 0.0
        %3608 = vmatprep.subr.mxu0 0.0
        %3609 = vmatpush1.msra.mxu0 0.0
        %3610 = vmatprep.subr.mxu0 0.0
        %3611 = vmatpush1.msra.mxu0 0.0
        %3612 = vmatprep.subr.mxu0 0.0
        %3613 = vmatpush1.msra.mxu0 0.0
        %3614 = vmatprep.subr.mxu0 0.0
        %3615 = vmatpush1.msra.mxu0 0.0
        %3616 = vmatprep.subr.mxu0 0.0
        %3617 = vmatpush1.msra.mxu0 0.0
        %3618 = vmatprep.subr.mxu0 0.0
        %3619 = vmatpush1.msra.mxu0 0.0
        %3620 = vmatprep.subr.mxu0 0.0
        %3621 = vmatpush1.msra.mxu0 0.0
        %3622 = vmatprep.subr.mxu0 0.0
        %3623 = vmatpush1.msra.mxu0 0.0
        %3624 = vmatprep.mubr.f32.mxu0 0.0
        %v3625 = vand.u32 %v3534, 4294901760
        %v3626 = vsub.f32 %v3534, %v3625
        %v3627 = vand.u32 %v3626, 4294901760
        %v3628 = vsub.f32 %v3626, %v3627
        %v3629 = vand.u32 %v3628, 4294901760
        %3630 = vmatmul.mubr.f32.gmra.mrb[0].mxu0 %v3629
        %v3631 = vpop.f32.mrb[0].mxu0
        %v3632 = vadd.f32 0.0, %v3631
        %v3633 = vpop.f32.mrb[0].mxu0
        %v3634 = vadd.f32 0.0, %v3633
        %3635 = vdwg.mxu0
        %v3636 = vand.u32 %v3461, 4294901760
        %v3637 = vsub.f32 %v3461, %v3636
        %v3638 = vand.u32 %v3637, 4294901760
        %v3639 = vsub.f32 %v3637, %v3638
        %v3640 = vand.u32 %v3639, 4294901760
        %3641 = vmatprep.subr.mxu0 %v3640
        %v3642 = vand.u32 %v3460, 4294901760
        %v3643 = vsub.f32 %v3460, %v3642
        %v3644 = vand.u32 %v3643, 4294901760
        %v3645 = vsub.f32 %v3643, %v3644
        %v3646 = vand.u32 %v3645, 4294901760
        %3647 = vmatpush1.msra.mxu0 %v3646
        %v3648 = vand.u32 %v3467, 4294901760
        %v3649 = vsub.f32 %v3467, %v3648
        %v3650 = vand.u32 %v3649, 4294901760
        %v3651 = vsub.f32 %v3649, %v3650
        %v3652 = vand.u32 %v3651, 4294901760
        %3653 = vmatprep.subr.mxu0 %v3652
        %v3654 = vand.u32 %v3466, 4294901760
        %v3655 = vsub.f32 %v3466, %v3654
        %v3656 = vand.u32 %v3655, 4294901760
        %v3657 = vsub.f32 %v3655, %v3656
        %v3658 = vand.u32 %v3657, 4294901760
        %3659 = vmatpush1.msra.mxu0 %v3658
        %v3660 = vand.u32 %v3473, 4294901760
        %v3661 = vsub.f32 %v3473, %v3660
        %v3662 = vand.u32 %v3661, 4294901760
        %v3663 = vsub.f32 %v3661, %v3662
        %v3664 = vand.u32 %v3663, 4294901760
        %3665 = vmatprep.subr.mxu0 %v3664
        %v3666 = vand.u32 %v3472, 4294901760
        %v3667 = vsub.f32 %v3472, %v3666
        %v3668 = vand.u32 %v3667, 4294901760
        %v3669 = vsub.f32 %v3667, %v3668
        %v3670 = vand.u32 %v3669, 4294901760
        %3671 = vmatpush1.msra.mxu0 %v3670
        %v3672 = vand.u32 %v3479, 4294901760
        %v3673 = vsub.f32 %v3479, %v3672
        %v3674 = vand.u32 %v3673, 4294901760
        %v3675 = vsub.f32 %v3673, %v3674
        %v3676 = vand.u32 %v3675, 4294901760
        %3677 = vmatprep.subr.mxu0 %v3676
        %v3678 = vand.u32 %v3478, 4294901760
        %v3679 = vsub.f32 %v3478, %v3678
        %v3680 = vand.u32 %v3679, 4294901760
        %v3681 = vsub.f32 %v3679, %v3680
        %v3682 = vand.u32 %v3681, 4294901760
        %3683 = vmatpush1.msra.mxu0 %v3682
        %v3684 = vand.u32 %v3485, 4294901760
        %v3685 = vsub.f32 %v3485, %v3684
        %v3686 = vand.u32 %v3685, 4294901760
        %v3687 = vsub.f32 %v3685, %v3686
        %v3688 = vand.u32 %v3687, 4294901760
        %3689 = vmatprep.subr.mxu0 %v3688
        %v3690 = vand.u32 %v3484, 4294901760
        %v3691 = vsub.f32 %v3484, %v3690
        %v3692 = vand.u32 %v3691, 4294901760
        %v3693 = vsub.f32 %v3691, %v3692
        %v3694 = vand.u32 %v3693, 4294901760
        %3695 = vmatpush1.msra.mxu0 %v3694
        %v3696 = vand.u32 %v3491, 4294901760
        %v3697 = vsub.f32 %v3491, %v3696
        %v3698 = vand.u32 %v3697, 4294901760
        %v3699 = vsub.f32 %v3697, %v3698
        %v3700 = vand.u32 %v3699, 4294901760
        %3701 = vmatprep.subr.mxu0 %v3700
        %v3702 = vand.u32 %v3490, 4294901760
        %v3703 = vsub.f32 %v3490, %v3702
        %v3704 = vand.u32 %v3703, 4294901760
        %v3705 = vsub.f32 %v3703, %v3704
        %v3706 = vand.u32 %v3705, 4294901760
        %3707 = vmatpush1.msra.mxu0 %v3706
        %v3708 = vand.u32 %v3497, 4294901760
        %v3709 = vsub.f32 %v3497, %v3708
        %v3710 = vand.u32 %v3709, 4294901760
        %v3711 = vsub.f32 %v3709, %v3710
        %v3712 = vand.u32 %v3711, 4294901760
        %3713 = vmatprep.subr.mxu0 %v3712
        %v3714 = vand.u32 %v3496, 4294901760
        %v3715 = vsub.f32 %v3496, %v3714
        %v3716 = vand.u32 %v3715, 4294901760
        %v3717 = vsub.f32 %v3715, %v3716
        %v3718 = vand.u32 %v3717, 4294901760
        %3719 = vmatpush1.msra.mxu0 %v3718
        %v3720 = vand.u32 %v3503, 4294901760
        %v3721 = vsub.f32 %v3503, %v3720
        %v3722 = vand.u32 %v3721, 4294901760
        %v3723 = vsub.f32 %v3721, %v3722
        %v3724 = vand.u32 %v3723, 4294901760
        %3725 = vmatprep.subr.mxu0 %v3724
        %v3726 = vand.u32 %v3502, 4294901760
        %v3727 = vsub.f32 %v3502, %v3726
        %v3728 = vand.u32 %v3727, 4294901760
        %v3729 = vsub.f32 %v3727, %v3728
        %v3730 = vand.u32 %v3729, 4294901760
        %3731 = vmatpush1.msra.mxu0 %v3730
        %v3732 = vand.u32 %v3509, 4294901760
        %v3733 = vsub.f32 %v3509, %v3732
        %v3734 = vand.u32 %v3733, 4294901760
        %v3735 = vsub.f32 %v3733, %v3734
        %v3736 = vand.u32 %v3735, 4294901760
        %3737 = vmatprep.subr.mxu0 %v3736
        %v3738 = vand.u32 %v3508, 4294901760
        %v3739 = vsub.f32 %v3508, %v3738
        %v3740 = vand.u32 %v3739, 4294901760
        %v3741 = vsub.f32 %v3739, %v3740
        %v3742 = vand.u32 %v3741, 4294901760
        %3743 = vmatpush1.msra.mxu0 %v3742
        %v3744 = vand.u32 %v3515, 4294901760
        %v3745 = vsub.f32 %v3515, %v3744
        %v3746 = vand.u32 %v3745, 4294901760
        %v3747 = vsub.f32 %v3745, %v3746
        %v3748 = vand.u32 %v3747, 4294901760
        %3749 = vmatprep.subr.mxu0 %v3748
        %v3750 = vand.u32 %v3514, 4294901760
        %v3751 = vsub.f32 %v3514, %v3750
        %v3752 = vand.u32 %v3751, 4294901760
        %v3753 = vsub.f32 %v3751, %v3752
        %v3754 = vand.u32 %v3753, 4294901760
        %3755 = vmatpush1.msra.mxu0 %v3754
        %v3756 = vand.u32 %v3521, 4294901760
        %v3757 = vsub.f32 %v3521, %v3756
        %v3758 = vand.u32 %v3757, 4294901760
        %v3759 = vsub.f32 %v3757, %v3758
        %v3760 = vand.u32 %v3759, 4294901760
        %3761 = vmatprep.subr.mxu0 %v3760
        %v3762 = vand.u32 %v3520, 4294901760
        %v3763 = vsub.f32 %v3520, %v3762
        %v3764 = vand.u32 %v3763, 4294901760
        %v3765 = vsub.f32 %v3763, %v3764
        %v3766 = vand.u32 %v3765, 4294901760
        %3767 = vmatpush1.msra.mxu0 %v3766
        %v3768 = vand.u32 %v3527, 4294901760
        %v3769 = vsub.f32 %v3527, %v3768
        %v3770 = vand.u32 %v3769, 4294901760
        %v3771 = vsub.f32 %v3769, %v3770
        %v3772 = vand.u32 %v3771, 4294901760
        %3773 = vmatprep.subr.mxu0 %v3772
        %v3774 = vand.u32 %v3526, 4294901760
        %v3775 = vsub.f32 %v3526, %v3774
        %v3776 = vand.u32 %v3775, 4294901760
        %v3777 = vsub.f32 %v3775, %v3776
        %v3778 = vand.u32 %v3777, 4294901760
        %3779 = vmatpush1.msra.mxu0 %v3778
        %3780 = vmatprep.subr.mxu0 0.0
        %3781 = vmatpush1.msra.mxu0 0.0
        %3782 = vmatprep.subr.mxu0 0.0
        %3783 = vmatpush1.msra.mxu0 0.0
        %3784 = vmatprep.subr.mxu0 0.0
        %3785 = vmatpush1.msra.mxu0 0.0
        %3786 = vmatprep.subr.mxu0 0.0
        %3787 = vmatpush1.msra.mxu0 0.0
        %3788 = vmatprep.subr.mxu0 0.0
        %3789 = vmatpush1.msra.mxu0 0.0
        %3790 = vmatprep.subr.mxu0 0.0
        %3791 = vmatpush1.msra.mxu0 0.0
        %3792 = vmatprep.subr.mxu0 0.0
        %3793 = vmatpush1.msra.mxu0 0.0
        %3794 = vmatprep.subr.mxu0 0.0
        %3795 = vmatpush1.msra.mxu0 0.0
        %3796 = vmatprep.subr.mxu0 0.0
        %3797 = vmatpush1.msra.mxu0 0.0
        %3798 = vmatprep.subr.mxu0 0.0
        %3799 = vmatpush1.msra.mxu0 0.0
        %3800 = vmatprep.subr.mxu0 0.0
        %3801 = vmatpush1.msra.mxu0 0.0
        %3802 = vmatprep.subr.mxu0 0.0
        %3803 = vmatpush1.msra.mxu0 0.0
        %3804 = vmatprep.subr.mxu0 0.0
        %3805 = vmatpush1.msra.mxu0 0.0
        %3806 = vmatprep.subr.mxu0 0.0
        %3807 = vmatpush1.msra.mxu0 0.0
        %3808 = vmatprep.subr.mxu0 0.0
        %3809 = vmatpush1.msra.mxu0 0.0
        %3810 = vmatprep.subr.mxu0 0.0
        %3811 = vmatpush1.msra.mxu0 0.0
        %3812 = vmatprep.subr.mxu0 0.0
        %3813 = vmatpush1.msra.mxu0 0.0
        %3814 = vmatprep.subr.mxu0 0.0
        %3815 = vmatpush1.msra.mxu0 0.0
        %3816 = vmatprep.subr.mxu0 0.0
        %3817 = vmatpush1.msra.mxu0 0.0
        %3818 = vmatprep.subr.mxu0 0.0
        %3819 = vmatpush1.msra.mxu0 0.0
        %3820 = vmatprep.mubr.f32.mxu0 0.0
        %v3821 = vand.u32 %v3534, 4294901760
        %3822 = vmatmul.mubr.f32.gmra.mrb[0].mxu0 %v3821
        %v3823 = vpop.f32.mrb[0].mxu0
        %v3824 = vadd.f32 %v3632, %v3823
        %v3825 = vpop.f32.mrb[0].mxu0
        %v3826 = vadd.f32 %v3634, %v3825
        %3827 = vdwg.mxu0
        %v3828 = vand.u32 %v3461, 4294901760
        %v3829 = vsub.f32 %v3461, %v3828
        %3830 = vmatprep.subr.mxu0 %v3829
        %v3831 = vand.u32 %v3460, 4294901760
        %v3832 = vsub.f32 %v3460, %v3831
        %3833 = vmatpush1.msra.mxu0 %v3832
        %v3834 = vand.u32 %v3467, 4294901760
        %v3835 = vsub.f32 %v3467, %v3834
        %3836 = vmatprep.subr.mxu0 %v3835
        %v3837 = vand.u32 %v3466, 4294901760
        %v3838 = vsub.f32 %v3466, %v3837
        %3839 = vmatpush1.msra.mxu0 %v3838
        %v3840 = vand.u32 %v3473, 4294901760
        %v3841 = vsub.f32 %v3473, %v3840
        %3842 = vmatprep.subr.mxu0 %v3841
        %v3843 = vand.u32 %v3472, 4294901760
        %v3844 = vsub.f32 %v3472, %v3843
        %3845 = vmatpush1.msra.mxu0 %v3844
        %v3846 = vand.u32 %v3479, 4294901760
        %v3847 = vsub.f32 %v3479, %v3846
        %3848 = vmatprep.subr.mxu0 %v3847
        %v3849 = vand.u32 %v3478, 4294901760
        %v3850 = vsub.f32 %v3478, %v3849
        %3851 = vmatpush1.msra.mxu0 %v3850
        %v3852 = vand.u32 %v3485, 4294901760
        %v3853 = vsub.f32 %v3485, %v3852
        %3854 = vmatprep.subr.mxu0 %v3853
        %v3855 = vand.u32 %v3484, 4294901760
        %v3856 = vsub.f32 %v3484, %v3855
        %3857 = vmatpush1.msra.mxu0 %v3856
        %v3858 = vand.u32 %v3491, 4294901760
        %v3859 = vsub.f32 %v3491, %v3858
        %3860 = vmatprep.subr.mxu0 %v3859
        %v3861 = vand.u32 %v3490, 4294901760
        %v3862 = vsub.f32 %v3490, %v3861
        %3863 = vmatpush1.msra.mxu0 %v3862
        %v3864 = vand.u32 %v3497, 4294901760
        %v3865 = vsub.f32 %v3497, %v3864
        %3866 = vmatprep.subr.mxu0 %v3865
        %v3867 = vand.u32 %v3496, 4294901760
        %v3868 = vsub.f32 %v3496, %v3867
        %3869 = vmatpush1.msra.mxu0 %v3868
        %v3870 = vand.u32 %v3503, 4294901760
        %v3871 = vsub.f32 %v3503, %v3870
        %3872 = vmatprep.subr.mxu0 %v3871
        %v3873 = vand.u32 %v3502, 4294901760
        %v3874 = vsub.f32 %v3502, %v3873
        %3875 = vmatpush1.msra.mxu0 %v3874
        %v3876 = vand.u32 %v3509, 4294901760
        %v3877 = vsub.f32 %v3509, %v3876
        %3878 = vmatprep.subr.mxu0 %v3877
        %v3879 = vand.u32 %v3508, 4294901760
        %v3880 = vsub.f32 %v3508, %v3879
        %3881 = vmatpush1.msra.mxu0 %v3880
        %v3882 = vand.u32 %v3515, 4294901760
        %v3883 = vsub.f32 %v3515, %v3882
        %3884 = vmatprep.subr.mxu0 %v3883
        %v3885 = vand.u32 %v3514, 4294901760
        %v3886 = vsub.f32 %v3514, %v3885
        %3887 = vmatpush1.msra.mxu0 %v3886
        %v3888 = vand.u32 %v3521, 4294901760
        %v3889 = vsub.f32 %v3521, %v3888
        %3890 = vmatprep.subr.mxu0 %v3889
        %v3891 = vand.u32 %v3520, 4294901760
        %v3892 = vsub.f32 %v3520, %v3891
        %3893 = vmatpush1.msra.mxu0 %v3892
        %v3894 = vand.u32 %v3527, 4294901760
        %v3895 = vsub.f32 %v3527, %v3894
        %3896 = vmatprep.subr.mxu0 %v3895
        %v3897 = vand.u32 %v3526, 4294901760
        %v3898 = vsub.f32 %v3526, %v3897
        %3899 = vmatpush1.msra.mxu0 %v3898
        %3900 = vmatprep.subr.mxu0 0.0
        %3901 = vmatpush1.msra.mxu0 0.0
        %3902 = vmatprep.subr.mxu0 0.0
        %3903 = vmatpush1.msra.mxu0 0.0
        %3904 = vmatprep.subr.mxu0 0.0
        %3905 = vmatpush1.msra.mxu0 0.0
        %3906 = vmatprep.subr.mxu0 0.0
        %3907 = vmatpush1.msra.mxu0 0.0
        %3908 = vmatprep.subr.mxu0 0.0
        %3909 = vmatpush1.msra.mxu0 0.0
        %3910 = vmatprep.subr.mxu0 0.0
        %3911 = vmatpush1.msra.mxu0 0.0
        %3912 = vmatprep.subr.mxu0 0.0
        %3913 = vmatpush1.msra.mxu0 0.0
        %3914 = vmatprep.subr.mxu0 0.0
        %3915 = vmatpush1.msra.mxu0 0.0
        %3916 = vmatprep.subr.mxu0 0.0
        %3917 = vmatpush1.msra.mxu0 0.0
        %3918 = vmatprep.subr.mxu0 0.0
        %3919 = vmatpush1.msra.mxu0 0.0
        %3920 = vmatprep.subr.mxu0 0.0
        %3921 = vmatpush1.msra.mxu0 0.0
        %3922 = vmatprep.subr.mxu0 0.0
        %3923 = vmatpush1.msra.mxu0 0.0
        %3924 = vmatprep.subr.mxu0 0.0
        %3925 = vmatpush1.msra.mxu0 0.0
        %3926 = vmatprep.subr.mxu0 0.0
        %3927 = vmatpush1.msra.mxu0 0.0
        %3928 = vmatprep.subr.mxu0 0.0
        %3929 = vmatpush1.msra.mxu0 0.0
        %3930 = vmatprep.subr.mxu0 0.0
        %3931 = vmatpush1.msra.mxu0 0.0
        %3932 = vmatprep.subr.mxu0 0.0
        %3933 = vmatpush1.msra.mxu0 0.0
        %3934 = vmatprep.subr.mxu0 0.0
        %3935 = vmatpush1.msra.mxu0 0.0
        %3936 = vmatprep.subr.mxu0 0.0
        %3937 = vmatpush1.msra.mxu0 0.0
        %3938 = vmatprep.subr.mxu0 0.0
        %3939 = vmatpush1.msra.mxu0 0.0
        %3940 = vmatprep.mubr.f32.mxu0 0.0
        %v3941 = vand.u32 %v3534, 4294901760
        %v3942 = vsub.f32 %v3534, %v3941
        %3943 = vmatmul.mubr.f32.gmra.mrb[0].mxu0 %v3942
        %v3944 = vpop.f32.mrb[0].mxu0
        %v3945 = vadd.f32 %v3824, %v3944
        %v3946 = vpop.f32.mrb[0].mxu0
        %v3947 = vadd.f32 %v3826, %v3946
        %3948 = vdwg.mxu0
        %v3949 = vand.u32 %v3461, 4294901760
        %3950 = vmatprep.subr.mxu0 %v3949
        %v3951 = vand.u32 %v3460, 4294901760
        %3952 = vmatpush1.msra.mxu0 %v3951
        %v3953 = vand.u32 %v3467, 4294901760
        %3954 = vmatprep.subr.mxu0 %v3953
        %v3955 = vand.u32 %v3466, 4294901760
        %3956 = vmatpush1.msra.mxu0 %v3955
        %v3957 = vand.u32 %v3473, 4294901760
        %3958 = vmatprep.subr.mxu0 %v3957
        %v3959 = vand.u32 %v3472, 4294901760
        %3960 = vmatpush1.msra.mxu0 %v3959
        %v3961 = vand.u32 %v3479, 4294901760
        %3962 = vmatprep.subr.mxu0 %v3961
        %v3963 = vand.u32 %v3478, 4294901760
        %3964 = vmatpush1.msra.mxu0 %v3963
        %v3965 = vand.u32 %v3485, 4294901760
        %3966 = vmatprep.subr.mxu0 %v3965
        %v3967 = vand.u32 %v3484, 4294901760
        %3968 = vmatpush1.msra.mxu0 %v3967
        %v3969 = vand.u32 %v3491, 4294901760
        %3970 = vmatprep.subr.mxu0 %v3969
        %v3971 = vand.u32 %v3490, 4294901760
        %3972 = vmatpush1.msra.mxu0 %v3971
        %v3973 = vand.u32 %v3497, 4294901760
        %3974 = vmatprep.subr.mxu0 %v3973
        %v3975 = vand.u32 %v3496, 4294901760
        %3976 = vmatpush1.msra.mxu0 %v3975
        %v3977 = vand.u32 %v3503, 4294901760
        %3978 = vmatprep.subr.mxu0 %v3977
        %v3979 = vand.u32 %v3502, 4294901760
        %3980 = vmatpush1.msra.mxu0 %v3979
        %v3981 = vand.u32 %v3509, 4294901760
        %3982 = vmatprep.subr.mxu0 %v3981
        %v3983 = vand.u32 %v3508, 4294901760
        %3984 = vmatpush1.msra.mxu0 %v3983
        %v3985 = vand.u32 %v3515, 4294901760
        %3986 = vmatprep.subr.mxu0 %v3985
        %v3987 = vand.u32 %v3514, 4294901760
        %3988 = vmatpush1.msra.mxu0 %v3987
        %v3989 = vand.u32 %v3521, 4294901760
        %3990 = vmatprep.subr.mxu0 %v3989
        %v3991 = vand.u32 %v3520, 4294901760
        %3992 = vmatpush1.msra.mxu0 %v3991
        %v3993 = vand.u32 %v3527, 4294901760
        %3994 = vmatprep.subr.mxu0 %v3993
        %v3995 = vand.u32 %v3526, 4294901760
        %3996 = vmatpush1.msra.mxu0 %v3995
        %3997 = vmatprep.subr.mxu0 0.0
        %3998 = vmatpush1.msra.mxu0 0.0
        %3999 = vmatprep.subr.mxu0 0.0
        %4000 = vmatpush1.msra.mxu0 0.0
        %4001 = vmatprep.subr.mxu0 0.0
        %4002 = vmatpush1.msra.mxu0 0.0
        %4003 = vmatprep.subr.mxu0 0.0
        %4004 = vmatpush1.msra.mxu0 0.0
        %4005 = vmatprep.subr.mxu0 0.0
        %4006 = vmatpush1.msra.mxu0 0.0
        %4007 = vmatprep.subr.mxu0 0.0
        %4008 = vmatpush1.msra.mxu0 0.0
        %4009 = vmatprep.subr.mxu0 0.0
        %4010 = vmatpush1.msra.mxu0 0.0
        %4011 = vmatprep.subr.mxu0 0.0
        %4012 = vmatpush1.msra.mxu0 0.0
        %4013 = vmatprep.subr.mxu0 0.0
        %4014 = vmatpush1.msra.mxu0 0.0
        %4015 = vmatprep.subr.mxu0 0.0
        %4016 = vmatpush1.msra.mxu0 0.0
        %4017 = vmatprep.subr.mxu0 0.0
        %4018 = vmatpush1.msra.mxu0 0.0
        %4019 = vmatprep.subr.mxu0 0.0
        %4020 = vmatpush1.msra.mxu0 0.0
        %4021 = vmatprep.subr.mxu0 0.0
        %4022 = vmatpush1.msra.mxu0 0.0
        %4023 = vmatprep.subr.mxu0 0.0
        %4024 = vmatpush1.msra.mxu0 0.0
        %4025 = vmatprep.subr.mxu0 0.0
        %4026 = vmatpush1.msra.mxu0 0.0
        %4027 = vmatprep.subr.mxu0 0.0
        %4028 = vmatpush1.msra.mxu0 0.0
        %4029 = vmatprep.subr.mxu0 0.0
        %4030 = vmatpush1.msra.mxu0 0.0
        %4031 = vmatprep.subr.mxu0 0.0
        %4032 = vmatpush1.msra.mxu0 0.0
        %4033 = vmatprep.subr.mxu0 0.0
        %4034 = vmatpush1.msra.mxu0 0.0
        %4035 = vmatprep.subr.mxu0 0.0
        %4036 = vmatpush1.msra.mxu0 0.0
        %4037 = vmatprep.mubr.f32.mxu0 0.0
        %v4038 = vand.u32 %v3534, 4294901760
        %v4039 = vsub.f32 %v3534, %v4038
        %v4040 = vand.u32 %v4039, 4294901760
        %4041 = vmatmul.mubr.f32.gmra.mrb[0].mxu0 %v4040
        %v4042 = vpop.f32.mrb[0].mxu0
        %v4043 = vadd.f32 %v3945, %v4042
        %v4044 = vpop.f32.mrb[0].mxu0
        %v4045 = vadd.f32 %v3947, %v4044
        %4046 = vdwg.mxu0
        %v4047 = vand.u32 %v3461, 4294901760
        %v4048 = vsub.f32 %v3461, %v4047
        %v4049 = vand.u32 %v4048, 4294901760
        %4050 = vmatprep.subr.mxu0 %v4049
        %v4051 = vand.u32 %v3460, 4294901760
        %v4052 = vsub.f32 %v3460, %v4051
        %v4053 = vand.u32 %v4052, 4294901760
        %4054 = vmatpush1.msra.mxu0 %v4053
        %v4055 = vand.u32 %v3467, 4294901760
        %v4056 = vsub.f32 %v3467, %v4055
        %v4057 = vand.u32 %v4056, 4294901760
        %4058 = vmatprep.subr.mxu0 %v4057
        %v4059 = vand.u32 %v3466, 4294901760
        %v4060 = vsub.f32 %v3466, %v4059
        %v4061 = vand.u32 %v4060, 4294901760
        %4062 = vmatpush1.msra.mxu0 %v4061
        %v4063 = vand.u32 %v3473, 4294901760
        %v4064 = vsub.f32 %v3473, %v4063
        %v4065 = vand.u32 %v4064, 4294901760
        %4066 = vmatprep.subr.mxu0 %v4065
        %v4067 = vand.u32 %v3472, 4294901760
        %v4068 = vsub.f32 %v3472, %v4067
        %v4069 = vand.u32 %v4068, 4294901760
        %4070 = vmatpush1.msra.mxu0 %v4069
        %v4071 = vand.u32 %v3479, 4294901760
        %v4072 = vsub.f32 %v3479, %v4071
        %v4073 = vand.u32 %v4072, 4294901760
        %4074 = vmatprep.subr.mxu0 %v4073
        %v4075 = vand.u32 %v3478, 4294901760
        %v4076 = vsub.f32 %v3478, %v4075
        %v4077 = vand.u32 %v4076, 4294901760
        %4078 = vmatpush1.msra.mxu0 %v4077
        %v4079 = vand.u32 %v3485, 4294901760
        %v4080 = vsub.f32 %v3485, %v4079
        %v4081 = vand.u32 %v4080, 4294901760
        %4082 = vmatprep.subr.mxu0 %v4081
        %v4083 = vand.u32 %v3484, 4294901760
        %v4084 = vsub.f32 %v3484, %v4083
        %v4085 = vand.u32 %v4084, 4294901760
        %4086 = vmatpush1.msra.mxu0 %v4085
        %v4087 = vand.u32 %v3491, 4294901760
        %v4088 = vsub.f32 %v3491, %v4087
        %v4089 = vand.u32 %v4088, 4294901760
        %4090 = vmatprep.subr.mxu0 %v4089
        %v4091 = vand.u32 %v3490, 4294901760
        %v4092 = vsub.f32 %v3490, %v4091
        %v4093 = vand.u32 %v4092, 4294901760
        %4094 = vmatpush1.msra.mxu0 %v4093
        %v4095 = vand.u32 %v3497, 4294901760
        %v4096 = vsub.f32 %v3497, %v4095
        %v4097 = vand.u32 %v4096, 4294901760
        %4098 = vmatprep.subr.mxu0 %v4097
        %v4099 = vand.u32 %v3496, 4294901760
        %v4100 = vsub.f32 %v3496, %v4099
        %v4101 = vand.u32 %v4100, 4294901760
        %4102 = vmatpush1.msra.mxu0 %v4101
        %v4103 = vand.u32 %v3503, 4294901760
        %v4104 = vsub.f32 %v3503, %v4103
        %v4105 = vand.u32 %v4104, 4294901760
        %4106 = vmatprep.subr.mxu0 %v4105
        %v4107 = vand.u32 %v3502, 4294901760
        %v4108 = vsub.f32 %v3502, %v4107
        %v4109 = vand.u32 %v4108, 4294901760
        %4110 = vmatpush1.msra.mxu0 %v4109
        %v4111 = vand.u32 %v3509, 4294901760
        %v4112 = vsub.f32 %v3509, %v4111
        %v4113 = vand.u32 %v4112, 4294901760
        %4114 = vmatprep.subr.mxu0 %v4113
        %v4115 = vand.u32 %v3508, 4294901760
        %v4116 = vsub.f32 %v3508, %v4115
        %v4117 = vand.u32 %v4116, 4294901760
        %4118 = vmatpush1.msra.mxu0 %v4117
        %v4119 = vand.u32 %v3515, 4294901760
        %v4120 = vsub.f32 %v3515, %v4119
        %v4121 = vand.u32 %v4120, 4294901760
        %4122 = vmatprep.subr.mxu0 %v4121
        %v4123 = vand.u32 %v3514, 4294901760
        %v4124 = vsub.f32 %v3514, %v4123
        %v4125 = vand.u32 %v4124, 4294901760
        %4126 = vmatpush1.msra.mxu0 %v4125
        %v4127 = vand.u32 %v3521, 4294901760
        %v4128 = vsub.f32 %v3521, %v4127
        %v4129 = vand.u32 %v4128, 4294901760
        %4130 = vmatprep.subr.mxu0 %v4129
        %v4131 = vand.u32 %v3520, 4294901760
        %v4132 = vsub.f32 %v3520, %v4131
        %v4133 = vand.u32 %v4132, 4294901760
        %4134 = vmatpush1.msra.mxu0 %v4133
        %v4135 = vand.u32 %v3527, 4294901760
        %v4136 = vsub.f32 %v3527, %v4135
        %v4137 = vand.u32 %v4136, 4294901760
        %4138 = vmatprep.subr.mxu0 %v4137
        %v4139 = vand.u32 %v3526, 4294901760
        %v4140 = vsub.f32 %v3526, %v4139
        %v4141 = vand.u32 %v4140, 4294901760
        %4142 = vmatpush1.msra.mxu0 %v4141
        %4143 = vmatprep.subr.mxu0 0.0
        %4144 = vmatpush1.msra.mxu0 0.0
        %4145 = vmatprep.subr.mxu0 0.0
        %4146 = vmatpush1.msra.mxu0 0.0
        %4147 = vmatprep.subr.mxu0 0.0
        %4148 = vmatpush1.msra.mxu0 0.0
        %4149 = vmatprep.subr.mxu0 0.0
        %4150 = vmatpush1.msra.mxu0 0.0
        %4151 = vmatprep.subr.mxu0 0.0
        %4152 = vmatpush1.msra.mxu0 0.0
        %4153 = vmatprep.subr.mxu0 0.0
        %4154 = vmatpush1.msra.mxu0 0.0
        %4155 = vmatprep.subr.mxu0 0.0
        %4156 = vmatpush1.msra.mxu0 0.0
        %4157 = vmatprep.subr.mxu0 0.0
        %4158 = vmatpush1.msra.mxu0 0.0
        %4159 = vmatprep.subr.mxu0 0.0
        %4160 = vmatpush1.msra.mxu0 0.0
        %4161 = vmatprep.subr.mxu0 0.0
        %4162 = vmatpush1.msra.mxu0 0.0
        %4163 = vmatprep.subr.mxu0 0.0
        %4164 = vmatpush1.msra.mxu0 0.0
        %4165 = vmatprep.subr.mxu0 0.0
        %4166 = vmatpush1.msra.mxu0 0.0
        %4167 = vmatprep.subr.mxu0 0.0
        %4168 = vmatpush1.msra.mxu0 0.0
        %4169 = vmatprep.subr.mxu0 0.0
        %4170 = vmatpush1.msra.mxu0 0.0
        %4171 = vmatprep.subr.mxu0 0.0
        %4172 = vmatpush1.msra.mxu0 0.0
        %4173 = vmatprep.subr.mxu0 0.0
        %4174 = vmatpush1.msra.mxu0 0.0
        %4175 = vmatprep.subr.mxu0 0.0
        %4176 = vmatpush1.msra.mxu0 0.0
        %4177 = vmatprep.subr.mxu0 0.0
        %4178 = vmatpush1.msra.mxu0 0.0
        %4179 = vmatprep.subr.mxu0 0.0
        %4180 = vmatpush1.msra.mxu0 0.0
        %4181 = vmatprep.subr.mxu0 0.0
        %4182 = vmatpush1.msra.mxu0 0.0
        %4183 = vmatprep.mubr.f32.mxu0 0.0
        %v4184 = vand.u32 %v3534, 4294901760
        %4185 = vmatmul.mubr.f32.gmra.mrb[0].mxu0 %v4184
        %v4186 = vpop.f32.mrb[0].mxu0
        %v4187 = vadd.f32 %v4043, %v4186
        %v4188 = vpop.f32.mrb[0].mxu0
        %v4189 = vadd.f32 %v4045, %v4188
        %4190 = vdwg.mxu0
        %v4191 = vand.u32 %v3461, 4294901760
        %4192 = vmatprep.subr.mxu0 %v4191
        %v4193 = vand.u32 %v3460, 4294901760
        %4194 = vmatpush1.msra.mxu0 %v4193
        %v4195 = vand.u32 %v3467, 4294901760
        %4196 = vmatprep.subr.mxu0 %v4195
        %v4197 = vand.u32 %v3466, 4294901760
        %4198 = vmatpush1.msra.mxu0 %v4197
        %v4199 = vand.u32 %v3473, 4294901760
        %4200 = vmatprep.subr.mxu0 %v4199
        %v4201 = vand.u32 %v3472, 4294901760
        %4202 = vmatpush1.msra.mxu0 %v4201
        %v4203 = vand.u32 %v3479, 4294901760
        %4204 = vmatprep.subr.mxu0 %v4203
        %v4205 = vand.u32 %v3478, 4294901760
        %4206 = vmatpush1.msra.mxu0 %v4205
        %v4207 = vand.u32 %v3485, 4294901760
        %4208 = vmatprep.subr.mxu0 %v4207
        %v4209 = vand.u32 %v3484, 4294901760
        %4210 = vmatpush1.msra.mxu0 %v4209
        %v4211 = vand.u32 %v3491, 4294901760
        %4212 = vmatprep.subr.mxu0 %v4211
        %v4213 = vand.u32 %v3490, 4294901760
        %4214 = vmatpush1.msra.mxu0 %v4213
        %v4215 = vand.u32 %v3497, 4294901760
        %4216 = vmatprep.subr.mxu0 %v4215
        %v4217 = vand.u32 %v3496, 4294901760
        %4218 = vmatpush1.msra.mxu0 %v4217
        %v4219 = vand.u32 %v3503, 4294901760
        %4220 = vmatprep.subr.mxu0 %v4219
        %v4221 = vand.u32 %v3502, 4294901760
        %4222 = vmatpush1.msra.mxu0 %v4221
        %v4223 = vand.u32 %v3509, 4294901760
        %4224 = vmatprep.subr.mxu0 %v4223
        %v4225 = vand.u32 %v3508, 4294901760
        %4226 = vmatpush1.msra.mxu0 %v4225
        %v4227 = vand.u32 %v3515, 4294901760
        %4228 = vmatprep.subr.mxu0 %v4227
        %v4229 = vand.u32 %v3514, 4294901760
        %4230 = vmatpush1.msra.mxu0 %v4229
        %v4231 = vand.u32 %v3521, 4294901760
        %4232 = vmatprep.subr.mxu0 %v4231
        %v4233 = vand.u32 %v3520, 4294901760
        %4234 = vmatpush1.msra.mxu0 %v4233
        %v4235 = vand.u32 %v3527, 4294901760
        %4236 = vmatprep.subr.mxu0 %v4235
        %v4237 = vand.u32 %v3526, 4294901760
        %4238 = vmatpush1.msra.mxu0 %v4237
        %4239 = vmatprep.subr.mxu0 0.0
        %4240 = vmatpush1.msra.mxu0 0.0
        %4241 = vmatprep.subr.mxu0 0.0
        %4242 = vmatpush1.msra.mxu0 0.0
        %4243 = vmatprep.subr.mxu0 0.0
        %4244 = vmatpush1.msra.mxu0 0.0
        %4245 = vmatprep.subr.mxu0 0.0
        %4246 = vmatpush1.msra.mxu0 0.0
        %4247 = vmatprep.subr.mxu0 0.0
        %4248 = vmatpush1.msra.mxu0 0.0
        %4249 = vmatprep.subr.mxu0 0.0
        %4250 = vmatpush1.msra.mxu0 0.0
        %4251 = vmatprep.subr.mxu0 0.0
        %4252 = vmatpush1.msra.mxu0 0.0
        %4253 = vmatprep.subr.mxu0 0.0
        %4254 = vmatpush1.msra.mxu0 0.0
        %4255 = vmatprep.subr.mxu0 0.0
        %4256 = vmatpush1.msra.mxu0 0.0
        %4257 = vmatprep.subr.mxu0 0.0
        %4258 = vmatpush1.msra.mxu0 0.0
        %4259 = vmatprep.subr.mxu0 0.0
        %4260 = vmatpush1.msra.mxu0 0.0
        %4261 = vmatprep.subr.mxu0 0.0
        %4262 = vmatpush1.msra.mxu0 0.0
        %4263 = vmatprep.subr.mxu0 0.0
        %4264 = vmatpush1.msra.mxu0 0.0
        %4265 = vmatprep.subr.mxu0 0.0
        %4266 = vmatpush1.msra.mxu0 0.0
        %4267 = vmatprep.subr.mxu0 0.0
        %4268 = vmatpush1.msra.mxu0 0.0
        %4269 = vmatprep.subr.mxu0 0.0
        %4270 = vmatpush1.msra.mxu0 0.0
        %4271 = vmatprep.subr.mxu0 0.0
        %4272 = vmatpush1.msra.mxu0 0.0
        %4273 = vmatprep.subr.mxu0 0.0
        %4274 = vmatpush1.msra.mxu0 0.0
        %4275 = vmatprep.subr.mxu0 0.0
        %4276 = vmatpush1.msra.mxu0 0.0
        %4277 = vmatprep.subr.mxu0 0.0
        %4278 = vmatpush1.msra.mxu0 0.0
        %4279 = vmatprep.mubr.f32.mxu0 0.0
        %v4280 = vand.u32 %v3534, 4294901760
        %4281 = vmatmul.mubr.f32.gmra.mrb[0].mxu0 %v4280
        %v4282 = vpop.f32.mrb[0].mxu0
        %v4283 = vadd.f32 %v4187, %v4282
        %v4284 = vpop.f32.mrb[0].mxu0
        %v4285 = vadd.f32 %v4189, %v4284
        %4286 = vdwg.mxu0
        %v4287 = vand.u32 %v3463, 4294901760
        %4288 = vmatprep.subr.mxu0 %v4287
        %v4289 = vand.u32 %v3462, 4294901760
        %4290 = vmatpush1.msra.mxu0 %v4289
        %v4291 = vand.u32 %v3469, 4294901760
        %4292 = vmatprep.subr.mxu0 %v4291
        %v4293 = vand.u32 %v3468, 4294901760
        %4294 = vmatpush1.msra.mxu0 %v4293
        %v4295 = vand.u32 %v3475, 4294901760
        %4296 = vmatprep.subr.mxu0 %v4295
        %v4297 = vand.u32 %v3474, 4294901760
        %4298 = vmatpush1.msra.mxu0 %v4297
        %v4299 = vand.u32 %v3481, 4294901760
        %4300 = vmatprep.subr.mxu0 %v4299
        %v4301 = vand.u32 %v3480, 4294901760
        %4302 = vmatpush1.msra.mxu0 %v4301
        %v4303 = vand.u32 %v3487, 4294901760
        %4304 = vmatprep.subr.mxu0 %v4303
        %v4305 = vand.u32 %v3486, 4294901760
        %4306 = vmatpush1.msra.mxu0 %v4305
        %v4307 = vand.u32 %v3493, 4294901760
        %4308 = vmatprep.subr.mxu0 %v4307
        %v4309 = vand.u32 %v3492, 4294901760
        %4310 = vmatpush1.msra.mxu0 %v4309
        %v4311 = vand.u32 %v3499, 4294901760
        %4312 = vmatprep.subr.mxu0 %v4311
        %v4313 = vand.u32 %v3498, 4294901760
        %4314 = vmatpush1.msra.mxu0 %v4313
        %v4315 = vand.u32 %v3505, 4294901760
        %4316 = vmatprep.subr.mxu0 %v4315
        %v4317 = vand.u32 %v3504, 4294901760
        %4318 = vmatpush1.msra.mxu0 %v4317
        %v4319 = vand.u32 %v3511, 4294901760
        %4320 = vmatprep.subr.mxu0 %v4319
        %v4321 = vand.u32 %v3510, 4294901760
        %4322 = vmatpush1.msra.mxu0 %v4321
        %v4323 = vand.u32 %v3517, 4294901760
        %4324 = vmatprep.subr.mxu0 %v4323
        %v4325 = vand.u32 %v3516, 4294901760
        %4326 = vmatpush1.msra.mxu0 %v4325
        %v4327 = vand.u32 %v3523, 4294901760
        %4328 = vmatprep.subr.mxu0 %v4327
        %v4329 = vand.u32 %v3522, 4294901760
        %4330 = vmatpush1.msra.mxu0 %v4329
        %v4331 = vand.u32 %v3529, 4294901760
        %4332 = vmatprep.subr.mxu0 %v4331
        %v4333 = vand.u32 %v3528, 4294901760
        %4334 = vmatpush1.msra.mxu0 %v4333
        %4335 = vmatprep.subr.mxu0 0.0
        %4336 = vmatpush1.msra.mxu0 0.0
        %4337 = vmatprep.subr.mxu0 0.0
        %4338 = vmatpush1.msra.mxu0 0.0
        %4339 = vmatprep.subr.mxu0 0.0
        %4340 = vmatpush1.msra.mxu0 0.0
        %4341 = vmatprep.subr.mxu0 0.0
        %4342 = vmatpush1.msra.mxu0 0.0
        %4343 = vmatprep.subr.mxu0 0.0
        %4344 = vmatpush1.msra.mxu0 0.0
        %4345 = vmatprep.subr.mxu0 0.0
        %4346 = vmatpush1.msra.mxu0 0.0
        %4347 = vmatprep.subr.mxu0 0.0
        %4348 = vmatpush1.msra.mxu0 0.0
        %4349 = vmatprep.subr.mxu0 0.0
        %4350 = vmatpush1.msra.mxu0 0.0
        %4351 = vmatprep.subr.mxu0 0.0
        %4352 = vmatpush1.msra.mxu0 0.0
        %4353 = vmatprep.subr.mxu0 0.0
        %4354 = vmatpush1.msra.mxu0 0.0
        %4355 = vmatprep.subr.mxu0 0.0
        %4356 = vmatpush1.msra.mxu0 0.0
        %4357 = vmatprep.subr.mxu0 0.0
        %4358 = vmatpush1.msra.mxu0 0.0
        %4359 = vmatprep.subr.mxu0 0.0
        %4360 = vmatpush1.msra.mxu0 0.0
        %4361 = vmatprep.subr.mxu0 0.0
        %4362 = vmatpush1.msra.mxu0 0.0
        %4363 = vmatprep.subr.mxu0 0.0
        %4364 = vmatpush1.msra.mxu0 0.0
        %4365 = vmatprep.subr.mxu0 0.0
        %4366 = vmatpush1.msra.mxu0 0.0
        %4367 = vmatprep.subr.mxu0 0.0
        %4368 = vmatpush1.msra.mxu0 0.0
        %4369 = vmatprep.subr.mxu0 0.0
        %4370 = vmatpush1.msra.mxu0 0.0
        %4371 = vmatprep.subr.mxu0 0.0
        %4372 = vmatpush1.msra.mxu0 0.0
        %4373 = vmatprep.subr.mxu0 0.0
        %4374 = vmatpush1.msra.mxu0 0.0
        %4375 = vmatprep.mubr.f32.mxu0 0.0
        %v4376 = vand.u32 %v3534, 4294901760
        %v4377 = vsub.f32 %v3534, %v4376
        %v4378 = vand.u32 %v4377, 4294901760
        %v4379 = vsub.f32 %v4377, %v4378
        %v4380 = vand.u32 %v4379, 4294901760
        %4381 = vmatmul.mubr.f32.gmra.mrb[0].mxu0 %v4380
        %v4382 = vpop.f32.mrb[0].mxu0
        %v4383 = vadd.f32 0.0, %v4382
        %v4384 = vpop.f32.mrb[0].mxu0
        %v4385 = vadd.f32 0.0, %v4384
        %4386 = vdwg.mxu0
        %v4387 = vand.u32 %v3463, 4294901760
        %v4388 = vsub.f32 %v3463, %v4387
        %v4389 = vand.u32 %v4388, 4294901760
        %v4390 = vsub.f32 %v4388, %v4389
        %v4391 = vand.u32 %v4390, 4294901760
        %4392 = vmatprep.subr.mxu0 %v4391
        %v4393 = vand.u32 %v3462, 4294901760
        %v4394 = vsub.f32 %v3462, %v4393
        %v4395 = vand.u32 %v4394, 4294901760
        %v4396 = vsub.f32 %v4394, %v4395
        %v4397 = vand.u32 %v4396, 4294901760
        %4398 = vmatpush1.msra.mxu0 %v4397
        %v4399 = vand.u32 %v3469, 4294901760
        %v4400 = vsub.f32 %v3469, %v4399
        %v4401 = vand.u32 %v4400, 4294901760
        %v4402 = vsub.f32 %v4400, %v4401
        %v4403 = vand.u32 %v4402, 4294901760
        %4404 = vmatprep.subr.mxu0 %v4403
        %v4405 = vand.u32 %v3468, 4294901760
        %v4406 = vsub.f32 %v3468, %v4405
        %v4407 = vand.u32 %v4406, 4294901760
        %v4408 = vsub.f32 %v4406, %v4407
        %v4409 = vand.u32 %v4408, 4294901760
        %4410 = vmatpush1.msra.mxu0 %v4409
        %v4411 = vand.u32 %v3475, 4294901760
        %v4412 = vsub.f32 %v3475, %v4411
        %v4413 = vand.u32 %v4412, 4294901760
        %v4414 = vsub.f32 %v4412, %v4413
        %v4415 = vand.u32 %v4414, 4294901760
        %4416 = vmatprep.subr.mxu0 %v4415
        %v4417 = vand.u32 %v3474, 4294901760
        %v4418 = vsub.f32 %v3474, %v4417
        %v4419 = vand.u32 %v4418, 4294901760
        %v4420 = vsub.f32 %v4418, %v4419
        %v4421 = vand.u32 %v4420, 4294901760
        %4422 = vmatpush1.msra.mxu0 %v4421
        %v4423 = vand.u32 %v3481, 4294901760
        %v4424 = vsub.f32 %v3481, %v4423
        %v4425 = vand.u32 %v4424, 4294901760
        %v4426 = vsub.f32 %v4424, %v4425
        %v4427 = vand.u32 %v4426, 4294901760
        %4428 = vmatprep.subr.mxu0 %v4427
        %v4429 = vand.u32 %v3480, 4294901760
        %v4430 = vsub.f32 %v3480, %v4429
        %v4431 = vand.u32 %v4430, 4294901760
        %v4432 = vsub.f32 %v4430, %v4431
        %v4433 = vand.u32 %v4432, 4294901760
        %4434 = vmatpush1.msra.mxu0 %v4433
        %v4435 = vand.u32 %v3487, 4294901760
        %v4436 = vsub.f32 %v3487, %v4435
        %v4437 = vand.u32 %v4436, 4294901760
        %v4438 = vsub.f32 %v4436, %v4437
        %v4439 = vand.u32 %v4438, 4294901760
        %4440 = vmatprep.subr.mxu0 %v4439
        %v4441 = vand.u32 %v3486, 4294901760
        %v4442 = vsub.f32 %v3486, %v4441
        %v4443 = vand.u32 %v4442, 4294901760
        %v4444 = vsub.f32 %v4442, %v4443
        %v4445 = vand.u32 %v4444, 4294901760
        %4446 = vmatpush1.msra.mxu0 %v4445
        %v4447 = vand.u32 %v3493, 4294901760
        %v4448 = vsub.f32 %v3493, %v4447
        %v4449 = vand.u32 %v4448, 4294901760
        %v4450 = vsub.f32 %v4448, %v4449
        %v4451 = vand.u32 %v4450, 4294901760
        %4452 = vmatprep.subr.mxu0 %v4451
        %v4453 = vand.u32 %v3492, 4294901760
        %v4454 = vsub.f32 %v3492, %v4453
        %v4455 = vand.u32 %v4454, 4294901760
        %v4456 = vsub.f32 %v4454, %v4455
        %v4457 = vand.u32 %v4456, 4294901760
        %4458 = vmatpush1.msra.mxu0 %v4457
        %v4459 = vand.u32 %v3499, 4294901760
        %v4460 = vsub.f32 %v3499, %v4459
        %v4461 = vand.u32 %v4460, 4294901760
        %v4462 = vsub.f32 %v4460, %v4461
        %v4463 = vand.u32 %v4462, 4294901760
        %4464 = vmatprep.subr.mxu0 %v4463
        %v4465 = vand.u32 %v3498, 4294901760
        %v4466 = vsub.f32 %v3498, %v4465
        %v4467 = vand.u32 %v4466, 4294901760
        %v4468 = vsub.f32 %v4466, %v4467
        %v4469 = vand.u32 %v4468, 4294901760
        %4470 = vmatpush1.msra.mxu0 %v4469
        %v4471 = vand.u32 %v3505, 4294901760
        %v4472 = vsub.f32 %v3505, %v4471
        %v4473 = vand.u32 %v4472, 4294901760
        %v4474 = vsub.f32 %v4472, %v4473
        %v4475 = vand.u32 %v4474, 4294901760
        %4476 = vmatprep.subr.mxu0 %v4475
        %v4477 = vand.u32 %v3504, 4294901760
        %v4478 = vsub.f32 %v3504, %v4477
        %v4479 = vand.u32 %v4478, 4294901760
        %v4480 = vsub.f32 %v4478, %v4479
        %v4481 = vand.u32 %v4480, 4294901760
        %4482 = vmatpush1.msra.mxu0 %v4481
        %v4483 = vand.u32 %v3511, 4294901760
        %v4484 = vsub.f32 %v3511, %v4483
        %v4485 = vand.u32 %v4484, 4294901760
        %v4486 = vsub.f32 %v4484, %v4485
        %v4487 = vand.u32 %v4486, 4294901760
        %4488 = vmatprep.subr.mxu0 %v4487
        %v4489 = vand.u32 %v3510, 4294901760
        %v4490 = vsub.f32 %v3510, %v4489
        %v4491 = vand.u32 %v4490, 4294901760
        %v4492 = vsub.f32 %v4490, %v4491
        %v4493 = vand.u32 %v4492, 4294901760
        %4494 = vmatpush1.msra.mxu0 %v4493
        %v4495 = vand.u32 %v3517, 4294901760
        %v4496 = vsub.f32 %v3517, %v4495
        %v4497 = vand.u32 %v4496, 4294901760
        %v4498 = vsub.f32 %v4496, %v4497
        %v4499 = vand.u32 %v4498, 4294901760
        %4500 = vmatprep.subr.mxu0 %v4499
        %v4501 = vand.u32 %v3516, 4294901760
        %v4502 = vsub.f32 %v3516, %v4501
        %v4503 = vand.u32 %v4502, 4294901760
        %v4504 = vsub.f32 %v4502, %v4503
        %v4505 = vand.u32 %v4504, 4294901760
        %4506 = vmatpush1.msra.mxu0 %v4505
        %v4507 = vand.u32 %v3523, 4294901760
        %v4508 = vsub.f32 %v3523, %v4507
        %v4509 = vand.u32 %v4508, 4294901760
        %v4510 = vsub.f32 %v4508, %v4509
        %v4511 = vand.u32 %v4510, 4294901760
        %4512 = vmatprep.subr.mxu0 %v4511
        %v4513 = vand.u32 %v3522, 4294901760
        %v4514 = vsub.f32 %v3522, %v4513
        %v4515 = vand.u32 %v4514, 4294901760
        %v4516 = vsub.f32 %v4514, %v4515
        %v4517 = vand.u32 %v4516, 4294901760
        %4518 = vmatpush1.msra.mxu0 %v4517
        %v4519 = vand.u32 %v3529, 4294901760
        %v4520 = vsub.f32 %v3529, %v4519
        %v4521 = vand.u32 %v4520, 4294901760
        %v4522 = vsub.f32 %v4520, %v4521
        %v4523 = vand.u32 %v4522, 4294901760
        %4524 = vmatprep.subr.mxu0 %v4523
        %v4525 = vand.u32 %v3528, 4294901760
        %v4526 = vsub.f32 %v3528, %v4525
        %v4527 = vand.u32 %v4526, 4294901760
        %v4528 = vsub.f32 %v4526, %v4527
        %v4529 = vand.u32 %v4528, 4294901760
        %4530 = vmatpush1.msra.mxu0 %v4529
        %4531 = vmatprep.subr.mxu0 0.0
        %4532 = vmatpush1.msra.mxu0 0.0
        %4533 = vmatprep.subr.mxu0 0.0
        %4534 = vmatpush1.msra.mxu0 0.0
        %4535 = vmatprep.subr.mxu0 0.0
        %4536 = vmatpush1.msra.mxu0 0.0
        %4537 = vmatprep.subr.mxu0 0.0
        %4538 = vmatpush1.msra.mxu0 0.0
        %4539 = vmatprep.subr.mxu0 0.0
        %4540 = vmatpush1.msra.mxu0 0.0
        %4541 = vmatprep.subr.mxu0 0.0
        %4542 = vmatpush1.msra.mxu0 0.0
        %4543 = vmatprep.subr.mxu0 0.0
        %4544 = vmatpush1.msra.mxu0 0.0
        %4545 = vmatprep.subr.mxu0 0.0
        %4546 = vmatpush1.msra.mxu0 0.0
        %4547 = vmatprep.subr.mxu0 0.0
        %4548 = vmatpush1.msra.mxu0 0.0
        %4549 = vmatprep.subr.mxu0 0.0
        %4550 = vmatpush1.msra.mxu0 0.0
        %4551 = vmatprep.subr.mxu0 0.0
        %4552 = vmatpush1.msra.mxu0 0.0
        %4553 = vmatprep.subr.mxu0 0.0
        %4554 = vmatpush1.msra.mxu0 0.0
        %4555 = vmatprep.subr.mxu0 0.0
        %4556 = vmatpush1.msra.mxu0 0.0
        %4557 = vmatprep.subr.mxu0 0.0
        %4558 = vmatpush1.msra.mxu0 0.0
        %4559 = vmatprep.subr.mxu0 0.0
        %4560 = vmatpush1.msra.mxu0 0.0
        %4561 = vmatprep.subr.mxu0 0.0
        %4562 = vmatpush1.msra.mxu0 0.0
        %4563 = vmatprep.subr.mxu0 0.0
        %4564 = vmatpush1.msra.mxu0 0.0
        %4565 = vmatprep.subr.mxu0 0.0
        %4566 = vmatpush1.msra.mxu0 0.0
        %4567 = vmatprep.subr.mxu0 0.0
        %4568 = vmatpush1.msra.mxu0 0.0
        %4569 = vmatprep.subr.mxu0 0.0
        %4570 = vmatpush1.msra.mxu0 0.0
        %4571 = vmatprep.mubr.f32.mxu0 0.0
        %v4572 = vand.u32 %v3534, 4294901760
        %4573 = vmatmul.mubr.f32.gmra.mrb[0].mxu0 %v4572
        %v4574 = vpop.f32.mrb[0].mxu0
        %v4575 = vadd.f32 %v4383, %v4574
        %v4576 = vpop.f32.mrb[0].mxu0
        %v4577 = vadd.f32 %v4385, %v4576
        %4578 = vdwg.mxu0
        %v4579 = vand.u32 %v3463, 4294901760
        %v4580 = vsub.f32 %v3463, %v4579
        %4581 = vmatprep.subr.mxu0 %v4580
        %v4582 = vand.u32 %v3462, 4294901760
        %v4583 = vsub.f32 %v3462, %v4582
        %4584 = vmatpush1.msra.mxu0 %v4583
        %v4585 = vand.u32 %v3469, 4294901760
        %v4586 = vsub.f32 %v3469, %v4585
        %4587 = vmatprep.subr.mxu0 %v4586
        %v4588 = vand.u32 %v3468, 4294901760
        %v4589 = vsub.f32 %v3468, %v4588
        %4590 = vmatpush1.msra.mxu0 %v4589
        %v4591 = vand.u32 %v3475, 4294901760
        %v4592 = vsub.f32 %v3475, %v4591
        %4593 = vmatprep.subr.mxu0 %v4592
        %v4594 = vand.u32 %v3474, 4294901760
        %v4595 = vsub.f32 %v3474, %v4594
        %4596 = vmatpush1.msra.mxu0 %v4595
        %v4597 = vand.u32 %v3481, 4294901760
        %v4598 = vsub.f32 %v3481, %v4597
        %4599 = vmatprep.subr.mxu0 %v4598
        %v4600 = vand.u32 %v3480, 4294901760
        %v4601 = vsub.f32 %v3480, %v4600
        %4602 = vmatpush1.msra.mxu0 %v4601
        %v4603 = vand.u32 %v3487, 4294901760
        %v4604 = vsub.f32 %v3487, %v4603
        %4605 = vmatprep.subr.mxu0 %v4604
        %v4606 = vand.u32 %v3486, 4294901760
        %v4607 = vsub.f32 %v3486, %v4606
        %4608 = vmatpush1.msra.mxu0 %v4607
        %v4609 = vand.u32 %v3493, 4294901760
        %v4610 = vsub.f32 %v3493, %v4609
        %4611 = vmatprep.subr.mxu0 %v4610
        %v4612 = vand.u32 %v3492, 4294901760
        %v4613 = vsub.f32 %v3492, %v4612
        %4614 = vmatpush1.msra.mxu0 %v4613
        %v4615 = vand.u32 %v3499, 4294901760
        %v4616 = vsub.f32 %v3499, %v4615
        %4617 = vmatprep.subr.mxu0 %v4616
        %v4618 = vand.u32 %v3498, 4294901760
        %v4619 = vsub.f32 %v3498, %v4618
        %4620 = vmatpush1.msra.mxu0 %v4619
        %v4621 = vand.u32 %v3505, 4294901760
        %v4622 = vsub.f32 %v3505, %v4621
        %4623 = vmatprep.subr.mxu0 %v4622
        %v4624 = vand.u32 %v3504, 4294901760
        %v4625 = vsub.f32 %v3504, %v4624
        %4626 = vmatpush1.msra.mxu0 %v4625
        %v4627 = vand.u32 %v3511, 4294901760
        %v4628 = vsub.f32 %v3511, %v4627
        %4629 = vmatprep.subr.mxu0 %v4628
        %v4630 = vand.u32 %v3510, 4294901760
        %v4631 = vsub.f32 %v3510, %v4630
        %4632 = vmatpush1.msra.mxu0 %v4631
        %v4633 = vand.u32 %v3517, 4294901760
        %v4634 = vsub.f32 %v3517, %v4633
        %4635 = vmatprep.subr.mxu0 %v4634
        %v4636 = vand.u32 %v3516, 4294901760
        %v4637 = vsub.f32 %v3516, %v4636
        %4638 = vmatpush1.msra.mxu0 %v4637
        %v4639 = vand.u32 %v3523, 4294901760
        %v4640 = vsub.f32 %v3523, %v4639
        %4641 = vmatprep.subr.mxu0 %v4640
        %v4642 = vand.u32 %v3522, 4294901760
        %v4643 = vsub.f32 %v3522, %v4642
        %4644 = vmatpush1.msra.mxu0 %v4643
        %v4645 = vand.u32 %v3529, 4294901760
        %v4646 = vsub.f32 %v3529, %v4645
        %4647 = vmatprep.subr.mxu0 %v4646
        %v4648 = vand.u32 %v3528, 4294901760
        %v4649 = vsub.f32 %v3528, %v4648
        %4650 = vmatpush1.msra.mxu0 %v4649
        %4651 = vmatprep.subr.mxu0 0.0
        %4652 = vmatpush1.msra.mxu0 0.0
        %4653 = vmatprep.subr.mxu0 0.0
        %4654 = vmatpush1.msra.mxu0 0.0
        %4655 = vmatprep.subr.mxu0 0.0
        %4656 = vmatpush1.msra.mxu0 0.0
        %4657 = vmatprep.subr.mxu0 0.0
        %4658 = vmatpush1.msra.mxu0 0.0
        %4659 = vmatprep.subr.mxu0 0.0
        %4660 = vmatpush1.msra.mxu0 0.0
        %4661 = vmatprep.subr.mxu0 0.0
        %4662 = vmatpush1.msra.mxu0 0.0
        %4663 = vmatprep.subr.mxu0 0.0
        %4664 = vmatpush1.msra.mxu0 0.0
        %4665 = vmatprep.subr.mxu0 0.0
        %4666 = vmatpush1.msra.mxu0 0.0
        %4667 = vmatprep.subr.mxu0 0.0
        %4668 = vmatpush1.msra.mxu0 0.0
        %4669 = vmatprep.subr.mxu0 0.0
        %4670 = vmatpush1.msra.mxu0 0.0
        %4671 = vmatprep.subr.mxu0 0.0
        %4672 = vmatpush1.msra.mxu0 0.0
        %4673 = vmatprep.subr.mxu0 0.0
        %4674 = vmatpush1.msra.mxu0 0.0
        %4675 = vmatprep.subr.mxu0 0.0
        %4676 = vmatpush1.msra.mxu0 0.0
        %4677 = vmatprep.subr.mxu0 0.0
        %4678 = vmatpush1.msra.mxu0 0.0
        %4679 = vmatprep.subr.mxu0 0.0
        %4680 = vmatpush1.msra.mxu0 0.0
        %4681 = vmatprep.subr.mxu0 0.0
        %4682 = vmatpush1.msra.mxu0 0.0
        %4683 = vmatprep.subr.mxu0 0.0
        %4684 = vmatpush1.msra.mxu0 0.0
        %4685 = vmatprep.subr.mxu0 0.0
        %4686 = vmatpush1.msra.mxu0 0.0
        %4687 = vmatprep.subr.mxu0 0.0
        %4688 = vmatpush1.msra.mxu0 0.0
        %4689 = vmatprep.subr.mxu0 0.0
        %4690 = vmatpush1.msra.mxu0 0.0
        %4691 = vmatprep.mubr.f32.mxu0 0.0
        %v4692 = vand.u32 %v3534, 4294901760
        %v4693 = vsub.f32 %v3534, %v4692
        %4694 = vmatmul.mubr.f32.gmra.mrb[0].mxu0 %v4693
        %v4695 = vpop.f32.mrb[0].mxu0
        %v4696 = vadd.f32 %v4575, %v4695
        %v4697 = vpop.f32.mrb[0].mxu0
        %v4698 = vadd.f32 %v4577, %v4697
        %4699 = vdwg.mxu0
        %v4700 = vand.u32 %v3463, 4294901760
        %4701 = vmatprep.subr.mxu0 %v4700
        %v4702 = vand.u32 %v3462, 4294901760
        %4703 = vmatpush1.msra.mxu0 %v4702
        %v4704 = vand.u32 %v3469, 4294901760
        %4705 = vmatprep.subr.mxu0 %v4704
        %v4706 = vand.u32 %v3468, 4294901760
        %4707 = vmatpush1.msra.mxu0 %v4706
        %v4708 = vand.u32 %v3475, 4294901760
        %4709 = vmatprep.subr.mxu0 %v4708
        %v4710 = vand.u32 %v3474, 4294901760
        %4711 = vmatpush1.msra.mxu0 %v4710
        %v4712 = vand.u32 %v3481, 4294901760
        %4713 = vmatprep.subr.mxu0 %v4712
        %v4714 = vand.u32 %v3480, 4294901760
        %4715 = vmatpush1.msra.mxu0 %v4714
        %v4716 = vand.u32 %v3487, 4294901760
        %4717 = vmatprep.subr.mxu0 %v4716
        %v4718 = vand.u32 %v3486, 4294901760
        %4719 = vmatpush1.msra.mxu0 %v4718
        %v4720 = vand.u32 %v3493, 4294901760
        %4721 = vmatprep.subr.mxu0 %v4720
        %v4722 = vand.u32 %v3492, 4294901760
        %4723 = vmatpush1.msra.mxu0 %v4722
        %v4724 = vand.u32 %v3499, 4294901760
        %4725 = vmatprep.subr.mxu0 %v4724
        %v4726 = vand.u32 %v3498, 4294901760
        %4727 = vmatpush1.msra.mxu0 %v4726
        %v4728 = vand.u32 %v3505, 4294901760
        %4729 = vmatprep.subr.mxu0 %v4728
        %v4730 = vand.u32 %v3504, 4294901760
        %4731 = vmatpush1.msra.mxu0 %v4730
        %v4732 = vand.u32 %v3511, 4294901760
        %4733 = vmatprep.subr.mxu0 %v4732
        %v4734 = vand.u32 %v3510, 4294901760
        %4735 = vmatpush1.msra.mxu0 %v4734
        %v4736 = vand.u32 %v3517, 4294901760
        %4737 = vmatprep.subr.mxu0 %v4736
        %v4738 = vand.u32 %v3516, 4294901760
        %4739 = vmatpush1.msra.mxu0 %v4738
        %v4740 = vand.u32 %v3523, 4294901760
        %4741 = vmatprep.subr.mxu0 %v4740
        %v4742 = vand.u32 %v3522, 4294901760
        %4743 = vmatpush1.msra.mxu0 %v4742
        %v4744 = vand.u32 %v3529, 4294901760
        %4745 = vmatprep.subr.mxu0 %v4744
        %v4746 = vand.u32 %v3528, 4294901760
        %4747 = vmatpush1.msra.mxu0 %v4746
        %4748 = vmatprep.subr.mxu0 0.0
        %4749 = vmatpush1.msra.mxu0 0.0
        %4750 = vmatprep.subr.mxu0 0.0
        %4751 = vmatpush1.msra.mxu0 0.0
        %4752 = vmatprep.subr.mxu0 0.0
        %4753 = vmatpush1.msra.mxu0 0.0
        %4754 = vmatprep.subr.mxu0 0.0
        %4755 = vmatpush1.msra.mxu0 0.0
        %4756 = vmatprep.subr.mxu0 0.0
        %4757 = vmatpush1.msra.mxu0 0.0
        %4758 = vmatprep.subr.mxu0 0.0
        %4759 = vmatpush1.msra.mxu0 0.0
        %4760 = vmatprep.subr.mxu0 0.0
        %4761 = vmatpush1.msra.mxu0 0.0
        %4762 = vmatprep.subr.mxu0 0.0
        %4763 = vmatpush1.msra.mxu0 0.0
        %4764 = vmatprep.subr.mxu0 0.0
        %4765 = vmatpush1.msra.mxu0 0.0
        %4766 = vmatprep.subr.mxu0 0.0
        %4767 = vmatpush1.msra.mxu0 0.0
        %4768 = vmatprep.subr.mxu0 0.0
        %4769 = vmatpush1.msra.mxu0 0.0
        %4770 = vmatprep.subr.mxu0 0.0
        %4771 = vmatpush1.msra.mxu0 0.0
        %4772 = vmatprep.subr.mxu0 0.0
        %4773 = vmatpush1.msra.mxu0 0.0
        %4774 = vmatprep.subr.mxu0 0.0
        %4775 = vmatpush1.msra.mxu0 0.0
        %4776 = vmatprep.subr.mxu0 0.0
        %4777 = vmatpush1.msra.mxu0 0.0
        %4778 = vmatprep.subr.mxu0 0.0
        %4779 = vmatpush1.msra.mxu0 0.0
        %4780 = vmatprep.subr.mxu0 0.0
        %4781 = vmatpush1.msra.mxu0 0.0
        %4782 = vmatprep.subr.mxu0 0.0
        %4783 = vmatpush1.msra.mxu0 0.0
        %4784 = vmatprep.subr.mxu0 0.0
        %4785 = vmatpush1.msra.mxu0 0.0
        %4786 = vmatprep.subr.mxu0 0.0
        %4787 = vmatpush1.msra.mxu0 0.0
        %4788 = vmatprep.mubr.f32.mxu0 0.0
        %v4789 = vand.u32 %v3534, 4294901760
        %v4790 = vsub.f32 %v3534, %v4789
        %v4791 = vand.u32 %v4790, 4294901760
        %4792 = vmatmul.mubr.f32.gmra.mrb[0].mxu0 %v4791
        %v4793 = vpop.f32.mrb[0].mxu0
        %v4794 = vadd.f32 %v4696, %v4793
        %v4795 = vpop.f32.mrb[0].mxu0
        %v4796 = vadd.f32 %v4698, %v4795
        %4797 = vdwg.mxu0
        %v4798 = vand.u32 %v3463, 4294901760
        %v4799 = vsub.f32 %v3463, %v4798
        %v4800 = vand.u32 %v4799, 4294901760
        %4801 = vmatprep.subr.mxu0 %v4800
        %v4802 = vand.u32 %v3462, 4294901760
        %v4803 = vsub.f32 %v3462, %v4802
        %v4804 = vand.u32 %v4803, 4294901760
        %4805 = vmatpush1.msra.mxu0 %v4804
        %v4806 = vand.u32 %v3469, 4294901760
        %v4807 = vsub.f32 %v3469, %v4806
        %v4808 = vand.u32 %v4807, 4294901760
        %4809 = vmatprep.subr.mxu0 %v4808
        %v4810 = vand.u32 %v3468, 4294901760
        %v4811 = vsub.f32 %v3468, %v4810
        %v4812 = vand.u32 %v4811, 4294901760
        %4813 = vmatpush1.msra.mxu0 %v4812
        %v4814 = vand.u32 %v3475, 4294901760
        %v4815 = vsub.f32 %v3475, %v4814
        %v4816 = vand.u32 %v4815, 4294901760
        %4817 = vmatprep.subr.mxu0 %v4816
        %v4818 = vand.u32 %v3474, 4294901760
        %v4819 = vsub.f32 %v3474, %v4818
        %v4820 = vand.u32 %v4819, 4294901760
        %4821 = vmatpush1.msra.mxu0 %v4820
        %v4822 = vand.u32 %v3481, 4294901760
        %v4823 = vsub.f32 %v3481, %v4822
        %v4824 = vand.u32 %v4823, 4294901760
        %4825 = vmatprep.subr.mxu0 %v4824
        %v4826 = vand.u32 %v3480, 4294901760
        %v4827 = vsub.f32 %v3480, %v4826
        %v4828 = vand.u32 %v4827, 4294901760
        %4829 = vmatpush1.msra.mxu0 %v4828
        %v4830 = vand.u32 %v3487, 4294901760
        %v4831 = vsub.f32 %v3487, %v4830
        %v4832 = vand.u32 %v4831, 4294901760
        %4833 = vmatprep.subr.mxu0 %v4832
        %v4834 = vand.u32 %v3486, 4294901760
        %v4835 = vsub.f32 %v3486, %v4834
        %v4836 = vand.u32 %v4835, 4294901760
        %4837 = vmatpush1.msra.mxu0 %v4836
        %v4838 = vand.u32 %v3493, 4294901760
        %v4839 = vsub.f32 %v3493, %v4838
        %v4840 = vand.u32 %v4839, 4294901760
        %4841 = vmatprep.subr.mxu0 %v4840
        %v4842 = vand.u32 %v3492, 4294901760
        %v4843 = vsub.f32 %v3492, %v4842
        %v4844 = vand.u32 %v4843, 4294901760
        %4845 = vmatpush1.msra.mxu0 %v4844
        %v4846 = vand.u32 %v3499, 4294901760
        %v4847 = vsub.f32 %v3499, %v4846
        %v4848 = vand.u32 %v4847, 4294901760
        %4849 = vmatprep.subr.mxu0 %v4848
        %v4850 = vand.u32 %v3498, 4294901760
        %v4851 = vsub.f32 %v3498, %v4850
        %v4852 = vand.u32 %v4851, 4294901760
        %4853 = vmatpush1.msra.mxu0 %v4852
        %v4854 = vand.u32 %v3505, 4294901760
        %v4855 = vsub.f32 %v3505, %v4854
        %v4856 = vand.u32 %v4855, 4294901760
        %4857 = vmatprep.subr.mxu0 %v4856
        %v4858 = vand.u32 %v3504, 4294901760
        %v4859 = vsub.f32 %v3504, %v4858
        %v4860 = vand.u32 %v4859, 4294901760
        %4861 = vmatpush1.msra.mxu0 %v4860
        %v4862 = vand.u32 %v3511, 4294901760
        %v4863 = vsub.f32 %v3511, %v4862
        %v4864 = vand.u32 %v4863, 4294901760
        %4865 = vmatprep.subr.mxu0 %v4864
        %v4866 = vand.u32 %v3510, 4294901760
        %v4867 = vsub.f32 %v3510, %v4866
        %v4868 = vand.u32 %v4867, 4294901760
        %4869 = vmatpush1.msra.mxu0 %v4868
        %v4870 = vand.u32 %v3517, 4294901760
        %v4871 = vsub.f32 %v3517, %v4870
        %v4872 = vand.u32 %v4871, 4294901760
        %4873 = vmatprep.subr.mxu0 %v4872
        %v4874 = vand.u32 %v3516, 4294901760
        %v4875 = vsub.f32 %v3516, %v4874
        %v4876 = vand.u32 %v4875, 4294901760
        %4877 = vmatpush1.msra.mxu0 %v4876
        %v4878 = vand.u32 %v3523, 4294901760
        %v4879 = vsub.f32 %v3523, %v4878
        %v4880 = vand.u32 %v4879, 4294901760
        %4881 = vmatprep.subr.mxu0 %v4880
        %v4882 = vand.u32 %v3522, 4294901760
        %v4883 = vsub.f32 %v3522, %v4882
        %v4884 = vand.u32 %v4883, 4294901760
        %4885 = vmatpush1.msra.mxu0 %v4884
        %v4886 = vand.u32 %v3529, 4294901760
        %v4887 = vsub.f32 %v3529, %v4886
        %v4888 = vand.u32 %v4887, 4294901760
        %4889 = vmatprep.subr.mxu0 %v4888
        %v4890 = vand.u32 %v3528, 4294901760
        %v4891 = vsub.f32 %v3528, %v4890
        %v4892 = vand.u32 %v4891, 4294901760
        %4893 = vmatpush1.msra.mxu0 %v4892
        %4894 = vmatprep.subr.mxu0 0.0
        %4895 = vmatpush1.msra.mxu0 0.0
        %4896 = vmatprep.subr.mxu0 0.0
        %4897 = vmatpush1.msra.mxu0 0.0
        %4898 = vmatprep.subr.mxu0 0.0
        %4899 = vmatpush1.msra.mxu0 0.0
        %4900 = vmatprep.subr.mxu0 0.0
        %4901 = vmatpush1.msra.mxu0 0.0
        %4902 = vmatprep.subr.mxu0 0.0
        %4903 = vmatpush1.msra.mxu0 0.0
        %4904 = vmatprep.subr.mxu0 0.0
        %4905 = vmatpush1.msra.mxu0 0.0
        %4906 = vmatprep.subr.mxu0 0.0
        %4907 = vmatpush1.msra.mxu0 0.0
        %4908 = vmatprep.subr.mxu0 0.0
        %4909 = vmatpush1.msra.mxu0 0.0
        %4910 = vmatprep.subr.mxu0 0.0
        %4911 = vmatpush1.msra.mxu0 0.0
        %4912 = vmatprep.subr.mxu0 0.0
        %4913 = vmatpush1.msra.mxu0 0.0
        %4914 = vmatprep.subr.mxu0 0.0
        %4915 = vmatpush1.msra.mxu0 0.0
        %4916 = vmatprep.subr.mxu0 0.0
        %4917 = vmatpush1.msra.mxu0 0.0
        %4918 = vmatprep.subr.mxu0 0.0
        %4919 = vmatpush1.msra.mxu0 0.0
        %4920 = vmatprep.subr.mxu0 0.0
        %4921 = vmatpush1.msra.mxu0 0.0
        %4922 = vmatprep.subr.mxu0 0.0
        %4923 = vmatpush1.msra.mxu0 0.0
        %4924 = vmatprep.subr.mxu0 0.0
        %4925 = vmatpush1.msra.mxu0 0.0
        %4926 = vmatprep.subr.mxu0 0.0
        %4927 = vmatpush1.msra.mxu0 0.0
        %4928 = vmatprep.subr.mxu0 0.0
        %4929 = vmatpush1.msra.mxu0 0.0
        %4930 = vmatprep.subr.mxu0 0.0
        %4931 = vmatpush1.msra.mxu0 0.0
        %4932 = vmatprep.subr.mxu0 0.0
        %4933 = vmatpush1.msra.mxu0 0.0
        %4934 = vmatprep.mubr.f32.mxu0 0.0
        %v4935 = vand.u32 %v3534, 4294901760
        %4936 = vmatmul.mubr.f32.gmra.mrb[0].mxu0 %v4935
        %v4937 = vpop.f32.mrb[0].mxu0
        %v4938 = vadd.f32 %v4794, %v4937
        %v4939 = vpop.f32.mrb[0].mxu0
        %v4940 = vadd.f32 %v4796, %v4939
        %4941 = vdwg.mxu0
        %v4942 = vand.u32 %v3463, 4294901760
        %4943 = vmatprep.subr.mxu0 %v4942
        %v4944 = vand.u32 %v3462, 4294901760
        %4945 = vmatpush1.msra.mxu0 %v4944
        %v4946 = vand.u32 %v3469, 4294901760
        %4947 = vmatprep.subr.mxu0 %v4946
        %v4948 = vand.u32 %v3468, 4294901760
        %4949 = vmatpush1.msra.mxu0 %v4948
        %v4950 = vand.u32 %v3475, 4294901760
        %4951 = vmatprep.subr.mxu0 %v4950
        %v4952 = vand.u32 %v3474, 4294901760
        %4953 = vmatpush1.msra.mxu0 %v4952
        %v4954 = vand.u32 %v3481, 4294901760
        %4955 = vmatprep.subr.mxu0 %v4954
        %v4956 = vand.u32 %v3480, 4294901760
        %4957 = vmatpush1.msra.mxu0 %v4956
        %v4958 = vand.u32 %v3487, 4294901760
        %4959 = vmatprep.subr.mxu0 %v4958
        %v4960 = vand.u32 %v3486, 4294901760
        %4961 = vmatpush1.msra.mxu0 %v4960
        %v4962 = vand.u32 %v3493, 4294901760
        %4963 = vmatprep.subr.mxu0 %v4962
        %v4964 = vand.u32 %v3492, 4294901760
        %4965 = vmatpush1.msra.mxu0 %v4964
        %v4966 = vand.u32 %v3499, 4294901760
        %4967 = vmatprep.subr.mxu0 %v4966
        %v4968 = vand.u32 %v3498, 4294901760
        %4969 = vmatpush1.msra.mxu0 %v4968
        %v4970 = vand.u32 %v3505, 4294901760
        %4971 = vmatprep.subr.mxu0 %v4970
        %v4972 = vand.u32 %v3504, 4294901760
        %4973 = vmatpush1.msra.mxu0 %v4972
        %v4974 = vand.u32 %v3511, 4294901760
        %4975 = vmatprep.subr.mxu0 %v4974
        %v4976 = vand.u32 %v3510, 4294901760
        %4977 = vmatpush1.msra.mxu0 %v4976
        %v4978 = vand.u32 %v3517, 4294901760
        %4979 = vmatprep.subr.mxu0 %v4978
        %v4980 = vand.u32 %v3516, 4294901760
        %4981 = vmatpush1.msra.mxu0 %v4980
        %v4982 = vand.u32 %v3523, 4294901760
        %4983 = vmatprep.subr.mxu0 %v4982
        %v4984 = vand.u32 %v3522, 4294901760
        %4985 = vmatpush1.msra.mxu0 %v4984
        %v4986 = vand.u32 %v3529, 4294901760
        %4987 = vmatprep.subr.mxu0 %v4986
        %v4988 = vand.u32 %v3528, 4294901760
        %4989 = vmatpush1.msra.mxu0 %v4988
        %4990 = vmatprep.subr.mxu0 0.0
        %4991 = vmatpush1.msra.mxu0 0.0
        %4992 = vmatprep.subr.mxu0 0.0
        %4993 = vmatpush1.msra.mxu0 0.0
        %4994 = vmatprep.subr.mxu0 0.0
        %4995 = vmatpush1.msra.mxu0 0.0
        %4996 = vmatprep.subr.mxu0 0.0
        %4997 = vmatpush1.msra.mxu0 0.0
        %4998 = vmatprep.subr.mxu0 0.0
        %4999 = vmatpush1.msra.mxu0 0.0
        %5000 = vmatprep.subr.mxu0 0.0
        %5001 = vmatpush1.msra.mxu0 0.0
        %5002 = vmatprep.subr.mxu0 0.0
        %5003 = vmatpush1.msra.mxu0 0.0
        %5004 = vmatprep.subr.mxu0 0.0
        %5005 = vmatpush1.msra.mxu0 0.0
        %5006 = vmatprep.subr.mxu0 0.0
        %5007 = vmatpush1.msra.mxu0 0.0
        %5008 = vmatprep.subr.mxu0 0.0
        %5009 = vmatpush1.msra.mxu0 0.0
        %5010 = vmatprep.subr.mxu0 0.0
        %5011 = vmatpush1.msra.mxu0 0.0
        %5012 = vmatprep.subr.mxu0 0.0
        %5013 = vmatpush1.msra.mxu0 0.0
        %5014 = vmatprep.subr.mxu0 0.0
        %5015 = vmatpush1.msra.mxu0 0.0
        %5016 = vmatprep.subr.mxu0 0.0
        %5017 = vmatpush1.msra.mxu0 0.0
        %5018 = vmatprep.subr.mxu0 0.0
        %5019 = vmatpush1.msra.mxu0 0.0
        %5020 = vmatprep.subr.mxu0 0.0
        %5021 = vmatpush1.msra.mxu0 0.0
        %5022 = vmatprep.subr.mxu0 0.0
        %5023 = vmatpush1.msra.mxu0 0.0
        %5024 = vmatprep.subr.mxu0 0.0
        %5025 = vmatpush1.msra.mxu0 0.0
        %5026 = vmatprep.subr.mxu0 0.0
        %5027 = vmatpush1.msra.mxu0 0.0
        %5028 = vmatprep.subr.mxu0 0.0
        %5029 = vmatpush1.msra.mxu0 0.0
        %5030 = vmatprep.mubr.f32.mxu0 0.0
        %v5031 = vand.u32 %v3534, 4294901760
        %5032 = vmatmul.mubr.f32.gmra.mrb[0].mxu0 %v5031
        %v5033 = vpop.f32.mrb[0].mxu0
        %v5034 = vadd.f32 %v4938, %v5033
        %v5035 = vpop.f32.mrb[0].mxu0
        %v5036 = vadd.f32 %v4940, %v5035
        %5037 = vdwg.mxu0
        %v5038 = vand.u32 %v3465, 4294901760
        %5039 = vmatprep.subr.mxu0 %v5038
        %v5040 = vand.u32 %v3464, 4294901760
        %5041 = vmatpush1.msra.mxu0 %v5040
        %v5042 = vand.u32 %v3471, 4294901760
        %5043 = vmatprep.subr.mxu0 %v5042
        %v5044 = vand.u32 %v3470, 4294901760
        %5045 = vmatpush1.msra.mxu0 %v5044
        %v5046 = vand.u32 %v3477, 4294901760
        %5047 = vmatprep.subr.mxu0 %v5046
        %v5048 = vand.u32 %v3476, 4294901760
        %5049 = vmatpush1.msra.mxu0 %v5048
        %v5050 = vand.u32 %v3483, 4294901760
        %5051 = vmatprep.subr.mxu0 %v5050
        %v5052 = vand.u32 %v3482, 4294901760
        %5053 = vmatpush1.msra.mxu0 %v5052
        %v5054 = vand.u32 %v3489, 4294901760
        %5055 = vmatprep.subr.mxu0 %v5054
        %v5056 = vand.u32 %v3488, 4294901760
        %5057 = vmatpush1.msra.mxu0 %v5056
        %v5058 = vand.u32 %v3495, 4294901760
        %5059 = vmatprep.subr.mxu0 %v5058
        %v5060 = vand.u32 %v3494, 4294901760
        %5061 = vmatpush1.msra.mxu0 %v5060
        %v5062 = vand.u32 %v3501, 4294901760
        %5063 = vmatprep.subr.mxu0 %v5062
        %v5064 = vand.u32 %v3500, 4294901760
        %5065 = vmatpush1.msra.mxu0 %v5064
        %v5066 = vand.u32 %v3507, 4294901760
        %5067 = vmatprep.subr.mxu0 %v5066
        %v5068 = vand.u32 %v3506, 4294901760
        %5069 = vmatpush1.msra.mxu0 %v5068
        %v5070 = vand.u32 %v3513, 4294901760
        %5071 = vmatprep.subr.mxu0 %v5070
        %v5072 = vand.u32 %v3512, 4294901760
        %5073 = vmatpush1.msra.mxu0 %v5072
        %v5074 = vand.u32 %v3519, 4294901760
        %5075 = vmatprep.subr.mxu0 %v5074
        %v5076 = vand.u32 %v3518, 4294901760
        %5077 = vmatpush1.msra.mxu0 %v5076
        %v5078 = vand.u32 %v3525, 4294901760
        %5079 = vmatprep.subr.mxu0 %v5078
        %v5080 = vand.u32 %v3524, 4294901760
        %5081 = vmatpush1.msra.mxu0 %v5080
        %v5082 = vand.u32 %v3531, 4294901760
        %5083 = vmatprep.subr.mxu0 %v5082
        %v5084 = vand.u32 %v3530, 4294901760
        %5085 = vmatpush1.msra.mxu0 %v5084
        %5086 = vmatprep.subr.mxu0 0.0
        %5087 = vmatpush1.msra.mxu0 0.0
        %5088 = vmatprep.subr.mxu0 0.0
        %5089 = vmatpush1.msra.mxu0 0.0
        %5090 = vmatprep.subr.mxu0 0.0
        %5091 = vmatpush1.msra.mxu0 0.0
        %5092 = vmatprep.subr.mxu0 0.0
        %5093 = vmatpush1.msra.mxu0 0.0
        %5094 = vmatprep.subr.mxu0 0.0
        %5095 = vmatpush1.msra.mxu0 0.0
        %5096 = vmatprep.subr.mxu0 0.0
        %5097 = vmatpush1.msra.mxu0 0.0
        %5098 = vmatprep.subr.mxu0 0.0
        %5099 = vmatpush1.msra.mxu0 0.0
        %5100 = vmatprep.subr.mxu0 0.0
        %5101 = vmatpush1.msra.mxu0 0.0
        %5102 = vmatprep.subr.mxu0 0.0
        %5103 = vmatpush1.msra.mxu0 0.0
        %5104 = vmatprep.subr.mxu0 0.0
        %5105 = vmatpush1.msra.mxu0 0.0
        %5106 = vmatprep.subr.mxu0 0.0
        %5107 = vmatpush1.msra.mxu0 0.0
        %5108 = vmatprep.subr.mxu0 0.0
        %5109 = vmatpush1.msra.mxu0 0.0
        %5110 = vmatprep.subr.mxu0 0.0
        %5111 = vmatpush1.msra.mxu0 0.0
        %5112 = vmatprep.subr.mxu0 0.0
        %5113 = vmatpush1.msra.mxu0 0.0
        %5114 = vmatprep.subr.mxu0 0.0
        %5115 = vmatpush1.msra.mxu0 0.0
        %5116 = vmatprep.subr.mxu0 0.0
        %5117 = vmatpush1.msra.mxu0 0.0
        %5118 = vmatprep.subr.mxu0 0.0
        %5119 = vmatpush1.msra.mxu0 0.0
        %5120 = vmatprep.subr.mxu0 0.0
        %5121 = vmatpush1.msra.mxu0 0.0
        %5122 = vmatprep.subr.mxu0 0.0
        %5123 = vmatpush1.msra.mxu0 0.0
        %5124 = vmatprep.subr.mxu0 0.0
        %5125 = vmatpush1.msra.mxu0 0.0
        %5126 = vmatprep.mubr.f32.mxu0 0.0
        %v5127 = vand.u32 %v3534, 4294901760
        %v5128 = vsub.f32 %v3534, %v5127
        %v5129 = vand.u32 %v5128, 4294901760
        %v5130 = vsub.f32 %v5128, %v5129
        %v5131 = vand.u32 %v5130, 4294901760
        %5132 = vmatmul.mubr.f32.gmra.mrb[0].mxu0 %v5131
        %v5133 = vpop.f32.mrb[0].mxu0
        %v5134 = vadd.f32 0.0, %v5133
        %v5135 = vpop.f32.mrb[0].mxu0
        %v5136 = vadd.f32 0.0, %v5135
        %5137 = vdwg.mxu0
        %v5138 = vand.u32 %v3465, 4294901760
        %v5139 = vsub.f32 %v3465, %v5138
        %v5140 = vand.u32 %v5139, 4294901760
        %v5141 = vsub.f32 %v5139, %v5140
        %v5142 = vand.u32 %v5141, 4294901760
        %5143 = vmatprep.subr.mxu0 %v5142
        %v5144 = vand.u32 %v3464, 4294901760
        %v5145 = vsub.f32 %v3464, %v5144
        %v5146 = vand.u32 %v5145, 4294901760
        %v5147 = vsub.f32 %v5145, %v5146
        %v5148 = vand.u32 %v5147, 4294901760
        %5149 = vmatpush1.msra.mxu0 %v5148
        %v5150 = vand.u32 %v3471, 4294901760
        %v5151 = vsub.f32 %v3471, %v5150
        %v5152 = vand.u32 %v5151, 4294901760
        %v5153 = vsub.f32 %v5151, %v5152
        %v5154 = vand.u32 %v5153, 4294901760
        %5155 = vmatprep.subr.mxu0 %v5154
        %v5156 = vand.u32 %v3470, 4294901760
        %v5157 = vsub.f32 %v3470, %v5156
        %v5158 = vand.u32 %v5157, 4294901760
        %v5159 = vsub.f32 %v5157, %v5158
        %v5160 = vand.u32 %v5159, 4294901760
        %5161 = vmatpush1.msra.mxu0 %v5160
        %v5162 = vand.u32 %v3477, 4294901760
        %v5163 = vsub.f32 %v3477, %v5162
        %v5164 = vand.u32 %v5163, 4294901760
        %v5165 = vsub.f32 %v5163, %v5164
        %v5166 = vand.u32 %v5165, 4294901760
        %5167 = vmatprep.subr.mxu0 %v5166
        %v5168 = vand.u32 %v3476, 4294901760
        %v5169 = vsub.f32 %v3476, %v5168
        %v5170 = vand.u32 %v5169, 4294901760
        %v5171 = vsub.f32 %v5169, %v5170
        %v5172 = vand.u32 %v5171, 4294901760
        %5173 = vmatpush1.msra.mxu0 %v5172
        %v5174 = vand.u32 %v3483, 4294901760
        %v5175 = vsub.f32 %v3483, %v5174
        %v5176 = vand.u32 %v5175, 4294901760
        %v5177 = vsub.f32 %v5175, %v5176
        %v5178 = vand.u32 %v5177, 4294901760
        %5179 = vmatprep.subr.mxu0 %v5178
        %v5180 = vand.u32 %v3482, 4294901760
        %v5181 = vsub.f32 %v3482, %v5180
        %v5182 = vand.u32 %v5181, 4294901760
        %v5183 = vsub.f32 %v5181, %v5182
        %v5184 = vand.u32 %v5183, 4294901760
        %5185 = vmatpush1.msra.mxu0 %v5184
        %v5186 = vand.u32 %v3489, 4294901760
        %v5187 = vsub.f32 %v3489, %v5186
        %v5188 = vand.u32 %v5187, 4294901760
        %v5189 = vsub.f32 %v5187, %v5188
        %v5190 = vand.u32 %v5189, 4294901760
        %5191 = vmatprep.subr.mxu0 %v5190
        %v5192 = vand.u32 %v3488, 4294901760
        %v5193 = vsub.f32 %v3488, %v5192
        %v5194 = vand.u32 %v5193, 4294901760
        %v5195 = vsub.f32 %v5193, %v5194
        %v5196 = vand.u32 %v5195, 4294901760
        %5197 = vmatpush1.msra.mxu0 %v5196
        %v5198 = vand.u32 %v3495, 4294901760
        %v5199 = vsub.f32 %v3495, %v5198
        %v5200 = vand.u32 %v5199, 4294901760
        %v5201 = vsub.f32 %v5199, %v5200
        %v5202 = vand.u32 %v5201, 4294901760
        %5203 = vmatprep.subr.mxu0 %v5202
        %v5204 = vand.u32 %v3494, 4294901760
        %v5205 = vsub.f32 %v3494, %v5204
        %v5206 = vand.u32 %v5205, 4294901760
        %v5207 = vsub.f32 %v5205, %v5206
        %v5208 = vand.u32 %v5207, 4294901760
        %5209 = vmatpush1.msra.mxu0 %v5208
        %v5210 = vand.u32 %v3501, 4294901760
        %v5211 = vsub.f32 %v3501, %v5210
        %v5212 = vand.u32 %v5211, 4294901760
        %v5213 = vsub.f32 %v5211, %v5212
        %v5214 = vand.u32 %v5213, 4294901760
        %5215 = vmatprep.subr.mxu0 %v5214
        %v5216 = vand.u32 %v3500, 4294901760
        %v5217 = vsub.f32 %v3500, %v5216
        %v5218 = vand.u32 %v5217, 4294901760
        %v5219 = vsub.f32 %v5217, %v5218
        %v5220 = vand.u32 %v5219, 4294901760
        %5221 = vmatpush1.msra.mxu0 %v5220
        %v5222 = vand.u32 %v3507, 4294901760
        %v5223 = vsub.f32 %v3507, %v5222
        %v5224 = vand.u32 %v5223, 4294901760
        %v5225 = vsub.f32 %v5223, %v5224
        %v5226 = vand.u32 %v5225, 4294901760
        %5227 = vmatprep.subr.mxu0 %v5226
        %v5228 = vand.u32 %v3506, 4294901760
        %v5229 = vsub.f32 %v3506, %v5228
        %v5230 = vand.u32 %v5229, 4294901760
        %v5231 = vsub.f32 %v5229, %v5230
        %v5232 = vand.u32 %v5231, 4294901760
        %5233 = vmatpush1.msra.mxu0 %v5232
        %v5234 = vand.u32 %v3513, 4294901760
        %v5235 = vsub.f32 %v3513, %v5234
        %v5236 = vand.u32 %v5235, 4294901760
        %v5237 = vsub.f32 %v5235, %v5236
        %v5238 = vand.u32 %v5237, 4294901760
        %5239 = vmatprep.subr.mxu0 %v5238
        %v5240 = vand.u32 %v3512, 4294901760
        %v5241 = vsub.f32 %v3512, %v5240
        %v5242 = vand.u32 %v5241, 4294901760
        %v5243 = vsub.f32 %v5241, %v5242
        %v5244 = vand.u32 %v5243, 4294901760
        %5245 = vmatpush1.msra.mxu0 %v5244
        %v5246 = vand.u32 %v3519, 4294901760
        %v5247 = vsub.f32 %v3519, %v5246
        %v5248 = vand.u32 %v5247, 4294901760
        %v5249 = vsub.f32 %v5247, %v5248
        %v5250 = vand.u32 %v5249, 4294901760
        %5251 = vmatprep.subr.mxu0 %v5250
        %v5252 = vand.u32 %v3518, 4294901760
        %v5253 = vsub.f32 %v3518, %v5252
        %v5254 = vand.u32 %v5253, 4294901760
        %v5255 = vsub.f32 %v5253, %v5254
        %v5256 = vand.u32 %v5255, 4294901760
        %5257 = vmatpush1.msra.mxu0 %v5256
        %v5258 = vand.u32 %v3525, 4294901760
        %v5259 = vsub.f32 %v3525, %v5258
        %v5260 = vand.u32 %v5259, 4294901760
        %v5261 = vsub.f32 %v5259, %v5260
        %v5262 = vand.u32 %v5261, 4294901760
        %5263 = vmatprep.subr.mxu0 %v5262
        %v5264 = vand.u32 %v3524, 4294901760
        %v5265 = vsub.f32 %v3524, %v5264
        %v5266 = vand.u32 %v5265, 4294901760
        %v5267 = vsub.f32 %v5265, %v5266
        %v5268 = vand.u32 %v5267, 4294901760
        %5269 = vmatpush1.msra.mxu0 %v5268
        %v5270 = vand.u32 %v3531, 4294901760
        %v5271 = vsub.f32 %v3531, %v5270
        %v5272 = vand.u32 %v5271, 4294901760
        %v5273 = vsub.f32 %v5271, %v5272
        %v5274 = vand.u32 %v5273, 4294901760
        %5275 = vmatprep.subr.mxu0 %v5274
        %v5276 = vand.u32 %v3530, 4294901760
        %v5277 = vsub.f32 %v3530, %v5276
        %v5278 = vand.u32 %v5277, 4294901760
        %v5279 = vsub.f32 %v5277, %v5278
        %v5280 = vand.u32 %v5279, 4294901760
        %5281 = vmatpush1.msra.mxu0 %v5280
        %5282 = vmatprep.subr.mxu0 0.0
        %5283 = vmatpush1.msra.mxu0 0.0
        %5284 = vmatprep.subr.mxu0 0.0
        %5285 = vmatpush1.msra.mxu0 0.0
        %5286 = vmatprep.subr.mxu0 0.0
        %5287 = vmatpush1.msra.mxu0 0.0
        %5288 = vmatprep.subr.mxu0 0.0
        %5289 = vmatpush1.msra.mxu0 0.0
        %5290 = vmatprep.subr.mxu0 0.0
        %5291 = vmatpush1.msra.mxu0 0.0
        %5292 = vmatprep.subr.mxu0 0.0
        %5293 = vmatpush1.msra.mxu0 0.0
        %5294 = vmatprep.subr.mxu0 0.0
        %5295 = vmatpush1.msra.mxu0 0.0
        %5296 = vmatprep.subr.mxu0 0.0
        %5297 = vmatpush1.msra.mxu0 0.0
        %5298 = vmatprep.subr.mxu0 0.0
        %5299 = vmatpush1.msra.mxu0 0.0
        %5300 = vmatprep.subr.mxu0 0.0
        %5301 = vmatpush1.msra.mxu0 0.0
        %5302 = vmatprep.subr.mxu0 0.0
        %5303 = vmatpush1.msra.mxu0 0.0
        %5304 = vmatprep.subr.mxu0 0.0
        %5305 = vmatpush1.msra.mxu0 0.0
        %5306 = vmatprep.subr.mxu0 0.0
        %5307 = vmatpush1.msra.mxu0 0.0
        %5308 = vmatprep.subr.mxu0 0.0
        %5309 = vmatpush1.msra.mxu0 0.0
        %5310 = vmatprep.subr.mxu0 0.0
        %5311 = vmatpush1.msra.mxu0 0.0
        %5312 = vmatprep.subr.mxu0 0.0
        %5313 = vmatpush1.msra.mxu0 0.0
        %5314 = vmatprep.subr.mxu0 0.0
        %5315 = vmatpush1.msra.mxu0 0.0
        %5316 = vmatprep.subr.mxu0 0.0
        %5317 = vmatpush1.msra.mxu0 0.0
        %5318 = vmatprep.subr.mxu0 0.0
        %5319 = vmatpush1.msra.mxu0 0.0
        %5320 = vmatprep.subr.mxu0 0.0
        %5321 = vmatpush1.msra.mxu0 0.0
        %5322 = vmatprep.mubr.f32.mxu0 0.0
        %v5323 = vand.u32 %v3534, 4294901760
        %5324 = vmatmul.mubr.f32.gmra.mrb[0].mxu0 %v5323
        %v5325 = vpop.f32.mrb[0].mxu0
        %v5326 = vadd.f32 %v5134, %v5325
        %v5327 = vpop.f32.mrb[0].mxu0
        %v5328 = vadd.f32 %v5136, %v5327
        %5329 = vdwg.mxu0
        %v5330 = vand.u32 %v3465, 4294901760
        %v5331 = vsub.f32 %v3465, %v5330
        %5332 = vmatprep.subr.mxu0 %v5331
        %v5333 = vand.u32 %v3464, 4294901760
        %v5334 = vsub.f32 %v3464, %v5333
        %5335 = vmatpush1.msra.mxu0 %v5334
        %v5336 = vand.u32 %v3471, 4294901760
        %v5337 = vsub.f32 %v3471, %v5336
        %5338 = vmatprep.subr.mxu0 %v5337
        %v5339 = vand.u32 %v3470, 4294901760
        %v5340 = vsub.f32 %v3470, %v5339
        %5341 = vmatpush1.msra.mxu0 %v5340
        %v5342 = vand.u32 %v3477, 4294901760
        %v5343 = vsub.f32 %v3477, %v5342
        %5344 = vmatprep.subr.mxu0 %v5343
        %v5345 = vand.u32 %v3476, 4294901760
        %v5346 = vsub.f32 %v3476, %v5345
        %5347 = vmatpush1.msra.mxu0 %v5346
        %v5348 = vand.u32 %v3483, 4294901760
        %v5349 = vsub.f32 %v3483, %v5348
        %5350 = vmatprep.subr.mxu0 %v5349
        %v5351 = vand.u32 %v3482, 4294901760
        %v5352 = vsub.f32 %v3482, %v5351
        %5353 = vmatpush1.msra.mxu0 %v5352
        %v5354 = vand.u32 %v3489, 4294901760
        %v5355 = vsub.f32 %v3489, %v5354
        %5356 = vmatprep.subr.mxu0 %v5355
        %v5357 = vand.u32 %v3488, 4294901760
        %v5358 = vsub.f32 %v3488, %v5357
        %5359 = vmatpush1.msra.mxu0 %v5358
        %v5360 = vand.u32 %v3495, 4294901760
        %v5361 = vsub.f32 %v3495, %v5360
        %5362 = vmatprep.subr.mxu0 %v5361
        %v5363 = vand.u32 %v3494, 4294901760
        %v5364 = vsub.f32 %v3494, %v5363
        %5365 = vmatpush1.msra.mxu0 %v5364
        %v5366 = vand.u32 %v3501, 4294901760
        %v5367 = vsub.f32 %v3501, %v5366
        %5368 = vmatprep.subr.mxu0 %v5367
        %v5369 = vand.u32 %v3500, 4294901760
        %v5370 = vsub.f32 %v3500, %v5369
        %5371 = vmatpush1.msra.mxu0 %v5370
        %v5372 = vand.u32 %v3507, 4294901760
        %v5373 = vsub.f32 %v3507, %v5372
        %5374 = vmatprep.subr.mxu0 %v5373
        %v5375 = vand.u32 %v3506, 4294901760
        %v5376 = vsub.f32 %v3506, %v5375
        %5377 = vmatpush1.msra.mxu0 %v5376
        %v5378 = vand.u32 %v3513, 4294901760
        %v5379 = vsub.f32 %v3513, %v5378
        %5380 = vmatprep.subr.mxu0 %v5379
        %v5381 = vand.u32 %v3512, 4294901760
        %v5382 = vsub.f32 %v3512, %v5381
        %5383 = vmatpush1.msra.mxu0 %v5382
        %v5384 = vand.u32 %v3519, 4294901760
        %v5385 = vsub.f32 %v3519, %v5384
        %5386 = vmatprep.subr.mxu0 %v5385
        %v5387 = vand.u32 %v3518, 4294901760
        %v5388 = vsub.f32 %v3518, %v5387
        %5389 = vmatpush1.msra.mxu0 %v5388
        %v5390 = vand.u32 %v3525, 4294901760
        %v5391 = vsub.f32 %v3525, %v5390
        %5392 = vmatprep.subr.mxu0 %v5391
        %v5393 = vand.u32 %v3524, 4294901760
        %v5394 = vsub.f32 %v3524, %v5393
        %5395 = vmatpush1.msra.mxu0 %v5394
        %v5396 = vand.u32 %v3531, 4294901760
        %v5397 = vsub.f32 %v3531, %v5396
        %5398 = vmatprep.subr.mxu0 %v5397
        %v5399 = vand.u32 %v3530, 4294901760
        %v5400 = vsub.f32 %v3530, %v5399
        %5401 = vmatpush1.msra.mxu0 %v5400
        %5402 = vmatprep.subr.mxu0 0.0
        %5403 = vmatpush1.msra.mxu0 0.0
        %5404 = vmatprep.subr.mxu0 0.0
        %5405 = vmatpush1.msra.mxu0 0.0
        %5406 = vmatprep.subr.mxu0 0.0
        %5407 = vmatpush1.msra.mxu0 0.0
        %5408 = vmatprep.subr.mxu0 0.0
        %5409 = vmatpush1.msra.mxu0 0.0
        %5410 = vmatprep.subr.mxu0 0.0
        %5411 = vmatpush1.msra.mxu0 0.0
        %5412 = vmatprep.subr.mxu0 0.0
        %5413 = vmatpush1.msra.mxu0 0.0
        %5414 = vmatprep.subr.mxu0 0.0
        %5415 = vmatpush1.msra.mxu0 0.0
        %5416 = vmatprep.subr.mxu0 0.0
        %5417 = vmatpush1.msra.mxu0 0.0
        %5418 = vmatprep.subr.mxu0 0.0
        %5419 = vmatpush1.msra.mxu0 0.0
        %5420 = vmatprep.subr.mxu0 0.0
        %5421 = vmatpush1.msra.mxu0 0.0
        %5422 = vmatprep.subr.mxu0 0.0
        %5423 = vmatpush1.msra.mxu0 0.0
        %5424 = vmatprep.subr.mxu0 0.0
        %5425 = vmatpush1.msra.mxu0 0.0
        %5426 = vmatprep.subr.mxu0 0.0
        %5427 = vmatpush1.msra.mxu0 0.0
        %5428 = vmatprep.subr.mxu0 0.0
        %5429 = vmatpush1.msra.mxu0 0.0
        %5430 = vmatprep.subr.mxu0 0.0
        %5431 = vmatpush1.msra.mxu0 0.0
        %5432 = vmatprep.subr.mxu0 0.0
        %5433 = vmatpush1.msra.mxu0 0.0
        %5434 = vmatprep.subr.mxu0 0.0
        %5435 = vmatpush1.msra.mxu0 0.0
        %5436 = vmatprep.subr.mxu0 0.0
        %5437 = vmatpush1.msra.mxu0 0.0
        %5438 = vmatprep.subr.mxu0 0.0
        %5439 = vmatpush1.msra.mxu0 0.0
        %5440 = vmatprep.subr.mxu0 0.0
        %5441 = vmatpush1.msra.mxu0 0.0
        %5442 = vmatprep.mubr.f32.mxu0 0.0
        %v5443 = vand.u32 %v3534, 4294901760
        %v5444 = vsub.f32 %v3534, %v5443
        %5445 = vmatmul.mubr.f32.gmra.mrb[0].mxu0 %v5444
        %v5446 = vpop.f32.mrb[0].mxu0
        %v5447 = vadd.f32 %v5326, %v5446
        %v5448 = vpop.f32.mrb[0].mxu0
        %v5449 = vadd.f32 %v5328, %v5448
        %5450 = vdwg.mxu0
        %v5451 = vand.u32 %v3465, 4294901760
        %5452 = vmatprep.subr.mxu0 %v5451
        %v5453 = vand.u32 %v3464, 4294901760
        %5454 = vmatpush1.msra.mxu0 %v5453
        %v5455 = vand.u32 %v3471, 4294901760
        %5456 = vmatprep.subr.mxu0 %v5455
        %v5457 = vand.u32 %v3470, 4294901760
        %5458 = vmatpush1.msra.mxu0 %v5457
        %v5459 = vand.u32 %v3477, 4294901760
        %5460 = vmatprep.subr.mxu0 %v5459
        %v5461 = vand.u32 %v3476, 4294901760
        %5462 = vmatpush1.msra.mxu0 %v5461
        %v5463 = vand.u32 %v3483, 4294901760
        %5464 = vmatprep.subr.mxu0 %v5463
        %v5465 = vand.u32 %v3482, 4294901760
        %5466 = vmatpush1.msra.mxu0 %v5465
        %v5467 = vand.u32 %v3489, 4294901760
        %5468 = vmatprep.subr.mxu0 %v5467
        %v5469 = vand.u32 %v3488, 4294901760
        %5470 = vmatpush1.msra.mxu0 %v5469
        %v5471 = vand.u32 %v3495, 4294901760
        %5472 = vmatprep.subr.mxu0 %v5471
        %v5473 = vand.u32 %v3494, 4294901760
        %5474 = vmatpush1.msra.mxu0 %v5473
        %v5475 = vand.u32 %v3501, 4294901760
        %5476 = vmatprep.subr.mxu0 %v5475
        %v5477 = vand.u32 %v3500, 4294901760
        %5478 = vmatpush1.msra.mxu0 %v5477
        %v5479 = vand.u32 %v3507, 4294901760
        %5480 = vmatprep.subr.mxu0 %v5479
        %v5481 = vand.u32 %v3506, 4294901760
        %5482 = vmatpush1.msra.mxu0 %v5481
        %v5483 = vand.u32 %v3513, 4294901760
        %5484 = vmatprep.subr.mxu0 %v5483
        %v5485 = vand.u32 %v3512, 4294901760
        %5486 = vmatpush1.msra.mxu0 %v5485
        %v5487 = vand.u32 %v3519, 4294901760
        %5488 = vmatprep.subr.mxu0 %v5487
        %v5489 = vand.u32 %v3518, 4294901760
        %5490 = vmatpush1.msra.mxu0 %v5489
        %v5491 = vand.u32 %v3525, 4294901760
        %5492 = vmatprep.subr.mxu0 %v5491
        %v5493 = vand.u32 %v3524, 4294901760
        %5494 = vmatpush1.msra.mxu0 %v5493
        %v5495 = vand.u32 %v3531, 4294901760
        %5496 = vmatprep.subr.mxu0 %v5495
        %v5497 = vand.u32 %v3530, 4294901760
        %5498 = vmatpush1.msra.mxu0 %v5497
        %5499 = vmatprep.subr.mxu0 0.0
        %5500 = vmatpush1.msra.mxu0 0.0
        %5501 = vmatprep.subr.mxu0 0.0
        %5502 = vmatpush1.msra.mxu0 0.0
        %5503 = vmatprep.subr.mxu0 0.0
        %5504 = vmatpush1.msra.mxu0 0.0
        %5505 = vmatprep.subr.mxu0 0.0
        %5506 = vmatpush1.msra.mxu0 0.0
        %5507 = vmatprep.subr.mxu0 0.0
        %5508 = vmatpush1.msra.mxu0 0.0
        %5509 = vmatprep.subr.mxu0 0.0
        %5510 = vmatpush1.msra.mxu0 0.0
        %5511 = vmatprep.subr.mxu0 0.0
        %5512 = vmatpush1.msra.mxu0 0.0
        %5513 = vmatprep.subr.mxu0 0.0
        %5514 = vmatpush1.msra.mxu0 0.0
        %5515 = vmatprep.subr.mxu0 0.0
        %5516 = vmatpush1.msra.mxu0 0.0
        %5517 = vmatprep.subr.mxu0 0.0
        %5518 = vmatpush1.msra.mxu0 0.0
        %5519 = vmatprep.subr.mxu0 0.0
        %5520 = vmatpush1.msra.mxu0 0.0
        %5521 = vmatprep.subr.mxu0 0.0
        %5522 = vmatpush1.msra.mxu0 0.0
        %5523 = vmatprep.subr.mxu0 0.0
        %5524 = vmatpush1.msra.mxu0 0.0
        %5525 = vmatprep.subr.mxu0 0.0
        %5526 = vmatpush1.msra.mxu0 0.0
        %5527 = vmatprep.subr.mxu0 0.0
        %5528 = vmatpush1.msra.mxu0 0.0
        %5529 = vmatprep.subr.mxu0 0.0
        %5530 = vmatpush1.msra.mxu0 0.0
        %5531 = vmatprep.subr.mxu0 0.0
        %5532 = vmatpush1.msra.mxu0 0.0
        %5533 = vmatprep.subr.mxu0 0.0
        %5534 = vmatpush1.msra.mxu0 0.0
        %5535 = vmatprep.subr.mxu0 0.0
        %5536 = vmatpush1.msra.mxu0 0.0
        %5537 = vmatprep.subr.mxu0 0.0
        %5538 = vmatpush1.msra.mxu0 0.0
        %5539 = vmatprep.mubr.f32.mxu0 0.0
        %v5540 = vand.u32 %v3534, 4294901760
        %v5541 = vsub.f32 %v3534, %v5540
        %v5542 = vand.u32 %v5541, 4294901760
        %5543 = vmatmul.mubr.f32.gmra.mrb[0].mxu0 %v5542
        %v5544 = vpop.f32.mrb[0].mxu0
        %v5545 = vadd.f32 %v5447, %v5544
        %v5546 = vpop.f32.mrb[0].mxu0
        %v5547 = vadd.f32 %v5449, %v5546
        %5548 = vdwg.mxu0
        %v5549 = vand.u32 %v3465, 4294901760
        %v5550 = vsub.f32 %v3465, %v5549
        %v5551 = vand.u32 %v5550, 4294901760
        %5552 = vmatprep.subr.mxu0 %v5551
        %v5553 = vand.u32 %v3464, 4294901760
        %v5554 = vsub.f32 %v3464, %v5553
        %v5555 = vand.u32 %v5554, 4294901760
        %5556 = vmatpush1.msra.mxu0 %v5555
        %v5557 = vand.u32 %v3471, 4294901760
        %v5558 = vsub.f32 %v3471, %v5557
        %v5559 = vand.u32 %v5558, 4294901760
        %5560 = vmatprep.subr.mxu0 %v5559
        %v5561 = vand.u32 %v3470, 4294901760
        %v5562 = vsub.f32 %v3470, %v5561
        %v5563 = vand.u32 %v5562, 4294901760
        %5564 = vmatpush1.msra.mxu0 %v5563
        %v5565 = vand.u32 %v3477, 4294901760
        %v5566 = vsub.f32 %v3477, %v5565
        %v5567 = vand.u32 %v5566, 4294901760
        %5568 = vmatprep.subr.mxu0 %v5567
        %v5569 = vand.u32 %v3476, 4294901760
        %v5570 = vsub.f32 %v3476, %v5569
        %v5571 = vand.u32 %v5570, 4294901760
        %5572 = vmatpush1.msra.mxu0 %v5571
        %v5573 = vand.u32 %v3483, 4294901760
        %v5574 = vsub.f32 %v3483, %v5573
        %v5575 = vand.u32 %v5574, 4294901760
        %5576 = vmatprep.subr.mxu0 %v5575
        %v5577 = vand.u32 %v3482, 4294901760
        %v5578 = vsub.f32 %v3482, %v5577
        %v5579 = vand.u32 %v5578, 4294901760
        %5580 = vmatpush1.msra.mxu0 %v5579
        %v5581 = vand.u32 %v3489, 4294901760
        %v5582 = vsub.f32 %v3489, %v5581
        %v5583 = vand.u32 %v5582, 4294901760
        %5584 = vmatprep.subr.mxu0 %v5583
        %v5585 = vand.u32 %v3488, 4294901760
        %v5586 = vsub.f32 %v3488, %v5585
        %v5587 = vand.u32 %v5586, 4294901760
        %5588 = vmatpush1.msra.mxu0 %v5587
        %v5589 = vand.u32 %v3495, 4294901760
        %v5590 = vsub.f32 %v3495, %v5589
        %v5591 = vand.u32 %v5590, 4294901760
        %5592 = vmatprep.subr.mxu0 %v5591
        %v5593 = vand.u32 %v3494, 4294901760
        %v5594 = vsub.f32 %v3494, %v5593
        %v5595 = vand.u32 %v5594, 4294901760
        %5596 = vmatpush1.msra.mxu0 %v5595
        %v5597 = vand.u32 %v3501, 4294901760
        %v5598 = vsub.f32 %v3501, %v5597
        %v5599 = vand.u32 %v5598, 4294901760
        %5600 = vmatprep.subr.mxu0 %v5599
        %v5601 = vand.u32 %v3500, 4294901760
        %v5602 = vsub.f32 %v3500, %v5601
        %v5603 = vand.u32 %v5602, 4294901760
        %5604 = vmatpush1.msra.mxu0 %v5603
        %v5605 = vand.u32 %v3507, 4294901760
        %v5606 = vsub.f32 %v3507, %v5605
        %v5607 = vand.u32 %v5606, 4294901760
        %5608 = vmatprep.subr.mxu0 %v5607
        %v5609 = vand.u32 %v3506, 4294901760
        %v5610 = vsub.f32 %v3506, %v5609
        %v5611 = vand.u32 %v5610, 4294901760
        %5612 = vmatpush1.msra.mxu0 %v5611
        %v5613 = vand.u32 %v3513, 4294901760
        %v5614 = vsub.f32 %v3513, %v5613
        %v5615 = vand.u32 %v5614, 4294901760
        %5616 = vmatprep.subr.mxu0 %v5615
        %v5617 = vand.u32 %v3512, 4294901760
        %v5618 = vsub.f32 %v3512, %v5617
        %v5619 = vand.u32 %v5618, 4294901760
        %5620 = vmatpush1.msra.mxu0 %v5619
        %v5621 = vand.u32 %v3519, 4294901760
        %v5622 = vsub.f32 %v3519, %v5621
        %v5623 = vand.u32 %v5622, 4294901760
        %5624 = vmatprep.subr.mxu0 %v5623
        %v5625 = vand.u32 %v3518, 4294901760
        %v5626 = vsub.f32 %v3518, %v5625
        %v5627 = vand.u32 %v5626, 4294901760
        %5628 = vmatpush1.msra.mxu0 %v5627
        %v5629 = vand.u32 %v3525, 4294901760
        %v5630 = vsub.f32 %v3525, %v5629
        %v5631 = vand.u32 %v5630, 4294901760
        %5632 = vmatprep.subr.mxu0 %v5631
        %v5633 = vand.u32 %v3524, 4294901760
        %v5634 = vsub.f32 %v3524, %v5633
        %v5635 = vand.u32 %v5634, 4294901760
        %5636 = vmatpush1.msra.mxu0 %v5635
        %v5637 = vand.u32 %v3531, 4294901760
        %v5638 = vsub.f32 %v3531, %v5637
        %v5639 = vand.u32 %v5638, 4294901760
        %5640 = vmatprep.subr.mxu0 %v5639
        %v5641 = vand.u32 %v3530, 4294901760
        %v5642 = vsub.f32 %v3530, %v5641
        %v5643 = vand.u32 %v5642, 4294901760
        %5644 = vmatpush1.msra.mxu0 %v5643
        %5645 = vmatprep.subr.mxu0 0.0
        %5646 = vmatpush1.msra.mxu0 0.0
        %5647 = vmatprep.subr.mxu0 0.0
        %5648 = vmatpush1.msra.mxu0 0.0
        %5649 = vmatprep.subr.mxu0 0.0
        %5650 = vmatpush1.msra.mxu0 0.0
        %5651 = vmatprep.subr.mxu0 0.0
        %5652 = vmatpush1.msra.mxu0 0.0
        %5653 = vmatprep.subr.mxu0 0.0
        %5654 = vmatpush1.msra.mxu0 0.0
        %5655 = vmatprep.subr.mxu0 0.0
        %5656 = vmatpush1.msra.mxu0 0.0
        %5657 = vmatprep.subr.mxu0 0.0
        %5658 = vmatpush1.msra.mxu0 0.0
        %5659 = vmatprep.subr.mxu0 0.0
        %5660 = vmatpush1.msra.mxu0 0.0
        %5661 = vmatprep.subr.mxu0 0.0
        %5662 = vmatpush1.msra.mxu0 0.0
        %5663 = vmatprep.subr.mxu0 0.0
        %5664 = vmatpush1.msra.mxu0 0.0
        %5665 = vmatprep.subr.mxu0 0.0
        %5666 = vmatpush1.msra.mxu0 0.0
        %5667 = vmatprep.subr.mxu0 0.0
        %5668 = vmatpush1.msra.mxu0 0.0
        %5669 = vmatprep.subr.mxu0 0.0
        %5670 = vmatpush1.msra.mxu0 0.0
        %5671 = vmatprep.subr.mxu0 0.0
        %5672 = vmatpush1.msra.mxu0 0.0
        %5673 = vmatprep.subr.mxu0 0.0
        %5674 = vmatpush1.msra.mxu0 0.0
        %5675 = vmatprep.subr.mxu0 0.0
        %5676 = vmatpush1.msra.mxu0 0.0
        %5677 = vmatprep.subr.mxu0 0.0
        %5678 = vmatpush1.msra.mxu0 0.0
        %5679 = vmatprep.subr.mxu0 0.0
        %5680 = vmatpush1.msra.mxu0 0.0
        %5681 = vmatprep.subr.mxu0 0.0
        %5682 = vmatpush1.msra.mxu0 0.0
        %5683 = vmatprep.subr.mxu0 0.0
        %5684 = vmatpush1.msra.mxu0 0.0
        %5685 = vmatprep.mubr.f32.mxu0 0.0
        %v5686 = vand.u32 %v3534, 4294901760
        %5687 = vmatmul.mubr.f32.gmra.mrb[0].mxu0 %v5686
        %v5688 = vpop.f32.mrb[0].mxu0
        %v5689 = vadd.f32 %v5545, %v5688
        %v5690 = vpop.f32.mrb[0].mxu0
        %v5691 = vadd.f32 %v5547, %v5690
        %5692 = vdwg.mxu0
        %v5693 = vand.u32 %v3465, 4294901760
        %5694 = vmatprep.subr.mxu0 %v5693
        %v5695 = vand.u32 %v3464, 4294901760
        %5696 = vmatpush1.msra.mxu0 %v5695
        %v5697 = vand.u32 %v3471, 4294901760
        %5698 = vmatprep.subr.mxu0 %v5697
        %v5699 = vand.u32 %v3470, 4294901760
        %5700 = vmatpush1.msra.mxu0 %v5699
        %v5701 = vand.u32 %v3477, 4294901760
        %5702 = vmatprep.subr.mxu0 %v5701
        %v5703 = vand.u32 %v3476, 4294901760
        %5704 = vmatpush1.msra.mxu0 %v5703
        %v5705 = vand.u32 %v3483, 4294901760
        %5706 = vmatprep.subr.mxu0 %v5705
        %v5707 = vand.u32 %v3482, 4294901760
        %5708 = vmatpush1.msra.mxu0 %v5707
        %v5709 = vand.u32 %v3489, 4294901760
        %5710 = vmatprep.subr.mxu0 %v5709
        %v5711 = vand.u32 %v3488, 4294901760
        %5712 = vmatpush1.msra.mxu0 %v5711
        %v5713 = vand.u32 %v3495, 4294901760
        %5714 = vmatprep.subr.mxu0 %v5713
        %v5715 = vand.u32 %v3494, 4294901760
        %5716 = vmatpush1.msra.mxu0 %v5715
        %v5717 = vand.u32 %v3501, 4294901760
        %5718 = vmatprep.subr.mxu0 %v5717
        %v5719 = vand.u32 %v3500, 4294901760
        %5720 = vmatpush1.msra.mxu0 %v5719
        %v5721 = vand.u32 %v3507, 4294901760
        %5722 = vmatprep.subr.mxu0 %v5721
        %v5723 = vand.u32 %v3506, 4294901760
        %5724 = vmatpush1.msra.mxu0 %v5723
        %v5725 = vand.u32 %v3513, 4294901760
        %5726 = vmatprep.subr.mxu0 %v5725
        %v5727 = vand.u32 %v3512, 4294901760
        %5728 = vmatpush1.msra.mxu0 %v5727
        %v5729 = vand.u32 %v3519, 4294901760
        %5730 = vmatprep.subr.mxu0 %v5729
        %v5731 = vand.u32 %v3518, 4294901760
        %5732 = vmatpush1.msra.mxu0 %v5731
        %v5733 = vand.u32 %v3525, 4294901760
        %5734 = vmatprep.subr.mxu0 %v5733
        %v5735 = vand.u32 %v3524, 4294901760
        %5736 = vmatpush1.msra.mxu0 %v5735
        %v5737 = vand.u32 %v3531, 4294901760
        %5738 = vmatprep.subr.mxu0 %v5737
        %v5739 = vand.u32 %v3530, 4294901760
        %5740 = vmatpush1.msra.mxu0 %v5739
        %5741 = vmatprep.subr.mxu0 0.0
        %5742 = vmatpush1.msra.mxu0 0.0
        %5743 = vmatprep.subr.mxu0 0.0
        %5744 = vmatpush1.msra.mxu0 0.0
        %5745 = vmatprep.subr.mxu0 0.0
        %5746 = vmatpush1.msra.mxu0 0.0
        %5747 = vmatprep.subr.mxu0 0.0
        %5748 = vmatpush1.msra.mxu0 0.0
        %5749 = vmatprep.subr.mxu0 0.0
        %5750 = vmatpush1.msra.mxu0 0.0
        %5751 = vmatprep.subr.mxu0 0.0
        %5752 = vmatpush1.msra.mxu0 0.0
        %5753 = vmatprep.subr.mxu0 0.0
        %5754 = vmatpush1.msra.mxu0 0.0
        %5755 = vmatprep.subr.mxu0 0.0
        %5756 = vmatpush1.msra.mxu0 0.0
        %5757 = vmatprep.subr.mxu0 0.0
        %5758 = vmatpush1.msra.mxu0 0.0
        %5759 = vmatprep.subr.mxu0 0.0
        %5760 = vmatpush1.msra.mxu0 0.0
        %5761 = vmatprep.subr.mxu0 0.0
        %5762 = vmatpush1.msra.mxu0 0.0
        %5763 = vmatprep.subr.mxu0 0.0
        %5764 = vmatpush1.msra.mxu0 0.0
        %5765 = vmatprep.subr.mxu0 0.0
        %5766 = vmatpush1.msra.mxu0 0.0
        %5767 = vmatprep.subr.mxu0 0.0
        %5768 = vmatpush1.msra.mxu0 0.0
        %5769 = vmatprep.subr.mxu0 0.0
        %5770 = vmatpush1.msra.mxu0 0.0
        %5771 = vmatprep.subr.mxu0 0.0
        %5772 = vmatpush1.msra.mxu0 0.0
        %5773 = vmatprep.subr.mxu0 0.0
        %5774 = vmatpush1.msra.mxu0 0.0
        %5775 = vmatprep.subr.mxu0 0.0
        %5776 = vmatpush1.msra.mxu0 0.0
        %5777 = vmatprep.subr.mxu0 0.0
        %5778 = vmatpush1.msra.mxu0 0.0
        %5779 = vmatprep.subr.mxu0 0.0
        %5780 = vmatpush1.msra.mxu0 0.0
        %5781 = vmatprep.mubr.f32.mxu0 0.0
        %v5782 = vand.u32 %v3534, 4294901760
        %5783 = vmatmul.mubr.f32.gmra.mrb[0].mxu0 %v5782
        %v5784 = vpop.f32.mrb[0].mxu0
        %v5785 = vadd.f32 %v5689, %v5784
        %v5786 = vpop.f32.mrb[0].mxu0
        %v5787 = vadd.f32 %v5691, %v5786
        %5788 = vdwg.mxu0
        %v5789 = vadd.f32 %v1674, %v4283
        %v5790 = vxor.u32 %v5789, 2147483648
        %v5791 = vmul.f32 %v5790, 1.442695
        %v5792 = vpow.pop %v5791
        %v5793 = vadd.f32 %v5792, 1.0
        %v5794 = vrcp.pop %v5793
        %v5795 = vmul.f32 1.0, %v5794
        %v5796 = vadd.f32 %v1676, %v4285
        %v5797 = vxor.u32 %v5796, 2147483648
        %v5798 = vmul.f32 %v5797, 1.442695
        %v5799 = vpow.pop %v5798
        %v5800 = vadd.f32 %v5799, 1.0
        %v5801 = vrcp.pop %v5800
        %v5802 = vmul.f32 1.0, %v5801
        %v5803 = vadd.f32 %v2217, %v5034
        %v5804 = vtanh.pop %v5803
        %v5805 = vadd.f32 %v2219, %v5036
        %v5806 = vxor.u32 %v5805, 2147483648
        %v5807 = vmul.f32 %v5806, 1.442695
        %v5808 = vpow.pop %v5807
        %v5809 = vadd.f32 %v5808, 1.0
        %v5810 = vrcp.pop %v5809
        %v5811 = vmul.f32 1.0, %v5810
        %v5812 = vmul.f32 %v5802, %v389
        %v5813 = vmul.f32 %v5795, %v5804
        %v5814 = vadd.f32 %v5812, %v5813
        %v5815 = vtanh.pop %v5814
        %v5816 = vmul.f32 %v5811, %v5815
        %vm5817 = vcmask 254976
        %5818 = vst.msk [vmem:[#allocation2] sm:$0x3] %vm5817, %v5816
        %5819 = vst.msk [vmem:[#allocation3] sm:$0x3] %vm5817, %v5814
        %v5820 = vld [vmem:[#allocation8] sm:$0xff]
        %v5821 = vld [vmem:[#allocation8 + $0x8] sm:$0xff]
        %v5822 = vld [vmem:[#allocation8 + $0x10] sm:$0xff]
        %v5823 = vld [vmem:[#allocation8 + $0x18] sm:$0xff]
        %v5825 = vsel %vm1131, %v5816, 0
        %5827 = vmatprep.subr.mxu0 0.0
        %v5828 = vand.u32 %v5820, 4294901760
        %5829 = vmatpush1.msra.mxu0 %v5828
        %5830 = vmatprep.subr.mxu0 0.0
        %v5831 = vand.u32 %v5821, 4294901760
        %5832 = vmatpush1.msra.mxu0 %v5831
        %5833 = vmatprep.subr.mxu0 0.0
        %v5834 = vand.u32 %v5822, 4294901760
        %5835 = vmatpush1.msra.mxu0 %v5834
        %5836 = vmatprep.subr.mxu0 0.0
        %v5837 = vand.u32 %v5823, 4294901760
        %5838 = vmatpush1.msra.mxu0 %v5837
        %5839 = vmatprep.subr.mxu0 0.0
        %5840 = vmatpush1.msra.mxu0 0.0
        %5841 = vmatprep.subr.mxu0 0.0
        %5842 = vmatpush1.msra.mxu0 0.0
        %5843 = vmatprep.subr.mxu0 0.0
        %5844 = vmatpush1.msra.mxu0 0.0
        %5845 = vmatprep.subr.mxu0 0.0
        %5846 = vmatpush1.msra.mxu0 0.0
        %5847 = vmatprep.subr.mxu0 0.0
        %5848 = vmatpush1.msra.mxu0 0.0
        %5849 = vmatprep.subr.mxu0 0.0
        %5850 = vmatpush1.msra.mxu0 0.0
        %5851 = vmatprep.subr.mxu0 0.0
        %5852 = vmatpush1.msra.mxu0 0.0
        %5853 = vmatprep.subr.mxu0 0.0
        %5854 = vmatpush1.msra.mxu0 0.0
        %5855 = vmatprep.subr.mxu0 0.0
        %5856 = vmatpush1.msra.mxu0 0.0
        %5857 = vmatprep.subr.mxu0 0.0
        %5858 = vmatpush1.msra.mxu0 0.0
        %5859 = vmatprep.subr.mxu0 0.0
        %5860 = vmatpush1.msra.mxu0 0.0
        %5861 = vmatprep.subr.mxu0 0.0
        %5862 = vmatpush1.msra.mxu0 0.0
        %5863 = vmatprep.subr.mxu0 0.0
        %5864 = vmatpush1.msra.mxu0 0.0
        %5865 = vmatprep.subr.mxu0 0.0
        %5866 = vmatpush1.msra.mxu0 0.0
        %5867 = vmatprep.subr.mxu0 0.0
        %5868 = vmatpush1.msra.mxu0 0.0
        %5869 = vmatprep.subr.mxu0 0.0
        %5870 = vmatpush1.msra.mxu0 0.0
        %5871 = vmatprep.subr.mxu0 0.0
        %5872 = vmatpush1.msra.mxu0 0.0
        %5873 = vmatprep.subr.mxu0 0.0
        %5874 = vmatpush1.msra.mxu0 0.0
        %5875 = vmatprep.subr.mxu0 0.0
        %5876 = vmatpush1.msra.mxu0 0.0
        %5877 = vmatprep.subr.mxu0 0.0
        %5878 = vmatpush1.msra.mxu0 0.0
        %5879 = vmatprep.subr.mxu0 0.0
        %5880 = vmatpush1.msra.mxu0 0.0
        %5881 = vmatprep.subr.mxu0 0.0
        %5882 = vmatpush1.msra.mxu0 0.0
        %5883 = vmatprep.subr.mxu0 0.0
        %5884 = vmatpush1.msra.mxu0 0.0
        %5885 = vmatprep.subr.mxu0 0.0
        %5886 = vmatpush1.msra.mxu0 0.0
        %5887 = vmatprep.subr.mxu0 0.0
        %5888 = vmatpush1.msra.mxu0 0.0
        %5889 = vmatprep.subr.mxu0 0.0
        %5890 = vmatpush1.msra.mxu0 0.0
        %5891 = vmatprep.subr.mxu0 0.0
        %5892 = vmatpush1.msra.mxu0 0.0
        %5893 = vmatprep.subr.mxu0 0.0
        %5894 = vmatpush1.msra.mxu0 0.0
        %5895 = vmatprep.mubr.f32.mxu0 0.0
        %v5896 = vand.u32 %v5825, 4294901760
        %v5897 = vsub.f32 %v5825, %v5896
        %v5898 = vand.u32 %v5897, 4294901760
        %v5899 = vsub.f32 %v5897, %v5898
        %v5900 = vand.u32 %v5899, 4294901760
        %5901 = vmatmul.mubr.f32.gmra.mrb[0].mxu0 %v5900
        %v5902 = vpop.f32.mrb[0].mxu0
        %v5903 = vadd.f32 0.0, %v5902
        %v5904 = vpop.f32.mrb[0].mxu0
        %5905 = vdwg.mxu0
        %5906 = vmatprep.subr.mxu0 0.0
        %v5907 = vand.u32 %v5820, 4294901760
        %v5908 = vsub.f32 %v5820, %v5907
        %v5909 = vand.u32 %v5908, 4294901760
        %v5910 = vsub.f32 %v5908, %v5909
        %v5911 = vand.u32 %v5910, 4294901760
        %5912 = vmatpush1.msra.mxu0 %v5911
        %5913 = vmatprep.subr.mxu0 0.0
        %v5914 = vand.u32 %v5821, 4294901760
        %v5915 = vsub.f32 %v5821, %v5914
        %v5916 = vand.u32 %v5915, 4294901760
        %v5917 = vsub.f32 %v5915, %v5916
        %v5918 = vand.u32 %v5917, 4294901760
        %5919 = vmatpush1.msra.mxu0 %v5918
        %5920 = vmatprep.subr.mxu0 0.0
        %v5921 = vand.u32 %v5822, 4294901760
        %v5922 = vsub.f32 %v5822, %v5921
        %v5923 = vand.u32 %v5922, 4294901760
        %v5924 = vsub.f32 %v5922, %v5923
        %v5925 = vand.u32 %v5924, 4294901760
        %5926 = vmatpush1.msra.mxu0 %v5925
        %5927 = vmatprep.subr.mxu0 0.0
        %v5928 = vand.u32 %v5823, 4294901760
        %v5929 = vsub.f32 %v5823, %v5928
        %v5930 = vand.u32 %v5929, 4294901760
        %v5931 = vsub.f32 %v5929, %v5930
        %v5932 = vand.u32 %v5931, 4294901760
        %5933 = vmatpush1.msra.mxu0 %v5932
        %5934 = vmatprep.subr.mxu0 0.0
        %5935 = vmatpush1.msra.mxu0 0.0
        %5936 = vmatprep.subr.mxu0 0.0
        %5937 = vmatpush1.msra.mxu0 0.0
        %5938 = vmatprep.subr.mxu0 0.0
        %5939 = vmatpush1.msra.mxu0 0.0
        %5940 = vmatprep.subr.mxu0 0.0
        %5941 = vmatpush1.msra.mxu0 0.0
        %5942 = vmatprep.subr.mxu0 0.0
        %5943 = vmatpush1.msra.mxu0 0.0
        %5944 = vmatprep.subr.mxu0 0.0
        %5945 = vmatpush1.msra.mxu0 0.0
        %5946 = vmatprep.subr.mxu0 0.0
        %5947 = vmatpush1.msra.mxu0 0.0
        %5948 = vmatprep.subr.mxu0 0.0
        %5949 = vmatpush1.msra.mxu0 0.0
        %5950 = vmatprep.subr.mxu0 0.0
        %5951 = vmatpush1.msra.mxu0 0.0
        %5952 = vmatprep.subr.mxu0 0.0
        %5953 = vmatpush1.msra.mxu0 0.0
        %5954 = vmatprep.subr.mxu0 0.0
        %5955 = vmatpush1.msra.mxu0 0.0
        %5956 = vmatprep.subr.mxu0 0.0
        %5957 = vmatpush1.msra.mxu0 0.0
        %5958 = vmatprep.subr.mxu0 0.0
        %5959 = vmatpush1.msra.mxu0 0.0
        %5960 = vmatprep.subr.mxu0 0.0
        %5961 = vmatpush1.msra.mxu0 0.0
        %5962 = vmatprep.subr.mxu0 0.0
        %5963 = vmatpush1.msra.mxu0 0.0
        %5964 = vmatprep.subr.mxu0 0.0
        %5965 = vmatpush1.msra.mxu0 0.0
        %5966 = vmatprep.subr.mxu0 0.0
        %5967 = vmatpush1.msra.mxu0 0.0
        %5968 = vmatprep.subr.mxu0 0.0
        %5969 = vmatpush1.msra.mxu0 0.0
        %5970 = vmatprep.subr.mxu0 0.0
        %5971 = vmatpush1.msra.mxu0 0.0
        %5972 = vmatprep.subr.mxu0 0.0
        %5973 = vmatpush1.msra.mxu0 0.0
        %5974 = vmatprep.subr.mxu0 0.0
        %5975 = vmatpush1.msra.mxu0 0.0
        %5976 = vmatprep.subr.mxu0 0.0
        %5977 = vmatpush1.msra.mxu0 0.0
        %5978 = vmatprep.subr.mxu0 0.0
        %5979 = vmatpush1.msra.mxu0 0.0
        %5980 = vmatprep.subr.mxu0 0.0
        %5981 = vmatpush1.msra.mxu0 0.0
        %5982 = vmatprep.subr.mxu0 0.0
        %5983 = vmatpush1.msra.mxu0 0.0
        %5984 = vmatprep.subr.mxu0 0.0
        %5985 = vmatpush1.msra.mxu0 0.0
        %5986 = vmatprep.subr.mxu0 0.0
        %5987 = vmatpush1.msra.mxu0 0.0
        %5988 = vmatprep.subr.mxu0 0.0
        %5989 = vmatpush1.msra.mxu0 0.0
        %5990 = vmatprep.mubr.f32.mxu0 0.0
        %v5991 = vand.u32 %v5825, 4294901760
        %5992 = vmatmul.mubr.f32.gmra.mrb[0].mxu0 %v5991
        %v5993 = vpop.f32.mrb[0].mxu0
        %v5994 = vadd.f32 %v5903, %v5993
        %v5995 = vpop.f32.mrb[0].mxu0
        %5996 = vdwg.mxu0
        %5997 = vmatprep.subr.mxu0 0.0
        %v5998 = vand.u32 %v5820, 4294901760
        %v5999 = vsub.f32 %v5820, %v5998
        %6000 = vmatpush1.msra.mxu0 %v5999
        %6001 = vmatprep.subr.mxu0 0.0
        %v6002 = vand.u32 %v5821, 4294901760
        %v6003 = vsub.f32 %v5821, %v6002
        %6004 = vmatpush1.msra.mxu0 %v6003
        %6005 = vmatprep.subr.mxu0 0.0
        %v6006 = vand.u32 %v5822, 4294901760
        %v6007 = vsub.f32 %v5822, %v6006
        %6008 = vmatpush1.msra.mxu0 %v6007
        %6009 = vmatprep.subr.mxu0 0.0
        %v6010 = vand.u32 %v5823, 4294901760
        %v6011 = vsub.f32 %v5823, %v6010
        %6012 = vmatpush1.msra.mxu0 %v6011
        %6013 = vmatprep.subr.mxu0 0.0
        %6014 = vmatpush1.msra.mxu0 0.0
        %6015 = vmatprep.subr.mxu0 0.0
        %6016 = vmatpush1.msra.mxu0 0.0
        %6017 = vmatprep.subr.mxu0 0.0
        %6018 = vmatpush1.msra.mxu0 0.0
        %6019 = vmatprep.subr.mxu0 0.0
        %6020 = vmatpush1.msra.mxu0 0.0
        %6021 = vmatprep.subr.mxu0 0.0
        %6022 = vmatpush1.msra.mxu0 0.0
        %6023 = vmatprep.subr.mxu0 0.0
        %6024 = vmatpush1.msra.mxu0 0.0
        %6025 = vmatprep.subr.mxu0 0.0
        %6026 = vmatpush1.msra.mxu0 0.0
        %6027 = vmatprep.subr.mxu0 0.0
        %6028 = vmatpush1.msra.mxu0 0.0
        %6029 = vmatprep.subr.mxu0 0.0
        %6030 = vmatpush1.msra.mxu0 0.0
        %6031 = vmatprep.subr.mxu0 0.0
        %6032 = vmatpush1.msra.mxu0 0.0
        %6033 = vmatprep.subr.mxu0 0.0
        %6034 = vmatpush1.msra.mxu0 0.0
        %6035 = vmatprep.subr.mxu0 0.0
        %6036 = vmatpush1.msra.mxu0 0.0
        %6037 = vmatprep.subr.mxu0 0.0
        %6038 = vmatpush1.msra.mxu0 0.0
        %6039 = vmatprep.subr.mxu0 0.0
        %6040 = vmatpush1.msra.mxu0 0.0
        %6041 = vmatprep.subr.mxu0 0.0
        %6042 = vmatpush1.msra.mxu0 0.0
        %6043 = vmatprep.subr.mxu0 0.0
        %6044 = vmatpush1.msra.mxu0 0.0
        %6045 = vmatprep.subr.mxu0 0.0
        %6046 = vmatpush1.msra.mxu0 0.0
        %6047 = vmatprep.subr.mxu0 0.0
        %6048 = vmatpush1.msra.mxu0 0.0
        %6049 = vmatprep.subr.mxu0 0.0
        %6050 = vmatpush1.msra.mxu0 0.0
        %6051 = vmatprep.subr.mxu0 0.0
        %6052 = vmatpush1.msra.mxu0 0.0
        %6053 = vmatprep.subr.mxu0 0.0
        %6054 = vmatpush1.msra.mxu0 0.0
        %6055 = vmatprep.subr.mxu0 0.0
        %6056 = vmatpush1.msra.mxu0 0.0
        %6057 = vmatprep.subr.mxu0 0.0
        %6058 = vmatpush1.msra.mxu0 0.0
        %6059 = vmatprep.subr.mxu0 0.0
        %6060 = vmatpush1.msra.mxu0 0.0
        %6061 = vmatprep.subr.mxu0 0.0
        %6062 = vmatpush1.msra.mxu0 0.0
        %6063 = vmatprep.subr.mxu0 0.0
        %6064 = vmatpush1.msra.mxu0 0.0
        %6065 = vmatprep.subr.mxu0 0.0
        %6066 = vmatpush1.msra.mxu0 0.0
        %6067 = vmatprep.subr.mxu0 0.0
        %6068 = vmatpush1.msra.mxu0 0.0
        %6069 = vmatprep.mubr.f32.mxu0 0.0
        %v6070 = vand.u32 %v5825, 4294901760
        %v6071 = vsub.f32 %v5825, %v6070
        %6072 = vmatmul.mubr.f32.gmra.mrb[0].mxu0 %v6071
        %v6073 = vpop.f32.mrb[0].mxu0
        %v6074 = vadd.f32 %v5994, %v6073
        %v6075 = vpop.f32.mrb[0].mxu0
        %6076 = vdwg.mxu0
        %6077 = vmatprep.subr.mxu0 0.0
        %v6078 = vand.u32 %v5820, 4294901760
        %6079 = vmatpush1.msra.mxu0 %v6078
        %6080 = vmatprep.subr.mxu0 0.0
        %v6081 = vand.u32 %v5821, 4294901760
        %6082 = vmatpush1.msra.mxu0 %v6081
        %6083 = vmatprep.subr.mxu0 0.0
        %v6084 = vand.u32 %v5822, 4294901760
        %6085 = vmatpush1.msra.mxu0 %v6084
        %6086 = vmatprep.subr.mxu0 0.0
        %v6087 = vand.u32 %v5823, 4294901760
        %6088 = vmatpush1.msra.mxu0 %v6087
        %6089 = vmatprep.subr.mxu0 0.0
        %6090 = vmatpush1.msra.mxu0 0.0
        %6091 = vmatprep.subr.mxu0 0.0
        %6092 = vmatpush1.msra.mxu0 0.0
        %6093 = vmatprep.subr.mxu0 0.0
        %6094 = vmatpush1.msra.mxu0 0.0
        %6095 = vmatprep.subr.mxu0 0.0
        %6096 = vmatpush1.msra.mxu0 0.0
        %6097 = vmatprep.subr.mxu0 0.0
        %6098 = vmatpush1.msra.mxu0 0.0
        %6099 = vmatprep.subr.mxu0 0.0
        %6100 = vmatpush1.msra.mxu0 0.0
        %6101 = vmatprep.subr.mxu0 0.0
        %6102 = vmatpush1.msra.mxu0 0.0
        %6103 = vmatprep.subr.mxu0 0.0
        %6104 = vmatpush1.msra.mxu0 0.0
        %6105 = vmatprep.subr.mxu0 0.0
        %6106 = vmatpush1.msra.mxu0 0.0
        %6107 = vmatprep.subr.mxu0 0.0
        %6108 = vmatpush1.msra.mxu0 0.0
        %6109 = vmatprep.subr.mxu0 0.0
        %6110 = vmatpush1.msra.mxu0 0.0
        %6111 = vmatprep.subr.mxu0 0.0
        %6112 = vmatpush1.msra.mxu0 0.0
        %6113 = vmatprep.subr.mxu0 0.0
        %6114 = vmatpush1.msra.mxu0 0.0
        %6115 = vmatprep.subr.mxu0 0.0
        %6116 = vmatpush1.msra.mxu0 0.0
        %6117 = vmatprep.subr.mxu0 0.0
        %6118 = vmatpush1.msra.mxu0 0.0
        %6119 = vmatprep.subr.mxu0 0.0
        %6120 = vmatpush1.msra.mxu0 0.0
        %6121 = vmatprep.subr.mxu0 0.0
        %6122 = vmatpush1.msra.mxu0 0.0
        %6123 = vmatprep.subr.mxu0 0.0
        %6124 = vmatpush1.msra.mxu0 0.0
        %6125 = vmatprep.subr.mxu0 0.0
        %6126 = vmatpush1.msra.mxu0 0.0
        %6127 = vmatprep.subr.mxu0 0.0
        %6128 = vmatpush1.msra.mxu0 0.0
        %6129 = vmatprep.subr.mxu0 0.0
        %6130 = vmatpush1.msra.mxu0 0.0
        %6131 = vmatprep.subr.mxu0 0.0
        %6132 = vmatpush1.msra.mxu0 0.0
        %6133 = vmatprep.subr.mxu0 0.0
        %6134 = vmatpush1.msra.mxu0 0.0
        %6135 = vmatprep.subr.mxu0 0.0
        %6136 = vmatpush1.msra.mxu0 0.0
        %6137 = vmatprep.subr.mxu0 0.0
        %6138 = vmatpush1.msra.mxu0 0.0
        %6139 = vmatprep.subr.mxu0 0.0
        %6140 = vmatpush1.msra.mxu0 0.0
        %6141 = vmatprep.subr.mxu0 0.0
        %6142 = vmatpush1.msra.mxu0 0.0
        %6143 = vmatprep.subr.mxu0 0.0
        %6144 = vmatpush1.msra.mxu0 0.0
        %6145 = vmatprep.mubr.f32.mxu0 0.0
        %v6146 = vand.u32 %v5825, 4294901760
        %v6147 = vsub.f32 %v5825, %v6146
        %v6148 = vand.u32 %v6147, 4294901760
        %6149 = vmatmul.mubr.f32.gmra.mrb[0].mxu0 %v6148
        %v6150 = vpop.f32.mrb[0].mxu0
        %v6151 = vadd.f32 %v6074, %v6150
        %v6152 = vpop.f32.mrb[0].mxu0
        %6153 = vdwg.mxu0
        %6154 = vmatprep.subr.mxu0 0.0
        %v6155 = vand.u32 %v5820, 4294901760
        %v6156 = vsub.f32 %v5820, %v6155
        %v6157 = vand.u32 %v6156, 4294901760
        %6158 = vmatpush1.msra.mxu0 %v6157
        %6159 = vmatprep.subr.mxu0 0.0
        %v6160 = vand.u32 %v5821, 4294901760
        %v6161 = vsub.f32 %v5821, %v6160
        %v6162 = vand.u32 %v6161, 4294901760
        %6163 = vmatpush1.msra.mxu0 %v6162
        %6164 = vmatprep.subr.mxu0 0.0
        %v6165 = vand.u32 %v5822, 4294901760
        %v6166 = vsub.f32 %v5822, %v6165
        %v6167 = vand.u32 %v6166, 4294901760
        %6168 = vmatpush1.msra.mxu0 %v6167
        %6169 = vmatprep.subr.mxu0 0.0
        %v6170 = vand.u32 %v5823, 4294901760
        %v6171 = vsub.f32 %v5823, %v6170
        %v6172 = vand.u32 %v6171, 4294901760
        %6173 = vmatpush1.msra.mxu0 %v6172
        %6174 = vmatprep.subr.mxu0 0.0
        %6175 = vmatpush1.msra.mxu0 0.0
        %6176 = vmatprep.subr.mxu0 0.0
        %6177 = vmatpush1.msra.mxu0 0.0
        %6178 = vmatprep.subr.mxu0 0.0
        %6179 = vmatpush1.msra.mxu0 0.0
        %6180 = vmatprep.subr.mxu0 0.0
        %6181 = vmatpush1.msra.mxu0 0.0
        %6182 = vmatprep.subr.mxu0 0.0
        %6183 = vmatpush1.msra.mxu0 0.0
        %6184 = vmatprep.subr.mxu0 0.0
        %6185 = vmatpush1.msra.mxu0 0.0
        %6186 = vmatprep.subr.mxu0 0.0
        %6187 = vmatpush1.msra.mxu0 0.0
        %6188 = vmatprep.subr.mxu0 0.0
        %6189 = vmatpush1.msra.mxu0 0.0
        %6190 = vmatprep.subr.mxu0 0.0
        %6191 = vmatpush1.msra.mxu0 0.0
        %6192 = vmatprep.subr.mxu0 0.0
        %6193 = vmatpush1.msra.mxu0 0.0
        %6194 = vmatprep.subr.mxu0 0.0
        %6195 = vmatpush1.msra.mxu0 0.0
        %6196 = vmatprep.subr.mxu0 0.0
        %6197 = vmatpush1.msra.mxu0 0.0
        %6198 = vmatprep.subr.mxu0 0.0
        %6199 = vmatpush1.msra.mxu0 0.0
        %6200 = vmatprep.subr.mxu0 0.0
        %6201 = vmatpush1.msra.mxu0 0.0
        %6202 = vmatprep.subr.mxu0 0.0
        %6203 = vmatpush1.msra.mxu0 0.0
        %6204 = vmatprep.subr.mxu0 0.0
        %6205 = vmatpush1.msra.mxu0 0.0
        %6206 = vmatprep.subr.mxu0 0.0
        %6207 = vmatpush1.msra.mxu0 0.0
        %6208 = vmatprep.subr.mxu0 0.0
        %6209 = vmatpush1.msra.mxu0 0.0
        %6210 = vmatprep.subr.mxu0 0.0
        %6211 = vmatpush1.msra.mxu0 0.0
        %6212 = vmatprep.subr.mxu0 0.0
        %6213 = vmatpush1.msra.mxu0 0.0
        %6214 = vmatprep.subr.mxu0 0.0
        %6215 = vmatpush1.msra.mxu0 0.0
        %6216 = vmatprep.subr.mxu0 0.0
        %6217 = vmatpush1.msra.mxu0 0.0
        %6218 = vmatprep.subr.mxu0 0.0
        %6219 = vmatpush1.msra.mxu0 0.0
        %6220 = vmatprep.subr.mxu0 0.0
        %6221 = vmatpush1.msra.mxu0 0.0
        %6222 = vmatprep.subr.mxu0 0.0
        %6223 = vmatpush1.msra.mxu0 0.0
        %6224 = vmatprep.subr.mxu0 0.0
        %6225 = vmatpush1.msra.mxu0 0.0
        %6226 = vmatprep.subr.mxu0 0.0
        %6227 = vmatpush1.msra.mxu0 0.0
        %6228 = vmatprep.subr.mxu0 0.0
        %6229 = vmatpush1.msra.mxu0 0.0
        %6230 = vmatprep.mubr.f32.mxu0 0.0
        %v6231 = vand.u32 %v5825, 4294901760
        %6232 = vmatmul.mubr.f32.gmra.mrb[0].mxu0 %v6231
        %v6233 = vpop.f32.mrb[0].mxu0
        %v6234 = vadd.f32 %v6151, %v6233
        %v6235 = vpop.f32.mrb[0].mxu0
        %6236 = vdwg.mxu0
        %6237 = vmatprep.subr.mxu0 0.0
        %v6238 = vand.u32 %v5820, 4294901760
        %6239 = vmatpush1.msra.mxu0 %v6238
        %6240 = vmatprep.subr.mxu0 0.0
        %v6241 = vand.u32 %v5821, 4294901760
        %6242 = vmatpush1.msra.mxu0 %v6241
        %6243 = vmatprep.subr.mxu0 0.0
        %v6244 = vand.u32 %v5822, 4294901760
        %6245 = vmatpush1.msra.mxu0 %v6244
        %6246 = vmatprep.subr.mxu0 0.0
        %v6247 = vand.u32 %v5823, 4294901760
        %6248 = vmatpush1.msra.mxu0 %v6247
        %6249 = vmatprep.subr.mxu0 0.0
        %6250 = vmatpush1.msra.mxu0 0.0
        %6251 = vmatprep.subr.mxu0 0.0
        %6252 = vmatpush1.msra.mxu0 0.0
        %6253 = vmatprep.subr.mxu0 0.0
        %6254 = vmatpush1.msra.mxu0 0.0
        %6255 = vmatprep.subr.mxu0 0.0
        %6256 = vmatpush1.msra.mxu0 0.0
        %6257 = vmatprep.subr.mxu0 0.0
        %6258 = vmatpush1.msra.mxu0 0.0
        %6259 = vmatprep.subr.mxu0 0.0
        %6260 = vmatpush1.msra.mxu0 0.0
        %6261 = vmatprep.subr.mxu0 0.0
        %6262 = vmatpush1.msra.mxu0 0.0
        %6263 = vmatprep.subr.mxu0 0.0
        %6264 = vmatpush1.msra.mxu0 0.0
        %6265 = vmatprep.subr.mxu0 0.0
        %6266 = vmatpush1.msra.mxu0 0.0
        %6267 = vmatprep.subr.mxu0 0.0
        %6268 = vmatpush1.msra.mxu0 0.0
        %6269 = vmatprep.subr.mxu0 0.0
        %6270 = vmatpush1.msra.mxu0 0.0
        %6271 = vmatprep.subr.mxu0 0.0
        %6272 = vmatpush1.msra.mxu0 0.0
        %6273 = vmatprep.subr.mxu0 0.0
        %6274 = vmatpush1.msra.mxu0 0.0
        %6275 = vmatprep.subr.mxu0 0.0
        %6276 = vmatpush1.msra.mxu0 0.0
        %6277 = vmatprep.subr.mxu0 0.0
        %6278 = vmatpush1.msra.mxu0 0.0
        %6279 = vmatprep.subr.mxu0 0.0
        %6280 = vmatpush1.msra.mxu0 0.0
        %6281 = vmatprep.subr.mxu0 0.0
        %6282 = vmatpush1.msra.mxu0 0.0
        %6283 = vmatprep.subr.mxu0 0.0
        %6284 = vmatpush1.msra.mxu0 0.0
        %6285 = vmatprep.subr.mxu0 0.0
        %6286 = vmatpush1.msra.mxu0 0.0
        %6287 = vmatprep.subr.mxu0 0.0
        %6288 = vmatpush1.msra.mxu0 0.0
        %6289 = vmatprep.subr.mxu0 0.0
        %6290 = vmatpush1.msra.mxu0 0.0
        %6291 = vmatprep.subr.mxu0 0.0
        %6292 = vmatpush1.msra.mxu0 0.0
        %6293 = vmatprep.subr.mxu0 0.0
        %6294 = vmatpush1.msra.mxu0 0.0
        %6295 = vmatprep.subr.mxu0 0.0
        %6296 = vmatpush1.msra.mxu0 0.0
        %6297 = vmatprep.subr.mxu0 0.0
        %6298 = vmatpush1.msra.mxu0 0.0
        %6299 = vmatprep.subr.mxu0 0.0
        %6300 = vmatpush1.msra.mxu0 0.0
        %6301 = vmatprep.subr.mxu0 0.0
        %6302 = vmatpush1.msra.mxu0 0.0
        %6303 = vmatprep.subr.mxu0 0.0
        %6304 = vmatpush1.msra.mxu0 0.0
        %6305 = vmatprep.mubr.f32.mxu0 0.0
        %v6306 = vand.u32 %v5825, 4294901760
        %6307 = vmatmul.mubr.f32.gmra.mrb[0].mxu0 %v6306
        %v6308 = vpop.f32.mrb[0].mxu0
        %v6309 = vadd.f32 %v6234, %v6308
        %v6310 = vpop.f32.mrb[0].mxu0
        %6311 = vdwg.mxu0
        %v6312 = vadd.f32 %v5787, %v6309
        %v6313 = vadd.f32 %v6312, %v394
        %v6316 = vunpack.c.l.s4 1966171168
        %v6317 = vunpack.c.0.s8 %v6316
        %v6318 = vlaneseq
        %v6319 = vshrl.u32 %v6318, 7
        %v6320 = vsub.s32 %v6317, %v6319
        %v6321 = vrot.slane %v6313, %v6320
        %v6322 = vcombine.high %v6321, %v6321
        %v6324 = vunpack.c.l.s4 1966171168
        %v6325 = vunpack.c.0.s8 %v6324
        %v6326 = vlaneseq
        %v6327 = vshrl.u32 %v6326, 7
        %v6328 = vsub.s32 %v6325, %v6327
        %v6329 = vrot.slane %v6321, %v6328
        %v6331 = vunpack.c.l.s4 1966171168
        %v6332 = vunpack.c.0.s8 %v6331
        %v6333 = vlaneseq
        %v6334 = vshrl.u32 %v6333, 7
        %v6335 = vsub.s32 %v6332, %v6334
        %v6336 = vrot.slane %v6322, %v6335
        %v6337 = vlaneseq
        %v6338 = vshrl.u32 %v6337, 7
        %v6339 = vsub.s32 0, %v6338
        %v6340 = vrot.slane %v6329, %v6339
        %v6341 = vlaneseq
        %v6342 = vshrl.u32 %v6341, 7
        %v6343 = vsub.s32 0, %v6342
        %v6344 = vrot.slane %v6336, %v6343
        %v6347 = vmul.f32 %v1061, %v6340
        %v6348 = vmul.f32 %v1062, %v6344
        %v6349 = vsel %vm1131, %v6347, 0.0
        %6350 = vadd.xlane.f32.xlu0 %v6349
        %v6351 = vpop.xlane.xlu0 %6350
        %v6352 = vsel %vm1131, %v6348, 0.0
        %6353 = vadd.xlane.f32.xlu0 %v6352
        %v6354 = vpop.xlane.xlu0 %6353
        %v6355 = vadd.f32 %v3246, %v5785
        %v6356 = vxor.u32 %v6355, 2147483648
        %v6357 = vmul.f32 %v6356, 1.442695
        %v6358 = vpow.pop %v6357
        %v6359 = vadd.f32 %v6358, 1.0
        %v6360 = vrcp.pop %v6359
        %v6361 = vmul.f32 1.0, %v6360
        %v6362 = vmul.f32 %v6361, %v5815
        %v6363 = vmul.f32 %v3319, %v396
        %v6364 = vsel %vm3308, %v6363, 0.0
        %6365 = vadd.xlane.f32.xlu0 %v6364
        %v6366 = vpop.xlane.xlu0 %6365
        %v6367 = vmul.f32 %v6362, %v397
        %v6368 = vsel %vm5817, %v6367, 0.0
        %6369 = vadd.xlane.f32.xlu0 %v6368
        %v6370 = vpop.xlane.xlu0 %6369
        %v6371 = vadd.f32 %v6366, %v6370
        %v6372 = vadd.f32 %v6371, %v395
        %v6373 = vtanh.pop %v6372
        %6375 = vrot.lane.b32.xlu0 %v5814, 32
        %v6376 = vpop.permute.xlu0 %6375
        %6379 = vrot.lane.b32.xlu0 %v3415, 96
        %v6380 = vpop.permute.xlu0 %6379
        %6383 = vrot.lane.b32.xlu0 %v3319, 104
        %v6384 = vpop.permute.xlu0 %6383
        %v6388 = vadd.s32 %v3295, 4294967184
        %v6389 = vlaneseq
        %v6390 = vshrl.u32 %v6389, 7
        %v6391 = vsub.s32 %v6388, %v6390
        %v6392 = vrot.slane %v6351, %v6391
        %v6393 = vlaneseq
        %v6394 = vshrl.u32 %v6393, 7
        %v6395 = vsub.s32 %v6388, %v6394
        %v6396 = vrot.slane %v6354, %v6395
        %v6397 = vsel %vm3304, %v6396, %v6392
        %6400 = vrot.lane.b32.xlu0 %v6373, 120
        %v6401 = vpop.permute.xlu0 %6400
        %v6403 = vsel %vm1131, %v5816, %v6376
        %v6404 = vsel %vm410, %v6403, %v3456
        %v6405 = vsel %vm3532, %v6404, %v6380
        %vm6406 = vcmask 850944
        %v6407 = vsel %vm6406, %v6405, %v6384
        %vm6408 = vcmask 916480
        %v6409 = vsel %vm6408, %v6407, %v6397
        %vm6410 = vcmask 982016
        %v6411 = vsel %vm6410, %v6409, %v6401
        %vm6412 = vcmask 990208
        %v6413 = vsel %vm6412, %v6411, 0.0
        %6414 = vst [vmem:[%s374] sm:$0x3] %v6413
        %p6415 = scmp.lt.s32.totalorder %s22, 3
        %s6416 = scalar_select %p6415, %s22, 3
        %s6417 = smul.addr %s6416, 2
        %s6418 = scalar_lea.vmem %s9, %s6417
        // Predicated region
        $region73: #{self_monitoring_rollout.1} parent=55 // pred_check
          %p6419 = pneg %p234
        $region74: #{self_monitoring_rollout.1} parent=55 // pred_check_branch
          %6421 = sbr.rel (%p6419) target = $region76
        $region75: #{self_monitoring_rollout.1} parent=55 // pred_region
          _
        $region76: #{self_monitoring_rollout.1} parent=55 // pred_fallthru
          _
      $region56: #{self_monitoring_rollout.1} parent=5 // pred_fallthru
        _
      %p6422 = scmp.le.s32.totalorder 2, %s17
      // Predicated region
      $region77: #{self_monitoring_rollout.1} parent=5 // pred_check
        %p6423 = pneg %p6422
      $region78: #{self_monitoring_rollout.1} parent=5 // pred_check_branch
        %6425 = sbr.rel (%p6423) target = $region80
      $region79: #{self_monitoring_rollout.1} parent=5 // pred_region
        %s6426 = ssub.s32 %s17, 2
        // Predicated region
        $region81: #{self_monitoring_rollout.1} parent=79 // pred_check
          %p6427 = pneg %p240
        $region82: #{self_monitoring_rollout.1} parent=79 // pred_check_branch
          %6429 = sbr.rel (%p6427) target = $region84
        $region83: #{self_monitoring_rollout.1} parent=79 // pred_region
          %p6430 = scmp.lt.s32.totalorder %s23, 3
          %s6431 = scalar_select %p6430, %s23, 3
          %s6432 = smul.addr %s6431, 2
          %s6433 = scalar_lea.vmem %s9, %s6432
        $region84: #{self_monitoring_rollout.1} parent=79 // pred_fallthru
          _
      $region80: #{self_monitoring_rollout.1} parent=5 // pred_fallthru
        _
    $region6: #{self_monitoring_rollout.1} parent=1 // loop_footer
      %s21 = sadd.s32 1, %s17
    $region7: #{self_monitoring_rollout.1} parent=1 // loop_footer_branch
      %16 = sbr.rel target = $region3
    $region8: #{self_monitoring_rollout.1} parent=1 // loop_exit
      _
    %6434 = vsyncpa [#allocation5], 1
    %s6435 = scalar_lea.sflag [#allocation5], 1
    %6436 = vsyncpa %s6435, 1
    %6437 = vsyncpa [#allocation7], 1

</llo_original>
